<compile_context>
chip_gen: v6e
topology: v6e:2x2x1
jax: 0.10.0
libtpu: 0.0.40
codegen_flags: <defaults>
</compile_context>

<pallas_src>
import jax
import jax.numpy as jnp
from jax.experimental import pallas as pl
from jax.experimental.pallas import tpu as pltpu

I_DIM = 28 * 28
N_FEATURES = 3
O_DIM = 28 * 28

ENC_DIMS = [I_DIM, 784, 128, 64, 32, N_FEATURES]   # 5 Linear layers
DEC_DIMS = [N_FEATURES, 32, 64, 128, 784, O_DIM]   # 5 Linear layers
N_ENC = len(ENC_DIMS) - 1
N_DEC = len(DEC_DIMS) - 1
N_LAYERS = N_ENC + N_DEC                           # 10

LANE = 128
BF16_SUBLANE = 16      # bf16 packs 16 rows per vreg
ENC_PAD = LANE         # encoded output padded 3 -> 128 lanes (unmasked stores)
MAX_TM = 512           # batch-tile cap (VMEM use stays far under limit)


def _round_up(n, m):
    return ((n + m - 1) // m) * m


def _layer_dims():
    return list(zip(ENC_DIMS[:-1], ENC_DIMS[1:])) + list(zip(DEC_DIMS[:-1], DEC_DIMS[1:]))


def ae_kernel(x_ref, *refs):
    """Fused encoder+decoder forward for one (TM, 784) batch tile.

    refs = (w1, b1, ..., w10, b10, enc_out_ref, dec_out_ref).
    Weights are bf16 (in, out); biases fp32 (1, out); matmuls accumulate fp32.
    """
    param_refs = refs[: 2 * N_LAYERS]
    enc_out_ref = refs[2 * N_LAYERS]
    dec_out_ref = refs[2 * N_LAYERS + 1]

    # fp32 -> bf16 cast fused into the kernel (no extra wrapper HBM pass).
    h = x_ref[...].astype(jnp.bfloat16)

    for li in range(N_LAYERS):
        w = param_refs[2 * li][...]                  # bf16 (in, out)
        b = param_refs[2 * li + 1][...]              # fp32 (1, out)
        acc = jnp.dot(h, w, preferred_element_type=jnp.float32) + b
        if li == N_ENC - 1:
            # Encoder head: no ReLU.  Lanes 3..127 are exactly 0 because the
            # weight/bias were zero-padded, so the store is lane-dense & exact.
            enc_out_ref[...] = acc.astype(enc_out_ref.dtype)
            h = acc.astype(jnp.bfloat16)
        elif li == N_LAYERS - 1:
            # sigmoid(x) == 0.5 * tanh(0.5 * x) + 0.5 : single EUP transcendental.
            dec_out_ref[...] = (0.5 * jnp.tanh(0.5 * acc) + 0.5).astype(dec_out_ref.dtype)
        else:
            h = jnp.maximum(acc, 0.0).astype(jnp.bfloat16)


def init_params(key):
    """PyTorch nn.Linear-style init (U[-1/sqrt(fan_in), +1/sqrt(fan_in)]).

    Weights stored (in, out) so the kernel computes y = x @ W + b (== x @ W.T in torch).
    """
    params = []
    for fan_in, fan_out in _layer_dims():
        key, kw, kb = jax.random.split(key, 3)
        bound = 1.0 / jnp.sqrt(float(fan_in))
        w = jax.random.uniform(kw, (fan_in, fan_out), jnp.float32, -bound, bound)
        b = jax.random.uniform(kb, (1, fan_out), jnp.float32, -bound, bound)
        params.append((w, b))
    return params


def _choose_tm(batch):
    # >= 2 grid steps whenever the batch allows it (both v7x TCs get work),
    # large tiles for big batches on v5e/v6e, rounded to 16 for bf16 sublanes.
    half = _round_up(max((batch + 1) // 2, 1), BF16_SUBLANE)
    return max(BF16_SUBLANE, min(MAX_TM, half))


@jax.jit
def ae_forward(x, params):
    batch = x.shape[0]
    tm = _choose_tm(batch)
    padded_batch = _round_up(batch, tm)
    grid = (padded_batch // tm,)

    xb = x if padded_batch == batch else jnp.pad(x, ((0, padded_batch - batch), (0, 0)))

    flat = []
    in_specs = [pl.BlockSpec((tm, I_DIM), lambda i: (i, 0))]
    for li, ((w, b), (fi, fo)) in enumerate(zip(params, _layer_dims())):
        wi, wo = fi, fo
        if li == N_ENC - 1:          # encoder head: pad out dim 3 -> 128 with zeros
            wo = ENC_PAD
        if li == N_ENC:              # decoder first layer: pad in dim 3 -> 128 with zeros
            wi = ENC_PAD
        wp = w if (wi, wo) == (fi, fo) else jnp.pad(w, ((0, wi - fi), (0, wo - fo)))
        bp = b if wo == fo else jnp.pad(b, ((0, 0), (0, wo - fo)))
        flat.append(wp.astype(jnp.bfloat16))         # bf16 weights for the MXU
        flat.append(bp.astype(jnp.float32))          # fp32 biases
        # Constant index_map -> DMA'd once, VMEM-resident; single buffer (no
        # pointless double-buffering of static parameters).
        in_specs.append(pl.BlockSpec((wi, wo), lambda i: (0, 0),
                                     pipeline_mode=pl.Buffered(1)))
        in_specs.append(pl.BlockSpec((1, wo), lambda i: (0, 0),
                                     pipeline_mode=pl.Buffered(1)))

    encoded, decoded = pl.pallas_call(
        ae_kernel,
        out_shape=(
            jax.ShapeDtypeStruct((padded_batch, ENC_PAD), jnp.float32),
            jax.ShapeDtypeStruct((padded_batch, O_DIM), jnp.float32),
        ),
        grid=grid,
        in_specs=in_specs,
        out_specs=(
            pl.BlockSpec((tm, ENC_PAD), lambda i: (i, 0)),
            pl.BlockSpec((tm, O_DIM), lambda i: (i, 0)),
        ),
        compiler_params=pltpu.CompilerParams(
            dimension_semantics=("parallel",),   # batch tiles shard across TCs on v7x
            vmem_limit_bytes=32 << 20,           # fits v7x's 64 MiB physical VMEM
        ),
    )(xb, *flat)

    # Strip batch padding and the 3->128 lane padding of the encoded head.
    return encoded[:batch, :N_FEATURES], decoded[:batch]


def ae_forward_ref(x, params):
    """Exact fp32 pure-JAX reference (PyTorch-equivalent semantics)."""
    h = x
    for li, (w, b) in enumerate(params[:N_ENC]):
        h = h @ w + b
        if li < N_ENC - 1:
            h = jnp.maximum(h, 0.0)
    encoded = h
    h = encoded
    for li, (w, b) in enumerate(params[N_ENC:]):
        h = h @ w + b
        if li < N_DEC - 1:
            h = jnp.maximum(h, 0.0)
        else:
            h = jax.nn.sigmoid(h)
    return encoded, h


def ae_forward_ref_bf16(x, params):
    """Reference using the same bf16-matmul / fp32-accumulate arithmetic as the kernel."""
    h = x.astype(jnp.bfloat16)
    encoded = decoded = None
    for li, (w, b) in enumerate(params):
        acc = jnp.dot(h, w.astype(jnp.bfloat16), preferred_element_type=jnp.float32) + b
        if li == N_ENC - 1:
            encoded = acc
            h = acc.astype(jnp.bfloat16)
        elif li == N_LAYERS - 1:
            decoded = jax.nn.sigmoid(acc)
        else:
            h = jnp.maximum(acc, 0.0).astype(jnp.bfloat16)
    return encoded, decoded


if __name__ == "__main__":
    key = jax.random.PRNGKey(0)
    key, kx = jax.random.split(key)

    batch = 8
    x = jax.random.normal(kx, (batch, I_DIM), jnp.float32)
    params = init_params(key)

    encoded, decoded = ae_forward(x, params)
    jax.block_until_ready((encoded, decoded))

    assert encoded.shape == (batch, N_FEATURES)
    assert decoded.shape == (batch, O_DIM)

    # Strict check against a reference doing the same bf16/fp32 arithmetic.
    enc_bf, dec_bf = ae_forward_ref_bf16(x, params)
    assert jnp.allclose(encoded, enc_bf, atol=5e-3, rtol=5e-3)
    assert jnp.allclose(decoded, dec_bf, atol=5e-3, rtol=5e-3)

    # Loose check against the exact fp32 (PyTorch-equivalent) reference.
    enc_f32, dec_f32 = ae_forward_ref(x, params)
    assert jnp.allclose(encoded, enc_f32, atol=5e-2, rtol=5e-2)
    assert jnp.allclose(decoded, dec_f32, atol=5e-2, rtol=5e-2)

    print("KERNEL_OK")
</pallas_src>

<mosaic_0001>
module attributes {stable_mosaic.version = 11 : i64} {
  func.func @ae_kernel(%arg0: i32, %arg1: memref<16x784xf32, #tpu.memory_space<vmem>>, %arg2: memref<784x784xbf16, #tpu.memory_space<vmem>>, %arg3: memref<1x784xf32, #tpu.memory_space<vmem>>, %arg4: memref<784x128xbf16, #tpu.memory_space<vmem>>, %arg5: memref<1x128xf32, #tpu.memory_space<vmem>>, %arg6: memref<128x64xbf16, #tpu.memory_space<vmem>>, %arg7: memref<1x64xf32, #tpu.memory_space<vmem>>, %arg8: memref<64x32xbf16, #tpu.memory_space<vmem>>, %arg9: memref<1x32xf32, #tpu.memory_space<vmem>>, %arg10: memref<32x128xbf16, #tpu.memory_space<vmem>>, %arg11: memref<1x128xf32, #tpu.memory_space<vmem>>, %arg12: memref<128x32xbf16, #tpu.memory_space<vmem>>, %arg13: memref<1x32xf32, #tpu.memory_space<vmem>>, %arg14: memref<32x64xbf16, #tpu.memory_space<vmem>>, %arg15: memref<1x64xf32, #tpu.memory_space<vmem>>, %arg16: memref<64x128xbf16, #tpu.memory_space<vmem>>, %arg17: memref<1x128xf32, #tpu.memory_space<vmem>>, %arg18: memref<128x784xbf16, #tpu.memory_space<vmem>>, %arg19: memref<1x784xf32, #tpu.memory_space<vmem>>, %arg20: memref<784x784xbf16, #tpu.memory_space<vmem>>, %arg21: memref<1x784xf32, #tpu.memory_space<vmem>>, %arg22: memref<16x128xf32, #tpu.memory_space<vmem>>, %arg23: memref<16x784xf32, #tpu.memory_space<vmem>>) attributes {dimension_semantics = [#tpu.dimension_semantics<parallel>], iteration_bounds = array<i64: 1>, scalar_prefetch = 0 : i64, scratch_operands = 0 : i64, tpu.core_type = #tpu.core_type<tc>, window_params = [{transform_indices = @transform_0, window_bounds = array<i64: 16, 784>}, {pipeline_mode = #tpu.pipeline_mode<synchronous>, transform_indices = @transform_1, window_bounds = array<i64: 784, 784>}, {pipeline_mode = #tpu.pipeline_mode<synchronous>, transform_indices = @transform_2, window_bounds = array<i64: 1, 784>}, {pipeline_mode = #tpu.pipeline_mode<synchronous>, transform_indices = @transform_3, window_bounds = array<i64: 784, 128>}, {pipeline_mode = #tpu.pipeline_mode<synchronous>, transform_indices = @transform_4, window_bounds = array<i64: 1, 128>}, {pipeline_mode = #tpu.pipeline_mode<synchronous>, transform_indices = @transform_5, window_bounds = array<i64: 128, 64>}, {pipeline_mode = #tpu.pipeline_mode<synchronous>, transform_indices = @transform_6, window_bounds = array<i64: 1, 64>}, {pipeline_mode = #tpu.pipeline_mode<synchronous>, transform_indices = @transform_7, window_bounds = array<i64: 64, 32>}, {pipeline_mode = #tpu.pipeline_mode<synchronous>, transform_indices = @transform_8, window_bounds = array<i64: 1, 32>}, {pipeline_mode = #tpu.pipeline_mode<synchronous>, transform_indices = @transform_9, window_bounds = array<i64: 32, 128>}, {pipeline_mode = #tpu.pipeline_mode<synchronous>, transform_indices = @transform_10, window_bounds = array<i64: 1, 128>}, {pipeline_mode = #tpu.pipeline_mode<synchronous>, transform_indices = @transform_11, window_bounds = array<i64: 128, 32>}, {pipeline_mode = #tpu.pipeline_mode<synchronous>, transform_indices = @transform_12, window_bounds = array<i64: 1, 32>}, {pipeline_mode = #tpu.pipeline_mode<synchronous>, transform_indices = @transform_13, window_bounds = array<i64: 32, 64>}, {pipeline_mode = #tpu.pipeline_mode<synchronous>, transform_indices = @transform_14, window_bounds = array<i64: 1, 64>}, {pipeline_mode = #tpu.pipeline_mode<synchronous>, transform_indices = @transform_15, window_bounds = array<i64: 64, 128>}, {pipeline_mode = #tpu.pipeline_mode<synchronous>, transform_indices = @transform_16, window_bounds = array<i64: 1, 128>}, {pipeline_mode = #tpu.pipeline_mode<synchronous>, transform_indices = @transform_17, window_bounds = array<i64: 128, 784>}, {pipeline_mode = #tpu.pipeline_mode<synchronous>, transform_indices = @transform_18, window_bounds = array<i64: 1, 784>}, {pipeline_mode = #tpu.pipeline_mode<synchronous>, transform_indices = @transform_19, window_bounds = array<i64: 784, 784>}, {pipeline_mode = #tpu.pipeline_mode<synchronous>, transform_indices = @transform_20, window_bounds = array<i64: 1, 784>}, {transform_indices = @transform_21, window_bounds = array<i64: 16, 128>}, {transform_indices = @transform_22, window_bounds = array<i64: 16, 784>}]} {
    %c0 = arith.constant 0 : index
    %c0_0 = arith.constant 0 : index
    %0 = vector.load %arg1[%c0, %c0_0] : memref<16x784xf32, #tpu.memory_space<vmem>>, vector<16x784xf32>
    %1 = arith.truncf %0 : vector<16x784xf32> to vector<16x784xbf16>
    %c0_1 = arith.constant 0 : index
    %c0_2 = arith.constant 0 : index
    %2 = vector.load %arg2[%c0_1, %c0_2] : memref<784x784xbf16, #tpu.memory_space<vmem>>, vector<784x784xbf16>
    %c0_3 = arith.constant 0 : index
    %c0_4 = arith.constant 0 : index
    %3 = vector.load %arg3[%c0_3, %c0_4] : memref<1x784xf32, #tpu.memory_space<vmem>>, vector<1x784xf32>
    %cst = arith.constant dense<0.000000e+00> : vector<16x784xf32>
    %4 = tpu.matmul %1, %2, %cst {dimension_numbers = #tpu.dot_dimension_numbers<[1], [0], [0], [1], [0, 0, 1, 1], [], []>} : vector<16x784xbf16>, vector<784x784xbf16>, vector<16x784xf32> -> vector<16x784xf32>
    %5 = vector.broadcast %3 : vector<1x784xf32> to vector<16x784xf32>
    %6 = arith.addf %4, %5 : vector<16x784xf32>
    %cst_5 = arith.constant 0.000000e+00 : f32
    %7 = vector.broadcast %cst_5 : f32 to vector<16x784xf32>
    %8 = arith.maximumf %6, %7 : vector<16x784xf32>
    %9 = arith.truncf %8 : vector<16x784xf32> to vector<16x784xbf16>
    %c0_6 = arith.constant 0 : index
    %c0_7 = arith.constant 0 : index
    %10 = vector.load %arg4[%c0_6, %c0_7] : memref<784x128xbf16, #tpu.memory_space<vmem>>, vector<784x128xbf16>
    %c0_8 = arith.constant 0 : index
    %c0_9 = arith.constant 0 : index
    %11 = vector.load %arg5[%c0_8, %c0_9] : memref<1x128xf32, #tpu.memory_space<vmem>>, vector<1x128xf32>
    %cst_10 = arith.constant dense<0.000000e+00> : vector<16x128xf32>
    %12 = tpu.matmul %9, %10, %cst_10 {dimension_numbers = #tpu.dot_dimension_numbers<[1], [0], [0], [1], [0, 0, 1, 1], [], []>} : vector<16x784xbf16>, vector<784x128xbf16>, vector<16x128xf32> -> vector<16x128xf32>
    %13 = vector.broadcast %11 : vector<1x128xf32> to vector<16x128xf32>
    %14 = arith.addf %12, %13 : vector<16x128xf32>
    %cst_11 = arith.constant 0.000000e+00 : f32
    %15 = vector.broadcast %cst_11 : f32 to vector<16x128xf32>
    %16 = arith.maximumf %14, %15 : vector<16x128xf32>
    %17 = arith.truncf %16 : vector<16x128xf32> to vector<16x128xbf16>
    %c0_12 = arith.constant 0 : index
    %c0_13 = arith.constant 0 : index
    %18 = vector.load %arg6[%c0_12, %c0_13] : memref<128x64xbf16, #tpu.memory_space<vmem>>, vector<128x64xbf16>
    %c0_14 = arith.constant 0 : index
    %c0_15 = arith.constant 0 : index
    %19 = vector.load %arg7[%c0_14, %c0_15] : memref<1x64xf32, #tpu.memory_space<vmem>>, vector<1x64xf32>
    %cst_16 = arith.constant dense<0.000000e+00> : vector<16x64xf32>
    %20 = tpu.matmul %17, %18, %cst_16 {dimension_numbers = #tpu.dot_dimension_numbers<[1], [0], [0], [1], [0, 0, 1, 1], [], []>} : vector<16x128xbf16>, vector<128x64xbf16>, vector<16x64xf32> -> vector<16x64xf32>
    %21 = vector.broadcast %19 : vector<1x64xf32> to vector<16x64xf32>
    %22 = arith.addf %20, %21 : vector<16x64xf32>
    %cst_17 = arith.constant 0.000000e+00 : f32
    %23 = vector.broadcast %cst_17 : f32 to vector<16x64xf32>
    %24 = arith.maximumf %22, %23 : vector<16x64xf32>
    %25 = arith.truncf %24 : vector<16x64xf32> to vector<16x64xbf16>
    %c0_18 = arith.constant 0 : index
    %c0_19 = arith.constant 0 : index
    %26 = vector.load %arg8[%c0_18, %c0_19] : memref<64x32xbf16, #tpu.memory_space<vmem>>, vector<64x32xbf16>
    %c0_20 = arith.constant 0 : index
    %c0_21 = arith.constant 0 : index
    %27 = vector.load %arg9[%c0_20, %c0_21] : memref<1x32xf32, #tpu.memory_space<vmem>>, vector<1x32xf32>
    %cst_22 = arith.constant dense<0.000000e+00> : vector<16x32xf32>
    %28 = tpu.matmul %25, %26, %cst_22 {dimension_numbers = #tpu.dot_dimension_numbers<[1], [0], [0], [1], [0, 0, 1, 1], [], []>} : vector<16x64xbf16>, vector<64x32xbf16>, vector<16x32xf32> -> vector<16x32xf32>
    %29 = vector.broadcast %27 : vector<1x32xf32> to vector<16x32xf32>
    %30 = arith.addf %28, %29 : vector<16x32xf32>
    %cst_23 = arith.constant 0.000000e+00 : f32
    %31 = vector.broadcast %cst_23 : f32 to vector<16x32xf32>
    %32 = arith.maximumf %30, %31 : vector<16x32xf32>
    %33 = arith.truncf %32 : vector<16x32xf32> to vector<16x32xbf16>
    %c0_24 = arith.constant 0 : index
    %c0_25 = arith.constant 0 : index
    %34 = vector.load %arg10[%c0_24, %c0_25] : memref<32x128xbf16, #tpu.memory_space<vmem>>, vector<32x128xbf16>
    %c0_26 = arith.constant 0 : index
    %c0_27 = arith.constant 0 : index
    %35 = vector.load %arg11[%c0_26, %c0_27] : memref<1x128xf32, #tpu.memory_space<vmem>>, vector<1x128xf32>
    %cst_28 = arith.constant dense<0.000000e+00> : vector<16x128xf32>
    %36 = tpu.matmul %33, %34, %cst_28 {dimension_numbers = #tpu.dot_dimension_numbers<[1], [0], [0], [1], [0, 0, 1, 1], [], []>} : vector<16x32xbf16>, vector<32x128xbf16>, vector<16x128xf32> -> vector<16x128xf32>
    %37 = vector.broadcast %35 : vector<1x128xf32> to vector<16x128xf32>
    %38 = arith.addf %36, %37 : vector<16x128xf32>
    %c0_29 = arith.constant 0 : index
    %c0_30 = arith.constant 0 : index
    %39 = vector.load %arg22[%c0_29, %c0_30] : memref<16x128xf32, #tpu.memory_space<vmem>>, vector<16x128xf32>
    tpu.vector_store %arg22[%c0_29, %c0_30], %38 {strides = array<i32>} : memref<16x128xf32, #tpu.memory_space<vmem>>, vector<16x128xf32>,
    %40 = arith.truncf %38 : vector<16x128xf32> to vector<16x128xbf16>
    %c0_31 = arith.constant 0 : index
    %c0_32 = arith.constant 0 : index
    %41 = vector.load %arg12[%c0_31, %c0_32] : memref<128x32xbf16, #tpu.memory_space<vmem>>, vector<128x32xbf16>
    %c0_33 = arith.constant 0 : index
    %c0_34 = arith.constant 0 : index
    %42 = vector.load %arg13[%c0_33, %c0_34] : memref<1x32xf32, #tpu.memory_space<vmem>>, vector<1x32xf32>
    %cst_35 = arith.constant dense<0.000000e+00> : vector<16x32xf32>
    %43 = tpu.matmul %40, %41, %cst_35 {dimension_numbers = #tpu.dot_dimension_numbers<[1], [0], [0], [1], [0, 0, 1, 1], [], []>} : vector<16x128xbf16>, vector<128x32xbf16>, vector<16x32xf32> -> vector<16x32xf32>
    %44 = vector.broadcast %42 : vector<1x32xf32> to vector<16x32xf32>
    %45 = arith.addf %43, %44 : vector<16x32xf32>
    %cst_36 = arith.constant 0.000000e+00 : f32
    %46 = vector.broadcast %cst_36 : f32 to vector<16x32xf32>
    %47 = arith.maximumf %45, %46 : vector<16x32xf32>
    %48 = arith.truncf %47 : vector<16x32xf32> to vector<16x32xbf16>
    %c0_37 = arith.constant 0 : index
    %c0_38 = arith.constant 0 : index
    %49 = vector.load %arg14[%c0_37, %c0_38] : memref<32x64xbf16, #tpu.memory_space<vmem>>, vector<32x64xbf16>
    %c0_39 = arith.constant 0 : index
    %c0_40 = arith.constant 0 : index
    %50 = vector.load %arg15[%c0_39, %c0_40] : memref<1x64xf32, #tpu.memory_space<vmem>>, vector<1x64xf32>
    %cst_41 = arith.constant dense<0.000000e+00> : vector<16x64xf32>
    %51 = tpu.matmul %48, %49, %cst_41 {dimension_numbers = #tpu.dot_dimension_numbers<[1], [0], [0], [1], [0, 0, 1, 1], [], []>} : vector<16x32xbf16>, vector<32x64xbf16>, vector<16x64xf32> -> vector<16x64xf32>
    %52 = vector.broadcast %50 : vector<1x64xf32> to vector<16x64xf32>
    %53 = arith.addf %51, %52 : vector<16x64xf32>
    %cst_42 = arith.constant 0.000000e+00 : f32
    %54 = vector.broadcast %cst_42 : f32 to vector<16x64xf32>
    %55 = arith.maximumf %53, %54 : vector<16x64xf32>
    %56 = arith.truncf %55 : vector<16x64xf32> to vector<16x64xbf16>
    %c0_43 = arith.constant 0 : index
    %c0_44 = arith.constant 0 : index
    %57 = vector.load %arg16[%c0_43, %c0_44] : memref<64x128xbf16, #tpu.memory_space<vmem>>, vector<64x128xbf16>
    %c0_45 = arith.constant 0 : index
    %c0_46 = arith.constant 0 : index
    %58 = vector.load %arg17[%c0_45, %c0_46] : memref<1x128xf32, #tpu.memory_space<vmem>>, vector<1x128xf32>
    %cst_47 = arith.constant dense<0.000000e+00> : vector<16x128xf32>
    %59 = tpu.matmul %56, %57, %cst_47 {dimension_numbers = #tpu.dot_dimension_numbers<[1], [0], [0], [1], [0, 0, 1, 1], [], []>} : vector<16x64xbf16>, vector<64x128xbf16>, vector<16x128xf32> -> vector<16x128xf32>
    %60 = vector.broadcast %58 : vector<1x128xf32> to vector<16x128xf32>
    %61 = arith.addf %59, %60 : vector<16x128xf32>
    %cst_48 = arith.constant 0.000000e+00 : f32
    %62 = vector.broadcast %cst_48 : f32 to vector<16x128xf32>
    %63 = arith.maximumf %61, %62 : vector<16x128xf32>
    %64 = arith.truncf %63 : vector<16x128xf32> to vector<16x128xbf16>
    %c0_49 = arith.constant 0 : index
    %c0_50 = arith.constant 0 : index
    %65 = vector.load %arg18[%c0_49, %c0_50] : memref<128x784xbf16, #tpu.memory_space<vmem>>, vector<128x784xbf16>
    %c0_51 = arith.constant 0 : index
    %c0_52 = arith.constant 0 : index
    %66 = vector.load %arg19[%c0_51, %c0_52] : memref<1x784xf32, #tpu.memory_space<vmem>>, vector<1x784xf32>
    %cst_53 = arith.constant dense<0.000000e+00> : vector<16x784xf32>
    %67 = tpu.matmul %64, %65, %cst_53 {dimension_numbers = #tpu.dot_dimension_numbers<[1], [0], [0], [1], [0, 0, 1, 1], [], []>} : vector<16x128xbf16>, vector<128x784xbf16>, vector<16x784xf32> -> vector<16x784xf32>
    %68 = vector.broadcast %66 : vector<1x784xf32> to vector<16x784xf32>
    %69 = arith.addf %67, %68 : vector<16x784xf32>
    %cst_54 = arith.constant 0.000000e+00 : f32
    %70 = vector.broadcast %cst_54 : f32 to vector<16x784xf32>
    %71 = arith.maximumf %69, %70 : vector<16x784xf32>
    %72 = arith.truncf %71 : vector<16x784xf32> to vector<16x784xbf16>
    %c0_55 = arith.constant 0 : index
    %c0_56 = arith.constant 0 : index
    %73 = vector.load %arg20[%c0_55, %c0_56] : memref<784x784xbf16, #tpu.memory_space<vmem>>, vector<784x784xbf16>
    %c0_57 = arith.constant 0 : index
    %c0_58 = arith.constant 0 : index
    %74 = vector.load %arg21[%c0_57, %c0_58] : memref<1x784xf32, #tpu.memory_space<vmem>>, vector<1x784xf32>
    %cst_59 = arith.constant dense<0.000000e+00> : vector<16x784xf32>
    %75 = tpu.matmul %72, %73, %cst_59 {dimension_numbers = #tpu.dot_dimension_numbers<[1], [0], [0], [1], [0, 0, 1, 1], [], []>} : vector<16x784xbf16>, vector<784x784xbf16>, vector<16x784xf32> -> vector<16x784xf32>
    %76 = vector.broadcast %74 : vector<1x784xf32> to vector<16x784xf32>
    %77 = arith.addf %75, %76 : vector<16x784xf32>
    %cst_60 = arith.constant 5.000000e-01 : f32
    %78 = vector.broadcast %cst_60 : f32 to vector<16x784xf32>
    %79 = arith.mulf %78, %77 : vector<16x784xf32>
    %80 = math.tanh %79 : vector<16x784xf32>
    %cst_61 = arith.constant 5.000000e-01 : f32
    %81 = vector.broadcast %cst_61 : f32 to vector<16x784xf32>
    %82 = arith.mulf %81, %80 : vector<16x784xf32>
    %cst_62 = arith.constant 5.000000e-01 : f32
    %83 = vector.broadcast %cst_62 : f32 to vector<16x784xf32>
    %84 = arith.addf %82, %83 : vector<16x784xf32>
    %c0_63 = arith.constant 0 : index
    %c0_64 = arith.constant 0 : index
    %85 = vector.load %arg23[%c0_63, %c0_64] : memref<16x784xf32, #tpu.memory_space<vmem>>, vector<16x784xf32>
    tpu.vector_store %arg23[%c0_63, %c0_64], %84 {strides = array<i32>} : memref<16x784xf32, #tpu.memory_space<vmem>>, vector<16x784xf32>,
    return
  }
  func.func @transform_0(%arg0: i32) -> (i32, i32) {
    %c0_i32 = arith.constant 0 : i32
    %c0_i32_0 = arith.constant 0 : i32
    return %arg0, %c0_i32 : i32, i32
  }
  func.func @transform_1(%arg0: i32) -> (i32, i32) {
    %c0_i32 = arith.constant 0 : i32
    %c0_i32_0 = arith.constant 0 : i32
    %c0_i32_1 = arith.constant 0 : i32
    return %c0_i32, %c0_i32_0 : i32, i32
  }
  func.func @transform_2(%arg0: i32) -> (i32, i32) {
    %c0_i32 = arith.constant 0 : i32
    %c0_i32_0 = arith.constant 0 : i32
    %c0_i32_1 = arith.constant 0 : i32
    return %c0_i32, %c0_i32_0 : i32, i32
  }
  func.func @transform_3(%arg0: i32) -> (i32, i32) {
    %c0_i32 = arith.constant 0 : i32
    %c0_i32_0 = arith.constant 0 : i32
    %c0_i32_1 = arith.constant 0 : i32
    return %c0_i32, %c0_i32_0 : i32, i32
  }
  func.func @transform_4(%arg0: i32) -> (i32, i32) {
    %c0_i32 = arith.constant 0 : i32
    %c0_i32_0 = arith.constant 0 : i32
    %c0_i32_1 = arith.constant 0 : i32
    return %c0_i32, %c0_i32_0 : i32, i32
  }
  func.func @transform_5(%arg0: i32) -> (i32, i32) {
    %c0_i32 = arith.constant 0 : i32
    %c0_i32_0 = arith.constant 0 : i32
    %c0_i32_1 = arith.constant 0 : i32
    return %c0_i32, %c0_i32_0 : i32, i32
  }
  func.func @transform_6(%arg0: i32) -> (i32, i32) {
    %c0_i32 = arith.constant 0 : i32
    %c0_i32_0 = arith.constant 0 : i32
    %c0_i32_1 = arith.constant 0 : i32
    return %c0_i32, %c0_i32_0 : i32, i32
  }
  func.func @transform_7(%arg0: i32) -> (i32, i32) {
    %c0_i32 = arith.constant 0 : i32
    %c0_i32_0 = arith.constant 0 : i32
    %c0_i32_1 = arith.constant 0 : i32
    return %c0_i32, %c0_i32_0 : i32, i32
  }
  func.func @transform_8(%arg0: i32) -> (i32, i32) {
    %c0_i32 = arith.constant 0 : i32
    %c0_i32_0 = arith.constant 0 : i32
    %c0_i32_1 = arith.constant 0 : i32
    return %c0_i32, %c0_i32_0 : i32, i32
  }
  func.func @transform_9(%arg0: i32) -> (i32, i32) {
    %c0_i32 = arith.constant 0 : i32
    %c0_i32_0 = arith.constant 0 : i32
    %c0_i32_1 = arith.constant 0 : i32
    return %c0_i32, %c0_i32_0 : i32, i32
  }
  func.func @transform_10(%arg0: i32) -> (i32, i32) {
    %c0_i32 = arith.constant 0 : i32
    %c0_i32_0 = arith.constant 0 : i32
    %c0_i32_1 = arith.constant 0 : i32
    return %c0_i32, %c0_i32_0 : i32, i32
  }
  func.func @transform_11(%arg0: i32) -> (i32, i32) {
    %c0_i32 = arith.constant 0 : i32
    %c0_i32_0 = arith.constant 0 : i32
    %c0_i32_1 = arith.constant 0 : i32
    return %c0_i32, %c0_i32_0 : i32, i32
  }
  func.func @transform_12(%arg0: i32) -> (i32, i32) {
    %c0_i32 = arith.constant 0 : i32
    %c0_i32_0 = arith.constant 0 : i32
    %c0_i32_1 = arith.constant 0 : i32
    return %c0_i32, %c0_i32_0 : i32, i32
  }
  func.func @transform_13(%arg0: i32) -> (i32, i32) {
    %c0_i32 = arith.constant 0 : i32
    %c0_i32_0 = arith.constant 0 : i32
    %c0_i32_1 = arith.constant 0 : i32
    return %c0_i32, %c0_i32_0 : i32, i32
  }
  func.func @transform_14(%arg0: i32) -> (i32, i32) {
    %c0_i32 = arith.constant 0 : i32
    %c0_i32_0 = arith.constant 0 : i32
    %c0_i32_1 = arith.constant 0 : i32
    return %c0_i32, %c0_i32_0 : i32, i32
  }
  func.func @transform_15(%arg0: i32) -> (i32, i32) {
    %c0_i32 = arith.constant 0 : i32
    %c0_i32_0 = arith.constant 0 : i32
    %c0_i32_1 = arith.constant 0 : i32
    return %c0_i32, %c0_i32_0 : i32, i32
  }
  func.func @transform_16(%arg0: i32) -> (i32, i32) {
    %c0_i32 = arith.constant 0 : i32
    %c0_i32_0 = arith.constant 0 : i32
    %c0_i32_1 = arith.constant 0 : i32
    return %c0_i32, %c0_i32_0 : i32, i32
  }
  func.func @transform_17(%arg0: i32) -> (i32, i32) {
    %c0_i32 = arith.constant 0 : i32
    %c0_i32_0 = arith.constant 0 : i32
    %c0_i32_1 = arith.constant 0 : i32
    return %c0_i32, %c0_i32_0 : i32, i32
  }
  func.func @transform_18(%arg0: i32) -> (i32, i32) {
    %c0_i32 = arith.constant 0 : i32
    %c0_i32_0 = arith.constant 0 : i32
    %c0_i32_1 = arith.constant 0 : i32
    return %c0_i32, %c0_i32_0 : i32, i32
  }
  func.func @transform_19(%arg0: i32) -> (i32, i32) {
    %c0_i32 = arith.constant 0 : i32
    %c0_i32_0 = arith.constant 0 : i32
    %c0_i32_1 = arith.constant 0 : i32
    return %c0_i32, %c0_i32_0 : i32, i32
  }
  func.func @transform_20(%arg0: i32) -> (i32, i32) {
    %c0_i32 = arith.constant 0 : i32
    %c0_i32_0 = arith.constant 0 : i32
    %c0_i32_1 = arith.constant 0 : i32
    return %c0_i32, %c0_i32_0 : i32, i32
  }
  func.func @transform_21(%arg0: i32) -> (i32, i32) {
    %c0_i32 = arith.constant 0 : i32
    %c0_i32_0 = arith.constant 0 : i32
    return %arg0, %c0_i32 : i32, i32
  }
  func.func @transform_22(%arg0: i32) -> (i32, i32) {
    %c0_i32 = arith.constant 0 : i32
    %c0_i32_0 = arith.constant 0 : i32
    return %arg0, %c0_i32 : i32, i32
  }
}

</mosaic_0001>

<llo_original>
// kernel: ae_forward.1
$region0: #{ae_forward.1}
  #allocation0 [shape = 'u32[]', space=smem, size = 0x4, offset = 0x4, fixed_abs, tag = 'smem constant byte address 0x4 - core index']
  #allocation1 [shape = 'u32[144,128]{1,0:T(1,128)}', space=vmem, size = 0x12000, scoped, tag = 'internal scratch']
  %s0 = inlined_call_operand.vmem [shape: f32[16,784], index: 0, kind: input, shape index: {}]
  %s1 = inlined_call_operand.vmem [shape: bf16[784,784], index: 1, kind: input, shape index: {}]
  %s2 = inlined_call_operand.vmem [shape: f32[1,784], index: 2, kind: input, shape index: {}]
  %s3 = inlined_call_operand.vmem [shape: bf16[784,128], index: 3, kind: input, shape index: {}]
  %s4 = inlined_call_operand.vmem [shape: f32[1,128], index: 4, kind: input, shape index: {}]
  %s5 = inlined_call_operand.vmem [shape: bf16[128,64], index: 5, kind: input, shape index: {}]
  %s6 = inlined_call_operand.vmem [shape: f32[1,64], index: 6, kind: input, shape index: {}]
  %s7 = inlined_call_operand.vmem [shape: bf16[64,32], index: 7, kind: input, shape index: {}]
  %s8 = inlined_call_operand.vmem [shape: f32[1,32], index: 8, kind: input, shape index: {}]
  %s9 = inlined_call_operand.vmem [shape: bf16[32,128], index: 9, kind: input, shape index: {}]
  %s10 = inlined_call_operand.vmem [shape: f32[1,128], index: 10, kind: input, shape index: {}]
  %s11 = inlined_call_operand.vmem [shape: bf16[128,32], index: 11, kind: input, shape index: {}]
  %s12 = inlined_call_operand.vmem [shape: f32[1,32], index: 12, kind: input, shape index: {}]
  %s13 = inlined_call_operand.vmem [shape: bf16[32,64], index: 13, kind: input, shape index: {}]
  %s14 = inlined_call_operand.vmem [shape: f32[1,64], index: 14, kind: input, shape index: {}]
  %s15 = inlined_call_operand.vmem [shape: bf16[64,128], index: 15, kind: input, shape index: {}]
  %s16 = inlined_call_operand.vmem [shape: f32[1,128], index: 16, kind: input, shape index: {}]
  %s17 = inlined_call_operand.vmem [shape: bf16[128,784], index: 17, kind: input, shape index: {}]
  %s18 = inlined_call_operand.vmem [shape: f32[1,784], index: 18, kind: input, shape index: {}]
  %s19 = inlined_call_operand.vmem [shape: bf16[784,784], index: 19, kind: input, shape index: {}]
  %s20 = inlined_call_operand.vmem [shape: f32[1,784], index: 20, kind: input, shape index: {}]
  %s21 = inlined_call_operand.vmem [shape: f32[16,128], index: 21, kind: output, shape index: {0}]
  %s22 = inlined_call_operand.vmem [shape: f32[16,784], index: 22, kind: output, shape index: {1}]
  %23 = xla_tuple %s21, %s22
  %s24 = sld [smem:[#allocation0]]
  $region102: #{ae_forward.1} parent=0
    _
  %s26 = ssub.s32 1, %s24
  %s27 = scalar_select 0, %s26, %s24
  // Predicated region
  $region2: #{ae_forward.1} parent=0 // pred_check
    _
  $region3: #{ae_forward.1} parent=0 // pred_check_branch
    %29 = sbr.rel (0) target = $region5
  $region4: #{ae_forward.1} parent=0 // pred_region
    _
  $region5: #{ae_forward.1} parent=0 // pred_fallthru
    _
  // Predicated region
  $region6: #{ae_forward.1} parent=0 // pred_check
    _
  $region7: #{ae_forward.1} parent=0 // pred_check_branch
    %31 = sbr.rel (0) target = $region9
  $region8: #{ae_forward.1} parent=0 // pred_region
    _
  $region9: #{ae_forward.1} parent=0 // pred_fallthru
    _
  // Predicated region
  $region10: #{ae_forward.1} parent=0 // pred_check
    _
  $region11: #{ae_forward.1} parent=0 // pred_check_branch
    %33 = sbr.rel (0) target = $region13
  $region12: #{ae_forward.1} parent=0 // pred_region
    _
  $region13: #{ae_forward.1} parent=0 // pred_fallthru
    _
  // Predicated region
  $region14: #{ae_forward.1} parent=0 // pred_check
    _
  $region15: #{ae_forward.1} parent=0 // pred_check_branch
    %35 = sbr.rel (0) target = $region17
  $region16: #{ae_forward.1} parent=0 // pred_region
    _
  $region17: #{ae_forward.1} parent=0 // pred_fallthru
    _
  // Predicated region
  $region18: #{ae_forward.1} parent=0 // pred_check
    _
  $region19: #{ae_forward.1} parent=0 // pred_check_branch
    %37 = sbr.rel (0) target = $region21
  $region20: #{ae_forward.1} parent=0 // pred_region
    _
  $region21: #{ae_forward.1} parent=0 // pred_fallthru
    _
  // Predicated region
  $region22: #{ae_forward.1} parent=0 // pred_check
    _
  $region23: #{ae_forward.1} parent=0 // pred_check_branch
    %39 = sbr.rel (0) target = $region25
  $region24: #{ae_forward.1} parent=0 // pred_region
    _
  $region25: #{ae_forward.1} parent=0 // pred_fallthru
    _
  // Predicated region
  $region26: #{ae_forward.1} parent=0 // pred_check
    _
  $region27: #{ae_forward.1} parent=0 // pred_check_branch
    %41 = sbr.rel (0) target = $region29
  $region28: #{ae_forward.1} parent=0 // pred_region
    _
  $region29: #{ae_forward.1} parent=0 // pred_fallthru
    _
  // Predicated region
  $region30: #{ae_forward.1} parent=0 // pred_check
    _
  $region31: #{ae_forward.1} parent=0 // pred_check_branch
    %43 = sbr.rel (0) target = $region33
  $region32: #{ae_forward.1} parent=0 // pred_region
    _
  $region33: #{ae_forward.1} parent=0 // pred_fallthru
    _
  // Predicated region
  $region34: #{ae_forward.1} parent=0 // pred_check
    _
  $region35: #{ae_forward.1} parent=0 // pred_check_branch
    %45 = sbr.rel (0) target = $region37
  $region36: #{ae_forward.1} parent=0 // pred_region
    _
  $region37: #{ae_forward.1} parent=0 // pred_fallthru
    _
  // Predicated region
  $region38: #{ae_forward.1} parent=0 // pred_check
    _
  $region39: #{ae_forward.1} parent=0 // pred_check_branch
    %47 = sbr.rel (0) target = $region41
  $region40: #{ae_forward.1} parent=0 // pred_region
    _
  $region41: #{ae_forward.1} parent=0 // pred_fallthru
    _
  // Predicated region
  $region42: #{ae_forward.1} parent=0 // pred_check
    _
  $region43: #{ae_forward.1} parent=0 // pred_check_branch
    %49 = sbr.rel (0) target = $region45
  $region44: #{ae_forward.1} parent=0 // pred_region
    _
  $region45: #{ae_forward.1} parent=0 // pred_fallthru
    _
  // Predicated region
  $region46: #{ae_forward.1} parent=0 // pred_check
    _
  $region47: #{ae_forward.1} parent=0 // pred_check_branch
    %51 = sbr.rel (0) target = $region49
  $region48: #{ae_forward.1} parent=0 // pred_region
    _
  $region49: #{ae_forward.1} parent=0 // pred_fallthru
    _
  // Predicated region
  $region50: #{ae_forward.1} parent=0 // pred_check
    _
  $region51: #{ae_forward.1} parent=0 // pred_check_branch
    %53 = sbr.rel (0) target = $region53
  $region52: #{ae_forward.1} parent=0 // pred_region
    _
  $region53: #{ae_forward.1} parent=0 // pred_fallthru
    _
  // Predicated region
  $region54: #{ae_forward.1} parent=0 // pred_check
    _
  $region55: #{ae_forward.1} parent=0 // pred_check_branch
    %55 = sbr.rel (0) target = $region57
  $region56: #{ae_forward.1} parent=0 // pred_region
    _
  $region57: #{ae_forward.1} parent=0 // pred_fallthru
    _
  // Predicated region
  $region58: #{ae_forward.1} parent=0 // pred_check
    _
  $region59: #{ae_forward.1} parent=0 // pred_check_branch
    %57 = sbr.rel (0) target = $region61
  $region60: #{ae_forward.1} parent=0 // pred_region
    _
  $region61: #{ae_forward.1} parent=0 // pred_fallthru
    _
  // Predicated region
  $region62: #{ae_forward.1} parent=0 // pred_check
    _
  $region63: #{ae_forward.1} parent=0 // pred_check_branch
    %59 = sbr.rel (0) target = $region65
  $region64: #{ae_forward.1} parent=0 // pred_region
    _
  $region65: #{ae_forward.1} parent=0 // pred_fallthru
    _
  // Predicated region
  $region66: #{ae_forward.1} parent=0 // pred_check
    _
  $region67: #{ae_forward.1} parent=0 // pred_check_branch
    %61 = sbr.rel (0) target = $region69
  $region68: #{ae_forward.1} parent=0 // pred_region
    _
  $region69: #{ae_forward.1} parent=0 // pred_fallthru
    _
  // Predicated region
  $region70: #{ae_forward.1} parent=0 // pred_check
    _
  $region71: #{ae_forward.1} parent=0 // pred_check_branch
    %63 = sbr.rel (0) target = $region73
  $region72: #{ae_forward.1} parent=0 // pred_region
    _
  $region73: #{ae_forward.1} parent=0 // pred_fallthru
    _
  // Predicated region
  $region74: #{ae_forward.1} parent=0 // pred_check
    _
  $region75: #{ae_forward.1} parent=0 // pred_check_branch
    %65 = sbr.rel (0) target = $region77
  $region76: #{ae_forward.1} parent=0 // pred_region
    _
  $region77: #{ae_forward.1} parent=0 // pred_fallthru
    _
  // Predicated region
  $region78: #{ae_forward.1} parent=0 // pred_check
    _
  $region79: #{ae_forward.1} parent=0 // pred_check_branch
    %67 = sbr.rel (0) target = $region81
  $region80: #{ae_forward.1} parent=0 // pred_region
    _
  $region81: #{ae_forward.1} parent=0 // pred_fallthru
    _
  // Predicated region
  $region82: #{ae_forward.1} parent=0 // pred_check
    _
  $region83: #{ae_forward.1} parent=0 // pred_check_branch
    %69 = sbr.rel (0) target = $region85
  $region84: #{ae_forward.1} parent=0 // pred_region
    _
  $region85: #{ae_forward.1} parent=0 // pred_fallthru
    _
  %v71 = vld [vmem:[%s0] sm:$0xff]
  %v72 = vld [vmem:[%s0 + $0x8] sm:$0xff]
  %v73 = vld [vmem:[%s0 + $0x10] sm:$0xff]
  %v74 = vld [vmem:[%s0 + $0x18] sm:$0xff]
  %v75 = vld [vmem:[%s0 + $0x20] sm:$0xff]
  %v76 = vld [vmem:[%s0 + $0x28] sm:$0xff]
  %v77 = vld [vmem:[%s0 + $0x30] sm:$0xff]
  %v78 = vld [vmem:[%s0 + $0x38] sm:$0xff]
  %v79 = vld [vmem:[%s0 + $0x40] sm:$0xff]
  %v80 = vld [vmem:[%s0 + $0x48] sm:$0xff]
  %v81 = vld [vmem:[%s0 + $0x50] sm:$0xff]
  %v82 = vld [vmem:[%s0 + $0x58] sm:$0xff]
  %v83 = vld [vmem:[%s0 + $0x60] sm:$0xff]
  %v84 = vld [vmem:[%s0 + $0x68] sm:$0xff]
  %v85 = vpack.c.bf16 %v78, %v71
  %v86 = vpack.c.bf16 %v79, %v72
  %v87 = vpack.c.bf16 %v80, %v73
  %v88 = vpack.c.bf16 %v81, %v74
  %v89 = vpack.c.bf16 %v82, %v75
  %v90 = vpack.c.bf16 %v83, %v76
  %v91 = vpack.c.bf16 %v84, %v77
  %v92 = vld [vmem:[%s1] sm:$0xff]
  %v93 = vld [vmem:[%s1 + $0x8] sm:$0xff]
  %v94 = vld [vmem:[%s1 + $0x10] sm:$0xff]
  %v95 = vld [vmem:[%s1 + $0x18] sm:$0xf]
  %v96 = vld [vmem:[%s1 + $0x1c] sm:$0xff]
  %v97 = vld [vmem:[%s1 + $0x24] sm:$0xff]
  %v98 = vld [vmem:[%s1 + $0x2c] sm:$0xff]
  %v99 = vld [vmem:[%s1 + $0x34] sm:$0xf]
  %v100 = vld [vmem:[%s1 + $0x38] sm:$0xff]
  %v101 = vld [vmem:[%s1 + $0x40] sm:$0xff]
  %v102 = vld [vmem:[%s1 + $0x48] sm:$0xff]
  %v103 = vld [vmem:[%s1 + $0x50] sm:$0xf]
  %v104 = vld [vmem:[%s1 + $0x54] sm:$0xff]
  %v105 = vld [vmem:[%s1 + $0x5c] sm:$0xff]
  %v106 = vld [vmem:[%s1 + $0x64] sm:$0xff]
  %v107 = vld [vmem:[%s1 + $0x6c] sm:$0xf]
  %v108 = vld [vmem:[%s1 + $0x70] sm:$0xff]
  %v109 = vld [vmem:[%s1 + $0x78] sm:$0xff]
  %v110 = vld [vmem:[%s1 + $0x80] sm:$0xff]
  %v111 = vld [vmem:[%s1 + $0x88] sm:$0xf]
  %v112 = vld [vmem:[%s1 + $0x8c] sm:$0xff]
  %v113 = vld [vmem:[%s1 + $0x94] sm:$0xff]
  %v114 = vld [vmem:[%s1 + $0x9c] sm:$0xff]
  %v115 = vld [vmem:[%s1 + $0xa4] sm:$0xf]
  %v116 = vld [vmem:[%s1 + $0xa8] sm:$0xff]
  %v117 = vld [vmem:[%s1 + $0xb0] sm:$0xff]
  %v118 = vld [vmem:[%s1 + $0xb8] sm:$0xff]
  %v119 = vld [vmem:[%s1 + $0xc0] sm:$0xf]
  %v120 = vld [vmem:[%s1 + $0xc4] sm:$0xff]
  %v121 = vld [vmem:[%s1 + $0xcc] sm:$0xff]
  %v122 = vld [vmem:[%s1 + $0xd4] sm:$0xff]
  %v123 = vld [vmem:[%s1 + $0xdc] sm:$0xf]
  %v124 = vld [vmem:[%s1 + $0xe0] sm:$0xff]
  %v125 = vld [vmem:[%s1 + $0xe8] sm:$0xff]
  %v126 = vld [vmem:[%s1 + $0xf0] sm:$0xff]
  %v127 = vld [vmem:[%s1 + $0xf8] sm:$0xf]
  %v128 = vld [vmem:[%s1 + $0xfc] sm:$0xff]
  %v129 = vld [vmem:[%s1 + $0x104] sm:$0xff]
  %v130 = vld [vmem:[%s1 + $0x10c] sm:$0xff]
  %v131 = vld [vmem:[%s1 + $0x114] sm:$0xf]
  %v132 = vld [vmem:[%s1 + $0x118] sm:$0xff]
  %v133 = vld [vmem:[%s1 + $0x120] sm:$0xff]
  %v134 = vld [vmem:[%s1 + $0x128] sm:$0xff]
  %v135 = vld [vmem:[%s1 + $0x130] sm:$0xf]
  %v136 = vld [vmem:[%s1 + $0x134] sm:$0xff]
  %v137 = vld [vmem:[%s1 + $0x13c] sm:$0xff]
  %v138 = vld [vmem:[%s1 + $0x144] sm:$0xff]
  %v139 = vld [vmem:[%s1 + $0x14c] sm:$0xf]
  %v140 = vld [vmem:[%s1 + $0x150] sm:$0xff]
  %v141 = vld [vmem:[%s1 + $0x158] sm:$0xff]
  %v142 = vld [vmem:[%s1 + $0x160] sm:$0xff]
  %v143 = vld [vmem:[%s1 + $0x168] sm:$0xf]
  %v144 = vld [vmem:[%s1 + $0x16c] sm:$0xff]
  %v145 = vld [vmem:[%s1 + $0x174] sm:$0xff]
  %v146 = vld [vmem:[%s1 + $0x17c] sm:$0xff]
  %v147 = vld [vmem:[%s1 + $0x184] sm:$0xf]
  %v148 = vld [vmem:[%s1 + $0x188] sm:$0xff]
  %v149 = vld [vmem:[%s1 + $0x190] sm:$0xff]
  %v150 = vld [vmem:[%s1 + $0x198] sm:$0xff]
  %v151 = vld [vmem:[%s1 + $0x1a0] sm:$0xf]
  %v152 = vld [vmem:[%s1 + $0x1a4] sm:$0xff]
  %v153 = vld [vmem:[%s1 + $0x1ac] sm:$0xff]
  %v154 = vld [vmem:[%s1 + $0x1b4] sm:$0xff]
  %v155 = vld [vmem:[%s1 + $0x1bc] sm:$0xf]
  %v156 = vld [vmem:[%s1 + $0x1c0] sm:$0xff]
  %v157 = vld [vmem:[%s1 + $0x1c8] sm:$0xff]
  %v158 = vld [vmem:[%s1 + $0x1d0] sm:$0xff]
  %v159 = vld [vmem:[%s1 + $0x1d8] sm:$0xf]
  %v160 = vld [vmem:[%s1 + $0x1dc] sm:$0xff]
  %v161 = vld [vmem:[%s1 + $0x1e4] sm:$0xff]
  %v162 = vld [vmem:[%s1 + $0x1ec] sm:$0xff]
  %v163 = vld [vmem:[%s1 + $0x1f4] sm:$0xf]
  %v164 = vld [vmem:[%s1 + $0x1f8] sm:$0xff]
  %v165 = vld [vmem:[%s1 + $0x200] sm:$0xff]
  %v166 = vld [vmem:[%s1 + $0x208] sm:$0xff]
  %v167 = vld [vmem:[%s1 + $0x210] sm:$0xf]
  %v168 = vld [vmem:[%s1 + $0x214] sm:$0xff]
  %v169 = vld [vmem:[%s1 + $0x21c] sm:$0xff]
  %v170 = vld [vmem:[%s1 + $0x224] sm:$0xff]
  %v171 = vld [vmem:[%s1 + $0x22c] sm:$0xf]
  %v172 = vld [vmem:[%s1 + $0x230] sm:$0xff]
  %v173 = vld [vmem:[%s1 + $0x238] sm:$0xff]
  %v174 = vld [vmem:[%s1 + $0x240] sm:$0xff]
  %v175 = vld [vmem:[%s1 + $0x248] sm:$0xf]
  %v176 = vld [vmem:[%s1 + $0x24c] sm:$0xff]
  %v177 = vld [vmem:[%s1 + $0x254] sm:$0xff]
  %v178 = vld [vmem:[%s1 + $0x25c] sm:$0xff]
  %v179 = vld [vmem:[%s1 + $0x264] sm:$0xf]
  %v180 = vld [vmem:[%s1 + $0x268] sm:$0xff]
  %v181 = vld [vmem:[%s1 + $0x270] sm:$0xff]
  %v182 = vld [vmem:[%s1 + $0x278] sm:$0xff]
  %v183 = vld [vmem:[%s1 + $0x280] sm:$0xf]
  %v184 = vld [vmem:[%s1 + $0x284] sm:$0xff]
  %v185 = vld [vmem:[%s1 + $0x28c] sm:$0xff]
  %v186 = vld [vmem:[%s1 + $0x294] sm:$0xff]
  %v187 = vld [vmem:[%s1 + $0x29c] sm:$0xf]
  %v188 = vld [vmem:[%s1 + $0x2a0] sm:$0xff]
  %v189 = vld [vmem:[%s1 + $0x2a8] sm:$0xff]
  %v190 = vld [vmem:[%s1 + $0x2b0] sm:$0xff]
  %v191 = vld [vmem:[%s1 + $0x2b8] sm:$0xf]
  %v192 = vld [vmem:[%s1 + $0x2bc] sm:$0xff]
  %v193 = vld [vmem:[%s1 + $0x2c4] sm:$0xff]
  %v194 = vld [vmem:[%s1 + $0x2cc] sm:$0xff]
  %v195 = vld [vmem:[%s1 + $0x2d4] sm:$0xf]
  %v196 = vld [vmem:[%s1 + $0x2d8] sm:$0xff]
  %v197 = vld [vmem:[%s1 + $0x2e0] sm:$0xff]
  %v198 = vld [vmem:[%s1 + $0x2e8] sm:$0xff]
  %v199 = vld [vmem:[%s1 + $0x2f0] sm:$0xf]
  %v200 = vld [vmem:[%s1 + $0x2f4] sm:$0xff]
  %v201 = vld [vmem:[%s1 + $0x2fc] sm:$0xff]
  %v202 = vld [vmem:[%s1 + $0x304] sm:$0xff]
  %v203 = vld [vmem:[%s1 + $0x30c] sm:$0xf]
  %v204 = vld [vmem:[%s1 + $0x310] sm:$0xff]
  %v205 = vld [vmem:[%s1 + $0x318] sm:$0xff]
  %v206 = vld [vmem:[%s1 + $0x320] sm:$0xff]
  %v207 = vld [vmem:[%s1 + $0x328] sm:$0xf]
  %v208 = vld [vmem:[%s1 + $0x32c] sm:$0xff]
  %v209 = vld [vmem:[%s1 + $0x334] sm:$0xff]
  %v210 = vld [vmem:[%s1 + $0x33c] sm:$0xff]
  %v211 = vld [vmem:[%s1 + $0x344] sm:$0xf]
  %v212 = vld [vmem:[%s1 + $0x348] sm:$0xff]
  %v213 = vld [vmem:[%s1 + $0x350] sm:$0xff]
  %v214 = vld [vmem:[%s1 + $0x358] sm:$0xff]
  %v215 = vld [vmem:[%s1 + $0x360] sm:$0xf]
  %v216 = vld [vmem:[%s1 + $0x364] sm:$0xff]
  %v217 = vld [vmem:[%s1 + $0x36c] sm:$0xff]
  %v218 = vld [vmem:[%s1 + $0x374] sm:$0xff]
  %v219 = vld [vmem:[%s1 + $0x37c] sm:$0xf]
  %v220 = vld [vmem:[%s1 + $0x380] sm:$0xff]
  %v221 = vld [vmem:[%s1 + $0x388] sm:$0xff]
  %v222 = vld [vmem:[%s1 + $0x390] sm:$0xff]
  %v223 = vld [vmem:[%s1 + $0x398] sm:$0xf]
  %v224 = vld [vmem:[%s1 + $0x39c] sm:$0xff]
  %v225 = vld [vmem:[%s1 + $0x3a4] sm:$0xff]
  %v226 = vld [vmem:[%s1 + $0x3ac] sm:$0xff]
  %v227 = vld [vmem:[%s1 + $0x3b4] sm:$0xf]
  %v228 = vld [vmem:[%s1 + $0x3b8] sm:$0xff]
  %v229 = vld [vmem:[%s1 + $0x3c0] sm:$0xff]
  %v230 = vld [vmem:[%s1 + $0x3c8] sm:$0xff]
  %v231 = vld [vmem:[%s1 + $0x3d0] sm:$0xf]
  %v232 = vld [vmem:[%s1 + $0x3d4] sm:$0xff]
  %v233 = vld [vmem:[%s1 + $0x3dc] sm:$0xff]
  %v234 = vld [vmem:[%s1 + $0x3e4] sm:$0xff]
  %v235 = vld [vmem:[%s1 + $0x3ec] sm:$0xf]
  %v236 = vld [vmem:[%s1 + $0x3f0] sm:$0xff]
  %v237 = vld [vmem:[%s1 + $0x3f8] sm:$0xff]
  %v238 = vld [vmem:[%s1 + $0x400] sm:$0xff]
  %v239 = vld [vmem:[%s1 + $0x408] sm:$0xf]
  %v240 = vld [vmem:[%s1 + $0x40c] sm:$0xff]
  %v241 = vld [vmem:[%s1 + $0x414] sm:$0xff]
  %v242 = vld [vmem:[%s1 + $0x41c] sm:$0xff]
  %v243 = vld [vmem:[%s1 + $0x424] sm:$0xf]
  %v244 = vld [vmem:[%s1 + $0x428] sm:$0xff]
  %v245 = vld [vmem:[%s1 + $0x430] sm:$0xff]
  %v246 = vld [vmem:[%s1 + $0x438] sm:$0xff]
  %v247 = vld [vmem:[%s1 + $0x440] sm:$0xf]
  %v248 = vld [vmem:[%s1 + $0x444] sm:$0xff]
  %v249 = vld [vmem:[%s1 + $0x44c] sm:$0xff]
  %v250 = vld [vmem:[%s1 + $0x454] sm:$0xff]
  %v251 = vld [vmem:[%s1 + $0x45c] sm:$0xf]
  %v252 = vld [vmem:[%s1 + $0x460] sm:$0xff]
  %v253 = vld [vmem:[%s1 + $0x468] sm:$0xff]
  %v254 = vld [vmem:[%s1 + $0x470] sm:$0xff]
  %v255 = vld [vmem:[%s1 + $0x478] sm:$0xf]
  %v256 = vld [vmem:[%s1 + $0x47c] sm:$0xff]
  %v257 = vld [vmem:[%s1 + $0x484] sm:$0xff]
  %v258 = vld [vmem:[%s1 + $0x48c] sm:$0xff]
  %v259 = vld [vmem:[%s1 + $0x494] sm:$0xf]
  %v260 = vld [vmem:[%s1 + $0x498] sm:$0xff]
  %v261 = vld [vmem:[%s1 + $0x4a0] sm:$0xff]
  %v262 = vld [vmem:[%s1 + $0x4a8] sm:$0xff]
  %v263 = vld [vmem:[%s1 + $0x4b0] sm:$0xf]
  %v264 = vld [vmem:[%s1 + $0x4b4] sm:$0xff]
  %v265 = vld [vmem:[%s1 + $0x4bc] sm:$0xff]
  %v266 = vld [vmem:[%s1 + $0x4c4] sm:$0xff]
  %v267 = vld [vmem:[%s1 + $0x4cc] sm:$0xf]
  %v268 = vld [vmem:[%s1 + $0x4d0] sm:$0xff]
  %v269 = vld [vmem:[%s1 + $0x4d8] sm:$0xff]
  %v270 = vld [vmem:[%s1 + $0x4e0] sm:$0xff]
  %v271 = vld [vmem:[%s1 + $0x4e8] sm:$0xf]
  %v272 = vld [vmem:[%s1 + $0x4ec] sm:$0xff]
  %v273 = vld [vmem:[%s1 + $0x4f4] sm:$0xff]
  %v274 = vld [vmem:[%s1 + $0x4fc] sm:$0xff]
  %v275 = vld [vmem:[%s1 + $0x504] sm:$0xf]
  %v276 = vld [vmem:[%s1 + $0x508] sm:$0xff]
  %v277 = vld [vmem:[%s1 + $0x510] sm:$0xff]
  %v278 = vld [vmem:[%s1 + $0x518] sm:$0xff]
  %v279 = vld [vmem:[%s1 + $0x520] sm:$0xf]
  %v280 = vld [vmem:[%s1 + $0x524] sm:$0xff]
  %v281 = vld [vmem:[%s1 + $0x52c] sm:$0xff]
  %v282 = vld [vmem:[%s1 + $0x534] sm:$0xff]
  %v283 = vld [vmem:[%s1 + $0x53c] sm:$0xf]
  %v284 = vld [vmem:[%s1 + $0x540] sm:$0xff]
  %v285 = vld [vmem:[%s1 + $0x548] sm:$0xff]
  %v286 = vld [vmem:[%s1 + $0x550] sm:$0xff]
  %v287 = vld [vmem:[%s1 + $0x558] sm:$0xf]
  %v288 = vld [vmem:[%s1 + $0x55c] sm:$0xff]
  %v289 = vld [vmem:[%s1 + $0x564] sm:$0xff]
  %v290 = vld [vmem:[%s1 + $0x56c] sm:$0xff]
  %v291 = vld [vmem:[%s1 + $0x574] sm:$0xf]
  %v292 = vld [vmem:[%s1 + $0x578] sm:$0xff]
  %v293 = vld [vmem:[%s1 + $0x580] sm:$0xff]
  %v294 = vld [vmem:[%s1 + $0x588] sm:$0xff]
  %v295 = vld [vmem:[%s1 + $0x590] sm:$0xf]
  %v296 = vld [vmem:[%s1 + $0x594] sm:$0xff]
  %v297 = vld [vmem:[%s1 + $0x59c] sm:$0xff]
  %v298 = vld [vmem:[%s1 + $0x5a4] sm:$0xff]
  %v299 = vld [vmem:[%s1 + $0x5ac] sm:$0xf]
  %v300 = vld [vmem:[%s1 + $0x5b0] sm:$0xff]
  %v301 = vld [vmem:[%s1 + $0x5b8] sm:$0xff]
  %v302 = vld [vmem:[%s1 + $0x5c0] sm:$0xff]
  %v303 = vld [vmem:[%s1 + $0x5c8] sm:$0xf]
  %v304 = vld [vmem:[%s1 + $0x5cc] sm:$0xff]
  %v305 = vld [vmem:[%s1 + $0x5d4] sm:$0xff]
  %v306 = vld [vmem:[%s1 + $0x5dc] sm:$0xff]
  %v307 = vld [vmem:[%s1 + $0x5e4] sm:$0xf]
  %v308 = vld [vmem:[%s1 + $0x5e8] sm:$0xff]
  %v309 = vld [vmem:[%s1 + $0x5f0] sm:$0xff]
  %v310 = vld [vmem:[%s1 + $0x5f8] sm:$0xff]
  %v311 = vld [vmem:[%s1 + $0x600] sm:$0xf]
  %v312 = vld [vmem:[%s1 + $0x604] sm:$0xff]
  %v313 = vld [vmem:[%s1 + $0x60c] sm:$0xff]
  %v314 = vld [vmem:[%s1 + $0x614] sm:$0xff]
  %v315 = vld [vmem:[%s1 + $0x61c] sm:$0xf]
  %v316 = vld [vmem:[%s1 + $0x620] sm:$0xff]
  %v317 = vld [vmem:[%s1 + $0x628] sm:$0xff]
  %v318 = vld [vmem:[%s1 + $0x630] sm:$0xff]
  %v319 = vld [vmem:[%s1 + $0x638] sm:$0xf]
  %v320 = vld [vmem:[%s1 + $0x63c] sm:$0xff]
  %v321 = vld [vmem:[%s1 + $0x644] sm:$0xff]
  %v322 = vld [vmem:[%s1 + $0x64c] sm:$0xff]
  %v323 = vld [vmem:[%s1 + $0x654] sm:$0xf]
  %v324 = vld [vmem:[%s1 + $0x658] sm:$0xff]
  %v325 = vld [vmem:[%s1 + $0x660] sm:$0xff]
  %v326 = vld [vmem:[%s1 + $0x668] sm:$0xff]
  %v327 = vld [vmem:[%s1 + $0x670] sm:$0xf]
  %v328 = vld [vmem:[%s1 + $0x674] sm:$0xff]
  %v329 = vld [vmem:[%s1 + $0x67c] sm:$0xff]
  %v330 = vld [vmem:[%s1 + $0x684] sm:$0xff]
  %v331 = vld [vmem:[%s1 + $0x68c] sm:$0xf]
  %v332 = vld [vmem:[%s1 + $0x690] sm:$0xff]
  %v333 = vld [vmem:[%s1 + $0x698] sm:$0xff]
  %v334 = vld [vmem:[%s1 + $0x6a0] sm:$0xff]
  %v335 = vld [vmem:[%s1 + $0x6a8] sm:$0xf]
  %v336 = vld [vmem:[%s1 + $0x6ac] sm:$0xff]
  %v337 = vld [vmem:[%s1 + $0x6b4] sm:$0xff]
  %v338 = vld [vmem:[%s1 + $0x6bc] sm:$0xff]
  %v339 = vld [vmem:[%s1 + $0x6c4] sm:$0xf]
  %v340 = vld [vmem:[%s1 + $0x6c8] sm:$0xff]
  %v341 = vld [vmem:[%s1 + $0x6d0] sm:$0xff]
  %v342 = vld [vmem:[%s1 + $0x6d8] sm:$0xff]
  %v343 = vld [vmem:[%s1 + $0x6e0] sm:$0xf]
  %v344 = vld [vmem:[%s1 + $0x6e4] sm:$0xff]
  %v345 = vld [vmem:[%s1 + $0x6ec] sm:$0xff]
  %v346 = vld [vmem:[%s1 + $0x6f4] sm:$0xff]
  %v347 = vld [vmem:[%s1 + $0x6fc] sm:$0xf]
  %v348 = vld [vmem:[%s1 + $0x700] sm:$0xff]
  %v349 = vld [vmem:[%s1 + $0x708] sm:$0xff]
  %v350 = vld [vmem:[%s1 + $0x710] sm:$0xff]
  %v351 = vld [vmem:[%s1 + $0x718] sm:$0xf]
  %v352 = vld [vmem:[%s1 + $0x71c] sm:$0xff]
  %v353 = vld [vmem:[%s1 + $0x724] sm:$0xff]
  %v354 = vld [vmem:[%s1 + $0x72c] sm:$0xff]
  %v355 = vld [vmem:[%s1 + $0x734] sm:$0xf]
  %v356 = vld [vmem:[%s1 + $0x738] sm:$0xff]
  %v357 = vld [vmem:[%s1 + $0x740] sm:$0xff]
  %v358 = vld [vmem:[%s1 + $0x748] sm:$0xff]
  %v359 = vld [vmem:[%s1 + $0x750] sm:$0xf]
  %v360 = vld [vmem:[%s1 + $0x754] sm:$0xff]
  %v361 = vld [vmem:[%s1 + $0x75c] sm:$0xff]
  %v362 = vld [vmem:[%s1 + $0x764] sm:$0xff]
  %v363 = vld [vmem:[%s1 + $0x76c] sm:$0xf]
  %v364 = vld [vmem:[%s1 + $0x770] sm:$0xff]
  %v365 = vld [vmem:[%s1 + $0x778] sm:$0xff]
  %v366 = vld [vmem:[%s1 + $0x780] sm:$0xff]
  %v367 = vld [vmem:[%s1 + $0x788] sm:$0xf]
  %v368 = vld [vmem:[%s1 + $0x78c] sm:$0xff]
  %v369 = vld [vmem:[%s1 + $0x794] sm:$0xff]
  %v370 = vld [vmem:[%s1 + $0x79c] sm:$0xff]
  %v371 = vld [vmem:[%s1 + $0x7a4] sm:$0xf]
  %v372 = vld [vmem:[%s1 + $0x7a8] sm:$0xff]
  %v373 = vld [vmem:[%s1 + $0x7b0] sm:$0xff]
  %v374 = vld [vmem:[%s1 + $0x7b8] sm:$0xff]
  %v375 = vld [vmem:[%s1 + $0x7c0] sm:$0xf]
  %v376 = vld [vmem:[%s1 + $0x7c4] sm:$0xff]
  %v377 = vld [vmem:[%s1 + $0x7cc] sm:$0xff]
  %v378 = vld [vmem:[%s1 + $0x7d4] sm:$0xff]
  %v379 = vld [vmem:[%s1 + $0x7dc] sm:$0xf]
  %v380 = vld [vmem:[%s1 + $0x7e0] sm:$0xff]
  %v381 = vld [vmem:[%s1 + $0x7e8] sm:$0xff]
  %v382 = vld [vmem:[%s1 + $0x7f0] sm:$0xff]
  %v383 = vld [vmem:[%s1 + $0x7f8] sm:$0xf]
  %v384 = vld [vmem:[%s1 + $0x7fc] sm:$0xff]
  %v385 = vld [vmem:[%s1 + $0x804] sm:$0xff]
  %v386 = vld [vmem:[%s1 + $0x80c] sm:$0xff]
  %v387 = vld [vmem:[%s1 + $0x814] sm:$0xf]
  %v388 = vld [vmem:[%s1 + $0x818] sm:$0xff]
  %v389 = vld [vmem:[%s1 + $0x820] sm:$0xff]
  %v390 = vld [vmem:[%s1 + $0x828] sm:$0xff]
  %v391 = vld [vmem:[%s1 + $0x830] sm:$0xf]
  %v392 = vld [vmem:[%s1 + $0x834] sm:$0xff]
  %v393 = vld [vmem:[%s1 + $0x83c] sm:$0xff]
  %v394 = vld [vmem:[%s1 + $0x844] sm:$0xff]
  %v395 = vld [vmem:[%s1 + $0x84c] sm:$0xf]
  %v396 = vld [vmem:[%s1 + $0x850] sm:$0xff]
  %v397 = vld [vmem:[%s1 + $0x858] sm:$0xff]
  %v398 = vld [vmem:[%s1 + $0x860] sm:$0xff]
  %v399 = vld [vmem:[%s1 + $0x868] sm:$0xf]
  %v400 = vld [vmem:[%s1 + $0x86c] sm:$0xff]
  %v401 = vld [vmem:[%s1 + $0x874] sm:$0xff]
  %v402 = vld [vmem:[%s1 + $0x87c] sm:$0xff]
  %v403 = vld [vmem:[%s1 + $0x884] sm:$0xf]
  %v404 = vld [vmem:[%s1 + $0x888] sm:$0xff]
  %v405 = vld [vmem:[%s1 + $0x890] sm:$0xff]
  %v406 = vld [vmem:[%s1 + $0x898] sm:$0xff]
  %v407 = vld [vmem:[%s1 + $0x8a0] sm:$0xf]
  %v408 = vld [vmem:[%s1 + $0x8a4] sm:$0xff]
  %v409 = vld [vmem:[%s1 + $0x8ac] sm:$0xff]
  %v410 = vld [vmem:[%s1 + $0x8b4] sm:$0xff]
  %v411 = vld [vmem:[%s1 + $0x8bc] sm:$0xf]
  %v412 = vld [vmem:[%s1 + $0x8c0] sm:$0xff]
  %v413 = vld [vmem:[%s1 + $0x8c8] sm:$0xff]
  %v414 = vld [vmem:[%s1 + $0x8d0] sm:$0xff]
  %v415 = vld [vmem:[%s1 + $0x8d8] sm:$0xf]
  %v416 = vld [vmem:[%s1 + $0x8dc] sm:$0xff]
  %v417 = vld [vmem:[%s1 + $0x8e4] sm:$0xff]
  %v418 = vld [vmem:[%s1 + $0x8ec] sm:$0xff]
  %v419 = vld [vmem:[%s1 + $0x8f4] sm:$0xf]
  %v420 = vld [vmem:[%s1 + $0x8f8] sm:$0xff]
  %v421 = vld [vmem:[%s1 + $0x900] sm:$0xff]
  %v422 = vld [vmem:[%s1 + $0x908] sm:$0xff]
  %v423 = vld [vmem:[%s1 + $0x910] sm:$0xf]
  %v424 = vld [vmem:[%s1 + $0x914] sm:$0xff]
  %v425 = vld [vmem:[%s1 + $0x91c] sm:$0xff]
  %v426 = vld [vmem:[%s1 + $0x924] sm:$0xff]
  %v427 = vld [vmem:[%s1 + $0x92c] sm:$0xf]
  %v428 = vld [vmem:[%s1 + $0x930] sm:$0xff]
  %v429 = vld [vmem:[%s1 + $0x938] sm:$0xff]
  %v430 = vld [vmem:[%s1 + $0x940] sm:$0xff]
  %v431 = vld [vmem:[%s1 + $0x948] sm:$0xf]
  %v432 = vld [vmem:[%s1 + $0x94c] sm:$0xff]
  %v433 = vld [vmem:[%s1 + $0x954] sm:$0xff]
  %v434 = vld [vmem:[%s1 + $0x95c] sm:$0xff]
  %v435 = vld [vmem:[%s1 + $0x964] sm:$0xf]
  %v436 = vld [vmem:[%s1 + $0x968] sm:$0xff]
  %v437 = vld [vmem:[%s1 + $0x970] sm:$0xff]
  %v438 = vld [vmem:[%s1 + $0x978] sm:$0xff]
  %v439 = vld [vmem:[%s1 + $0x980] sm:$0xf]
  %v440 = vld [vmem:[%s1 + $0x984] sm:$0xff]
  %v441 = vld [vmem:[%s1 + $0x98c] sm:$0xff]
  %v442 = vld [vmem:[%s1 + $0x994] sm:$0xff]
  %v443 = vld [vmem:[%s1 + $0x99c] sm:$0xf]
  %v444 = vld [vmem:[%s1 + $0x9a0] sm:$0xff]
  %v445 = vld [vmem:[%s1 + $0x9a8] sm:$0xff]
  %v446 = vld [vmem:[%s1 + $0x9b0] sm:$0xff]
  %v447 = vld [vmem:[%s1 + $0x9b8] sm:$0xf]
  %v448 = vld [vmem:[%s1 + $0x9bc] sm:$0xff]
  %v449 = vld [vmem:[%s1 + $0x9c4] sm:$0xff]
  %v450 = vld [vmem:[%s1 + $0x9cc] sm:$0xff]
  %v451 = vld [vmem:[%s1 + $0x9d4] sm:$0xf]
  %v452 = vld [vmem:[%s1 + $0x9d8] sm:$0xff]
  %v453 = vld [vmem:[%s1 + $0x9e0] sm:$0xff]
  %v454 = vld [vmem:[%s1 + $0x9e8] sm:$0xff]
  %v455 = vld [vmem:[%s1 + $0x9f0] sm:$0xf]
  %v456 = vld [vmem:[%s1 + $0x9f4] sm:$0xff]
  %v457 = vld [vmem:[%s1 + $0x9fc] sm:$0xff]
  %v458 = vld [vmem:[%s1 + $0xa04] sm:$0xff]
  %v459 = vld [vmem:[%s1 + $0xa0c] sm:$0xf]
  %v460 = vld [vmem:[%s1 + $0xa10] sm:$0xff]
  %v461 = vld [vmem:[%s1 + $0xa18] sm:$0xff]
  %v462 = vld [vmem:[%s1 + $0xa20] sm:$0xff]
  %v463 = vld [vmem:[%s1 + $0xa28] sm:$0xf]
  %v464 = vld [vmem:[%s1 + $0xa2c] sm:$0xff]
  %v465 = vld [vmem:[%s1 + $0xa34] sm:$0xff]
  %v466 = vld [vmem:[%s1 + $0xa3c] sm:$0xff]
  %v467 = vld [vmem:[%s1 + $0xa44] sm:$0xf]
  %v468 = vld [vmem:[%s1 + $0xa48] sm:$0xff]
  %v469 = vld [vmem:[%s1 + $0xa50] sm:$0xff]
  %v470 = vld [vmem:[%s1 + $0xa58] sm:$0xff]
  %v471 = vld [vmem:[%s1 + $0xa60] sm:$0xf]
  %v472 = vld [vmem:[%s1 + $0xa64] sm:$0xff]
  %v473 = vld [vmem:[%s1 + $0xa6c] sm:$0xff]
  %v474 = vld [vmem:[%s1 + $0xa74] sm:$0xff]
  %v475 = vld [vmem:[%s1 + $0xa7c] sm:$0xf]
  %v476 = vld [vmem:[%s1 + $0xa80] sm:$0xff]
  %v477 = vld [vmem:[%s1 + $0xa88] sm:$0xff]
  %v478 = vld [vmem:[%s1 + $0xa90] sm:$0xff]
  %v479 = vld [vmem:[%s1 + $0xa98] sm:$0xf]
  %v480 = vld [vmem:[%s1 + $0xa9c] sm:$0xff]
  %v481 = vld [vmem:[%s1 + $0xaa4] sm:$0xff]
  %v482 = vld [vmem:[%s1 + $0xaac] sm:$0xff]
  %v483 = vld [vmem:[%s1 + $0xab4] sm:$0xf]
  %v484 = vld [vmem:[%s2] sm:$0x7f]
  %v486 = vlaneseq
  %v487 = vshrl.u32 %v486, 7
  %v488 = vsub.s32 0, %v487
  %v489 = vrot.slane %v484, %v488
  %v490 = vlaneseq
  %v491 = vshrl.u32 %v490, 7
  %v492 = vsub.s32 1, %v491
  %v493 = vrot.slane %v484, %v492
  %v494 = vlaneseq
  %v495 = vshrl.u32 %v494, 7
  %v496 = vsub.s32 2, %v495
  %v497 = vrot.slane %v484, %v496
  %v498 = vlaneseq
  %v499 = vshrl.u32 %v498, 7
  %v500 = vsub.s32 3, %v499
  %v501 = vrot.slane %v484, %v500
  %v502 = vlaneseq
  %v503 = vshrl.u32 %v502, 7
  %v504 = vsub.s32 4, %v503
  %v505 = vrot.slane %v484, %v504
  %v506 = vlaneseq
  %v507 = vshrl.u32 %v506, 7
  %v508 = vsub.s32 5, %v507
  %v509 = vrot.slane %v484, %v508
  %v510 = vlaneseq
  %v511 = vshrl.u32 %v510, 7
  %v512 = vsub.s32 6, %v511
  %v513 = vrot.slane %v484, %v512
  %v913 = vunpack.c.l.b16 %v92
  %v914 = vunpack.c.h.b16 %v92
  %v915 = vunpack.c.l.b16 %v93
  %v916 = vunpack.c.h.b16 %v93
  %v917 = vunpack.c.l.b16 %v94
  %v918 = vunpack.c.h.b16 %v94
  %v919 = vunpack.c.l.b16 %v95
  %v920 = vunpack.c.l.b16 %v96
  %v921 = vunpack.c.h.b16 %v96
  %v922 = vunpack.c.l.b16 %v97
  %v923 = vunpack.c.h.b16 %v97
  %v924 = vunpack.c.l.b16 %v98
  %v925 = vunpack.c.h.b16 %v98
  %v926 = vunpack.c.l.b16 %v99
  %v927 = vunpack.c.l.b16 %v100
  %v928 = vunpack.c.h.b16 %v100
  %v929 = vunpack.c.l.b16 %v101
  %v930 = vunpack.c.h.b16 %v101
  %v931 = vunpack.c.l.b16 %v102
  %v932 = vunpack.c.h.b16 %v102
  %v933 = vunpack.c.l.b16 %v103
  %v934 = vunpack.c.l.b16 %v104
  %v935 = vunpack.c.h.b16 %v104
  %v936 = vunpack.c.l.b16 %v105
  %v937 = vunpack.c.h.b16 %v105
  %v938 = vunpack.c.l.b16 %v106
  %v939 = vunpack.c.h.b16 %v106
  %v940 = vunpack.c.l.b16 %v107
  %v941 = vunpack.c.l.b16 %v108
  %v942 = vunpack.c.h.b16 %v108
  %v943 = vunpack.c.l.b16 %v109
  %v944 = vunpack.c.h.b16 %v109
  %v945 = vunpack.c.l.b16 %v110
  %v946 = vunpack.c.h.b16 %v110
  %v947 = vunpack.c.l.b16 %v111
  %v948 = vunpack.c.l.b16 %v112
  %v949 = vunpack.c.h.b16 %v112
  %v950 = vunpack.c.l.b16 %v113
  %v951 = vunpack.c.h.b16 %v113
  %v952 = vunpack.c.l.b16 %v114
  %v953 = vunpack.c.h.b16 %v114
  %v954 = vunpack.c.l.b16 %v115
  %v955 = vunpack.c.l.b16 %v116
  %v956 = vunpack.c.h.b16 %v116
  %v957 = vunpack.c.l.b16 %v117
  %v958 = vunpack.c.h.b16 %v117
  %v959 = vunpack.c.l.b16 %v118
  %v960 = vunpack.c.h.b16 %v118
  %v961 = vunpack.c.l.b16 %v119
  %v962 = vunpack.c.l.b16 %v120
  %v963 = vunpack.c.h.b16 %v120
  %v964 = vunpack.c.l.b16 %v121
  %v965 = vunpack.c.h.b16 %v121
  %v966 = vunpack.c.l.b16 %v122
  %v967 = vunpack.c.h.b16 %v122
  %v968 = vunpack.c.l.b16 %v123
  %v969 = vunpack.c.l.b16 %v124
  %v970 = vunpack.c.h.b16 %v124
  %v971 = vunpack.c.l.b16 %v125
  %v972 = vunpack.c.h.b16 %v125
  %v973 = vunpack.c.l.b16 %v126
  %v974 = vunpack.c.h.b16 %v126
  %v975 = vunpack.c.l.b16 %v127
  %v976 = vunpack.c.l.b16 %v128
  %v977 = vunpack.c.h.b16 %v128
  %v978 = vunpack.c.l.b16 %v129
  %v979 = vunpack.c.h.b16 %v129
  %v980 = vunpack.c.l.b16 %v130
  %v981 = vunpack.c.h.b16 %v130
  %v982 = vunpack.c.l.b16 %v131
  %v983 = vunpack.c.l.b16 %v132
  %v984 = vunpack.c.h.b16 %v132
  %v985 = vunpack.c.l.b16 %v133
  %v986 = vunpack.c.h.b16 %v133
  %v987 = vunpack.c.l.b16 %v134
  %v988 = vunpack.c.h.b16 %v134
  %v989 = vunpack.c.l.b16 %v135
  %v990 = vunpack.c.l.b16 %v136
  %v991 = vunpack.c.h.b16 %v136
  %v992 = vunpack.c.l.b16 %v137
  %v993 = vunpack.c.h.b16 %v137
  %v994 = vunpack.c.l.b16 %v138
  %v995 = vunpack.c.h.b16 %v138
  %v996 = vunpack.c.l.b16 %v139
  %v997 = vunpack.c.l.b16 %v140
  %v998 = vunpack.c.h.b16 %v140
  %v999 = vunpack.c.l.b16 %v141
  %v1000 = vunpack.c.h.b16 %v141
  %v1001 = vunpack.c.l.b16 %v142
  %v1002 = vunpack.c.h.b16 %v142
  %v1003 = vunpack.c.l.b16 %v143
  %v1004 = vunpack.c.l.b16 %v144
  %v1005 = vunpack.c.h.b16 %v144
  %v1006 = vunpack.c.l.b16 %v145
  %v1007 = vunpack.c.h.b16 %v145
  %v1008 = vunpack.c.l.b16 %v146
  %v1009 = vunpack.c.h.b16 %v146
  %v1010 = vunpack.c.l.b16 %v147
  %v1011 = vunpack.c.l.b16 %v148
  %v1012 = vunpack.c.h.b16 %v148
  %v1013 = vunpack.c.l.b16 %v149
  %v1014 = vunpack.c.h.b16 %v149
  %v1015 = vunpack.c.l.b16 %v150
  %v1016 = vunpack.c.h.b16 %v150
  %v1017 = vunpack.c.l.b16 %v151
  %v1018 = vunpack.c.l.b16 %v152
  %v1019 = vunpack.c.h.b16 %v152
  %v1020 = vunpack.c.l.b16 %v153
  %v1021 = vunpack.c.h.b16 %v153
  %v1022 = vunpack.c.l.b16 %v154
  %v1023 = vunpack.c.h.b16 %v154
  %v1024 = vunpack.c.l.b16 %v155
  %v1025 = vunpack.c.l.b16 %v156
  %v1026 = vunpack.c.h.b16 %v156
  %v1027 = vunpack.c.l.b16 %v157
  %v1028 = vunpack.c.h.b16 %v157
  %v1029 = vunpack.c.l.b16 %v158
  %v1030 = vunpack.c.h.b16 %v158
  %v1031 = vunpack.c.l.b16 %v159
  %v1032 = vunpack.c.l.b16 %v160
  %v1033 = vunpack.c.h.b16 %v160
  %v1034 = vunpack.c.l.b16 %v161
  %v1035 = vunpack.c.h.b16 %v161
  %v1036 = vunpack.c.l.b16 %v162
  %v1037 = vunpack.c.h.b16 %v162
  %v1038 = vunpack.c.l.b16 %v163
  %v1039 = vunpack.c.l.b16 %v164
  %v1040 = vunpack.c.h.b16 %v164
  %v1041 = vunpack.c.l.b16 %v165
  %v1042 = vunpack.c.h.b16 %v165
  %v1043 = vunpack.c.l.b16 %v166
  %v1044 = vunpack.c.h.b16 %v166
  %v1045 = vunpack.c.l.b16 %v167
  %v1046 = vunpack.c.l.b16 %v168
  %v1047 = vunpack.c.h.b16 %v168
  %v1048 = vunpack.c.l.b16 %v169
  %v1049 = vunpack.c.h.b16 %v169
  %v1050 = vunpack.c.l.b16 %v170
  %v1051 = vunpack.c.h.b16 %v170
  %v1052 = vunpack.c.l.b16 %v171
  %v1053 = vunpack.c.l.b16 %v172
  %v1054 = vunpack.c.h.b16 %v172
  %v1055 = vunpack.c.l.b16 %v173
  %v1056 = vunpack.c.h.b16 %v173
  %v1057 = vunpack.c.l.b16 %v174
  %v1058 = vunpack.c.h.b16 %v174
  %v1059 = vunpack.c.l.b16 %v175
  %v1060 = vunpack.c.l.b16 %v176
  %v1061 = vunpack.c.h.b16 %v176
  %v1062 = vunpack.c.l.b16 %v177
  %v1063 = vunpack.c.h.b16 %v177
  %v1064 = vunpack.c.l.b16 %v178
  %v1065 = vunpack.c.h.b16 %v178
  %v1066 = vunpack.c.l.b16 %v179
  %v1067 = vunpack.c.l.b16 %v180
  %v1068 = vunpack.c.h.b16 %v180
  %v1069 = vunpack.c.l.b16 %v181
  %v1070 = vunpack.c.h.b16 %v181
  %v1071 = vunpack.c.l.b16 %v182
  %v1072 = vunpack.c.h.b16 %v182
  %v1073 = vunpack.c.l.b16 %v183
  %v1074 = vunpack.c.l.b16 %v184
  %v1075 = vunpack.c.h.b16 %v184
  %v1076 = vunpack.c.l.b16 %v185
  %v1077 = vunpack.c.h.b16 %v185
  %v1078 = vunpack.c.l.b16 %v186
  %v1079 = vunpack.c.h.b16 %v186
  %v1080 = vunpack.c.l.b16 %v187
  %v1081 = vunpack.c.l.b16 %v188
  %v1082 = vunpack.c.h.b16 %v188
  %v1083 = vunpack.c.l.b16 %v189
  %v1084 = vunpack.c.h.b16 %v189
  %v1085 = vunpack.c.l.b16 %v190
  %v1086 = vunpack.c.h.b16 %v190
  %v1087 = vunpack.c.l.b16 %v191
  %v1088 = vunpack.c.l.b16 %v192
  %v1089 = vunpack.c.h.b16 %v192
  %v1090 = vunpack.c.l.b16 %v193
  %v1091 = vunpack.c.h.b16 %v193
  %v1092 = vunpack.c.l.b16 %v194
  %v1093 = vunpack.c.h.b16 %v194
  %v1094 = vunpack.c.l.b16 %v195
  %v1095 = vunpack.c.l.b16 %v196
  %v1096 = vunpack.c.h.b16 %v196
  %v1097 = vunpack.c.l.b16 %v197
  %v1098 = vunpack.c.h.b16 %v197
  %v1099 = vunpack.c.l.b16 %v198
  %v1100 = vunpack.c.h.b16 %v198
  %v1101 = vunpack.c.l.b16 %v199
  %v1102 = vunpack.c.l.b16 %v200
  %v1103 = vunpack.c.h.b16 %v200
  %v1104 = vunpack.c.l.b16 %v201
  %v1105 = vunpack.c.h.b16 %v201
  %v1106 = vunpack.c.l.b16 %v202
  %v1107 = vunpack.c.h.b16 %v202
  %v1108 = vunpack.c.l.b16 %v203
  %v1109 = vunpack.c.l.b16 %v204
  %v1110 = vunpack.c.h.b16 %v204
  %v1111 = vunpack.c.l.b16 %v205
  %v1112 = vunpack.c.h.b16 %v205
  %v1113 = vunpack.c.l.b16 %v206
  %v1114 = vunpack.c.h.b16 %v206
  %v1115 = vunpack.c.l.b16 %v207
  %v1116 = vunpack.c.l.b16 %v208
  %v1117 = vunpack.c.h.b16 %v208
  %v1118 = vunpack.c.l.b16 %v209
  %v1119 = vunpack.c.h.b16 %v209
  %v1120 = vunpack.c.l.b16 %v210
  %v1121 = vunpack.c.h.b16 %v210
  %v1122 = vunpack.c.l.b16 %v211
  %v1123 = vunpack.c.l.b16 %v212
  %v1124 = vunpack.c.h.b16 %v212
  %v1125 = vunpack.c.l.b16 %v213
  %v1126 = vunpack.c.h.b16 %v213
  %v1127 = vunpack.c.l.b16 %v214
  %v1128 = vunpack.c.h.b16 %v214
  %v1129 = vunpack.c.l.b16 %v215
  %v1130 = vunpack.c.l.b16 %v216
  %v1131 = vunpack.c.h.b16 %v216
  %v1132 = vunpack.c.l.b16 %v217
  %v1133 = vunpack.c.h.b16 %v217
  %v1134 = vunpack.c.l.b16 %v218
  %v1135 = vunpack.c.h.b16 %v218
  %v1136 = vunpack.c.l.b16 %v219
  %v1137 = vunpack.c.l.b16 %v220
  %v1138 = vunpack.c.h.b16 %v220
  %v1139 = vunpack.c.l.b16 %v221
  %v1140 = vunpack.c.h.b16 %v221
  %v1141 = vunpack.c.l.b16 %v222
  %v1142 = vunpack.c.h.b16 %v222
  %v1143 = vunpack.c.l.b16 %v223
  %v1144 = vunpack.c.l.b16 %v224
  %v1145 = vunpack.c.h.b16 %v224
  %v1146 = vunpack.c.l.b16 %v225
  %v1147 = vunpack.c.h.b16 %v225
  %v1148 = vunpack.c.l.b16 %v226
  %v1149 = vunpack.c.h.b16 %v226
  %v1150 = vunpack.c.l.b16 %v227
  %v1151 = vunpack.c.l.b16 %v228
  %v1152 = vunpack.c.h.b16 %v228
  %v1153 = vunpack.c.l.b16 %v229
  %v1154 = vunpack.c.h.b16 %v229
  %v1155 = vunpack.c.l.b16 %v230
  %v1156 = vunpack.c.h.b16 %v230
  %v1157 = vunpack.c.l.b16 %v231
  %v1158 = vunpack.c.l.b16 %v232
  %v1159 = vunpack.c.h.b16 %v232
  %v1160 = vunpack.c.l.b16 %v233
  %v1161 = vunpack.c.h.b16 %v233
  %v1162 = vunpack.c.l.b16 %v234
  %v1163 = vunpack.c.h.b16 %v234
  %v1164 = vunpack.c.l.b16 %v235
  %v1165 = vunpack.c.l.b16 %v236
  %v1166 = vunpack.c.h.b16 %v236
  %v1167 = vunpack.c.l.b16 %v237
  %v1168 = vunpack.c.h.b16 %v237
  %v1169 = vunpack.c.l.b16 %v238
  %v1170 = vunpack.c.h.b16 %v238
  %v1171 = vunpack.c.l.b16 %v239
  %v1172 = vunpack.c.l.b16 %v240
  %v1173 = vunpack.c.h.b16 %v240
  %v1174 = vunpack.c.l.b16 %v241
  %v1175 = vunpack.c.h.b16 %v241
  %v1176 = vunpack.c.l.b16 %v242
  %v1177 = vunpack.c.h.b16 %v242
  %v1178 = vunpack.c.l.b16 %v243
  %v1179 = vunpack.c.l.b16 %v244
  %v1180 = vunpack.c.h.b16 %v244
  %v1181 = vunpack.c.l.b16 %v245
  %v1182 = vunpack.c.h.b16 %v245
  %v1183 = vunpack.c.l.b16 %v246
  %v1184 = vunpack.c.h.b16 %v246
  %v1185 = vunpack.c.l.b16 %v247
  %v1186 = vunpack.c.l.b16 %v248
  %v1187 = vunpack.c.h.b16 %v248
  %v1188 = vunpack.c.l.b16 %v249
  %v1189 = vunpack.c.h.b16 %v249
  %v1190 = vunpack.c.l.b16 %v250
  %v1191 = vunpack.c.h.b16 %v250
  %v1192 = vunpack.c.l.b16 %v251
  %v1193 = vunpack.c.l.b16 %v252
  %v1194 = vunpack.c.h.b16 %v252
  %v1195 = vunpack.c.l.b16 %v253
  %v1196 = vunpack.c.h.b16 %v253
  %v1197 = vunpack.c.l.b16 %v254
  %v1198 = vunpack.c.h.b16 %v254
  %v1199 = vunpack.c.l.b16 %v255
  %v1200 = vunpack.c.l.b16 %v256
  %v1201 = vunpack.c.h.b16 %v256
  %v1202 = vunpack.c.l.b16 %v257
  %v1203 = vunpack.c.h.b16 %v257
  %v1204 = vunpack.c.l.b16 %v258
  %v1205 = vunpack.c.h.b16 %v258
  %v1206 = vunpack.c.l.b16 %v259
  %v1207 = vunpack.c.l.b16 %v260
  %v1208 = vunpack.c.h.b16 %v260
  %v1209 = vunpack.c.l.b16 %v261
  %v1210 = vunpack.c.h.b16 %v261
  %v1211 = vunpack.c.l.b16 %v262
  %v1212 = vunpack.c.h.b16 %v262
  %v1213 = vunpack.c.l.b16 %v263
  %v1214 = vunpack.c.l.b16 %v264
  %v1215 = vunpack.c.h.b16 %v264
  %v1216 = vunpack.c.l.b16 %v265
  %v1217 = vunpack.c.h.b16 %v265
  %v1218 = vunpack.c.l.b16 %v266
  %v1219 = vunpack.c.h.b16 %v266
  %v1220 = vunpack.c.l.b16 %v267
  %v1221 = vunpack.c.l.b16 %v268
  %v1222 = vunpack.c.h.b16 %v268
  %v1223 = vunpack.c.l.b16 %v269
  %v1224 = vunpack.c.h.b16 %v269
  %v1225 = vunpack.c.l.b16 %v270
  %v1226 = vunpack.c.h.b16 %v270
  %v1227 = vunpack.c.l.b16 %v271
  %v1228 = vunpack.c.l.b16 %v272
  %v1229 = vunpack.c.h.b16 %v272
  %v1230 = vunpack.c.l.b16 %v273
  %v1231 = vunpack.c.h.b16 %v273
  %v1232 = vunpack.c.l.b16 %v274
  %v1233 = vunpack.c.h.b16 %v274
  %v1234 = vunpack.c.l.b16 %v275
  %v1235 = vunpack.c.l.b16 %v276
  %v1236 = vunpack.c.h.b16 %v276
  %v1237 = vunpack.c.l.b16 %v277
  %v1238 = vunpack.c.h.b16 %v277
  %v1239 = vunpack.c.l.b16 %v278
  %v1240 = vunpack.c.h.b16 %v278
  %v1241 = vunpack.c.l.b16 %v279
  %v1242 = vunpack.c.l.b16 %v280
  %v1243 = vunpack.c.h.b16 %v280
  %v1244 = vunpack.c.l.b16 %v281
  %v1245 = vunpack.c.h.b16 %v281
  %v1246 = vunpack.c.l.b16 %v282
  %v1247 = vunpack.c.h.b16 %v282
  %v1248 = vunpack.c.l.b16 %v283
  %v1249 = vunpack.c.l.b16 %v284
  %v1250 = vunpack.c.h.b16 %v284
  %v1251 = vunpack.c.l.b16 %v285
  %v1252 = vunpack.c.h.b16 %v285
  %v1253 = vunpack.c.l.b16 %v286
  %v1254 = vunpack.c.h.b16 %v286
  %v1255 = vunpack.c.l.b16 %v287
  %v1256 = vunpack.c.l.b16 %v288
  %v1257 = vunpack.c.h.b16 %v288
  %v1258 = vunpack.c.l.b16 %v289
  %v1259 = vunpack.c.h.b16 %v289
  %v1260 = vunpack.c.l.b16 %v290
  %v1261 = vunpack.c.h.b16 %v290
  %v1262 = vunpack.c.l.b16 %v291
  %v1263 = vunpack.c.l.b16 %v292
  %v1264 = vunpack.c.h.b16 %v292
  %v1265 = vunpack.c.l.b16 %v293
  %v1266 = vunpack.c.h.b16 %v293
  %v1267 = vunpack.c.l.b16 %v294
  %v1268 = vunpack.c.h.b16 %v294
  %v1269 = vunpack.c.l.b16 %v295
  %v1270 = vunpack.c.l.b16 %v296
  %v1271 = vunpack.c.h.b16 %v296
  %v1272 = vunpack.c.l.b16 %v297
  %v1273 = vunpack.c.h.b16 %v297
  %v1274 = vunpack.c.l.b16 %v298
  %v1275 = vunpack.c.h.b16 %v298
  %v1276 = vunpack.c.l.b16 %v299
  %v1277 = vunpack.c.l.b16 %v300
  %v1278 = vunpack.c.h.b16 %v300
  %v1279 = vunpack.c.l.b16 %v301
  %v1280 = vunpack.c.h.b16 %v301
  %v1281 = vunpack.c.l.b16 %v302
  %v1282 = vunpack.c.h.b16 %v302
  %v1283 = vunpack.c.l.b16 %v303
  %v1284 = vunpack.c.l.b16 %v304
  %v1285 = vunpack.c.h.b16 %v304
  %v1286 = vunpack.c.l.b16 %v305
  %v1287 = vunpack.c.h.b16 %v305
  %v1288 = vunpack.c.l.b16 %v306
  %v1289 = vunpack.c.h.b16 %v306
  %v1290 = vunpack.c.l.b16 %v307
  %v1291 = vunpack.c.l.b16 %v308
  %v1292 = vunpack.c.h.b16 %v308
  %v1293 = vunpack.c.l.b16 %v309
  %v1294 = vunpack.c.h.b16 %v309
  %v1295 = vunpack.c.l.b16 %v310
  %v1296 = vunpack.c.h.b16 %v310
  %v1297 = vunpack.c.l.b16 %v311
  %v1298 = vunpack.c.l.b16 %v312
  %v1299 = vunpack.c.h.b16 %v312
  %v1300 = vunpack.c.l.b16 %v313
  %v1301 = vunpack.c.h.b16 %v313
  %v1302 = vunpack.c.l.b16 %v314
  %v1303 = vunpack.c.h.b16 %v314
  %v1304 = vunpack.c.l.b16 %v315
  %v1305 = vunpack.c.l.b16 %v316
  %v1306 = vunpack.c.h.b16 %v316
  %v1307 = vunpack.c.l.b16 %v317
  %v1308 = vunpack.c.h.b16 %v317
  %v1309 = vunpack.c.l.b16 %v318
  %v1310 = vunpack.c.h.b16 %v318
  %v1311 = vunpack.c.l.b16 %v319
  %v1312 = vunpack.c.l.b16 %v320
  %v1313 = vunpack.c.h.b16 %v320
  %v1314 = vunpack.c.l.b16 %v321
  %v1315 = vunpack.c.h.b16 %v321
  %v1316 = vunpack.c.l.b16 %v322
  %v1317 = vunpack.c.h.b16 %v322
  %v1318 = vunpack.c.l.b16 %v323
  %v1319 = vunpack.c.l.b16 %v324
  %v1320 = vunpack.c.h.b16 %v324
  %v1321 = vunpack.c.l.b16 %v325
  %v1322 = vunpack.c.h.b16 %v325
  %v1323 = vunpack.c.l.b16 %v326
  %v1324 = vunpack.c.h.b16 %v326
  %v1325 = vunpack.c.l.b16 %v327
  %v1326 = vunpack.c.l.b16 %v328
  %v1327 = vunpack.c.h.b16 %v328
  %v1328 = vunpack.c.l.b16 %v329
  %v1329 = vunpack.c.h.b16 %v329
  %v1330 = vunpack.c.l.b16 %v330
  %v1331 = vunpack.c.h.b16 %v330
  %v1332 = vunpack.c.l.b16 %v331
  %v1333 = vunpack.c.l.b16 %v332
  %v1334 = vunpack.c.h.b16 %v332
  %v1335 = vunpack.c.l.b16 %v333
  %v1336 = vunpack.c.h.b16 %v333
  %v1337 = vunpack.c.l.b16 %v334
  %v1338 = vunpack.c.h.b16 %v334
  %v1339 = vunpack.c.l.b16 %v335
  %v1340 = vunpack.c.l.b16 %v336
  %v1341 = vunpack.c.h.b16 %v336
  %v1342 = vunpack.c.l.b16 %v337
  %v1343 = vunpack.c.h.b16 %v337
  %v1344 = vunpack.c.l.b16 %v338
  %v1345 = vunpack.c.h.b16 %v338
  %v1346 = vunpack.c.l.b16 %v339
  %v1347 = vunpack.c.l.b16 %v340
  %v1348 = vunpack.c.h.b16 %v340
  %v1349 = vunpack.c.l.b16 %v341
  %v1350 = vunpack.c.h.b16 %v341
  %v1351 = vunpack.c.l.b16 %v342
  %v1352 = vunpack.c.h.b16 %v342
  %v1353 = vunpack.c.l.b16 %v343
  %v1354 = vunpack.c.l.b16 %v344
  %v1355 = vunpack.c.h.b16 %v344
  %v1356 = vunpack.c.l.b16 %v345
  %v1357 = vunpack.c.h.b16 %v345
  %v1358 = vunpack.c.l.b16 %v346
  %v1359 = vunpack.c.h.b16 %v346
  %v1360 = vunpack.c.l.b16 %v347
  %v1361 = vunpack.c.l.b16 %v348
  %v1362 = vunpack.c.h.b16 %v348
  %v1363 = vunpack.c.l.b16 %v349
  %v1364 = vunpack.c.h.b16 %v349
  %v1365 = vunpack.c.l.b16 %v350
  %v1366 = vunpack.c.h.b16 %v350
  %v1367 = vunpack.c.l.b16 %v351
  %v1368 = vunpack.c.l.b16 %v352
  %v1369 = vunpack.c.h.b16 %v352
  %v1370 = vunpack.c.l.b16 %v353
  %v1371 = vunpack.c.h.b16 %v353
  %v1372 = vunpack.c.l.b16 %v354
  %v1373 = vunpack.c.h.b16 %v354
  %v1374 = vunpack.c.l.b16 %v355
  %v1375 = vunpack.c.l.b16 %v356
  %v1376 = vunpack.c.h.b16 %v356
  %v1377 = vunpack.c.l.b16 %v357
  %v1378 = vunpack.c.h.b16 %v357
  %v1379 = vunpack.c.l.b16 %v358
  %v1380 = vunpack.c.h.b16 %v358
  %v1381 = vunpack.c.l.b16 %v359
  %v1382 = vunpack.c.l.b16 %v360
  %v1383 = vunpack.c.h.b16 %v360
  %v1384 = vunpack.c.l.b16 %v361
  %v1385 = vunpack.c.h.b16 %v361
  %v1386 = vunpack.c.l.b16 %v362
  %v1387 = vunpack.c.h.b16 %v362
  %v1388 = vunpack.c.l.b16 %v363
  %v1389 = vunpack.c.l.b16 %v364
  %v1390 = vunpack.c.h.b16 %v364
  %v1391 = vunpack.c.l.b16 %v365
  %v1392 = vunpack.c.h.b16 %v365
  %v1393 = vunpack.c.l.b16 %v366
  %v1394 = vunpack.c.h.b16 %v366
  %v1395 = vunpack.c.l.b16 %v367
  %v1396 = vunpack.c.l.b16 %v368
  %v1397 = vunpack.c.h.b16 %v368
  %v1398 = vunpack.c.l.b16 %v369
  %v1399 = vunpack.c.h.b16 %v369
  %v1400 = vunpack.c.l.b16 %v370
  %v1401 = vunpack.c.h.b16 %v370
  %v1402 = vunpack.c.l.b16 %v371
  %v1403 = vunpack.c.l.b16 %v372
  %v1404 = vunpack.c.h.b16 %v372
  %v1405 = vunpack.c.l.b16 %v373
  %v1406 = vunpack.c.h.b16 %v373
  %v1407 = vunpack.c.l.b16 %v374
  %v1408 = vunpack.c.h.b16 %v374
  %v1409 = vunpack.c.l.b16 %v375
  %v1410 = vunpack.c.l.b16 %v376
  %v1411 = vunpack.c.h.b16 %v376
  %v1412 = vunpack.c.l.b16 %v377
  %v1413 = vunpack.c.h.b16 %v377
  %v1414 = vunpack.c.l.b16 %v378
  %v1415 = vunpack.c.h.b16 %v378
  %v1416 = vunpack.c.l.b16 %v379
  %v1417 = vunpack.c.l.b16 %v380
  %v1418 = vunpack.c.h.b16 %v380
  %v1419 = vunpack.c.l.b16 %v381
  %v1420 = vunpack.c.h.b16 %v381
  %v1421 = vunpack.c.l.b16 %v382
  %v1422 = vunpack.c.h.b16 %v382
  %v1423 = vunpack.c.l.b16 %v383
  %v1424 = vunpack.c.l.b16 %v384
  %v1425 = vunpack.c.h.b16 %v384
  %v1426 = vunpack.c.l.b16 %v385
  %v1427 = vunpack.c.h.b16 %v385
  %v1428 = vunpack.c.l.b16 %v386
  %v1429 = vunpack.c.h.b16 %v386
  %v1430 = vunpack.c.l.b16 %v387
  %v1431 = vunpack.c.l.b16 %v388
  %v1432 = vunpack.c.h.b16 %v388
  %v1433 = vunpack.c.l.b16 %v389
  %v1434 = vunpack.c.h.b16 %v389
  %v1435 = vunpack.c.l.b16 %v390
  %v1436 = vunpack.c.h.b16 %v390
  %v1437 = vunpack.c.l.b16 %v391
  %v1438 = vunpack.c.l.b16 %v392
  %v1439 = vunpack.c.h.b16 %v392
  %v1440 = vunpack.c.l.b16 %v393
  %v1441 = vunpack.c.h.b16 %v393
  %v1442 = vunpack.c.l.b16 %v394
  %v1443 = vunpack.c.h.b16 %v394
  %v1444 = vunpack.c.l.b16 %v395
  %v1445 = vunpack.c.l.b16 %v396
  %v1446 = vunpack.c.h.b16 %v396
  %v1447 = vunpack.c.l.b16 %v397
  %v1448 = vunpack.c.h.b16 %v397
  %v1449 = vunpack.c.l.b16 %v398
  %v1450 = vunpack.c.h.b16 %v398
  %v1451 = vunpack.c.l.b16 %v399
  %v1452 = vunpack.c.l.b16 %v400
  %v1453 = vunpack.c.h.b16 %v400
  %v1454 = vunpack.c.l.b16 %v401
  %v1455 = vunpack.c.h.b16 %v401
  %v1456 = vunpack.c.l.b16 %v402
  %v1457 = vunpack.c.h.b16 %v402
  %v1458 = vunpack.c.l.b16 %v403
  %v1459 = vunpack.c.l.b16 %v404
  %v1460 = vunpack.c.h.b16 %v404
  %v1461 = vunpack.c.l.b16 %v405
  %v1462 = vunpack.c.h.b16 %v405
  %v1463 = vunpack.c.l.b16 %v406
  %v1464 = vunpack.c.h.b16 %v406
  %v1465 = vunpack.c.l.b16 %v407
  %v1466 = vunpack.c.l.b16 %v408
  %v1467 = vunpack.c.h.b16 %v408
  %v1468 = vunpack.c.l.b16 %v409
  %v1469 = vunpack.c.h.b16 %v409
  %v1470 = vunpack.c.l.b16 %v410
  %v1471 = vunpack.c.h.b16 %v410
  %v1472 = vunpack.c.l.b16 %v411
  %v1473 = vunpack.c.l.b16 %v412
  %v1474 = vunpack.c.h.b16 %v412
  %v1475 = vunpack.c.l.b16 %v413
  %v1476 = vunpack.c.h.b16 %v413
  %v1477 = vunpack.c.l.b16 %v414
  %v1478 = vunpack.c.h.b16 %v414
  %v1479 = vunpack.c.l.b16 %v415
  %v1480 = vunpack.c.l.b16 %v416
  %v1481 = vunpack.c.h.b16 %v416
  %v1482 = vunpack.c.l.b16 %v417
  %v1483 = vunpack.c.h.b16 %v417
  %v1484 = vunpack.c.l.b16 %v418
  %v1485 = vunpack.c.h.b16 %v418
  %v1486 = vunpack.c.l.b16 %v419
  %v1487 = vunpack.c.l.b16 %v420
  %v1488 = vunpack.c.h.b16 %v420
  %v1489 = vunpack.c.l.b16 %v421
  %v1490 = vunpack.c.h.b16 %v421
  %v1491 = vunpack.c.l.b16 %v422
  %v1492 = vunpack.c.h.b16 %v422
  %v1493 = vunpack.c.l.b16 %v423
  %v1494 = vunpack.c.l.b16 %v424
  %v1495 = vunpack.c.h.b16 %v424
  %v1496 = vunpack.c.l.b16 %v425
  %v1497 = vunpack.c.h.b16 %v425
  %v1498 = vunpack.c.l.b16 %v426
  %v1499 = vunpack.c.h.b16 %v426
  %v1500 = vunpack.c.l.b16 %v427
  %v1501 = vunpack.c.l.b16 %v428
  %v1502 = vunpack.c.h.b16 %v428
  %v1503 = vunpack.c.l.b16 %v429
  %v1504 = vunpack.c.h.b16 %v429
  %v1505 = vunpack.c.l.b16 %v430
  %v1506 = vunpack.c.h.b16 %v430
  %v1507 = vunpack.c.l.b16 %v431
  %v1508 = vunpack.c.l.b16 %v432
  %v1509 = vunpack.c.h.b16 %v432
  %v1510 = vunpack.c.l.b16 %v433
  %v1511 = vunpack.c.h.b16 %v433
  %v1512 = vunpack.c.l.b16 %v434
  %v1513 = vunpack.c.h.b16 %v434
  %v1514 = vunpack.c.l.b16 %v435
  %v1515 = vunpack.c.l.b16 %v436
  %v1516 = vunpack.c.h.b16 %v436
  %v1517 = vunpack.c.l.b16 %v437
  %v1518 = vunpack.c.h.b16 %v437
  %v1519 = vunpack.c.l.b16 %v438
  %v1520 = vunpack.c.h.b16 %v438
  %v1521 = vunpack.c.l.b16 %v439
  %v1522 = vunpack.c.l.b16 %v440
  %v1523 = vunpack.c.h.b16 %v440
  %v1524 = vunpack.c.l.b16 %v441
  %v1525 = vunpack.c.h.b16 %v441
  %v1526 = vunpack.c.l.b16 %v442
  %v1527 = vunpack.c.h.b16 %v442
  %v1528 = vunpack.c.l.b16 %v443
  %v1529 = vunpack.c.l.b16 %v444
  %v1530 = vunpack.c.h.b16 %v444
  %v1531 = vunpack.c.l.b16 %v445
  %v1532 = vunpack.c.h.b16 %v445
  %v1533 = vunpack.c.l.b16 %v446
  %v1534 = vunpack.c.h.b16 %v446
  %v1535 = vunpack.c.l.b16 %v447
  %v1536 = vunpack.c.l.b16 %v448
  %v1537 = vunpack.c.h.b16 %v448
  %v1538 = vunpack.c.l.b16 %v449
  %v1539 = vunpack.c.h.b16 %v449
  %v1540 = vunpack.c.l.b16 %v450
  %v1541 = vunpack.c.h.b16 %v450
  %v1542 = vunpack.c.l.b16 %v451
  %v1543 = vunpack.c.l.b16 %v452
  %v1544 = vunpack.c.h.b16 %v452
  %v1545 = vunpack.c.l.b16 %v453
  %v1546 = vunpack.c.h.b16 %v453
  %v1547 = vunpack.c.l.b16 %v454
  %v1548 = vunpack.c.h.b16 %v454
  %v1549 = vunpack.c.l.b16 %v455
  %v1550 = vunpack.c.l.b16 %v456
  %v1551 = vunpack.c.h.b16 %v456
  %v1552 = vunpack.c.l.b16 %v457
  %v1553 = vunpack.c.h.b16 %v457
  %v1554 = vunpack.c.l.b16 %v458
  %v1555 = vunpack.c.h.b16 %v458
  %v1556 = vunpack.c.l.b16 %v459
  %v1557 = vunpack.c.l.b16 %v460
  %v1558 = vunpack.c.h.b16 %v460
  %v1559 = vunpack.c.l.b16 %v461
  %v1560 = vunpack.c.h.b16 %v461
  %v1561 = vunpack.c.l.b16 %v462
  %v1562 = vunpack.c.h.b16 %v462
  %v1563 = vunpack.c.l.b16 %v463
  %v1564 = vunpack.c.l.b16 %v464
  %v1565 = vunpack.c.h.b16 %v464
  %v1566 = vunpack.c.l.b16 %v465
  %v1567 = vunpack.c.h.b16 %v465
  %v1568 = vunpack.c.l.b16 %v466
  %v1569 = vunpack.c.h.b16 %v466
  %v1570 = vunpack.c.l.b16 %v467
  %v1571 = vunpack.c.l.b16 %v468
  %v1572 = vunpack.c.h.b16 %v468
  %v1573 = vunpack.c.l.b16 %v469
  %v1574 = vunpack.c.h.b16 %v469
  %v1575 = vunpack.c.l.b16 %v470
  %v1576 = vunpack.c.h.b16 %v470
  %v1577 = vunpack.c.l.b16 %v471
  %v1578 = vunpack.c.l.b16 %v472
  %v1579 = vunpack.c.h.b16 %v472
  %v1580 = vunpack.c.l.b16 %v473
  %v1581 = vunpack.c.h.b16 %v473
  %v1582 = vunpack.c.l.b16 %v474
  %v1583 = vunpack.c.h.b16 %v474
  %v1584 = vunpack.c.l.b16 %v475
  %v1585 = vunpack.c.l.b16 %v476
  %v1586 = vunpack.c.h.b16 %v476
  %v1587 = vunpack.c.l.b16 %v477
  %v1588 = vunpack.c.h.b16 %v477
  %v1589 = vunpack.c.l.b16 %v478
  %v1590 = vunpack.c.h.b16 %v478
  %v1591 = vunpack.c.l.b16 %v479
  %v1592 = vunpack.c.l.b16 %v480
  %v1593 = vunpack.c.h.b16 %v480
  %v1594 = vunpack.c.l.b16 %v481
  %v1595 = vunpack.c.h.b16 %v481
  %v1596 = vunpack.c.l.b16 %v482
  %v1597 = vunpack.c.h.b16 %v482
  %v1598 = vunpack.c.l.b16 %v483
  %v1599 = vpack.c.b16 %v920, %v913
  %v1600 = vpack.c.b16 %v921, %v914
  %v1601 = vpack.c.b16 %v922, %v915
  %v1602 = vpack.c.b16 %v923, %v916
  %v1603 = vpack.c.b16 %v924, %v917
  %v1604 = vpack.c.b16 %v925, %v918
  %v1605 = vpack.c.b16 %v926, %v919
  %v1606 = vpack.c.b16 %v934, %v927
  %v1607 = vpack.c.b16 %v935, %v928
  %v1608 = vpack.c.b16 %v936, %v929
  %v1609 = vpack.c.b16 %v937, %v930
  %v1610 = vpack.c.b16 %v938, %v931
  %v1611 = vpack.c.b16 %v939, %v932
  %v1612 = vpack.c.b16 %v940, %v933
  %v1613 = vpack.c.b16 %v948, %v941
  %v1614 = vpack.c.b16 %v949, %v942
  %v1615 = vpack.c.b16 %v950, %v943
  %v1616 = vpack.c.b16 %v951, %v944
  %v1617 = vpack.c.b16 %v952, %v945
  %v1618 = vpack.c.b16 %v953, %v946
  %v1619 = vpack.c.b16 %v954, %v947
  %v1620 = vpack.c.b16 %v962, %v955
  %v1621 = vpack.c.b16 %v963, %v956
  %v1622 = vpack.c.b16 %v964, %v957
  %v1623 = vpack.c.b16 %v965, %v958
  %v1624 = vpack.c.b16 %v966, %v959
  %v1625 = vpack.c.b16 %v967, %v960
  %v1626 = vpack.c.b16 %v968, %v961
  %v1627 = vpack.c.b16 %v976, %v969
  %v1628 = vpack.c.b16 %v977, %v970
  %v1629 = vpack.c.b16 %v978, %v971
  %v1630 = vpack.c.b16 %v979, %v972
  %v1631 = vpack.c.b16 %v980, %v973
  %v1632 = vpack.c.b16 %v981, %v974
  %v1633 = vpack.c.b16 %v982, %v975
  %v1634 = vpack.c.b16 %v990, %v983
  %v1635 = vpack.c.b16 %v991, %v984
  %v1636 = vpack.c.b16 %v992, %v985
  %v1637 = vpack.c.b16 %v993, %v986
  %v1638 = vpack.c.b16 %v994, %v987
  %v1639 = vpack.c.b16 %v995, %v988
  %v1640 = vpack.c.b16 %v996, %v989
  %v1641 = vpack.c.b16 %v1004, %v997
  %v1642 = vpack.c.b16 %v1005, %v998
  %v1643 = vpack.c.b16 %v1006, %v999
  %v1644 = vpack.c.b16 %v1007, %v1000
  %v1645 = vpack.c.b16 %v1008, %v1001
  %v1646 = vpack.c.b16 %v1009, %v1002
  %v1647 = vpack.c.b16 %v1010, %v1003
  %v1648 = vpack.c.b16 %v1018, %v1011
  %v1649 = vpack.c.b16 %v1019, %v1012
  %v1650 = vpack.c.b16 %v1020, %v1013
  %v1651 = vpack.c.b16 %v1021, %v1014
  %v1652 = vpack.c.b16 %v1022, %v1015
  %v1653 = vpack.c.b16 %v1023, %v1016
  %v1654 = vpack.c.b16 %v1024, %v1017
  %v1655 = vpack.c.b16 %v1032, %v1025
  %v1656 = vpack.c.b16 %v1033, %v1026
  %v1657 = vpack.c.b16 %v1034, %v1027
  %v1658 = vpack.c.b16 %v1035, %v1028
  %v1659 = vpack.c.b16 %v1036, %v1029
  %v1660 = vpack.c.b16 %v1037, %v1030
  %v1661 = vpack.c.b16 %v1038, %v1031
  %v1662 = vpack.c.b16 %v1046, %v1039
  %v1663 = vpack.c.b16 %v1047, %v1040
  %v1664 = vpack.c.b16 %v1048, %v1041
  %v1665 = vpack.c.b16 %v1049, %v1042
  %v1666 = vpack.c.b16 %v1050, %v1043
  %v1667 = vpack.c.b16 %v1051, %v1044
  %v1668 = vpack.c.b16 %v1052, %v1045
  %v1669 = vpack.c.b16 %v1060, %v1053
  %v1670 = vpack.c.b16 %v1061, %v1054
  %v1671 = vpack.c.b16 %v1062, %v1055
  %v1672 = vpack.c.b16 %v1063, %v1056
  %v1673 = vpack.c.b16 %v1064, %v1057
  %v1674 = vpack.c.b16 %v1065, %v1058
  %v1675 = vpack.c.b16 %v1066, %v1059
  %v1676 = vpack.c.b16 %v1074, %v1067
  %v1677 = vpack.c.b16 %v1075, %v1068
  %v1678 = vpack.c.b16 %v1076, %v1069
  %v1679 = vpack.c.b16 %v1077, %v1070
  %v1680 = vpack.c.b16 %v1078, %v1071
  %v1681 = vpack.c.b16 %v1079, %v1072
  %v1682 = vpack.c.b16 %v1080, %v1073
  %v1683 = vpack.c.b16 %v1088, %v1081
  %v1684 = vpack.c.b16 %v1089, %v1082
  %v1685 = vpack.c.b16 %v1090, %v1083
  %v1686 = vpack.c.b16 %v1091, %v1084
  %v1687 = vpack.c.b16 %v1092, %v1085
  %v1688 = vpack.c.b16 %v1093, %v1086
  %v1689 = vpack.c.b16 %v1094, %v1087
  %v1690 = vpack.c.b16 %v1102, %v1095
  %v1691 = vpack.c.b16 %v1103, %v1096
  %v1692 = vpack.c.b16 %v1104, %v1097
  %v1693 = vpack.c.b16 %v1105, %v1098
  %v1694 = vpack.c.b16 %v1106, %v1099
  %v1695 = vpack.c.b16 %v1107, %v1100
  %v1696 = vpack.c.b16 %v1108, %v1101
  %v1697 = vpack.c.b16 %v1116, %v1109
  %v1698 = vpack.c.b16 %v1117, %v1110
  %v1699 = vpack.c.b16 %v1118, %v1111
  %v1700 = vpack.c.b16 %v1119, %v1112
  %v1701 = vpack.c.b16 %v1120, %v1113
  %v1702 = vpack.c.b16 %v1121, %v1114
  %v1703 = vpack.c.b16 %v1122, %v1115
  %v1704 = vpack.c.b16 %v1130, %v1123
  %v1705 = vpack.c.b16 %v1131, %v1124
  %v1706 = vpack.c.b16 %v1132, %v1125
  %v1707 = vpack.c.b16 %v1133, %v1126
  %v1708 = vpack.c.b16 %v1134, %v1127
  %v1709 = vpack.c.b16 %v1135, %v1128
  %v1710 = vpack.c.b16 %v1136, %v1129
  %v1711 = vpack.c.b16 %v1144, %v1137
  %v1712 = vpack.c.b16 %v1145, %v1138
  %v1713 = vpack.c.b16 %v1146, %v1139
  %v1714 = vpack.c.b16 %v1147, %v1140
  %v1715 = vpack.c.b16 %v1148, %v1141
  %v1716 = vpack.c.b16 %v1149, %v1142
  %v1717 = vpack.c.b16 %v1150, %v1143
  %v1718 = vpack.c.b16 %v1158, %v1151
  %v1719 = vpack.c.b16 %v1159, %v1152
  %v1720 = vpack.c.b16 %v1160, %v1153
  %v1721 = vpack.c.b16 %v1161, %v1154
  %v1722 = vpack.c.b16 %v1162, %v1155
  %v1723 = vpack.c.b16 %v1163, %v1156
  %v1724 = vpack.c.b16 %v1164, %v1157
  %v1725 = vpack.c.b16 %v1172, %v1165
  %v1726 = vpack.c.b16 %v1173, %v1166
  %v1727 = vpack.c.b16 %v1174, %v1167
  %v1728 = vpack.c.b16 %v1175, %v1168
  %v1729 = vpack.c.b16 %v1176, %v1169
  %v1730 = vpack.c.b16 %v1177, %v1170
  %v1731 = vpack.c.b16 %v1178, %v1171
  %v1732 = vpack.c.b16 %v1186, %v1179
  %v1733 = vpack.c.b16 %v1187, %v1180
  %v1734 = vpack.c.b16 %v1188, %v1181
  %v1735 = vpack.c.b16 %v1189, %v1182
  %v1736 = vpack.c.b16 %v1190, %v1183
  %v1737 = vpack.c.b16 %v1191, %v1184
  %v1738 = vpack.c.b16 %v1192, %v1185
  %v1739 = vpack.c.b16 %v1200, %v1193
  %v1740 = vpack.c.b16 %v1201, %v1194
  %v1741 = vpack.c.b16 %v1202, %v1195
  %v1742 = vpack.c.b16 %v1203, %v1196
  %v1743 = vpack.c.b16 %v1204, %v1197
  %v1744 = vpack.c.b16 %v1205, %v1198
  %v1745 = vpack.c.b16 %v1206, %v1199
  %v1746 = vpack.c.b16 %v1214, %v1207
  %v1747 = vpack.c.b16 %v1215, %v1208
  %v1748 = vpack.c.b16 %v1216, %v1209
  %v1749 = vpack.c.b16 %v1217, %v1210
  %v1750 = vpack.c.b16 %v1218, %v1211
  %v1751 = vpack.c.b16 %v1219, %v1212
  %v1752 = vpack.c.b16 %v1220, %v1213
  %v1753 = vpack.c.b16 %v1228, %v1221
  %v1754 = vpack.c.b16 %v1229, %v1222
  %v1755 = vpack.c.b16 %v1230, %v1223
  %v1756 = vpack.c.b16 %v1231, %v1224
  %v1757 = vpack.c.b16 %v1232, %v1225
  %v1758 = vpack.c.b16 %v1233, %v1226
  %v1759 = vpack.c.b16 %v1234, %v1227
  %v1760 = vpack.c.b16 %v1242, %v1235
  %v1761 = vpack.c.b16 %v1243, %v1236
  %v1762 = vpack.c.b16 %v1244, %v1237
  %v1763 = vpack.c.b16 %v1245, %v1238
  %v1764 = vpack.c.b16 %v1246, %v1239
  %v1765 = vpack.c.b16 %v1247, %v1240
  %v1766 = vpack.c.b16 %v1248, %v1241
  %v1767 = vpack.c.b16 %v1256, %v1249
  %v1768 = vpack.c.b16 %v1257, %v1250
  %v1769 = vpack.c.b16 %v1258, %v1251
  %v1770 = vpack.c.b16 %v1259, %v1252
  %v1771 = vpack.c.b16 %v1260, %v1253
  %v1772 = vpack.c.b16 %v1261, %v1254
  %v1773 = vpack.c.b16 %v1262, %v1255
  %v1774 = vpack.c.b16 %v1270, %v1263
  %v1775 = vpack.c.b16 %v1271, %v1264
  %v1776 = vpack.c.b16 %v1272, %v1265
  %v1777 = vpack.c.b16 %v1273, %v1266
  %v1778 = vpack.c.b16 %v1274, %v1267
  %v1779 = vpack.c.b16 %v1275, %v1268
  %v1780 = vpack.c.b16 %v1276, %v1269
  %v1781 = vpack.c.b16 %v1284, %v1277
  %v1782 = vpack.c.b16 %v1285, %v1278
  %v1783 = vpack.c.b16 %v1286, %v1279
  %v1784 = vpack.c.b16 %v1287, %v1280
  %v1785 = vpack.c.b16 %v1288, %v1281
  %v1786 = vpack.c.b16 %v1289, %v1282
  %v1787 = vpack.c.b16 %v1290, %v1283
  %v1788 = vpack.c.b16 %v1298, %v1291
  %v1789 = vpack.c.b16 %v1299, %v1292
  %v1790 = vpack.c.b16 %v1300, %v1293
  %v1791 = vpack.c.b16 %v1301, %v1294
  %v1792 = vpack.c.b16 %v1302, %v1295
  %v1793 = vpack.c.b16 %v1303, %v1296
  %v1794 = vpack.c.b16 %v1304, %v1297
  %v1795 = vpack.c.b16 %v1312, %v1305
  %v1796 = vpack.c.b16 %v1313, %v1306
  %v1797 = vpack.c.b16 %v1314, %v1307
  %v1798 = vpack.c.b16 %v1315, %v1308
  %v1799 = vpack.c.b16 %v1316, %v1309
  %v1800 = vpack.c.b16 %v1317, %v1310
  %v1801 = vpack.c.b16 %v1318, %v1311
  %v1802 = vpack.c.b16 %v1326, %v1319
  %v1803 = vpack.c.b16 %v1327, %v1320
  %v1804 = vpack.c.b16 %v1328, %v1321
  %v1805 = vpack.c.b16 %v1329, %v1322
  %v1806 = vpack.c.b16 %v1330, %v1323
  %v1807 = vpack.c.b16 %v1331, %v1324
  %v1808 = vpack.c.b16 %v1332, %v1325
  %v1809 = vpack.c.b16 %v1340, %v1333
  %v1810 = vpack.c.b16 %v1341, %v1334
  %v1811 = vpack.c.b16 %v1342, %v1335
  %v1812 = vpack.c.b16 %v1343, %v1336
  %v1813 = vpack.c.b16 %v1344, %v1337
  %v1814 = vpack.c.b16 %v1345, %v1338
  %v1815 = vpack.c.b16 %v1346, %v1339
  %v1816 = vpack.c.b16 %v1354, %v1347
  %v1817 = vpack.c.b16 %v1355, %v1348
  %v1818 = vpack.c.b16 %v1356, %v1349
  %v1819 = vpack.c.b16 %v1357, %v1350
  %v1820 = vpack.c.b16 %v1358, %v1351
  %v1821 = vpack.c.b16 %v1359, %v1352
  %v1822 = vpack.c.b16 %v1360, %v1353
  %v1823 = vpack.c.b16 %v1368, %v1361
  %v1824 = vpack.c.b16 %v1369, %v1362
  %v1825 = vpack.c.b16 %v1370, %v1363
  %v1826 = vpack.c.b16 %v1371, %v1364
  %v1827 = vpack.c.b16 %v1372, %v1365
  %v1828 = vpack.c.b16 %v1373, %v1366
  %v1829 = vpack.c.b16 %v1374, %v1367
  %v1830 = vpack.c.b16 %v1382, %v1375
  %v1831 = vpack.c.b16 %v1383, %v1376
  %v1832 = vpack.c.b16 %v1384, %v1377
  %v1833 = vpack.c.b16 %v1385, %v1378
  %v1834 = vpack.c.b16 %v1386, %v1379
  %v1835 = vpack.c.b16 %v1387, %v1380
  %v1836 = vpack.c.b16 %v1388, %v1381
  %v1837 = vpack.c.b16 %v1396, %v1389
  %v1838 = vpack.c.b16 %v1397, %v1390
  %v1839 = vpack.c.b16 %v1398, %v1391
  %v1840 = vpack.c.b16 %v1399, %v1392
  %v1841 = vpack.c.b16 %v1400, %v1393
  %v1842 = vpack.c.b16 %v1401, %v1394
  %v1843 = vpack.c.b16 %v1402, %v1395
  %v1844 = vpack.c.b16 %v1410, %v1403
  %v1845 = vpack.c.b16 %v1411, %v1404
  %v1846 = vpack.c.b16 %v1412, %v1405
  %v1847 = vpack.c.b16 %v1413, %v1406
  %v1848 = vpack.c.b16 %v1414, %v1407
  %v1849 = vpack.c.b16 %v1415, %v1408
  %v1850 = vpack.c.b16 %v1416, %v1409
  %v1851 = vpack.c.b16 %v1424, %v1417
  %v1852 = vpack.c.b16 %v1425, %v1418
  %v1853 = vpack.c.b16 %v1426, %v1419
  %v1854 = vpack.c.b16 %v1427, %v1420
  %v1855 = vpack.c.b16 %v1428, %v1421
  %v1856 = vpack.c.b16 %v1429, %v1422
  %v1857 = vpack.c.b16 %v1430, %v1423
  %v1858 = vpack.c.b16 %v1438, %v1431
  %v1859 = vpack.c.b16 %v1439, %v1432
  %v1860 = vpack.c.b16 %v1440, %v1433
  %v1861 = vpack.c.b16 %v1441, %v1434
  %v1862 = vpack.c.b16 %v1442, %v1435
  %v1863 = vpack.c.b16 %v1443, %v1436
  %v1864 = vpack.c.b16 %v1444, %v1437
  %v1865 = vpack.c.b16 %v1452, %v1445
  %v1866 = vpack.c.b16 %v1453, %v1446
  %v1867 = vpack.c.b16 %v1454, %v1447
  %v1868 = vpack.c.b16 %v1455, %v1448
  %v1869 = vpack.c.b16 %v1456, %v1449
  %v1870 = vpack.c.b16 %v1457, %v1450
  %v1871 = vpack.c.b16 %v1458, %v1451
  %v1872 = vpack.c.b16 %v1466, %v1459
  %v1873 = vpack.c.b16 %v1467, %v1460
  %v1874 = vpack.c.b16 %v1468, %v1461
  %v1875 = vpack.c.b16 %v1469, %v1462
  %v1876 = vpack.c.b16 %v1470, %v1463
  %v1877 = vpack.c.b16 %v1471, %v1464
  %v1878 = vpack.c.b16 %v1472, %v1465
  %v1879 = vpack.c.b16 %v1480, %v1473
  %v1880 = vpack.c.b16 %v1481, %v1474
  %v1881 = vpack.c.b16 %v1482, %v1475
  %v1882 = vpack.c.b16 %v1483, %v1476
  %v1883 = vpack.c.b16 %v1484, %v1477
  %v1884 = vpack.c.b16 %v1485, %v1478
  %v1885 = vpack.c.b16 %v1486, %v1479
  %v1886 = vpack.c.b16 %v1494, %v1487
  %v1887 = vpack.c.b16 %v1495, %v1488
  %v1888 = vpack.c.b16 %v1496, %v1489
  %v1889 = vpack.c.b16 %v1497, %v1490
  %v1890 = vpack.c.b16 %v1498, %v1491
  %v1891 = vpack.c.b16 %v1499, %v1492
  %v1892 = vpack.c.b16 %v1500, %v1493
  %v1893 = vpack.c.b16 %v1508, %v1501
  %v1894 = vpack.c.b16 %v1509, %v1502
  %v1895 = vpack.c.b16 %v1510, %v1503
  %v1896 = vpack.c.b16 %v1511, %v1504
  %v1897 = vpack.c.b16 %v1512, %v1505
  %v1898 = vpack.c.b16 %v1513, %v1506
  %v1899 = vpack.c.b16 %v1514, %v1507
  %v1900 = vpack.c.b16 %v1522, %v1515
  %v1901 = vpack.c.b16 %v1523, %v1516
  %v1902 = vpack.c.b16 %v1524, %v1517
  %v1903 = vpack.c.b16 %v1525, %v1518
  %v1904 = vpack.c.b16 %v1526, %v1519
  %v1905 = vpack.c.b16 %v1527, %v1520
  %v1906 = vpack.c.b16 %v1528, %v1521
  %v1907 = vpack.c.b16 %v1536, %v1529
  %v1908 = vpack.c.b16 %v1537, %v1530
  %v1909 = vpack.c.b16 %v1538, %v1531
  %v1910 = vpack.c.b16 %v1539, %v1532
  %v1911 = vpack.c.b16 %v1540, %v1533
  %v1912 = vpack.c.b16 %v1541, %v1534
  %v1913 = vpack.c.b16 %v1542, %v1535
  %v1914 = vpack.c.b16 %v1550, %v1543
  %v1915 = vpack.c.b16 %v1551, %v1544
  %v1916 = vpack.c.b16 %v1552, %v1545
  %v1917 = vpack.c.b16 %v1553, %v1546
  %v1918 = vpack.c.b16 %v1554, %v1547
  %v1919 = vpack.c.b16 %v1555, %v1548
  %v1920 = vpack.c.b16 %v1556, %v1549
  %v1921 = vpack.c.b16 %v1564, %v1557
  %v1922 = vpack.c.b16 %v1565, %v1558
  %v1923 = vpack.c.b16 %v1566, %v1559
  %v1924 = vpack.c.b16 %v1567, %v1560
  %v1925 = vpack.c.b16 %v1568, %v1561
  %v1926 = vpack.c.b16 %v1569, %v1562
  %v1927 = vpack.c.b16 %v1570, %v1563
  %v1928 = vpack.c.b16 %v1578, %v1571
  %v1929 = vpack.c.b16 %v1579, %v1572
  %v1930 = vpack.c.b16 %v1580, %v1573
  %v1931 = vpack.c.b16 %v1581, %v1574
  %v1932 = vpack.c.b16 %v1582, %v1575
  %v1933 = vpack.c.b16 %v1583, %v1576
  %v1934 = vpack.c.b16 %v1584, %v1577
  %v1935 = vpack.c.b16 %v1592, %v1585
  %v1936 = vpack.c.b16 %v1593, %v1586
  %v1937 = vpack.c.b16 %v1594, %v1587
  %v1938 = vpack.c.b16 %v1595, %v1588
  %v1939 = vpack.c.b16 %v1596, %v1589
  %v1940 = vpack.c.b16 %v1597, %v1590
  %v1941 = vpack.c.b16 %v1598, %v1591
  %vm2285 = vcmask 130048
  %v2287 = vsel %vm2285, %v91, 0
  %2289 = vmatprep.subr.bf16.mxu0 %v1649
  %2290 = vmatpush1.bf16.msra.mxu0 %v1648
  %2291 = vmatprep.subr.bf16.mxu0 %v1642
  %2292 = vmatpush1.bf16.msra.mxu0 %v1641
  %2293 = vmatprep.subr.bf16.mxu0 %v1635
  %2294 = vmatpush1.bf16.msra.mxu0 %v1634
  %2295 = vmatprep.subr.bf16.mxu0 %v1628
  %2296 = vmatpush1.bf16.msra.mxu0 %v1627
  %2297 = vmatprep.subr.bf16.mxu0 %v1621
  %2298 = vmatpush1.bf16.msra.mxu0 %v1620
  %2299 = vmatprep.subr.bf16.mxu0 %v1614
  %2300 = vmatpush1.bf16.msra.mxu0 %v1613
  %2301 = vmatprep.subr.bf16.mxu0 %v1607
  %2302 = vmatpush1.bf16.msra.mxu0 %v1606
  %2303 = vmatprep.subr.bf16.mxu0 %v1600
  %2304 = vmatpush1.bf16.msra.mxu0 %v1599
  %2305 = vmatprep.subr.bf16.mxu0 %v1705
  %2306 = vmatpush2.bf16.msra.mxu0 %v1704
  %2307 = vmatprep.subr.bf16.mxu0 %v1698
  %2308 = vmatpush2.bf16.msra.mxu0 %v1697
  %2309 = vmatprep.subr.bf16.mxu0 %v1691
  %2310 = vmatpush2.bf16.msra.mxu0 %v1690
  %2311 = vmatprep.subr.bf16.mxu0 %v1684
  %2312 = vmatpush2.bf16.msra.mxu0 %v1683
  %2313 = vmatprep.subr.bf16.mxu0 %v1677
  %2314 = vmatpush2.bf16.msra.mxu0 %v1676
  %2315 = vmatprep.subr.bf16.mxu0 %v1670
  %2316 = vmatpush2.bf16.msra.mxu0 %v1669
  %2317 = vmatprep.subr.bf16.mxu0 %v1663
  %2318 = vmatpush2.bf16.msra.mxu0 %v1662
  %2319 = vmatprep.subr.bf16.mxu0 %v1656
  %2320 = vmatpush2.bf16.msra.mxu0 %v1655
  %2321 = vmatprep.mubr.bf16.mxu0 %v86
  %2322 = vmatmul.mubr.bf16.gmra.mxu0 %v85
  %v2323 = vpop.f32.mrf.mxu0
  %v2324 = vadd.f32 %v489, %v2323
  %v2325 = vpop.f32.mrf.mxu0
  %v2326 = vadd.f32 %v493, %v2325
  %v2327 = vpop.f32.mrf.mxu0
  %v2328 = vadd.f32 %v489, %v2327
  %v2329 = vpop.f32.mrf.mxu0
  %v2330 = vadd.f32 %v493, %v2329
  %2331 = vdwg.mxu0
  %2332 = vmatprep.subr.bf16.mxu0 %v1761
  %2333 = vmatpush1.bf16.msra.mxu0 %v1760
  %2334 = vmatprep.subr.bf16.mxu0 %v1754
  %2335 = vmatpush1.bf16.msra.mxu0 %v1753
  %2336 = vmatprep.subr.bf16.mxu0 %v1747
  %2337 = vmatpush1.bf16.msra.mxu0 %v1746
  %2338 = vmatprep.subr.bf16.mxu0 %v1740
  %2339 = vmatpush1.bf16.msra.mxu0 %v1739
  %2340 = vmatprep.subr.bf16.mxu0 %v1733
  %2341 = vmatpush1.bf16.msra.mxu0 %v1732
  %2342 = vmatprep.subr.bf16.mxu0 %v1726
  %2343 = vmatpush1.bf16.msra.mxu0 %v1725
  %2344 = vmatprep.subr.bf16.mxu0 %v1719
  %2345 = vmatpush1.bf16.msra.mxu0 %v1718
  %2346 = vmatprep.subr.bf16.mxu0 %v1712
  %2347 = vmatpush1.bf16.msra.mxu0 %v1711
  %2348 = vmatprep.subr.bf16.mxu0 %v1817
  %2349 = vmatpush2.bf16.msra.mxu0 %v1816
  %2350 = vmatprep.subr.bf16.mxu0 %v1810
  %2351 = vmatpush2.bf16.msra.mxu0 %v1809
  %2352 = vmatprep.subr.bf16.mxu0 %v1803
  %2353 = vmatpush2.bf16.msra.mxu0 %v1802
  %2354 = vmatprep.subr.bf16.mxu0 %v1796
  %2355 = vmatpush2.bf16.msra.mxu0 %v1795
  %2356 = vmatprep.subr.bf16.mxu0 %v1789
  %2357 = vmatpush2.bf16.msra.mxu0 %v1788
  %2358 = vmatprep.subr.bf16.mxu0 %v1782
  %2359 = vmatpush2.bf16.msra.mxu0 %v1781
  %2360 = vmatprep.subr.bf16.mxu0 %v1775
  %2361 = vmatpush2.bf16.msra.mxu0 %v1774
  %2362 = vmatprep.subr.bf16.mxu0 %v1768
  %2363 = vmatpush2.bf16.msra.mxu0 %v1767
  %2364 = vmatprep.mubr.bf16.mxu0 %v88
  %2365 = vmatmul.mubr.bf16.gmra.mxu0 %v87
  %v2366 = vpop.f32.mrf.mxu0
  %v2367 = vadd.f32 %v2324, %v2366
  %v2368 = vpop.f32.mrf.mxu0
  %v2369 = vadd.f32 %v2326, %v2368
  %v2370 = vpop.f32.mrf.mxu0
  %v2371 = vadd.f32 %v2328, %v2370
  %v2372 = vpop.f32.mrf.mxu0
  %v2373 = vadd.f32 %v2330, %v2372
  %2374 = vdwg.mxu0
  %2375 = vmatprep.subr.bf16.mxu0 %v1873
  %2376 = vmatpush1.bf16.msra.mxu0 %v1872
  %2377 = vmatprep.subr.bf16.mxu0 %v1866
  %2378 = vmatpush1.bf16.msra.mxu0 %v1865
  %2379 = vmatprep.subr.bf16.mxu0 %v1859
  %2380 = vmatpush1.bf16.msra.mxu0 %v1858
  %2381 = vmatprep.subr.bf16.mxu0 %v1852
  %2382 = vmatpush1.bf16.msra.mxu0 %v1851
  %2383 = vmatprep.subr.bf16.mxu0 %v1845
  %2384 = vmatpush1.bf16.msra.mxu0 %v1844
  %2385 = vmatprep.subr.bf16.mxu0 %v1838
  %2386 = vmatpush1.bf16.msra.mxu0 %v1837
  %2387 = vmatprep.subr.bf16.mxu0 %v1831
  %2388 = vmatpush1.bf16.msra.mxu0 %v1830
  %2389 = vmatprep.subr.bf16.mxu0 %v1824
  %2390 = vmatpush1.bf16.msra.mxu0 %v1823
  %2391 = vmatprep.subr.bf16.mxu0 %v1929
  %2392 = vmatpush2.bf16.msra.mxu0 %v1928
  %2393 = vmatprep.subr.bf16.mxu0 %v1922
  %2394 = vmatpush2.bf16.msra.mxu0 %v1921
  %2395 = vmatprep.subr.bf16.mxu0 %v1915
  %2396 = vmatpush2.bf16.msra.mxu0 %v1914
  %2397 = vmatprep.subr.bf16.mxu0 %v1908
  %2398 = vmatpush2.bf16.msra.mxu0 %v1907
  %2399 = vmatprep.subr.bf16.mxu0 %v1901
  %2400 = vmatpush2.bf16.msra.mxu0 %v1900
  %2401 = vmatprep.subr.bf16.mxu0 %v1894
  %2402 = vmatpush2.bf16.msra.mxu0 %v1893
  %2403 = vmatprep.subr.bf16.mxu0 %v1887
  %2404 = vmatpush2.bf16.msra.mxu0 %v1886
  %2405 = vmatprep.subr.bf16.mxu0 %v1880
  %2406 = vmatpush2.bf16.msra.mxu0 %v1879
  %2407 = vmatprep.mubr.bf16.mxu0 %v90
  %2408 = vmatmul.mubr.bf16.gmra.mxu0 %v89
  %v2409 = vpop.f32.mrf.mxu0
  %v2410 = vadd.f32 %v2367, %v2409
  %v2411 = vpop.f32.mrf.mxu0
  %v2412 = vadd.f32 %v2369, %v2411
  %v2413 = vpop.f32.mrf.mxu0
  %v2414 = vadd.f32 %v2371, %v2413
  %v2415 = vpop.f32.mrf.mxu0
  %v2416 = vadd.f32 %v2373, %v2415
  %2417 = vdwg.mxu0
  %2418 = vmatprep.subr.bf16.mxu0 0
  %2419 = vmatpush1.bf16.msra.mxu0 0
  %2420 = vmatprep.subr.bf16.mxu0 0
  %2421 = vmatpush1.bf16.msra.mxu0 0
  %2422 = vmatprep.subr.bf16.mxu0 0
  %2423 = vmatpush1.bf16.msra.mxu0 0
  %2424 = vmatprep.subr.bf16.mxu0 0
  %2425 = vmatpush1.bf16.msra.mxu0 0
  %2426 = vmatprep.subr.bf16.mxu0 0
  %2427 = vmatpush1.bf16.msra.mxu0 0
  %2428 = vmatprep.subr.bf16.mxu0 0
  %2429 = vmatpush1.bf16.msra.mxu0 0
  %2430 = vmatprep.subr.bf16.mxu0 0
  %2431 = vmatpush1.bf16.msra.mxu0 0
  %2432 = vmatprep.subr.bf16.mxu0 %v1936
  %2433 = vmatpush1.bf16.msra.mxu0 %v1935
  %2434 = vmatprep.subr.bf16.mxu0 0
  %2435 = vmatpush2.bf16.msra.mxu0 0
  %2436 = vmatprep.subr.bf16.mxu0 0
  %2437 = vmatpush2.bf16.msra.mxu0 0
  %2438 = vmatprep.subr.bf16.mxu0 0
  %2439 = vmatpush2.bf16.msra.mxu0 0
  %2440 = vmatprep.subr.bf16.mxu0 0
  %2441 = vmatpush2.bf16.msra.mxu0 0
  %2442 = vmatprep.subr.bf16.mxu0 0
  %2443 = vmatpush2.bf16.msra.mxu0 0
  %2444 = vmatprep.subr.bf16.mxu0 0
  %2445 = vmatpush2.bf16.msra.mxu0 0
  %2446 = vmatprep.subr.bf16.mxu0 0
  %2447 = vmatpush2.bf16.msra.mxu0 0
  %2448 = vmatprep.subr.bf16.mxu0 0
  %2449 = vmatpush2.bf16.msra.mxu0 0
  %2450 = vmatprep.mubr.bf16.mxu0 0
  %2451 = vmatmul.mubr.bf16.gmra.mxu0 %v2287
  %v2452 = vpop.f32.mrf.mxu0
  %v2453 = vadd.f32 %v2410, %v2452
  %v2454 = vpop.f32.mrf.mxu0
  %v2455 = vadd.f32 %v2412, %v2454
  %v2456 = vpop.f32.mrf.mxu0
  %v2457 = vadd.f32 %v2414, %v2456
  %v2458 = vpop.f32.mrf.mxu0
  %v2459 = vadd.f32 %v2416, %v2458
  %2460 = vdwg.mxu0
  %2461 = vmatprep.subr.bf16.mxu0 %v1651
  %2462 = vmatpush1.bf16.msra.mxu0 %v1650
  %2463 = vmatprep.subr.bf16.mxu0 %v1644
  %2464 = vmatpush1.bf16.msra.mxu0 %v1643
  %2465 = vmatprep.subr.bf16.mxu0 %v1637
  %2466 = vmatpush1.bf16.msra.mxu0 %v1636
  %2467 = vmatprep.subr.bf16.mxu0 %v1630
  %2468 = vmatpush1.bf16.msra.mxu0 %v1629
  %2469 = vmatprep.subr.bf16.mxu0 %v1623
  %2470 = vmatpush1.bf16.msra.mxu0 %v1622
  %2471 = vmatprep.subr.bf16.mxu0 %v1616
  %2472 = vmatpush1.bf16.msra.mxu0 %v1615
  %2473 = vmatprep.subr.bf16.mxu0 %v1609
  %2474 = vmatpush1.bf16.msra.mxu0 %v1608
  %2475 = vmatprep.subr.bf16.mxu0 %v1602
  %2476 = vmatpush1.bf16.msra.mxu0 %v1601
  %2477 = vmatprep.subr.bf16.mxu0 %v1707
  %2478 = vmatpush2.bf16.msra.mxu0 %v1706
  %2479 = vmatprep.subr.bf16.mxu0 %v1700
  %2480 = vmatpush2.bf16.msra.mxu0 %v1699
  %2481 = vmatprep.subr.bf16.mxu0 %v1693
  %2482 = vmatpush2.bf16.msra.mxu0 %v1692
  %2483 = vmatprep.subr.bf16.mxu0 %v1686
  %2484 = vmatpush2.bf16.msra.mxu0 %v1685
  %2485 = vmatprep.subr.bf16.mxu0 %v1679
  %2486 = vmatpush2.bf16.msra.mxu0 %v1678
  %2487 = vmatprep.subr.bf16.mxu0 %v1672
  %2488 = vmatpush2.bf16.msra.mxu0 %v1671
  %2489 = vmatprep.subr.bf16.mxu0 %v1665
  %2490 = vmatpush2.bf16.msra.mxu0 %v1664
  %2491 = vmatprep.subr.bf16.mxu0 %v1658
  %2492 = vmatpush2.bf16.msra.mxu0 %v1657
  %2493 = vmatprep.mubr.bf16.mxu0 %v86
  %2494 = vmatmul.mubr.bf16.gmra.mxu0 %v85
  %v2495 = vpop.f32.mrf.mxu0
  %v2496 = vadd.f32 %v497, %v2495
  %v2497 = vpop.f32.mrf.mxu0
  %v2498 = vadd.f32 %v501, %v2497
  %v2499 = vpop.f32.mrf.mxu0
  %v2500 = vadd.f32 %v497, %v2499
  %v2501 = vpop.f32.mrf.mxu0
  %v2502 = vadd.f32 %v501, %v2501
  %2503 = vdwg.mxu0
  %2504 = vmatprep.subr.bf16.mxu0 %v1763
  %2505 = vmatpush1.bf16.msra.mxu0 %v1762
  %2506 = vmatprep.subr.bf16.mxu0 %v1756
  %2507 = vmatpush1.bf16.msra.mxu0 %v1755
  %2508 = vmatprep.subr.bf16.mxu0 %v1749
  %2509 = vmatpush1.bf16.msra.mxu0 %v1748
  %2510 = vmatprep.subr.bf16.mxu0 %v1742
  %2511 = vmatpush1.bf16.msra.mxu0 %v1741
  %2512 = vmatprep.subr.bf16.mxu0 %v1735
  %2513 = vmatpush1.bf16.msra.mxu0 %v1734
  %2514 = vmatprep.subr.bf16.mxu0 %v1728
  %2515 = vmatpush1.bf16.msra.mxu0 %v1727
  %2516 = vmatprep.subr.bf16.mxu0 %v1721
  %2517 = vmatpush1.bf16.msra.mxu0 %v1720
  %2518 = vmatprep.subr.bf16.mxu0 %v1714
  %2519 = vmatpush1.bf16.msra.mxu0 %v1713
  %2520 = vmatprep.subr.bf16.mxu0 %v1819
  %2521 = vmatpush2.bf16.msra.mxu0 %v1818
  %2522 = vmatprep.subr.bf16.mxu0 %v1812
  %2523 = vmatpush2.bf16.msra.mxu0 %v1811
  %2524 = vmatprep.subr.bf16.mxu0 %v1805
  %2525 = vmatpush2.bf16.msra.mxu0 %v1804
  %2526 = vmatprep.subr.bf16.mxu0 %v1798
  %2527 = vmatpush2.bf16.msra.mxu0 %v1797
  %2528 = vmatprep.subr.bf16.mxu0 %v1791
  %2529 = vmatpush2.bf16.msra.mxu0 %v1790
  %2530 = vmatprep.subr.bf16.mxu0 %v1784
  %2531 = vmatpush2.bf16.msra.mxu0 %v1783
  %2532 = vmatprep.subr.bf16.mxu0 %v1777
  %2533 = vmatpush2.bf16.msra.mxu0 %v1776
  %2534 = vmatprep.subr.bf16.mxu0 %v1770
  %2535 = vmatpush2.bf16.msra.mxu0 %v1769
  %2536 = vmatprep.mubr.bf16.mxu0 %v88
  %2537 = vmatmul.mubr.bf16.gmra.mxu0 %v87
  %v2538 = vpop.f32.mrf.mxu0
  %v2539 = vadd.f32 %v2496, %v2538
  %v2540 = vpop.f32.mrf.mxu0
  %v2541 = vadd.f32 %v2498, %v2540
  %v2542 = vpop.f32.mrf.mxu0
  %v2543 = vadd.f32 %v2500, %v2542
  %v2544 = vpop.f32.mrf.mxu0
  %v2545 = vadd.f32 %v2502, %v2544
  %2546 = vdwg.mxu0
  %2547 = vmatprep.subr.bf16.mxu0 %v1875
  %2548 = vmatpush1.bf16.msra.mxu0 %v1874
  %2549 = vmatprep.subr.bf16.mxu0 %v1868
  %2550 = vmatpush1.bf16.msra.mxu0 %v1867
  %2551 = vmatprep.subr.bf16.mxu0 %v1861
  %2552 = vmatpush1.bf16.msra.mxu0 %v1860
  %2553 = vmatprep.subr.bf16.mxu0 %v1854
  %2554 = vmatpush1.bf16.msra.mxu0 %v1853
  %2555 = vmatprep.subr.bf16.mxu0 %v1847
  %2556 = vmatpush1.bf16.msra.mxu0 %v1846
  %2557 = vmatprep.subr.bf16.mxu0 %v1840
  %2558 = vmatpush1.bf16.msra.mxu0 %v1839
  %2559 = vmatprep.subr.bf16.mxu0 %v1833
  %2560 = vmatpush1.bf16.msra.mxu0 %v1832
  %2561 = vmatprep.subr.bf16.mxu0 %v1826
  %2562 = vmatpush1.bf16.msra.mxu0 %v1825
  %2563 = vmatprep.subr.bf16.mxu0 %v1931
  %2564 = vmatpush2.bf16.msra.mxu0 %v1930
  %2565 = vmatprep.subr.bf16.mxu0 %v1924
  %2566 = vmatpush2.bf16.msra.mxu0 %v1923
  %2567 = vmatprep.subr.bf16.mxu0 %v1917
  %2568 = vmatpush2.bf16.msra.mxu0 %v1916
  %2569 = vmatprep.subr.bf16.mxu0 %v1910
  %2570 = vmatpush2.bf16.msra.mxu0 %v1909
  %2571 = vmatprep.subr.bf16.mxu0 %v1903
  %2572 = vmatpush2.bf16.msra.mxu0 %v1902
  %2573 = vmatprep.subr.bf16.mxu0 %v1896
  %2574 = vmatpush2.bf16.msra.mxu0 %v1895
  %2575 = vmatprep.subr.bf16.mxu0 %v1889
  %2576 = vmatpush2.bf16.msra.mxu0 %v1888
  %2577 = vmatprep.subr.bf16.mxu0 %v1882
  %2578 = vmatpush2.bf16.msra.mxu0 %v1881
  %2579 = vmatprep.mubr.bf16.mxu0 %v90
  %2580 = vmatmul.mubr.bf16.gmra.mxu0 %v89
  %v2581 = vpop.f32.mrf.mxu0
  %v2582 = vadd.f32 %v2539, %v2581
  %v2583 = vpop.f32.mrf.mxu0
  %v2584 = vadd.f32 %v2541, %v2583
  %v2585 = vpop.f32.mrf.mxu0
  %v2586 = vadd.f32 %v2543, %v2585
  %v2587 = vpop.f32.mrf.mxu0
  %v2588 = vadd.f32 %v2545, %v2587
  %2589 = vdwg.mxu0
  %2590 = vmatprep.subr.bf16.mxu0 0
  %2591 = vmatpush1.bf16.msra.mxu0 0
  %2592 = vmatprep.subr.bf16.mxu0 0
  %2593 = vmatpush1.bf16.msra.mxu0 0
  %2594 = vmatprep.subr.bf16.mxu0 0
  %2595 = vmatpush1.bf16.msra.mxu0 0
  %2596 = vmatprep.subr.bf16.mxu0 0
  %2597 = vmatpush1.bf16.msra.mxu0 0
  %2598 = vmatprep.subr.bf16.mxu0 0
  %2599 = vmatpush1.bf16.msra.mxu0 0
  %2600 = vmatprep.subr.bf16.mxu0 0
  %2601 = vmatpush1.bf16.msra.mxu0 0
  %2602 = vmatprep.subr.bf16.mxu0 0
  %2603 = vmatpush1.bf16.msra.mxu0 0
  %2604 = vmatprep.subr.bf16.mxu0 %v1938
  %2605 = vmatpush1.bf16.msra.mxu0 %v1937
  %2606 = vmatprep.subr.bf16.mxu0 0
  %2607 = vmatpush2.bf16.msra.mxu0 0
  %2608 = vmatprep.subr.bf16.mxu0 0
  %2609 = vmatpush2.bf16.msra.mxu0 0
  %2610 = vmatprep.subr.bf16.mxu0 0
  %2611 = vmatpush2.bf16.msra.mxu0 0
  %2612 = vmatprep.subr.bf16.mxu0 0
  %2613 = vmatpush2.bf16.msra.mxu0 0
  %2614 = vmatprep.subr.bf16.mxu0 0
  %2615 = vmatpush2.bf16.msra.mxu0 0
  %2616 = vmatprep.subr.bf16.mxu0 0
  %2617 = vmatpush2.bf16.msra.mxu0 0
  %2618 = vmatprep.subr.bf16.mxu0 0
  %2619 = vmatpush2.bf16.msra.mxu0 0
  %2620 = vmatprep.subr.bf16.mxu0 0
  %2621 = vmatpush2.bf16.msra.mxu0 0
  %2622 = vmatprep.mubr.bf16.mxu0 0
  %2623 = vmatmul.mubr.bf16.gmra.mxu0 %v2287
  %v2624 = vpop.f32.mrf.mxu0
  %v2625 = vadd.f32 %v2582, %v2624
  %v2626 = vpop.f32.mrf.mxu0
  %v2627 = vadd.f32 %v2584, %v2626
  %v2628 = vpop.f32.mrf.mxu0
  %v2629 = vadd.f32 %v2586, %v2628
  %v2630 = vpop.f32.mrf.mxu0
  %v2631 = vadd.f32 %v2588, %v2630
  %2632 = vdwg.mxu0
  %2633 = vmatprep.subr.bf16.mxu0 %v1653
  %2634 = vmatpush1.bf16.msra.mxu0 %v1652
  %2635 = vmatprep.subr.bf16.mxu0 %v1646
  %2636 = vmatpush1.bf16.msra.mxu0 %v1645
  %2637 = vmatprep.subr.bf16.mxu0 %v1639
  %2638 = vmatpush1.bf16.msra.mxu0 %v1638
  %2639 = vmatprep.subr.bf16.mxu0 %v1632
  %2640 = vmatpush1.bf16.msra.mxu0 %v1631
  %2641 = vmatprep.subr.bf16.mxu0 %v1625
  %2642 = vmatpush1.bf16.msra.mxu0 %v1624
  %2643 = vmatprep.subr.bf16.mxu0 %v1618
  %2644 = vmatpush1.bf16.msra.mxu0 %v1617
  %2645 = vmatprep.subr.bf16.mxu0 %v1611
  %2646 = vmatpush1.bf16.msra.mxu0 %v1610
  %2647 = vmatprep.subr.bf16.mxu0 %v1604
  %2648 = vmatpush1.bf16.msra.mxu0 %v1603
  %2649 = vmatprep.subr.bf16.mxu0 %v1709
  %2650 = vmatpush2.bf16.msra.mxu0 %v1708
  %2651 = vmatprep.subr.bf16.mxu0 %v1702
  %2652 = vmatpush2.bf16.msra.mxu0 %v1701
  %2653 = vmatprep.subr.bf16.mxu0 %v1695
  %2654 = vmatpush2.bf16.msra.mxu0 %v1694
  %2655 = vmatprep.subr.bf16.mxu0 %v1688
  %2656 = vmatpush2.bf16.msra.mxu0 %v1687
  %2657 = vmatprep.subr.bf16.mxu0 %v1681
  %2658 = vmatpush2.bf16.msra.mxu0 %v1680
  %2659 = vmatprep.subr.bf16.mxu0 %v1674
  %2660 = vmatpush2.bf16.msra.mxu0 %v1673
  %2661 = vmatprep.subr.bf16.mxu0 %v1667
  %2662 = vmatpush2.bf16.msra.mxu0 %v1666
  %2663 = vmatprep.subr.bf16.mxu0 %v1660
  %2664 = vmatpush2.bf16.msra.mxu0 %v1659
  %2665 = vmatprep.mubr.bf16.mxu0 %v86
  %2666 = vmatmul.mubr.bf16.gmra.mxu0 %v85
  %v2667 = vpop.f32.mrf.mxu0
  %v2668 = vadd.f32 %v505, %v2667
  %v2669 = vpop.f32.mrf.mxu0
  %v2670 = vadd.f32 %v509, %v2669
  %v2671 = vpop.f32.mrf.mxu0
  %v2672 = vadd.f32 %v505, %v2671
  %v2673 = vpop.f32.mrf.mxu0
  %v2674 = vadd.f32 %v509, %v2673
  %2675 = vdwg.mxu0
  %2676 = vmatprep.subr.bf16.mxu0 %v1765
  %2677 = vmatpush1.bf16.msra.mxu0 %v1764
  %2678 = vmatprep.subr.bf16.mxu0 %v1758
  %2679 = vmatpush1.bf16.msra.mxu0 %v1757
  %2680 = vmatprep.subr.bf16.mxu0 %v1751
  %2681 = vmatpush1.bf16.msra.mxu0 %v1750
  %2682 = vmatprep.subr.bf16.mxu0 %v1744
  %2683 = vmatpush1.bf16.msra.mxu0 %v1743
  %2684 = vmatprep.subr.bf16.mxu0 %v1737
  %2685 = vmatpush1.bf16.msra.mxu0 %v1736
  %2686 = vmatprep.subr.bf16.mxu0 %v1730
  %2687 = vmatpush1.bf16.msra.mxu0 %v1729
  %2688 = vmatprep.subr.bf16.mxu0 %v1723
  %2689 = vmatpush1.bf16.msra.mxu0 %v1722
  %2690 = vmatprep.subr.bf16.mxu0 %v1716
  %2691 = vmatpush1.bf16.msra.mxu0 %v1715
  %2692 = vmatprep.subr.bf16.mxu0 %v1821
  %2693 = vmatpush2.bf16.msra.mxu0 %v1820
  %2694 = vmatprep.subr.bf16.mxu0 %v1814
  %2695 = vmatpush2.bf16.msra.mxu0 %v1813
  %2696 = vmatprep.subr.bf16.mxu0 %v1807
  %2697 = vmatpush2.bf16.msra.mxu0 %v1806
  %2698 = vmatprep.subr.bf16.mxu0 %v1800
  %2699 = vmatpush2.bf16.msra.mxu0 %v1799
  %2700 = vmatprep.subr.bf16.mxu0 %v1793
  %2701 = vmatpush2.bf16.msra.mxu0 %v1792
  %2702 = vmatprep.subr.bf16.mxu0 %v1786
  %2703 = vmatpush2.bf16.msra.mxu0 %v1785
  %2704 = vmatprep.subr.bf16.mxu0 %v1779
  %2705 = vmatpush2.bf16.msra.mxu0 %v1778
  %2706 = vmatprep.subr.bf16.mxu0 %v1772
  %2707 = vmatpush2.bf16.msra.mxu0 %v1771
  %2708 = vmatprep.mubr.bf16.mxu0 %v88
  %2709 = vmatmul.mubr.bf16.gmra.mxu0 %v87
  %v2710 = vpop.f32.mrf.mxu0
  %v2711 = vadd.f32 %v2668, %v2710
  %v2712 = vpop.f32.mrf.mxu0
  %v2713 = vadd.f32 %v2670, %v2712
  %v2714 = vpop.f32.mrf.mxu0
  %v2715 = vadd.f32 %v2672, %v2714
  %v2716 = vpop.f32.mrf.mxu0
  %v2717 = vadd.f32 %v2674, %v2716
  %2718 = vdwg.mxu0
  %2719 = vmatprep.subr.bf16.mxu0 %v1877
  %2720 = vmatpush1.bf16.msra.mxu0 %v1876
  %2721 = vmatprep.subr.bf16.mxu0 %v1870
  %2722 = vmatpush1.bf16.msra.mxu0 %v1869
  %2723 = vmatprep.subr.bf16.mxu0 %v1863
  %2724 = vmatpush1.bf16.msra.mxu0 %v1862
  %2725 = vmatprep.subr.bf16.mxu0 %v1856
  %2726 = vmatpush1.bf16.msra.mxu0 %v1855
  %2727 = vmatprep.subr.bf16.mxu0 %v1849
  %2728 = vmatpush1.bf16.msra.mxu0 %v1848
  %2729 = vmatprep.subr.bf16.mxu0 %v1842
  %2730 = vmatpush1.bf16.msra.mxu0 %v1841
  %2731 = vmatprep.subr.bf16.mxu0 %v1835
  %2732 = vmatpush1.bf16.msra.mxu0 %v1834
  %2733 = vmatprep.subr.bf16.mxu0 %v1828
  %2734 = vmatpush1.bf16.msra.mxu0 %v1827
  %2735 = vmatprep.subr.bf16.mxu0 %v1933
  %2736 = vmatpush2.bf16.msra.mxu0 %v1932
  %2737 = vmatprep.subr.bf16.mxu0 %v1926
  %2738 = vmatpush2.bf16.msra.mxu0 %v1925
  %2739 = vmatprep.subr.bf16.mxu0 %v1919
  %2740 = vmatpush2.bf16.msra.mxu0 %v1918
  %2741 = vmatprep.subr.bf16.mxu0 %v1912
  %2742 = vmatpush2.bf16.msra.mxu0 %v1911
  %2743 = vmatprep.subr.bf16.mxu0 %v1905
  %2744 = vmatpush2.bf16.msra.mxu0 %v1904
  %2745 = vmatprep.subr.bf16.mxu0 %v1898
  %2746 = vmatpush2.bf16.msra.mxu0 %v1897
  %2747 = vmatprep.subr.bf16.mxu0 %v1891
  %2748 = vmatpush2.bf16.msra.mxu0 %v1890
  %2749 = vmatprep.subr.bf16.mxu0 %v1884
  %2750 = vmatpush2.bf16.msra.mxu0 %v1883
  %2751 = vmatprep.mubr.bf16.mxu0 %v90
  %2752 = vmatmul.mubr.bf16.gmra.mxu0 %v89
  %v2753 = vpop.f32.mrf.mxu0
  %v2754 = vadd.f32 %v2711, %v2753
  %v2755 = vpop.f32.mrf.mxu0
  %v2756 = vadd.f32 %v2713, %v2755
  %v2757 = vpop.f32.mrf.mxu0
  %v2758 = vadd.f32 %v2715, %v2757
  %v2759 = vpop.f32.mrf.mxu0
  %v2760 = vadd.f32 %v2717, %v2759
  %2761 = vdwg.mxu0
  %2762 = vmatprep.subr.bf16.mxu0 0
  %2763 = vmatpush1.bf16.msra.mxu0 0
  %2764 = vmatprep.subr.bf16.mxu0 0
  %2765 = vmatpush1.bf16.msra.mxu0 0
  %2766 = vmatprep.subr.bf16.mxu0 0
  %2767 = vmatpush1.bf16.msra.mxu0 0
  %2768 = vmatprep.subr.bf16.mxu0 0
  %2769 = vmatpush1.bf16.msra.mxu0 0
  %2770 = vmatprep.subr.bf16.mxu0 0
  %2771 = vmatpush1.bf16.msra.mxu0 0
  %2772 = vmatprep.subr.bf16.mxu0 0
  %2773 = vmatpush1.bf16.msra.mxu0 0
  %2774 = vmatprep.subr.bf16.mxu0 0
  %2775 = vmatpush1.bf16.msra.mxu0 0
  %2776 = vmatprep.subr.bf16.mxu0 %v1940
  %2777 = vmatpush1.bf16.msra.mxu0 %v1939
  %2778 = vmatprep.subr.bf16.mxu0 0
  %2779 = vmatpush2.bf16.msra.mxu0 0
  %2780 = vmatprep.subr.bf16.mxu0 0
  %2781 = vmatpush2.bf16.msra.mxu0 0
  %2782 = vmatprep.subr.bf16.mxu0 0
  %2783 = vmatpush2.bf16.msra.mxu0 0
  %2784 = vmatprep.subr.bf16.mxu0 0
  %2785 = vmatpush2.bf16.msra.mxu0 0
  %2786 = vmatprep.subr.bf16.mxu0 0
  %2787 = vmatpush2.bf16.msra.mxu0 0
  %2788 = vmatprep.subr.bf16.mxu0 0
  %2789 = vmatpush2.bf16.msra.mxu0 0
  %2790 = vmatprep.subr.bf16.mxu0 0
  %2791 = vmatpush2.bf16.msra.mxu0 0
  %2792 = vmatprep.subr.bf16.mxu0 0
  %2793 = vmatpush2.bf16.msra.mxu0 0
  %2794 = vmatprep.mubr.bf16.mxu0 0
  %2795 = vmatmul.mubr.bf16.gmra.mxu0 %v2287
  %v2796 = vpop.f32.mrf.mxu0
  %v2797 = vadd.f32 %v2754, %v2796
  %v2798 = vpop.f32.mrf.mxu0
  %v2799 = vadd.f32 %v2756, %v2798
  %v2800 = vpop.f32.mrf.mxu0
  %v2801 = vadd.f32 %v2758, %v2800
  %v2802 = vpop.f32.mrf.mxu0
  %v2803 = vadd.f32 %v2760, %v2802
  %2804 = vdwg.mxu0
  %2805 = vmatprep.subr.bf16.mxu0 0
  %2806 = vmatpush1.bf16.msra.mxu0 %v1654
  %2807 = vmatprep.subr.bf16.mxu0 0
  %2808 = vmatpush1.bf16.msra.mxu0 %v1647
  %2809 = vmatprep.subr.bf16.mxu0 0
  %2810 = vmatpush1.bf16.msra.mxu0 %v1640
  %2811 = vmatprep.subr.bf16.mxu0 0
  %2812 = vmatpush1.bf16.msra.mxu0 %v1633
  %2813 = vmatprep.subr.bf16.mxu0 0
  %2814 = vmatpush1.bf16.msra.mxu0 %v1626
  %2815 = vmatprep.subr.bf16.mxu0 0
  %2816 = vmatpush1.bf16.msra.mxu0 %v1619
  %2817 = vmatprep.subr.bf16.mxu0 0
  %2818 = vmatpush1.bf16.msra.mxu0 %v1612
  %2819 = vmatprep.subr.bf16.mxu0 0
  %2820 = vmatpush1.bf16.msra.mxu0 %v1605
  %2821 = vmatprep.subr.bf16.mxu0 0
  %2822 = vmatpush2.bf16.msra.mxu0 %v1710
  %2823 = vmatprep.subr.bf16.mxu0 0
  %2824 = vmatpush2.bf16.msra.mxu0 %v1703
  %2825 = vmatprep.subr.bf16.mxu0 0
  %2826 = vmatpush2.bf16.msra.mxu0 %v1696
  %2827 = vmatprep.subr.bf16.mxu0 0
  %2828 = vmatpush2.bf16.msra.mxu0 %v1689
  %2829 = vmatprep.subr.bf16.mxu0 0
  %2830 = vmatpush2.bf16.msra.mxu0 %v1682
  %2831 = vmatprep.subr.bf16.mxu0 0
  %2832 = vmatpush2.bf16.msra.mxu0 %v1675
  %2833 = vmatprep.subr.bf16.mxu0 0
  %2834 = vmatpush2.bf16.msra.mxu0 %v1668
  %2835 = vmatprep.subr.bf16.mxu0 0
  %2836 = vmatpush2.bf16.msra.mxu0 %v1661
  %2837 = vmatprep.mubr.bf16.mxu0 %v86
  %2838 = vmatmul.mubr.bf16.gmra.mxu0 %v85
  %v2839 = vpop.f32.mrf.mxu0
  %v2840 = vadd.f32 %v513, %v2839
  %v2841 = vpop.f32.mrf.mxu0
  %v2842 = vpop.f32.mrf.mxu0
  %v2843 = vadd.f32 %v513, %v2842
  %v2844 = vpop.f32.mrf.mxu0
  %2845 = vdwg.mxu0
  %2846 = vmatprep.subr.bf16.mxu0 0
  %2847 = vmatpush1.bf16.msra.mxu0 %v1766
  %2848 = vmatprep.subr.bf16.mxu0 0
  %2849 = vmatpush1.bf16.msra.mxu0 %v1759
  %2850 = vmatprep.subr.bf16.mxu0 0
  %2851 = vmatpush1.bf16.msra.mxu0 %v1752
  %2852 = vmatprep.subr.bf16.mxu0 0
  %2853 = vmatpush1.bf16.msra.mxu0 %v1745
  %2854 = vmatprep.subr.bf16.mxu0 0
  %2855 = vmatpush1.bf16.msra.mxu0 %v1738
  %2856 = vmatprep.subr.bf16.mxu0 0
  %2857 = vmatpush1.bf16.msra.mxu0 %v1731
  %2858 = vmatprep.subr.bf16.mxu0 0
  %2859 = vmatpush1.bf16.msra.mxu0 %v1724
  %2860 = vmatprep.subr.bf16.mxu0 0
  %2861 = vmatpush1.bf16.msra.mxu0 %v1717
  %2862 = vmatprep.subr.bf16.mxu0 0
  %2863 = vmatpush2.bf16.msra.mxu0 %v1822
  %2864 = vmatprep.subr.bf16.mxu0 0
  %2865 = vmatpush2.bf16.msra.mxu0 %v1815
  %2866 = vmatprep.subr.bf16.mxu0 0
  %2867 = vmatpush2.bf16.msra.mxu0 %v1808
  %2868 = vmatprep.subr.bf16.mxu0 0
  %2869 = vmatpush2.bf16.msra.mxu0 %v1801
  %2870 = vmatprep.subr.bf16.mxu0 0
  %2871 = vmatpush2.bf16.msra.mxu0 %v1794
  %2872 = vmatprep.subr.bf16.mxu0 0
  %2873 = vmatpush2.bf16.msra.mxu0 %v1787
  %2874 = vmatprep.subr.bf16.mxu0 0
  %2875 = vmatpush2.bf16.msra.mxu0 %v1780
  %2876 = vmatprep.subr.bf16.mxu0 0
  %2877 = vmatpush2.bf16.msra.mxu0 %v1773
  %2878 = vmatprep.mubr.bf16.mxu0 %v88
  %2879 = vmatmul.mubr.bf16.gmra.mxu0 %v87
  %v2880 = vpop.f32.mrf.mxu0
  %v2881 = vadd.f32 %v2840, %v2880
  %v2882 = vpop.f32.mrf.mxu0
  %v2883 = vpop.f32.mrf.mxu0
  %v2884 = vadd.f32 %v2843, %v2883
  %v2885 = vpop.f32.mrf.mxu0
  %2886 = vdwg.mxu0
  %2887 = vmatprep.subr.bf16.mxu0 0
  %2888 = vmatpush1.bf16.msra.mxu0 %v1878
  %2889 = vmatprep.subr.bf16.mxu0 0
  %2890 = vmatpush1.bf16.msra.mxu0 %v1871
  %2891 = vmatprep.subr.bf16.mxu0 0
  %2892 = vmatpush1.bf16.msra.mxu0 %v1864
  %2893 = vmatprep.subr.bf16.mxu0 0
  %2894 = vmatpush1.bf16.msra.mxu0 %v1857
  %2895 = vmatprep.subr.bf16.mxu0 0
  %2896 = vmatpush1.bf16.msra.mxu0 %v1850
  %2897 = vmatprep.subr.bf16.mxu0 0
  %2898 = vmatpush1.bf16.msra.mxu0 %v1843
  %2899 = vmatprep.subr.bf16.mxu0 0
  %2900 = vmatpush1.bf16.msra.mxu0 %v1836
  %2901 = vmatprep.subr.bf16.mxu0 0
  %2902 = vmatpush1.bf16.msra.mxu0 %v1829
  %2903 = vmatprep.subr.bf16.mxu0 0
  %2904 = vmatpush2.bf16.msra.mxu0 %v1934
  %2905 = vmatprep.subr.bf16.mxu0 0
  %2906 = vmatpush2.bf16.msra.mxu0 %v1927
  %2907 = vmatprep.subr.bf16.mxu0 0
  %2908 = vmatpush2.bf16.msra.mxu0 %v1920
  %2909 = vmatprep.subr.bf16.mxu0 0
  %2910 = vmatpush2.bf16.msra.mxu0 %v1913
  %2911 = vmatprep.subr.bf16.mxu0 0
  %2912 = vmatpush2.bf16.msra.mxu0 %v1906
  %2913 = vmatprep.subr.bf16.mxu0 0
  %2914 = vmatpush2.bf16.msra.mxu0 %v1899
  %2915 = vmatprep.subr.bf16.mxu0 0
  %2916 = vmatpush2.bf16.msra.mxu0 %v1892
  %2917 = vmatprep.subr.bf16.mxu0 0
  %2918 = vmatpush2.bf16.msra.mxu0 %v1885
  %2919 = vmatprep.mubr.bf16.mxu0 %v90
  %2920 = vmatmul.mubr.bf16.gmra.mxu0 %v89
  %v2921 = vpop.f32.mrf.mxu0
  %v2922 = vadd.f32 %v2881, %v2921
  %v2923 = vpop.f32.mrf.mxu0
  %v2924 = vpop.f32.mrf.mxu0
  %v2925 = vadd.f32 %v2884, %v2924
  %v2926 = vpop.f32.mrf.mxu0
  %2927 = vdwg.mxu0
  %2928 = vmatprep.subr.bf16.mxu0 0
  %2929 = vmatpush1.bf16.msra.mxu0 0
  %2930 = vmatprep.subr.bf16.mxu0 0
  %2931 = vmatpush1.bf16.msra.mxu0 0
  %2932 = vmatprep.subr.bf16.mxu0 0
  %2933 = vmatpush1.bf16.msra.mxu0 0
  %2934 = vmatprep.subr.bf16.mxu0 0
  %2935 = vmatpush1.bf16.msra.mxu0 0
  %2936 = vmatprep.subr.bf16.mxu0 0
  %2937 = vmatpush1.bf16.msra.mxu0 0
  %2938 = vmatprep.subr.bf16.mxu0 0
  %2939 = vmatpush1.bf16.msra.mxu0 0
  %2940 = vmatprep.subr.bf16.mxu0 0
  %2941 = vmatpush1.bf16.msra.mxu0 0
  %2942 = vmatprep.subr.bf16.mxu0 0
  %2943 = vmatpush1.bf16.msra.mxu0 %v1941
  %2944 = vmatprep.subr.bf16.mxu0 0
  %2945 = vmatpush2.bf16.msra.mxu0 0
  %2946 = vmatprep.subr.bf16.mxu0 0
  %2947 = vmatpush2.bf16.msra.mxu0 0
  %2948 = vmatprep.subr.bf16.mxu0 0
  %2949 = vmatpush2.bf16.msra.mxu0 0
  %2950 = vmatprep.subr.bf16.mxu0 0
  %2951 = vmatpush2.bf16.msra.mxu0 0
  %2952 = vmatprep.subr.bf16.mxu0 0
  %2953 = vmatpush2.bf16.msra.mxu0 0
  %2954 = vmatprep.subr.bf16.mxu0 0
  %2955 = vmatpush2.bf16.msra.mxu0 0
  %2956 = vmatprep.subr.bf16.mxu0 0
  %2957 = vmatpush2.bf16.msra.mxu0 0
  %2958 = vmatprep.subr.bf16.mxu0 0
  %2959 = vmatpush2.bf16.msra.mxu0 0
  %2960 = vmatprep.mubr.bf16.mxu0 0
  %2961 = vmatmul.mubr.bf16.gmra.mxu0 %v2287
  %v2962 = vpop.f32.mrf.mxu0
  %v2963 = vadd.f32 %v2922, %v2962
  %v2964 = vpop.f32.mrf.mxu0
  %v2965 = vpop.f32.mrf.mxu0
  %v2966 = vadd.f32 %v2925, %v2965
  %v2967 = vpop.f32.mrf.mxu0
  %2968 = vdwg.mxu0
  %v2969 = vmax.f32 %v2453, 0.0
  %v2970 = vmax.f32 %v2455, 0.0
  %v2971 = vmax.f32 %v2625, 0.0
  %v2972 = vmax.f32 %v2627, 0.0
  %v2973 = vmax.f32 %v2797, 0.0
  %v2974 = vmax.f32 %v2799, 0.0
  %v2975 = vmax.f32 %v2963, 0.0
  %v2976 = vmax.f32 %v2457, 0.0
  %v2977 = vmax.f32 %v2459, 0.0
  %v2978 = vmax.f32 %v2629, 0.0
  %v2979 = vmax.f32 %v2631, 0.0
  %v2980 = vmax.f32 %v2801, 0.0
  %v2981 = vmax.f32 %v2803, 0.0
  %v2982 = vmax.f32 %v2966, 0.0
  %v2983 = vpack.c.bf16 %v2976, %v2969
  %v2984 = vpack.c.bf16 %v2977, %v2970
  %v2985 = vpack.c.bf16 %v2978, %v2971
  %v2986 = vpack.c.bf16 %v2979, %v2972
  %v2987 = vpack.c.bf16 %v2980, %v2973
  %v2988 = vpack.c.bf16 %v2981, %v2974
  %v2989 = vpack.c.bf16 %v2982, %v2975
  %v2990 = vld [vmem:[%s3] sm:$0xf]
  %v2991 = vld [vmem:[%s3 + $0x4] sm:$0xf]
  %v2992 = vld [vmem:[%s3 + $0x8] sm:$0xf]
  %v2993 = vld [vmem:[%s3 + $0xc] sm:$0xf]
  %v2994 = vld [vmem:[%s3 + $0x10] sm:$0xf]
  %v2995 = vld [vmem:[%s3 + $0x14] sm:$0xf]
  %v2996 = vld [vmem:[%s3 + $0x18] sm:$0xf]
  %v2997 = vld [vmem:[%s3 + $0x1c] sm:$0xf]
  %v2998 = vld [vmem:[%s3 + $0x20] sm:$0xf]
  %v2999 = vld [vmem:[%s3 + $0x24] sm:$0xf]
  %v3000 = vld [vmem:[%s3 + $0x28] sm:$0xf]
  %v3001 = vld [vmem:[%s3 + $0x2c] sm:$0xf]
  %v3002 = vld [vmem:[%s3 + $0x30] sm:$0xf]
  %v3003 = vld [vmem:[%s3 + $0x34] sm:$0xf]
  %v3004 = vld [vmem:[%s3 + $0x38] sm:$0xf]
  %v3005 = vld [vmem:[%s3 + $0x3c] sm:$0xf]
  %v3006 = vld [vmem:[%s3 + $0x40] sm:$0xf]
  %v3007 = vld [vmem:[%s3 + $0x44] sm:$0xf]
  %v3008 = vld [vmem:[%s3 + $0x48] sm:$0xf]
  %v3009 = vld [vmem:[%s3 + $0x4c] sm:$0xf]
  %v3010 = vld [vmem:[%s3 + $0x50] sm:$0xf]
  %v3011 = vld [vmem:[%s3 + $0x54] sm:$0xf]
  %v3012 = vld [vmem:[%s3 + $0x58] sm:$0xf]
  %v3013 = vld [vmem:[%s3 + $0x5c] sm:$0xf]
  %v3014 = vld [vmem:[%s3 + $0x60] sm:$0xf]
  %v3015 = vld [vmem:[%s3 + $0x64] sm:$0xf]
  %v3016 = vld [vmem:[%s3 + $0x68] sm:$0xf]
  %v3017 = vld [vmem:[%s3 + $0x6c] sm:$0xf]
  %v3018 = vld [vmem:[%s3 + $0x70] sm:$0xf]
  %v3019 = vld [vmem:[%s3 + $0x74] sm:$0xf]
  %v3020 = vld [vmem:[%s3 + $0x78] sm:$0xf]
  %v3021 = vld [vmem:[%s3 + $0x7c] sm:$0xf]
  %v3022 = vld [vmem:[%s3 + $0x80] sm:$0xf]
  %v3023 = vld [vmem:[%s3 + $0x84] sm:$0xf]
  %v3024 = vld [vmem:[%s3 + $0x88] sm:$0xf]
  %v3025 = vld [vmem:[%s3 + $0x8c] sm:$0xf]
  %v3026 = vld [vmem:[%s3 + $0x90] sm:$0xf]
  %v3027 = vld [vmem:[%s3 + $0x94] sm:$0xf]
  %v3028 = vld [vmem:[%s3 + $0x98] sm:$0xf]
  %v3029 = vld [vmem:[%s3 + $0x9c] sm:$0xf]
  %v3030 = vld [vmem:[%s3 + $0xa0] sm:$0xf]
  %v3031 = vld [vmem:[%s3 + $0xa4] sm:$0xf]
  %v3032 = vld [vmem:[%s3 + $0xa8] sm:$0xf]
  %v3033 = vld [vmem:[%s3 + $0xac] sm:$0xf]
  %v3034 = vld [vmem:[%s3 + $0xb0] sm:$0xf]
  %v3035 = vld [vmem:[%s3 + $0xb4] sm:$0xf]
  %v3036 = vld [vmem:[%s3 + $0xb8] sm:$0xf]
  %v3037 = vld [vmem:[%s3 + $0xbc] sm:$0xf]
  %v3038 = vld [vmem:[%s3 + $0xc0] sm:$0xf]
  %v3039 = vld [vmem:[%s3 + $0xc4] sm:$0xf]
  %v3040 = vld [vmem:[%s3 + $0xc8] sm:$0xf]
  %v3041 = vld [vmem:[%s3 + $0xcc] sm:$0xf]
  %v3042 = vld [vmem:[%s3 + $0xd0] sm:$0xf]
  %v3043 = vld [vmem:[%s3 + $0xd4] sm:$0xf]
  %v3044 = vld [vmem:[%s3 + $0xd8] sm:$0xf]
  %v3045 = vld [vmem:[%s3 + $0xdc] sm:$0xf]
  %v3046 = vld [vmem:[%s3 + $0xe0] sm:$0xf]
  %v3047 = vld [vmem:[%s3 + $0xe4] sm:$0xf]
  %v3048 = vld [vmem:[%s3 + $0xe8] sm:$0xf]
  %v3049 = vld [vmem:[%s3 + $0xec] sm:$0xf]
  %v3050 = vld [vmem:[%s3 + $0xf0] sm:$0xf]
  %v3051 = vld [vmem:[%s3 + $0xf4] sm:$0xf]
  %v3052 = vld [vmem:[%s3 + $0xf8] sm:$0xf]
  %v3053 = vld [vmem:[%s3 + $0xfc] sm:$0xf]
  %v3054 = vld [vmem:[%s3 + $0x100] sm:$0xf]
  %v3055 = vld [vmem:[%s3 + $0x104] sm:$0xf]
  %v3056 = vld [vmem:[%s3 + $0x108] sm:$0xf]
  %v3057 = vld [vmem:[%s3 + $0x10c] sm:$0xf]
  %v3058 = vld [vmem:[%s3 + $0x110] sm:$0xf]
  %v3059 = vld [vmem:[%s3 + $0x114] sm:$0xf]
  %v3060 = vld [vmem:[%s3 + $0x118] sm:$0xf]
  %v3061 = vld [vmem:[%s3 + $0x11c] sm:$0xf]
  %v3062 = vld [vmem:[%s3 + $0x120] sm:$0xf]
  %v3063 = vld [vmem:[%s3 + $0x124] sm:$0xf]
  %v3064 = vld [vmem:[%s3 + $0x128] sm:$0xf]
  %v3065 = vld [vmem:[%s3 + $0x12c] sm:$0xf]
  %v3066 = vld [vmem:[%s3 + $0x130] sm:$0xf]
  %v3067 = vld [vmem:[%s3 + $0x134] sm:$0xf]
  %v3068 = vld [vmem:[%s3 + $0x138] sm:$0xf]
  %v3069 = vld [vmem:[%s3 + $0x13c] sm:$0xf]
  %v3070 = vld [vmem:[%s3 + $0x140] sm:$0xf]
  %v3071 = vld [vmem:[%s3 + $0x144] sm:$0xf]
  %v3072 = vld [vmem:[%s3 + $0x148] sm:$0xf]
  %v3073 = vld [vmem:[%s3 + $0x14c] sm:$0xf]
  %v3074 = vld [vmem:[%s3 + $0x150] sm:$0xf]
  %v3075 = vld [vmem:[%s3 + $0x154] sm:$0xf]
  %v3076 = vld [vmem:[%s3 + $0x158] sm:$0xf]
  %v3077 = vld [vmem:[%s3 + $0x15c] sm:$0xf]
  %v3078 = vld [vmem:[%s3 + $0x160] sm:$0xf]
  %v3079 = vld [vmem:[%s3 + $0x164] sm:$0xf]
  %v3080 = vld [vmem:[%s3 + $0x168] sm:$0xf]
  %v3081 = vld [vmem:[%s3 + $0x16c] sm:$0xf]
  %v3082 = vld [vmem:[%s3 + $0x170] sm:$0xf]
  %v3083 = vld [vmem:[%s3 + $0x174] sm:$0xf]
  %v3084 = vld [vmem:[%s3 + $0x178] sm:$0xf]
  %v3085 = vld [vmem:[%s3 + $0x17c] sm:$0xf]
  %v3086 = vld [vmem:[%s3 + $0x180] sm:$0xf]
  %v3087 = vld [vmem:[%s3 + $0x184] sm:$0xf]
  %v3088 = vld [vmem:[%s4] sm:$0x1]
  %v3090 = vlaneseq
  %v3091 = vshrl.u32 %v3090, 7
  %v3092 = vsub.s32 0, %v3091
  %v3093 = vrot.slane %v3088, %v3092
  %v3193 = vunpack.c.l.b16 %v2990
  %v3194 = vunpack.c.l.b16 %v2991
  %v3195 = vunpack.c.l.b16 %v2992
  %v3196 = vunpack.c.l.b16 %v2993
  %v3197 = vunpack.c.l.b16 %v2994
  %v3198 = vunpack.c.l.b16 %v2995
  %v3199 = vunpack.c.l.b16 %v2996
  %v3200 = vunpack.c.l.b16 %v2997
  %v3201 = vunpack.c.l.b16 %v2998
  %v3202 = vunpack.c.l.b16 %v2999
  %v3203 = vunpack.c.l.b16 %v3000
  %v3204 = vunpack.c.l.b16 %v3001
  %v3205 = vunpack.c.l.b16 %v3002
  %v3206 = vunpack.c.l.b16 %v3003
  %v3207 = vunpack.c.l.b16 %v3004
  %v3208 = vunpack.c.l.b16 %v3005
  %v3209 = vunpack.c.l.b16 %v3006
  %v3210 = vunpack.c.l.b16 %v3007
  %v3211 = vunpack.c.l.b16 %v3008
  %v3212 = vunpack.c.l.b16 %v3009
  %v3213 = vunpack.c.l.b16 %v3010
  %v3214 = vunpack.c.l.b16 %v3011
  %v3215 = vunpack.c.l.b16 %v3012
  %v3216 = vunpack.c.l.b16 %v3013
  %v3217 = vunpack.c.l.b16 %v3014
  %v3218 = vunpack.c.l.b16 %v3015
  %v3219 = vunpack.c.l.b16 %v3016
  %v3220 = vunpack.c.l.b16 %v3017
  %v3221 = vunpack.c.l.b16 %v3018
  %v3222 = vunpack.c.l.b16 %v3019
  %v3223 = vunpack.c.l.b16 %v3020
  %v3224 = vunpack.c.l.b16 %v3021
  %v3225 = vunpack.c.l.b16 %v3022
  %v3226 = vunpack.c.l.b16 %v3023
  %v3227 = vunpack.c.l.b16 %v3024
  %v3228 = vunpack.c.l.b16 %v3025
  %v3229 = vunpack.c.l.b16 %v3026
  %v3230 = vunpack.c.l.b16 %v3027
  %v3231 = vunpack.c.l.b16 %v3028
  %v3232 = vunpack.c.l.b16 %v3029
  %v3233 = vunpack.c.l.b16 %v3030
  %v3234 = vunpack.c.l.b16 %v3031
  %v3235 = vunpack.c.l.b16 %v3032
  %v3236 = vunpack.c.l.b16 %v3033
  %v3237 = vunpack.c.l.b16 %v3034
  %v3238 = vunpack.c.l.b16 %v3035
  %v3239 = vunpack.c.l.b16 %v3036
  %v3240 = vunpack.c.l.b16 %v3037
  %v3241 = vunpack.c.l.b16 %v3038
  %v3242 = vunpack.c.l.b16 %v3039
  %v3243 = vunpack.c.l.b16 %v3040
  %v3244 = vunpack.c.l.b16 %v3041
  %v3245 = vunpack.c.l.b16 %v3042
  %v3246 = vunpack.c.l.b16 %v3043
  %v3247 = vunpack.c.l.b16 %v3044
  %v3248 = vunpack.c.l.b16 %v3045
  %v3249 = vunpack.c.l.b16 %v3046
  %v3250 = vunpack.c.l.b16 %v3047
  %v3251 = vunpack.c.l.b16 %v3048
  %v3252 = vunpack.c.l.b16 %v3049
  %v3253 = vunpack.c.l.b16 %v3050
  %v3254 = vunpack.c.l.b16 %v3051
  %v3255 = vunpack.c.l.b16 %v3052
  %v3256 = vunpack.c.l.b16 %v3053
  %v3257 = vunpack.c.l.b16 %v3054
  %v3258 = vunpack.c.l.b16 %v3055
  %v3259 = vunpack.c.l.b16 %v3056
  %v3260 = vunpack.c.l.b16 %v3057
  %v3261 = vunpack.c.l.b16 %v3058
  %v3262 = vunpack.c.l.b16 %v3059
  %v3263 = vunpack.c.l.b16 %v3060
  %v3264 = vunpack.c.l.b16 %v3061
  %v3265 = vunpack.c.l.b16 %v3062
  %v3266 = vunpack.c.l.b16 %v3063
  %v3267 = vunpack.c.l.b16 %v3064
  %v3268 = vunpack.c.l.b16 %v3065
  %v3269 = vunpack.c.l.b16 %v3066
  %v3270 = vunpack.c.l.b16 %v3067
  %v3271 = vunpack.c.l.b16 %v3068
  %v3272 = vunpack.c.l.b16 %v3069
  %v3273 = vunpack.c.l.b16 %v3070
  %v3274 = vunpack.c.l.b16 %v3071
  %v3275 = vunpack.c.l.b16 %v3072
  %v3276 = vunpack.c.l.b16 %v3073
  %v3277 = vunpack.c.l.b16 %v3074
  %v3278 = vunpack.c.l.b16 %v3075
  %v3279 = vunpack.c.l.b16 %v3076
  %v3280 = vunpack.c.l.b16 %v3077
  %v3281 = vunpack.c.l.b16 %v3078
  %v3282 = vunpack.c.l.b16 %v3079
  %v3283 = vunpack.c.l.b16 %v3080
  %v3284 = vunpack.c.l.b16 %v3081
  %v3285 = vunpack.c.l.b16 %v3082
  %v3286 = vunpack.c.l.b16 %v3083
  %v3287 = vunpack.c.l.b16 %v3084
  %v3288 = vunpack.c.l.b16 %v3085
  %v3289 = vunpack.c.l.b16 %v3086
  %v3290 = vunpack.c.l.b16 %v3087
  %v3291 = vpack.c.b16 %v3194, %v3193
  %v3292 = vpack.c.b16 %v3196, %v3195
  %v3293 = vpack.c.b16 %v3198, %v3197
  %v3294 = vpack.c.b16 %v3200, %v3199
  %v3295 = vpack.c.b16 %v3202, %v3201
  %v3296 = vpack.c.b16 %v3204, %v3203
  %v3297 = vpack.c.b16 %v3206, %v3205
  %v3298 = vpack.c.b16 %v3208, %v3207
  %v3299 = vpack.c.b16 %v3210, %v3209
  %v3300 = vpack.c.b16 %v3212, %v3211
  %v3301 = vpack.c.b16 %v3214, %v3213
  %v3302 = vpack.c.b16 %v3216, %v3215
  %v3303 = vpack.c.b16 %v3218, %v3217
  %v3304 = vpack.c.b16 %v3220, %v3219
  %v3305 = vpack.c.b16 %v3222, %v3221
  %v3306 = vpack.c.b16 %v3224, %v3223
  %v3307 = vpack.c.b16 %v3226, %v3225
  %v3308 = vpack.c.b16 %v3228, %v3227
  %v3309 = vpack.c.b16 %v3230, %v3229
  %v3310 = vpack.c.b16 %v3232, %v3231
  %v3311 = vpack.c.b16 %v3234, %v3233
  %v3312 = vpack.c.b16 %v3236, %v3235
  %v3313 = vpack.c.b16 %v3238, %v3237
  %v3314 = vpack.c.b16 %v3240, %v3239
  %v3315 = vpack.c.b16 %v3242, %v3241
  %v3316 = vpack.c.b16 %v3244, %v3243
  %v3317 = vpack.c.b16 %v3246, %v3245
  %v3318 = vpack.c.b16 %v3248, %v3247
  %v3319 = vpack.c.b16 %v3250, %v3249
  %v3320 = vpack.c.b16 %v3252, %v3251
  %v3321 = vpack.c.b16 %v3254, %v3253
  %v3322 = vpack.c.b16 %v3256, %v3255
  %v3323 = vpack.c.b16 %v3258, %v3257
  %v3324 = vpack.c.b16 %v3260, %v3259
  %v3325 = vpack.c.b16 %v3262, %v3261
  %v3326 = vpack.c.b16 %v3264, %v3263
  %v3327 = vpack.c.b16 %v3266, %v3265
  %v3328 = vpack.c.b16 %v3268, %v3267
  %v3329 = vpack.c.b16 %v3270, %v3269
  %v3330 = vpack.c.b16 %v3272, %v3271
  %v3331 = vpack.c.b16 %v3274, %v3273
  %v3332 = vpack.c.b16 %v3276, %v3275
  %v3333 = vpack.c.b16 %v3278, %v3277
  %v3334 = vpack.c.b16 %v3280, %v3279
  %v3335 = vpack.c.b16 %v3282, %v3281
  %v3336 = vpack.c.b16 %v3284, %v3283
  %v3337 = vpack.c.b16 %v3286, %v3285
  %v3338 = vpack.c.b16 %v3288, %v3287
  %v3339 = vpack.c.b16 %v3290, %v3289
  %v3390 = vsel %vm2285, %v2989, 0
  %3392 = vmatprep.subr.bf16.mxu0 0
  %3393 = vmatpush1.bf16.msra.mxu0 %v3298
  %3394 = vmatprep.subr.bf16.mxu0 0
  %3395 = vmatpush1.bf16.msra.mxu0 %v3297
  %3396 = vmatprep.subr.bf16.mxu0 0
  %3397 = vmatpush1.bf16.msra.mxu0 %v3296
  %3398 = vmatprep.subr.bf16.mxu0 0
  %3399 = vmatpush1.bf16.msra.mxu0 %v3295
  %3400 = vmatprep.subr.bf16.mxu0 0
  %3401 = vmatpush1.bf16.msra.mxu0 %v3294
  %3402 = vmatprep.subr.bf16.mxu0 0
  %3403 = vmatpush1.bf16.msra.mxu0 %v3293
  %3404 = vmatprep.subr.bf16.mxu0 0
  %3405 = vmatpush1.bf16.msra.mxu0 %v3292
  %3406 = vmatprep.subr.bf16.mxu0 0
  %3407 = vmatpush1.bf16.msra.mxu0 %v3291
  %3408 = vmatprep.subr.bf16.mxu0 0
  %3409 = vmatpush2.bf16.msra.mxu0 %v3306
  %3410 = vmatprep.subr.bf16.mxu0 0
  %3411 = vmatpush2.bf16.msra.mxu0 %v3305
  %3412 = vmatprep.subr.bf16.mxu0 0
  %3413 = vmatpush2.bf16.msra.mxu0 %v3304
  %3414 = vmatprep.subr.bf16.mxu0 0
  %3415 = vmatpush2.bf16.msra.mxu0 %v3303
  %3416 = vmatprep.subr.bf16.mxu0 0
  %3417 = vmatpush2.bf16.msra.mxu0 %v3302
  %3418 = vmatprep.subr.bf16.mxu0 0
  %3419 = vmatpush2.bf16.msra.mxu0 %v3301
  %3420 = vmatprep.subr.bf16.mxu0 0
  %3421 = vmatpush2.bf16.msra.mxu0 %v3300
  %3422 = vmatprep.subr.bf16.mxu0 0
  %3423 = vmatpush2.bf16.msra.mxu0 %v3299
  %3424 = vmatprep.mubr.bf16.mxu0 %v2984
  %3425 = vmatmul.mubr.bf16.gmra.mxu0 %v2983
  %v3426 = vpop.f32.mrf.mxu0
  %v3427 = vadd.f32 %v3093, %v3426
  %v3428 = vpop.f32.mrf.mxu0
  %v3429 = vpop.f32.mrf.mxu0
  %v3430 = vadd.f32 %v3093, %v3429
  %v3431 = vpop.f32.mrf.mxu0
  %3432 = vdwg.mxu0
  %3433 = vmatprep.subr.bf16.mxu0 0
  %3434 = vmatpush1.bf16.msra.mxu0 %v3314
  %3435 = vmatprep.subr.bf16.mxu0 0
  %3436 = vmatpush1.bf16.msra.mxu0 %v3313
  %3437 = vmatprep.subr.bf16.mxu0 0
  %3438 = vmatpush1.bf16.msra.mxu0 %v3312
  %3439 = vmatprep.subr.bf16.mxu0 0
  %3440 = vmatpush1.bf16.msra.mxu0 %v3311
  %3441 = vmatprep.subr.bf16.mxu0 0
  %3442 = vmatpush1.bf16.msra.mxu0 %v3310
  %3443 = vmatprep.subr.bf16.mxu0 0
  %3444 = vmatpush1.bf16.msra.mxu0 %v3309
  %3445 = vmatprep.subr.bf16.mxu0 0
  %3446 = vmatpush1.bf16.msra.mxu0 %v3308
  %3447 = vmatprep.subr.bf16.mxu0 0
  %3448 = vmatpush1.bf16.msra.mxu0 %v3307
  %3449 = vmatprep.subr.bf16.mxu0 0
  %3450 = vmatpush2.bf16.msra.mxu0 %v3322
  %3451 = vmatprep.subr.bf16.mxu0 0
  %3452 = vmatpush2.bf16.msra.mxu0 %v3321
  %3453 = vmatprep.subr.bf16.mxu0 0
  %3454 = vmatpush2.bf16.msra.mxu0 %v3320
  %3455 = vmatprep.subr.bf16.mxu0 0
  %3456 = vmatpush2.bf16.msra.mxu0 %v3319
  %3457 = vmatprep.subr.bf16.mxu0 0
  %3458 = vmatpush2.bf16.msra.mxu0 %v3318
  %3459 = vmatprep.subr.bf16.mxu0 0
  %3460 = vmatpush2.bf16.msra.mxu0 %v3317
  %3461 = vmatprep.subr.bf16.mxu0 0
  %3462 = vmatpush2.bf16.msra.mxu0 %v3316
  %3463 = vmatprep.subr.bf16.mxu0 0
  %3464 = vmatpush2.bf16.msra.mxu0 %v3315
  %3465 = vmatprep.mubr.bf16.mxu0 %v2986
  %3466 = vmatmul.mubr.bf16.gmra.mxu0 %v2985
  %v3467 = vpop.f32.mrf.mxu0
  %v3468 = vadd.f32 %v3427, %v3467
  %v3469 = vpop.f32.mrf.mxu0
  %v3470 = vpop.f32.mrf.mxu0
  %v3471 = vadd.f32 %v3430, %v3470
  %v3472 = vpop.f32.mrf.mxu0
  %3473 = vdwg.mxu0
  %3474 = vmatprep.subr.bf16.mxu0 0
  %3475 = vmatpush1.bf16.msra.mxu0 %v3330
  %3476 = vmatprep.subr.bf16.mxu0 0
  %3477 = vmatpush1.bf16.msra.mxu0 %v3329
  %3478 = vmatprep.subr.bf16.mxu0 0
  %3479 = vmatpush1.bf16.msra.mxu0 %v3328
  %3480 = vmatprep.subr.bf16.mxu0 0
  %3481 = vmatpush1.bf16.msra.mxu0 %v3327
  %3482 = vmatprep.subr.bf16.mxu0 0
  %3483 = vmatpush1.bf16.msra.mxu0 %v3326
  %3484 = vmatprep.subr.bf16.mxu0 0
  %3485 = vmatpush1.bf16.msra.mxu0 %v3325
  %3486 = vmatprep.subr.bf16.mxu0 0
  %3487 = vmatpush1.bf16.msra.mxu0 %v3324
  %3488 = vmatprep.subr.bf16.mxu0 0
  %3489 = vmatpush1.bf16.msra.mxu0 %v3323
  %3490 = vmatprep.subr.bf16.mxu0 0
  %3491 = vmatpush2.bf16.msra.mxu0 %v3338
  %3492 = vmatprep.subr.bf16.mxu0 0
  %3493 = vmatpush2.bf16.msra.mxu0 %v3337
  %3494 = vmatprep.subr.bf16.mxu0 0
  %3495 = vmatpush2.bf16.msra.mxu0 %v3336
  %3496 = vmatprep.subr.bf16.mxu0 0
  %3497 = vmatpush2.bf16.msra.mxu0 %v3335
  %3498 = vmatprep.subr.bf16.mxu0 0
  %3499 = vmatpush2.bf16.msra.mxu0 %v3334
  %3500 = vmatprep.subr.bf16.mxu0 0
  %3501 = vmatpush2.bf16.msra.mxu0 %v3333
  %3502 = vmatprep.subr.bf16.mxu0 0
  %3503 = vmatpush2.bf16.msra.mxu0 %v3332
  %3504 = vmatprep.subr.bf16.mxu0 0
  %3505 = vmatpush2.bf16.msra.mxu0 %v3331
  %3506 = vmatprep.mubr.bf16.mxu0 %v2988
  %3507 = vmatmul.mubr.bf16.gmra.mxu0 %v2987
  %v3508 = vpop.f32.mrf.mxu0
  %v3509 = vadd.f32 %v3468, %v3508
  %v3510 = vpop.f32.mrf.mxu0
  %v3511 = vpop.f32.mrf.mxu0
  %v3512 = vadd.f32 %v3471, %v3511
  %v3513 = vpop.f32.mrf.mxu0
  %3514 = vdwg.mxu0
  %3515 = vmatprep.subr.bf16.mxu0 0
  %3516 = vmatpush1.bf16.msra.mxu0 0
  %3517 = vmatprep.subr.bf16.mxu0 0
  %3518 = vmatpush1.bf16.msra.mxu0 0
  %3519 = vmatprep.subr.bf16.mxu0 0
  %3520 = vmatpush1.bf16.msra.mxu0 0
  %3521 = vmatprep.subr.bf16.mxu0 0
  %3522 = vmatpush1.bf16.msra.mxu0 0
  %3523 = vmatprep.subr.bf16.mxu0 0
  %3524 = vmatpush1.bf16.msra.mxu0 0
  %3525 = vmatprep.subr.bf16.mxu0 0
  %3526 = vmatpush1.bf16.msra.mxu0 0
  %3527 = vmatprep.subr.bf16.mxu0 0
  %3528 = vmatpush1.bf16.msra.mxu0 0
  %3529 = vmatprep.subr.bf16.mxu0 0
  %3530 = vmatpush1.bf16.msra.mxu0 %v3339
  %3531 = vmatprep.subr.bf16.mxu0 0
  %3532 = vmatpush2.bf16.msra.mxu0 0
  %3533 = vmatprep.subr.bf16.mxu0 0
  %3534 = vmatpush2.bf16.msra.mxu0 0
  %3535 = vmatprep.subr.bf16.mxu0 0
  %3536 = vmatpush2.bf16.msra.mxu0 0
  %3537 = vmatprep.subr.bf16.mxu0 0
  %3538 = vmatpush2.bf16.msra.mxu0 0
  %3539 = vmatprep.subr.bf16.mxu0 0
  %3540 = vmatpush2.bf16.msra.mxu0 0
  %3541 = vmatprep.subr.bf16.mxu0 0
  %3542 = vmatpush2.bf16.msra.mxu0 0
  %3543 = vmatprep.subr.bf16.mxu0 0
  %3544 = vmatpush2.bf16.msra.mxu0 0
  %3545 = vmatprep.subr.bf16.mxu0 0
  %3546 = vmatpush2.bf16.msra.mxu0 0
  %3547 = vmatprep.mubr.bf16.mxu0 0
  %3548 = vmatmul.mubr.bf16.gmra.mxu0 %v3390
  %v3549 = vpop.f32.mrf.mxu0
  %v3550 = vadd.f32 %v3509, %v3549
  %v3551 = vpop.f32.mrf.mxu0
  %v3552 = vpop.f32.mrf.mxu0
  %v3553 = vadd.f32 %v3512, %v3552
  %v3554 = vpop.f32.mrf.mxu0
  %3555 = vdwg.mxu0
  %v3556 = vmax.f32 %v3550, 0.0
  %v3557 = vmax.f32 %v3553, 0.0
  %v3558 = vpack.c.bf16 %v3557, %v3556
  %v3559 = vld [vmem:[%s5] sm:$0xf]
  %v3560 = vld [vmem:[%s5 + $0x4] sm:$0xf]
  %v3561 = vld [vmem:[%s5 + $0x8] sm:$0xf]
  %v3562 = vld [vmem:[%s5 + $0xc] sm:$0xf]
  %v3563 = vld [vmem:[%s5 + $0x10] sm:$0xf]
  %v3564 = vld [vmem:[%s5 + $0x14] sm:$0xf]
  %v3565 = vld [vmem:[%s5 + $0x18] sm:$0xf]
  %v3566 = vld [vmem:[%s5 + $0x1c] sm:$0xf]
  %v3567 = vld [vmem:[%s5 + $0x20] sm:$0xf]
  %v3568 = vld [vmem:[%s5 + $0x24] sm:$0xf]
  %v3569 = vld [vmem:[%s5 + $0x28] sm:$0xf]
  %v3570 = vld [vmem:[%s5 + $0x2c] sm:$0xf]
  %v3571 = vld [vmem:[%s5 + $0x30] sm:$0xf]
  %v3572 = vld [vmem:[%s5 + $0x34] sm:$0xf]
  %v3573 = vld [vmem:[%s5 + $0x38] sm:$0xf]
  %v3574 = vld [vmem:[%s5 + $0x3c] sm:$0xf]
  %v3575 = vld [vmem:[%s6] sm:$0x1]
  %v3577 = vlaneseq
  %v3578 = vshrl.u32 %v3577, 7
  %v3579 = vsub.s32 0, %v3578
  %v3580 = vrot.slane %v3575, %v3579
  %v3598 = vunpack.c.l.b16 %v3559
  %v3599 = vunpack.c.l.b16 %v3560
  %v3600 = vunpack.c.l.b16 %v3561
  %v3601 = vunpack.c.l.b16 %v3562
  %v3602 = vunpack.c.l.b16 %v3563
  %v3603 = vunpack.c.l.b16 %v3564
  %v3604 = vunpack.c.l.b16 %v3565
  %v3605 = vunpack.c.l.b16 %v3566
  %v3606 = vunpack.c.l.b16 %v3567
  %v3607 = vunpack.c.l.b16 %v3568
  %v3608 = vunpack.c.l.b16 %v3569
  %v3609 = vunpack.c.l.b16 %v3570
  %v3610 = vunpack.c.l.b16 %v3571
  %v3611 = vunpack.c.l.b16 %v3572
  %v3612 = vunpack.c.l.b16 %v3573
  %v3613 = vunpack.c.l.b16 %v3574
  %v3614 = vpack.c.b16 %v3599, %v3598
  %v3615 = vpack.c.b16 %v3601, %v3600
  %v3616 = vpack.c.b16 %v3603, %v3602
  %v3617 = vpack.c.b16 %v3605, %v3604
  %v3618 = vpack.c.b16 %v3607, %v3606
  %v3619 = vpack.c.b16 %v3609, %v3608
  %v3620 = vpack.c.b16 %v3611, %v3610
  %v3621 = vpack.c.b16 %v3613, %v3612
  %3630 = vmatprep.subr.bf16.mxu0 0
  %3631 = vmatpush1.bf16.msra.mxu0 %v3621
  %3632 = vmatprep.subr.bf16.mxu0 0
  %3633 = vmatpush1.bf16.msra.mxu0 %v3620
  %3634 = vmatprep.subr.bf16.mxu0 0
  %3635 = vmatpush1.bf16.msra.mxu0 %v3619
  %3636 = vmatprep.subr.bf16.mxu0 0
  %3637 = vmatpush1.bf16.msra.mxu0 %v3618
  %3638 = vmatprep.subr.bf16.mxu0 0
  %3639 = vmatpush1.bf16.msra.mxu0 %v3617
  %3640 = vmatprep.subr.bf16.mxu0 0
  %3641 = vmatpush1.bf16.msra.mxu0 %v3616
  %3642 = vmatprep.subr.bf16.mxu0 0
  %3643 = vmatpush1.bf16.msra.mxu0 %v3615
  %3644 = vmatprep.subr.bf16.mxu0 0
  %3645 = vmatpush1.bf16.msra.mxu0 %v3614
  %3646 = vmatprep.subr.bf16.mxu0 0
  %3647 = vmatpush2.bf16.msra.mxu0 0
  %3648 = vmatprep.subr.bf16.mxu0 0
  %3649 = vmatpush2.bf16.msra.mxu0 0
  %3650 = vmatprep.subr.bf16.mxu0 0
  %3651 = vmatpush2.bf16.msra.mxu0 0
  %3652 = vmatprep.subr.bf16.mxu0 0
  %3653 = vmatpush2.bf16.msra.mxu0 0
  %3654 = vmatprep.subr.bf16.mxu0 0
  %3655 = vmatpush2.bf16.msra.mxu0 0
  %3656 = vmatprep.subr.bf16.mxu0 0
  %3657 = vmatpush2.bf16.msra.mxu0 0
  %3658 = vmatprep.subr.bf16.mxu0 0
  %3659 = vmatpush2.bf16.msra.mxu0 0
  %3660 = vmatprep.subr.bf16.mxu0 0
  %3661 = vmatpush2.bf16.msra.mxu0 0
  %3662 = vmatprep.mubr.bf16.mxu0 0
  %3663 = vmatmul.mubr.bf16.gmra.mxu0 %v3558
  %v3664 = vpop.f32.mrf.mxu0
  %v3665 = vadd.f32 %v3580, %v3664
  %v3666 = vpop.f32.mrf.mxu0
  %v3667 = vpop.f32.mrf.mxu0
  %v3668 = vadd.f32 %v3580, %v3667
  %v3669 = vpop.f32.mrf.mxu0
  %3670 = vdwg.mxu0
  %v3671 = vmax.f32 %v3665, 0.0
  %v3672 = vmax.f32 %v3668, 0.0
  %v3673 = vpack.c.bf16 %v3672, %v3671
  %v3674 = vld [vmem:[%s7] sm:$0xf]
  %v3675 = vld [vmem:[%s7 + $0x4] sm:$0xf]
  %v3676 = vld [vmem:[%s7 + $0x8] sm:$0xf]
  %v3677 = vld [vmem:[%s7 + $0xc] sm:$0xf]
  %v3678 = vld [vmem:[%s7 + $0x10] sm:$0xf]
  %v3679 = vld [vmem:[%s7 + $0x14] sm:$0xf]
  %v3680 = vld [vmem:[%s7 + $0x18] sm:$0xf]
  %v3681 = vld [vmem:[%s7 + $0x1c] sm:$0xf]
  %v3682 = vld [vmem:[%s8] sm:$0x1]
  %v3684 = vlaneseq
  %v3685 = vshrl.u32 %v3684, 7
  %v3686 = vsub.s32 0, %v3685
  %v3687 = vrot.slane %v3682, %v3686
  %v3697 = vunpack.c.l.b16 %v3674
  %v3698 = vunpack.c.l.b16 %v3675
  %v3699 = vunpack.c.l.b16 %v3676
  %v3700 = vunpack.c.l.b16 %v3677
  %v3701 = vunpack.c.l.b16 %v3678
  %v3702 = vunpack.c.l.b16 %v3679
  %v3703 = vunpack.c.l.b16 %v3680
  %v3704 = vunpack.c.l.b16 %v3681
  %v3705 = vpack.c.b16 %v3698, %v3697
  %v3706 = vpack.c.b16 %v3700, %v3699
  %v3707 = vpack.c.b16 %v3702, %v3701
  %v3708 = vpack.c.b16 %v3704, %v3703
  %vm3713 = vcmask 523264
  %v3715 = vsel %vm3713, %v3673, 0
  %3717 = vmatprep.subr.bf16.mxu0 0
  %3718 = vmatpush1.bf16.msra.mxu0 0
  %3719 = vmatprep.subr.bf16.mxu0 0
  %3720 = vmatpush1.bf16.msra.mxu0 0
  %3721 = vmatprep.subr.bf16.mxu0 0
  %3722 = vmatpush1.bf16.msra.mxu0 0
  %3723 = vmatprep.subr.bf16.mxu0 0
  %3724 = vmatpush1.bf16.msra.mxu0 0
  %3725 = vmatprep.subr.bf16.mxu0 0
  %3726 = vmatpush1.bf16.msra.mxu0 %v3708
  %3727 = vmatprep.subr.bf16.mxu0 0
  %3728 = vmatpush1.bf16.msra.mxu0 %v3707
  %3729 = vmatprep.subr.bf16.mxu0 0
  %3730 = vmatpush1.bf16.msra.mxu0 %v3706
  %3731 = vmatprep.subr.bf16.mxu0 0
  %3732 = vmatpush1.bf16.msra.mxu0 %v3705
  %3733 = vmatprep.subr.bf16.mxu0 0
  %3734 = vmatpush2.bf16.msra.mxu0 0
  %3735 = vmatprep.subr.bf16.mxu0 0
  %3736 = vmatpush2.bf16.msra.mxu0 0
  %3737 = vmatprep.subr.bf16.mxu0 0
  %3738 = vmatpush2.bf16.msra.mxu0 0
  %3739 = vmatprep.subr.bf16.mxu0 0
  %3740 = vmatpush2.bf16.msra.mxu0 0
  %3741 = vmatprep.subr.bf16.mxu0 0
  %3742 = vmatpush2.bf16.msra.mxu0 0
  %3743 = vmatprep.subr.bf16.mxu0 0
  %3744 = vmatpush2.bf16.msra.mxu0 0
  %3745 = vmatprep.subr.bf16.mxu0 0
  %3746 = vmatpush2.bf16.msra.mxu0 0
  %3747 = vmatprep.subr.bf16.mxu0 0
  %3748 = vmatpush2.bf16.msra.mxu0 0
  %3749 = vmatprep.mubr.bf16.mxu0 0
  %3750 = vmatmul.mubr.bf16.gmra.mxu0 %v3715
  %v3751 = vpop.f32.mrf.mxu0
  %v3752 = vadd.f32 %v3687, %v3751
  %v3753 = vpop.f32.mrf.mxu0
  %v3754 = vpop.f32.mrf.mxu0
  %v3755 = vadd.f32 %v3687, %v3754
  %v3756 = vpop.f32.mrf.mxu0
  %3757 = vdwg.mxu0
  %v3758 = vmax.f32 %v3752, 0.0
  %v3759 = vmax.f32 %v3755, 0.0
  %v3760 = vpack.c.bf16 %v3759, %v3758
  %v3761 = vld [vmem:[%s9] sm:$0xf]
  %v3762 = vld [vmem:[%s9 + $0x4] sm:$0xf]
  %v3763 = vld [vmem:[%s9 + $0x8] sm:$0xf]
  %v3764 = vld [vmem:[%s9 + $0xc] sm:$0xf]
  %v3765 = vld [vmem:[%s10] sm:$0x1]
  %v3767 = vlaneseq
  %v3768 = vshrl.u32 %v3767, 7
  %v3769 = vsub.s32 0, %v3768
  %v3770 = vrot.slane %v3765, %v3769
  %v3776 = vunpack.c.l.b16 %v3761
  %v3777 = vunpack.c.l.b16 %v3762
  %v3778 = vunpack.c.l.b16 %v3763
  %v3779 = vunpack.c.l.b16 %v3764
  %v3780 = vpack.c.b16 %v3777, %v3776
  %v3781 = vpack.c.b16 %v3779, %v3778
  %vm3784 = vcmask 261120
  %v3786 = vsel %vm3784, %v3760, 0
  %3788 = vmatprep.subr.bf16.mxu0 0
  %3789 = vmatpush1.bf16.msra.mxu0 0
  %3790 = vmatprep.subr.bf16.mxu0 0
  %3791 = vmatpush1.bf16.msra.mxu0 0
  %3792 = vmatprep.subr.bf16.mxu0 0
  %3793 = vmatpush1.bf16.msra.mxu0 0
  %3794 = vmatprep.subr.bf16.mxu0 0
  %3795 = vmatpush1.bf16.msra.mxu0 0
  %3796 = vmatprep.subr.bf16.mxu0 0
  %3797 = vmatpush1.bf16.msra.mxu0 0
  %3798 = vmatprep.subr.bf16.mxu0 0
  %3799 = vmatpush1.bf16.msra.mxu0 0
  %3800 = vmatprep.subr.bf16.mxu0 0
  %3801 = vmatpush1.bf16.msra.mxu0 %v3781
  %3802 = vmatprep.subr.bf16.mxu0 0
  %3803 = vmatpush1.bf16.msra.mxu0 %v3780
  %3804 = vmatprep.subr.bf16.mxu0 0
  %3805 = vmatpush2.bf16.msra.mxu0 0
  %3806 = vmatprep.subr.bf16.mxu0 0
  %3807 = vmatpush2.bf16.msra.mxu0 0
  %3808 = vmatprep.subr.bf16.mxu0 0
  %3809 = vmatpush2.bf16.msra.mxu0 0
  %3810 = vmatprep.subr.bf16.mxu0 0
  %3811 = vmatpush2.bf16.msra.mxu0 0
  %3812 = vmatprep.subr.bf16.mxu0 0
  %3813 = vmatpush2.bf16.msra.mxu0 0
  %3814 = vmatprep.subr.bf16.mxu0 0
  %3815 = vmatpush2.bf16.msra.mxu0 0
  %3816 = vmatprep.subr.bf16.mxu0 0
  %3817 = vmatpush2.bf16.msra.mxu0 0
  %3818 = vmatprep.subr.bf16.mxu0 0
  %3819 = vmatpush2.bf16.msra.mxu0 0
  %3820 = vmatprep.mubr.bf16.mxu0 0
  %3821 = vmatmul.mubr.bf16.gmra.mxu0 %v3786
  %v3822 = vpop.f32.mrf.mxu0
  %v3823 = vadd.f32 %v3770, %v3822
  %v3824 = vpop.f32.mrf.mxu0
  %v3825 = vpop.f32.mrf.mxu0
  %v3826 = vadd.f32 %v3770, %v3825
  %v3827 = vpop.f32.mrf.mxu0
  %3828 = vdwg.mxu0
  %3829 = vst [vmem:[%s21] sm:$0xff] %v3823
  %3830 = vst [vmem:[%s21 + $0x8] sm:$0xff] %v3826
  %v3831 = vpack.c.bf16 %v3826, %v3823
  %v3832 = vld [vmem:[%s11] sm:$0xf]
  %v3833 = vld [vmem:[%s11 + $0x4] sm:$0xf]
  %v3834 = vld [vmem:[%s11 + $0x8] sm:$0xf]
  %v3835 = vld [vmem:[%s11 + $0xc] sm:$0xf]
  %v3836 = vld [vmem:[%s11 + $0x10] sm:$0xf]
  %v3837 = vld [vmem:[%s11 + $0x14] sm:$0xf]
  %v3838 = vld [vmem:[%s11 + $0x18] sm:$0xf]
  %v3839 = vld [vmem:[%s11 + $0x1c] sm:$0xf]
  %v3840 = vld [vmem:[%s11 + $0x20] sm:$0xf]
  %v3841 = vld [vmem:[%s11 + $0x24] sm:$0xf]
  %v3842 = vld [vmem:[%s11 + $0x28] sm:$0xf]
  %v3843 = vld [vmem:[%s11 + $0x2c] sm:$0xf]
  %v3844 = vld [vmem:[%s11 + $0x30] sm:$0xf]
  %v3845 = vld [vmem:[%s11 + $0x34] sm:$0xf]
  %v3846 = vld [vmem:[%s11 + $0x38] sm:$0xf]
  %v3847 = vld [vmem:[%s11 + $0x3c] sm:$0xf]
  %v3848 = vld [vmem:[%s12] sm:$0x1]
  %v3850 = vlaneseq
  %v3851 = vshrl.u32 %v3850, 7
  %v3852 = vsub.s32 0, %v3851
  %v3853 = vrot.slane %v3848, %v3852
  %v3871 = vunpack.c.l.b16 %v3832
  %v3872 = vunpack.c.l.b16 %v3833
  %v3873 = vunpack.c.l.b16 %v3834
  %v3874 = vunpack.c.l.b16 %v3835
  %v3875 = vunpack.c.l.b16 %v3836
  %v3876 = vunpack.c.l.b16 %v3837
  %v3877 = vunpack.c.l.b16 %v3838
  %v3878 = vunpack.c.l.b16 %v3839
  %v3879 = vunpack.c.l.b16 %v3840
  %v3880 = vunpack.c.l.b16 %v3841
  %v3881 = vunpack.c.l.b16 %v3842
  %v3882 = vunpack.c.l.b16 %v3843
  %v3883 = vunpack.c.l.b16 %v3844
  %v3884 = vunpack.c.l.b16 %v3845
  %v3885 = vunpack.c.l.b16 %v3846
  %v3886 = vunpack.c.l.b16 %v3847
  %v3887 = vpack.c.b16 %v3872, %v3871
  %v3888 = vpack.c.b16 %v3874, %v3873
  %v3889 = vpack.c.b16 %v3876, %v3875
  %v3890 = vpack.c.b16 %v3878, %v3877
  %v3891 = vpack.c.b16 %v3880, %v3879
  %v3892 = vpack.c.b16 %v3882, %v3881
  %v3893 = vpack.c.b16 %v3884, %v3883
  %v3894 = vpack.c.b16 %v3886, %v3885
  %3903 = vmatprep.subr.bf16.mxu0 0
  %3904 = vmatpush1.bf16.msra.mxu0 %v3894
  %3905 = vmatprep.subr.bf16.mxu0 0
  %3906 = vmatpush1.bf16.msra.mxu0 %v3893
  %3907 = vmatprep.subr.bf16.mxu0 0
  %3908 = vmatpush1.bf16.msra.mxu0 %v3892
  %3909 = vmatprep.subr.bf16.mxu0 0
  %3910 = vmatpush1.bf16.msra.mxu0 %v3891
  %3911 = vmatprep.subr.bf16.mxu0 0
  %3912 = vmatpush1.bf16.msra.mxu0 %v3890
  %3913 = vmatprep.subr.bf16.mxu0 0
  %3914 = vmatpush1.bf16.msra.mxu0 %v3889
  %3915 = vmatprep.subr.bf16.mxu0 0
  %3916 = vmatpush1.bf16.msra.mxu0 %v3888
  %3917 = vmatprep.subr.bf16.mxu0 0
  %3918 = vmatpush1.bf16.msra.mxu0 %v3887
  %3919 = vmatprep.subr.bf16.mxu0 0
  %3920 = vmatpush2.bf16.msra.mxu0 0
  %3921 = vmatprep.subr.bf16.mxu0 0
  %3922 = vmatpush2.bf16.msra.mxu0 0
  %3923 = vmatprep.subr.bf16.mxu0 0
  %3924 = vmatpush2.bf16.msra.mxu0 0
  %3925 = vmatprep.subr.bf16.mxu0 0
  %3926 = vmatpush2.bf16.msra.mxu0 0
  %3927 = vmatprep.subr.bf16.mxu0 0
  %3928 = vmatpush2.bf16.msra.mxu0 0
  %3929 = vmatprep.subr.bf16.mxu0 0
  %3930 = vmatpush2.bf16.msra.mxu0 0
  %3931 = vmatprep.subr.bf16.mxu0 0
  %3932 = vmatpush2.bf16.msra.mxu0 0
  %3933 = vmatprep.subr.bf16.mxu0 0
  %3934 = vmatpush2.bf16.msra.mxu0 0
  %3935 = vmatprep.mubr.bf16.mxu0 0
  %3936 = vmatmul.mubr.bf16.gmra.mxu0 %v3831
  %v3937 = vpop.f32.mrf.mxu0
  %v3938 = vadd.f32 %v3853, %v3937
  %v3939 = vpop.f32.mrf.mxu0
  %v3940 = vpop.f32.mrf.mxu0
  %v3941 = vadd.f32 %v3853, %v3940
  %v3942 = vpop.f32.mrf.mxu0
  %3943 = vdwg.mxu0
  %v3944 = vmax.f32 %v3938, 0.0
  %v3945 = vmax.f32 %v3941, 0.0
  %v3946 = vpack.c.bf16 %v3945, %v3944
  %v3947 = vld [vmem:[%s13] sm:$0xf]
  %v3948 = vld [vmem:[%s13 + $0x4] sm:$0xf]
  %v3949 = vld [vmem:[%s13 + $0x8] sm:$0xf]
  %v3950 = vld [vmem:[%s13 + $0xc] sm:$0xf]
  %v3951 = vld [vmem:[%s14] sm:$0x1]
  %v3953 = vlaneseq
  %v3954 = vshrl.u32 %v3953, 7
  %v3955 = vsub.s32 0, %v3954
  %v3956 = vrot.slane %v3951, %v3955
  %v3962 = vunpack.c.l.b16 %v3947
  %v3963 = vunpack.c.l.b16 %v3948
  %v3964 = vunpack.c.l.b16 %v3949
  %v3965 = vunpack.c.l.b16 %v3950
  %v3966 = vpack.c.b16 %v3963, %v3962
  %v3967 = vpack.c.b16 %v3965, %v3964
  %v3971 = vsel %vm3784, %v3946, 0
  %3973 = vmatprep.subr.bf16.mxu0 0
  %3974 = vmatpush1.bf16.msra.mxu0 0
  %3975 = vmatprep.subr.bf16.mxu0 0
  %3976 = vmatpush1.bf16.msra.mxu0 0
  %3977 = vmatprep.subr.bf16.mxu0 0
  %3978 = vmatpush1.bf16.msra.mxu0 0
  %3979 = vmatprep.subr.bf16.mxu0 0
  %3980 = vmatpush1.bf16.msra.mxu0 0
  %3981 = vmatprep.subr.bf16.mxu0 0
  %3982 = vmatpush1.bf16.msra.mxu0 0
  %3983 = vmatprep.subr.bf16.mxu0 0
  %3984 = vmatpush1.bf16.msra.mxu0 0
  %3985 = vmatprep.subr.bf16.mxu0 0
  %3986 = vmatpush1.bf16.msra.mxu0 %v3967
  %3987 = vmatprep.subr.bf16.mxu0 0
  %3988 = vmatpush1.bf16.msra.mxu0 %v3966
  %3989 = vmatprep.subr.bf16.mxu0 0
  %3990 = vmatpush2.bf16.msra.mxu0 0
  %3991 = vmatprep.subr.bf16.mxu0 0
  %3992 = vmatpush2.bf16.msra.mxu0 0
  %3993 = vmatprep.subr.bf16.mxu0 0
  %3994 = vmatpush2.bf16.msra.mxu0 0
  %3995 = vmatprep.subr.bf16.mxu0 0
  %3996 = vmatpush2.bf16.msra.mxu0 0
  %3997 = vmatprep.subr.bf16.mxu0 0
  %3998 = vmatpush2.bf16.msra.mxu0 0
  %3999 = vmatprep.subr.bf16.mxu0 0
  %4000 = vmatpush2.bf16.msra.mxu0 0
  %4001 = vmatprep.subr.bf16.mxu0 0
  %4002 = vmatpush2.bf16.msra.mxu0 0
  %4003 = vmatprep.subr.bf16.mxu0 0
  %4004 = vmatpush2.bf16.msra.mxu0 0
  %4005 = vmatprep.mubr.bf16.mxu0 0
  %4006 = vmatmul.mubr.bf16.gmra.mxu0 %v3971
  %v4007 = vpop.f32.mrf.mxu0
  %v4008 = vadd.f32 %v3956, %v4007
  %v4009 = vpop.f32.mrf.mxu0
  %v4010 = vpop.f32.mrf.mxu0
  %v4011 = vadd.f32 %v3956, %v4010
  %v4012 = vpop.f32.mrf.mxu0
  %4013 = vdwg.mxu0
  %v4014 = vmax.f32 %v4008, 0.0
  %v4015 = vmax.f32 %v4011, 0.0
  %v4016 = vpack.c.bf16 %v4015, %v4014
  %v4017 = vld [vmem:[%s15] sm:$0xf]
  %v4018 = vld [vmem:[%s15 + $0x4] sm:$0xf]
  %v4019 = vld [vmem:[%s15 + $0x8] sm:$0xf]
  %v4020 = vld [vmem:[%s15 + $0xc] sm:$0xf]
  %v4021 = vld [vmem:[%s15 + $0x10] sm:$0xf]
  %v4022 = vld [vmem:[%s15 + $0x14] sm:$0xf]
  %v4023 = vld [vmem:[%s15 + $0x18] sm:$0xf]
  %v4024 = vld [vmem:[%s15 + $0x1c] sm:$0xf]
  %v4025 = vld [vmem:[%s16] sm:$0x1]
  %v4027 = vlaneseq
  %v4028 = vshrl.u32 %v4027, 7
  %v4029 = vsub.s32 0, %v4028
  %v4030 = vrot.slane %v4025, %v4029
  %v4040 = vunpack.c.l.b16 %v4017
  %v4041 = vunpack.c.l.b16 %v4018
  %v4042 = vunpack.c.l.b16 %v4019
  %v4043 = vunpack.c.l.b16 %v4020
  %v4044 = vunpack.c.l.b16 %v4021
  %v4045 = vunpack.c.l.b16 %v4022
  %v4046 = vunpack.c.l.b16 %v4023
  %v4047 = vunpack.c.l.b16 %v4024
  %v4048 = vpack.c.b16 %v4041, %v4040
  %v4049 = vpack.c.b16 %v4043, %v4042
  %v4050 = vpack.c.b16 %v4045, %v4044
  %v4051 = vpack.c.b16 %v4047, %v4046
  %v4057 = vsel %vm3713, %v4016, 0
  %4059 = vmatprep.subr.bf16.mxu0 0
  %4060 = vmatpush1.bf16.msra.mxu0 0
  %4061 = vmatprep.subr.bf16.mxu0 0
  %4062 = vmatpush1.bf16.msra.mxu0 0
  %4063 = vmatprep.subr.bf16.mxu0 0
  %4064 = vmatpush1.bf16.msra.mxu0 0
  %4065 = vmatprep.subr.bf16.mxu0 0
  %4066 = vmatpush1.bf16.msra.mxu0 0
  %4067 = vmatprep.subr.bf16.mxu0 0
  %4068 = vmatpush1.bf16.msra.mxu0 %v4051
  %4069 = vmatprep.subr.bf16.mxu0 0
  %4070 = vmatpush1.bf16.msra.mxu0 %v4050
  %4071 = vmatprep.subr.bf16.mxu0 0
  %4072 = vmatpush1.bf16.msra.mxu0 %v4049
  %4073 = vmatprep.subr.bf16.mxu0 0
  %4074 = vmatpush1.bf16.msra.mxu0 %v4048
  %4075 = vmatprep.subr.bf16.mxu0 0
  %4076 = vmatpush2.bf16.msra.mxu0 0
  %4077 = vmatprep.subr.bf16.mxu0 0
  %4078 = vmatpush2.bf16.msra.mxu0 0
  %4079 = vmatprep.subr.bf16.mxu0 0
  %4080 = vmatpush2.bf16.msra.mxu0 0
  %4081 = vmatprep.subr.bf16.mxu0 0
  %4082 = vmatpush2.bf16.msra.mxu0 0
  %4083 = vmatprep.subr.bf16.mxu0 0
  %4084 = vmatpush2.bf16.msra.mxu0 0
  %4085 = vmatprep.subr.bf16.mxu0 0
  %4086 = vmatpush2.bf16.msra.mxu0 0
  %4087 = vmatprep.subr.bf16.mxu0 0
  %4088 = vmatpush2.bf16.msra.mxu0 0
  %4089 = vmatprep.subr.bf16.mxu0 0
  %4090 = vmatpush2.bf16.msra.mxu0 0
  %4091 = vmatprep.mubr.bf16.mxu0 0
  %4092 = vmatmul.mubr.bf16.gmra.mxu0 %v4057
  %v4093 = vpop.f32.mrf.mxu0
  %v4094 = vadd.f32 %v4030, %v4093
  %v4095 = vpop.f32.mrf.mxu0
  %v4096 = vpop.f32.mrf.mxu0
  %v4097 = vadd.f32 %v4030, %v4096
  %v4098 = vpop.f32.mrf.mxu0
  %4099 = vdwg.mxu0
  %v4100 = vmax.f32 %v4094, 0.0
  %v4101 = vmax.f32 %v4097, 0.0
  %v4102 = vpack.c.bf16 %v4101, %v4100
  %v4103 = vld [vmem:[%s17] sm:$0xff]
  %v4104 = vld [vmem:[%s17 + $0x8] sm:$0xff]
  %v4105 = vld [vmem:[%s17 + $0x10] sm:$0xff]
  %v4106 = vld [vmem:[%s17 + $0x18] sm:$0xf]
  %v4107 = vld [vmem:[%s17 + $0x1c] sm:$0xff]
  %v4108 = vld [vmem:[%s17 + $0x24] sm:$0xff]
  %v4109 = vld [vmem:[%s17 + $0x2c] sm:$0xff]
  %v4110 = vld [vmem:[%s17 + $0x34] sm:$0xf]
  %v4111 = vld [vmem:[%s17 + $0x38] sm:$0xff]
  %v4112 = vld [vmem:[%s17 + $0x40] sm:$0xff]
  %v4113 = vld [vmem:[%s17 + $0x48] sm:$0xff]
  %v4114 = vld [vmem:[%s17 + $0x50] sm:$0xf]
  %v4115 = vld [vmem:[%s17 + $0x54] sm:$0xff]
  %v4116 = vld [vmem:[%s17 + $0x5c] sm:$0xff]
  %v4117 = vld [vmem:[%s17 + $0x64] sm:$0xff]
  %v4118 = vld [vmem:[%s17 + $0x6c] sm:$0xf]
  %v4119 = vld [vmem:[%s17 + $0x70] sm:$0xff]
  %v4120 = vld [vmem:[%s17 + $0x78] sm:$0xff]
  %v4121 = vld [vmem:[%s17 + $0x80] sm:$0xff]
  %v4122 = vld [vmem:[%s17 + $0x88] sm:$0xf]
  %v4123 = vld [vmem:[%s17 + $0x8c] sm:$0xff]
  %v4124 = vld [vmem:[%s17 + $0x94] sm:$0xff]
  %v4125 = vld [vmem:[%s17 + $0x9c] sm:$0xff]
  %v4126 = vld [vmem:[%s17 + $0xa4] sm:$0xf]
  %v4127 = vld [vmem:[%s17 + $0xa8] sm:$0xff]
  %v4128 = vld [vmem:[%s17 + $0xb0] sm:$0xff]
  %v4129 = vld [vmem:[%s17 + $0xb8] sm:$0xff]
  %v4130 = vld [vmem:[%s17 + $0xc0] sm:$0xf]
  %v4131 = vld [vmem:[%s17 + $0xc4] sm:$0xff]
  %v4132 = vld [vmem:[%s17 + $0xcc] sm:$0xff]
  %v4133 = vld [vmem:[%s17 + $0xd4] sm:$0xff]
  %v4134 = vld [vmem:[%s17 + $0xdc] sm:$0xf]
  %v4135 = vld [vmem:[%s17 + $0xe0] sm:$0xff]
  %v4136 = vld [vmem:[%s17 + $0xe8] sm:$0xff]
  %v4137 = vld [vmem:[%s17 + $0xf0] sm:$0xff]
  %v4138 = vld [vmem:[%s17 + $0xf8] sm:$0xf]
  %v4139 = vld [vmem:[%s17 + $0xfc] sm:$0xff]
  %v4140 = vld [vmem:[%s17 + $0x104] sm:$0xff]
  %v4141 = vld [vmem:[%s17 + $0x10c] sm:$0xff]
  %v4142 = vld [vmem:[%s17 + $0x114] sm:$0xf]
  %v4143 = vld [vmem:[%s17 + $0x118] sm:$0xff]
  %v4144 = vld [vmem:[%s17 + $0x120] sm:$0xff]
  %v4145 = vld [vmem:[%s17 + $0x128] sm:$0xff]
  %v4146 = vld [vmem:[%s17 + $0x130] sm:$0xf]
  %v4147 = vld [vmem:[%s17 + $0x134] sm:$0xff]
  %v4148 = vld [vmem:[%s17 + $0x13c] sm:$0xff]
  %v4149 = vld [vmem:[%s17 + $0x144] sm:$0xff]
  %v4150 = vld [vmem:[%s17 + $0x14c] sm:$0xf]
  %v4151 = vld [vmem:[%s17 + $0x150] sm:$0xff]
  %v4152 = vld [vmem:[%s17 + $0x158] sm:$0xff]
  %v4153 = vld [vmem:[%s17 + $0x160] sm:$0xff]
  %v4154 = vld [vmem:[%s17 + $0x168] sm:$0xf]
  %v4155 = vld [vmem:[%s17 + $0x16c] sm:$0xff]
  %v4156 = vld [vmem:[%s17 + $0x174] sm:$0xff]
  %v4157 = vld [vmem:[%s17 + $0x17c] sm:$0xff]
  %v4158 = vld [vmem:[%s17 + $0x184] sm:$0xf]
  %v4159 = vld [vmem:[%s17 + $0x188] sm:$0xff]
  %v4160 = vld [vmem:[%s17 + $0x190] sm:$0xff]
  %v4161 = vld [vmem:[%s17 + $0x198] sm:$0xff]
  %v4162 = vld [vmem:[%s17 + $0x1a0] sm:$0xf]
  %v4163 = vld [vmem:[%s17 + $0x1a4] sm:$0xff]
  %v4164 = vld [vmem:[%s17 + $0x1ac] sm:$0xff]
  %v4165 = vld [vmem:[%s17 + $0x1b4] sm:$0xff]
  %v4166 = vld [vmem:[%s17 + $0x1bc] sm:$0xf]
  %v4167 = vld [vmem:[%s18] sm:$0x7f]
  %v4169 = vlaneseq
  %v4170 = vshrl.u32 %v4169, 7
  %v4171 = vsub.s32 0, %v4170
  %v4172 = vrot.slane %v4167, %v4171
  %v4173 = vlaneseq
  %v4174 = vshrl.u32 %v4173, 7
  %v4175 = vsub.s32 1, %v4174
  %v4176 = vrot.slane %v4167, %v4175
  %v4177 = vlaneseq
  %v4178 = vshrl.u32 %v4177, 7
  %v4179 = vsub.s32 2, %v4178
  %v4180 = vrot.slane %v4167, %v4179
  %v4181 = vlaneseq
  %v4182 = vshrl.u32 %v4181, 7
  %v4183 = vsub.s32 3, %v4182
  %v4184 = vrot.slane %v4167, %v4183
  %v4185 = vlaneseq
  %v4186 = vshrl.u32 %v4185, 7
  %v4187 = vsub.s32 4, %v4186
  %v4188 = vrot.slane %v4167, %v4187
  %v4189 = vlaneseq
  %v4190 = vshrl.u32 %v4189, 7
  %v4191 = vsub.s32 5, %v4190
  %v4192 = vrot.slane %v4167, %v4191
  %v4193 = vlaneseq
  %v4194 = vshrl.u32 %v4193, 7
  %v4195 = vsub.s32 6, %v4194
  %v4196 = vrot.slane %v4167, %v4195
  %v4268 = vunpack.c.l.b16 %v4103
  %v4269 = vunpack.c.h.b16 %v4103
  %v4270 = vunpack.c.l.b16 %v4104
  %v4271 = vunpack.c.h.b16 %v4104
  %v4272 = vunpack.c.l.b16 %v4105
  %v4273 = vunpack.c.h.b16 %v4105
  %v4274 = vunpack.c.l.b16 %v4106
  %v4275 = vunpack.c.l.b16 %v4107
  %v4276 = vunpack.c.h.b16 %v4107
  %v4277 = vunpack.c.l.b16 %v4108
  %v4278 = vunpack.c.h.b16 %v4108
  %v4279 = vunpack.c.l.b16 %v4109
  %v4280 = vunpack.c.h.b16 %v4109
  %v4281 = vunpack.c.l.b16 %v4110
  %v4282 = vunpack.c.l.b16 %v4111
  %v4283 = vunpack.c.h.b16 %v4111
  %v4284 = vunpack.c.l.b16 %v4112
  %v4285 = vunpack.c.h.b16 %v4112
  %v4286 = vunpack.c.l.b16 %v4113
  %v4287 = vunpack.c.h.b16 %v4113
  %v4288 = vunpack.c.l.b16 %v4114
  %v4289 = vunpack.c.l.b16 %v4115
  %v4290 = vunpack.c.h.b16 %v4115
  %v4291 = vunpack.c.l.b16 %v4116
  %v4292 = vunpack.c.h.b16 %v4116
  %v4293 = vunpack.c.l.b16 %v4117
  %v4294 = vunpack.c.h.b16 %v4117
  %v4295 = vunpack.c.l.b16 %v4118
  %v4296 = vunpack.c.l.b16 %v4119
  %v4297 = vunpack.c.h.b16 %v4119
  %v4298 = vunpack.c.l.b16 %v4120
  %v4299 = vunpack.c.h.b16 %v4120
  %v4300 = vunpack.c.l.b16 %v4121
  %v4301 = vunpack.c.h.b16 %v4121
  %v4302 = vunpack.c.l.b16 %v4122
  %v4303 = vunpack.c.l.b16 %v4123
  %v4304 = vunpack.c.h.b16 %v4123
  %v4305 = vunpack.c.l.b16 %v4124
  %v4306 = vunpack.c.h.b16 %v4124
  %v4307 = vunpack.c.l.b16 %v4125
  %v4308 = vunpack.c.h.b16 %v4125
  %v4309 = vunpack.c.l.b16 %v4126
  %v4310 = vunpack.c.l.b16 %v4127
  %v4311 = vunpack.c.h.b16 %v4127
  %v4312 = vunpack.c.l.b16 %v4128
  %v4313 = vunpack.c.h.b16 %v4128
  %v4314 = vunpack.c.l.b16 %v4129
  %v4315 = vunpack.c.h.b16 %v4129
  %v4316 = vunpack.c.l.b16 %v4130
  %v4317 = vunpack.c.l.b16 %v4131
  %v4318 = vunpack.c.h.b16 %v4131
  %v4319 = vunpack.c.l.b16 %v4132
  %v4320 = vunpack.c.h.b16 %v4132
  %v4321 = vunpack.c.l.b16 %v4133
  %v4322 = vunpack.c.h.b16 %v4133
  %v4323 = vunpack.c.l.b16 %v4134
  %v4324 = vunpack.c.l.b16 %v4135
  %v4325 = vunpack.c.h.b16 %v4135
  %v4326 = vunpack.c.l.b16 %v4136
  %v4327 = vunpack.c.h.b16 %v4136
  %v4328 = vunpack.c.l.b16 %v4137
  %v4329 = vunpack.c.h.b16 %v4137
  %v4330 = vunpack.c.l.b16 %v4138
  %v4331 = vunpack.c.l.b16 %v4139
  %v4332 = vunpack.c.h.b16 %v4139
  %v4333 = vunpack.c.l.b16 %v4140
  %v4334 = vunpack.c.h.b16 %v4140
  %v4335 = vunpack.c.l.b16 %v4141
  %v4336 = vunpack.c.h.b16 %v4141
  %v4337 = vunpack.c.l.b16 %v4142
  %v4338 = vunpack.c.l.b16 %v4143
  %v4339 = vunpack.c.h.b16 %v4143
  %v4340 = vunpack.c.l.b16 %v4144
  %v4341 = vunpack.c.h.b16 %v4144
  %v4342 = vunpack.c.l.b16 %v4145
  %v4343 = vunpack.c.h.b16 %v4145
  %v4344 = vunpack.c.l.b16 %v4146
  %v4345 = vunpack.c.l.b16 %v4147
  %v4346 = vunpack.c.h.b16 %v4147
  %v4347 = vunpack.c.l.b16 %v4148
  %v4348 = vunpack.c.h.b16 %v4148
  %v4349 = vunpack.c.l.b16 %v4149
  %v4350 = vunpack.c.h.b16 %v4149
  %v4351 = vunpack.c.l.b16 %v4150
  %v4352 = vunpack.c.l.b16 %v4151
  %v4353 = vunpack.c.h.b16 %v4151
  %v4354 = vunpack.c.l.b16 %v4152
  %v4355 = vunpack.c.h.b16 %v4152
  %v4356 = vunpack.c.l.b16 %v4153
  %v4357 = vunpack.c.h.b16 %v4153
  %v4358 = vunpack.c.l.b16 %v4154
  %v4359 = vunpack.c.l.b16 %v4155
  %v4360 = vunpack.c.h.b16 %v4155
  %v4361 = vunpack.c.l.b16 %v4156
  %v4362 = vunpack.c.h.b16 %v4156
  %v4363 = vunpack.c.l.b16 %v4157
  %v4364 = vunpack.c.h.b16 %v4157
  %v4365 = vunpack.c.l.b16 %v4158
  %v4366 = vunpack.c.l.b16 %v4159
  %v4367 = vunpack.c.h.b16 %v4159
  %v4368 = vunpack.c.l.b16 %v4160
  %v4369 = vunpack.c.h.b16 %v4160
  %v4370 = vunpack.c.l.b16 %v4161
  %v4371 = vunpack.c.h.b16 %v4161
  %v4372 = vunpack.c.l.b16 %v4162
  %v4373 = vunpack.c.l.b16 %v4163
  %v4374 = vunpack.c.h.b16 %v4163
  %v4375 = vunpack.c.l.b16 %v4164
  %v4376 = vunpack.c.h.b16 %v4164
  %v4377 = vunpack.c.l.b16 %v4165
  %v4378 = vunpack.c.h.b16 %v4165
  %v4379 = vunpack.c.l.b16 %v4166
  %v4380 = vpack.c.b16 %v4275, %v4268
  %v4381 = vpack.c.b16 %v4276, %v4269
  %v4382 = vpack.c.b16 %v4277, %v4270
  %v4383 = vpack.c.b16 %v4278, %v4271
  %v4384 = vpack.c.b16 %v4279, %v4272
  %v4385 = vpack.c.b16 %v4280, %v4273
  %v4386 = vpack.c.b16 %v4281, %v4274
  %v4387 = vpack.c.b16 %v4289, %v4282
  %v4388 = vpack.c.b16 %v4290, %v4283
  %v4389 = vpack.c.b16 %v4291, %v4284
  %v4390 = vpack.c.b16 %v4292, %v4285
  %v4391 = vpack.c.b16 %v4293, %v4286
  %v4392 = vpack.c.b16 %v4294, %v4287
  %v4393 = vpack.c.b16 %v4295, %v4288
  %v4394 = vpack.c.b16 %v4303, %v4296
  %v4395 = vpack.c.b16 %v4304, %v4297
  %v4396 = vpack.c.b16 %v4305, %v4298
  %v4397 = vpack.c.b16 %v4306, %v4299
  %v4398 = vpack.c.b16 %v4307, %v4300
  %v4399 = vpack.c.b16 %v4308, %v4301
  %v4400 = vpack.c.b16 %v4309, %v4302
  %v4401 = vpack.c.b16 %v4317, %v4310
  %v4402 = vpack.c.b16 %v4318, %v4311
  %v4403 = vpack.c.b16 %v4319, %v4312
  %v4404 = vpack.c.b16 %v4320, %v4313
  %v4405 = vpack.c.b16 %v4321, %v4314
  %v4406 = vpack.c.b16 %v4322, %v4315
  %v4407 = vpack.c.b16 %v4323, %v4316
  %v4408 = vpack.c.b16 %v4331, %v4324
  %v4409 = vpack.c.b16 %v4332, %v4325
  %v4410 = vpack.c.b16 %v4333, %v4326
  %v4411 = vpack.c.b16 %v4334, %v4327
  %v4412 = vpack.c.b16 %v4335, %v4328
  %v4413 = vpack.c.b16 %v4336, %v4329
  %v4414 = vpack.c.b16 %v4337, %v4330
  %v4415 = vpack.c.b16 %v4345, %v4338
  %v4416 = vpack.c.b16 %v4346, %v4339
  %v4417 = vpack.c.b16 %v4347, %v4340
  %v4418 = vpack.c.b16 %v4348, %v4341
  %v4419 = vpack.c.b16 %v4349, %v4342
  %v4420 = vpack.c.b16 %v4350, %v4343
  %v4421 = vpack.c.b16 %v4351, %v4344
  %v4422 = vpack.c.b16 %v4359, %v4352
  %v4423 = vpack.c.b16 %v4360, %v4353
  %v4424 = vpack.c.b16 %v4361, %v4354
  %v4425 = vpack.c.b16 %v4362, %v4355
  %v4426 = vpack.c.b16 %v4363, %v4356
  %v4427 = vpack.c.b16 %v4364, %v4357
  %v4428 = vpack.c.b16 %v4365, %v4358
  %v4429 = vpack.c.b16 %v4373, %v4366
  %v4430 = vpack.c.b16 %v4374, %v4367
  %v4431 = vpack.c.b16 %v4375, %v4368
  %v4432 = vpack.c.b16 %v4376, %v4369
  %v4433 = vpack.c.b16 %v4377, %v4370
  %v4434 = vpack.c.b16 %v4378, %v4371
  %v4435 = vpack.c.b16 %v4379, %v4372
  %4492 = vmatprep.subr.bf16.mxu0 %v4430
  %4493 = vmatpush1.bf16.msra.mxu0 %v4429
  %4494 = vmatprep.subr.bf16.mxu0 %v4423
  %4495 = vmatpush1.bf16.msra.mxu0 %v4422
  %4496 = vmatprep.subr.bf16.mxu0 %v4416
  %4497 = vmatpush1.bf16.msra.mxu0 %v4415
  %4498 = vmatprep.subr.bf16.mxu0 %v4409
  %4499 = vmatpush1.bf16.msra.mxu0 %v4408
  %4500 = vmatprep.subr.bf16.mxu0 %v4402
  %4501 = vmatpush1.bf16.msra.mxu0 %v4401
  %4502 = vmatprep.subr.bf16.mxu0 %v4395
  %4503 = vmatpush1.bf16.msra.mxu0 %v4394
  %4504 = vmatprep.subr.bf16.mxu0 %v4388
  %4505 = vmatpush1.bf16.msra.mxu0 %v4387
  %4506 = vmatprep.subr.bf16.mxu0 %v4381
  %4507 = vmatpush1.bf16.msra.mxu0 %v4380
  %4508 = vmatprep.subr.bf16.mxu0 0
  %4509 = vmatpush2.bf16.msra.mxu0 0
  %4510 = vmatprep.subr.bf16.mxu0 0
  %4511 = vmatpush2.bf16.msra.mxu0 0
  %4512 = vmatprep.subr.bf16.mxu0 0
  %4513 = vmatpush2.bf16.msra.mxu0 0
  %4514 = vmatprep.subr.bf16.mxu0 0
  %4515 = vmatpush2.bf16.msra.mxu0 0
  %4516 = vmatprep.subr.bf16.mxu0 0
  %4517 = vmatpush2.bf16.msra.mxu0 0
  %4518 = vmatprep.subr.bf16.mxu0 0
  %4519 = vmatpush2.bf16.msra.mxu0 0
  %4520 = vmatprep.subr.bf16.mxu0 0
  %4521 = vmatpush2.bf16.msra.mxu0 0
  %4522 = vmatprep.subr.bf16.mxu0 0
  %4523 = vmatpush2.bf16.msra.mxu0 0
  %4524 = vmatprep.mubr.bf16.mxu0 0
  %4525 = vmatmul.mubr.bf16.gmra.mxu0 %v4102
  %v4526 = vpop.f32.mrf.mxu0
  %v4527 = vadd.f32 %v4172, %v4526
  %v4528 = vpop.f32.mrf.mxu0
  %v4529 = vadd.f32 %v4176, %v4528
  %v4530 = vpop.f32.mrf.mxu0
  %v4531 = vadd.f32 %v4172, %v4530
  %v4532 = vpop.f32.mrf.mxu0
  %v4533 = vadd.f32 %v4176, %v4532
  %4534 = vdwg.mxu0
  %4535 = vmatprep.subr.bf16.mxu0 %v4432
  %4536 = vmatpush1.bf16.msra.mxu0 %v4431
  %4537 = vmatprep.subr.bf16.mxu0 %v4425
  %4538 = vmatpush1.bf16.msra.mxu0 %v4424
  %4539 = vmatprep.subr.bf16.mxu0 %v4418
  %4540 = vmatpush1.bf16.msra.mxu0 %v4417
  %4541 = vmatprep.subr.bf16.mxu0 %v4411
  %4542 = vmatpush1.bf16.msra.mxu0 %v4410
  %4543 = vmatprep.subr.bf16.mxu0 %v4404
  %4544 = vmatpush1.bf16.msra.mxu0 %v4403
  %4545 = vmatprep.subr.bf16.mxu0 %v4397
  %4546 = vmatpush1.bf16.msra.mxu0 %v4396
  %4547 = vmatprep.subr.bf16.mxu0 %v4390
  %4548 = vmatpush1.bf16.msra.mxu0 %v4389
  %4549 = vmatprep.subr.bf16.mxu0 %v4383
  %4550 = vmatpush1.bf16.msra.mxu0 %v4382
  %4551 = vmatprep.subr.bf16.mxu0 0
  %4552 = vmatpush2.bf16.msra.mxu0 0
  %4553 = vmatprep.subr.bf16.mxu0 0
  %4554 = vmatpush2.bf16.msra.mxu0 0
  %4555 = vmatprep.subr.bf16.mxu0 0
  %4556 = vmatpush2.bf16.msra.mxu0 0
  %4557 = vmatprep.subr.bf16.mxu0 0
  %4558 = vmatpush2.bf16.msra.mxu0 0
  %4559 = vmatprep.subr.bf16.mxu0 0
  %4560 = vmatpush2.bf16.msra.mxu0 0
  %4561 = vmatprep.subr.bf16.mxu0 0
  %4562 = vmatpush2.bf16.msra.mxu0 0
  %4563 = vmatprep.subr.bf16.mxu0 0
  %4564 = vmatpush2.bf16.msra.mxu0 0
  %4565 = vmatprep.subr.bf16.mxu0 0
  %4566 = vmatpush2.bf16.msra.mxu0 0
  %4567 = vmatprep.mubr.bf16.mxu0 0
  %4568 = vmatmul.mubr.bf16.gmra.mxu0 %v4102
  %v4569 = vpop.f32.mrf.mxu0
  %v4570 = vadd.f32 %v4180, %v4569
  %v4571 = vpop.f32.mrf.mxu0
  %v4572 = vadd.f32 %v4184, %v4571
  %v4573 = vpop.f32.mrf.mxu0
  %v4574 = vadd.f32 %v4180, %v4573
  %v4575 = vpop.f32.mrf.mxu0
  %v4576 = vadd.f32 %v4184, %v4575
  %4577 = vdwg.mxu0
  %4578 = vmatprep.subr.bf16.mxu0 %v4434
  %4579 = vmatpush1.bf16.msra.mxu0 %v4433
  %4580 = vmatprep.subr.bf16.mxu0 %v4427
  %4581 = vmatpush1.bf16.msra.mxu0 %v4426
  %4582 = vmatprep.subr.bf16.mxu0 %v4420
  %4583 = vmatpush1.bf16.msra.mxu0 %v4419
  %4584 = vmatprep.subr.bf16.mxu0 %v4413
  %4585 = vmatpush1.bf16.msra.mxu0 %v4412
  %4586 = vmatprep.subr.bf16.mxu0 %v4406
  %4587 = vmatpush1.bf16.msra.mxu0 %v4405
  %4588 = vmatprep.subr.bf16.mxu0 %v4399
  %4589 = vmatpush1.bf16.msra.mxu0 %v4398
  %4590 = vmatprep.subr.bf16.mxu0 %v4392
  %4591 = vmatpush1.bf16.msra.mxu0 %v4391
  %4592 = vmatprep.subr.bf16.mxu0 %v4385
  %4593 = vmatpush1.bf16.msra.mxu0 %v4384
  %4594 = vmatprep.subr.bf16.mxu0 0
  %4595 = vmatpush2.bf16.msra.mxu0 0
  %4596 = vmatprep.subr.bf16.mxu0 0
  %4597 = vmatpush2.bf16.msra.mxu0 0
  %4598 = vmatprep.subr.bf16.mxu0 0
  %4599 = vmatpush2.bf16.msra.mxu0 0
  %4600 = vmatprep.subr.bf16.mxu0 0
  %4601 = vmatpush2.bf16.msra.mxu0 0
  %4602 = vmatprep.subr.bf16.mxu0 0
  %4603 = vmatpush2.bf16.msra.mxu0 0
  %4604 = vmatprep.subr.bf16.mxu0 0
  %4605 = vmatpush2.bf16.msra.mxu0 0
  %4606 = vmatprep.subr.bf16.mxu0 0
  %4607 = vmatpush2.bf16.msra.mxu0 0
  %4608 = vmatprep.subr.bf16.mxu0 0
  %4609 = vmatpush2.bf16.msra.mxu0 0
  %4610 = vmatprep.mubr.bf16.mxu0 0
  %4611 = vmatmul.mubr.bf16.gmra.mxu0 %v4102
  %v4612 = vpop.f32.mrf.mxu0
  %v4613 = vadd.f32 %v4188, %v4612
  %v4614 = vpop.f32.mrf.mxu0
  %v4615 = vadd.f32 %v4192, %v4614
  %v4616 = vpop.f32.mrf.mxu0
  %v4617 = vadd.f32 %v4188, %v4616
  %v4618 = vpop.f32.mrf.mxu0
  %v4619 = vadd.f32 %v4192, %v4618
  %4620 = vdwg.mxu0
  %4621 = vmatprep.subr.bf16.mxu0 0
  %4622 = vmatpush1.bf16.msra.mxu0 %v4435
  %4623 = vmatprep.subr.bf16.mxu0 0
  %4624 = vmatpush1.bf16.msra.mxu0 %v4428
  %4625 = vmatprep.subr.bf16.mxu0 0
  %4626 = vmatpush1.bf16.msra.mxu0 %v4421
  %4627 = vmatprep.subr.bf16.mxu0 0
  %4628 = vmatpush1.bf16.msra.mxu0 %v4414
  %4629 = vmatprep.subr.bf16.mxu0 0
  %4630 = vmatpush1.bf16.msra.mxu0 %v4407
  %4631 = vmatprep.subr.bf16.mxu0 0
  %4632 = vmatpush1.bf16.msra.mxu0 %v4400
  %4633 = vmatprep.subr.bf16.mxu0 0
  %4634 = vmatpush1.bf16.msra.mxu0 %v4393
  %4635 = vmatprep.subr.bf16.mxu0 0
  %4636 = vmatpush1.bf16.msra.mxu0 %v4386
  %4637 = vmatprep.subr.bf16.mxu0 0
  %4638 = vmatpush2.bf16.msra.mxu0 0
  %4639 = vmatprep.subr.bf16.mxu0 0
  %4640 = vmatpush2.bf16.msra.mxu0 0
  %4641 = vmatprep.subr.bf16.mxu0 0
  %4642 = vmatpush2.bf16.msra.mxu0 0
  %4643 = vmatprep.subr.bf16.mxu0 0
  %4644 = vmatpush2.bf16.msra.mxu0 0
  %4645 = vmatprep.subr.bf16.mxu0 0
  %4646 = vmatpush2.bf16.msra.mxu0 0
  %4647 = vmatprep.subr.bf16.mxu0 0
  %4648 = vmatpush2.bf16.msra.mxu0 0
  %4649 = vmatprep.subr.bf16.mxu0 0
  %4650 = vmatpush2.bf16.msra.mxu0 0
  %4651 = vmatprep.subr.bf16.mxu0 0
  %4652 = vmatpush2.bf16.msra.mxu0 0
  %4653 = vmatprep.mubr.bf16.mxu0 0
  %4654 = vmatmul.mubr.bf16.gmra.mxu0 %v4102
  %v4655 = vpop.f32.mrf.mxu0
  %v4656 = vadd.f32 %v4196, %v4655
  %v4657 = vpop.f32.mrf.mxu0
  %v4658 = vpop.f32.mrf.mxu0
  %v4659 = vadd.f32 %v4196, %v4658
  %v4660 = vpop.f32.mrf.mxu0
  %4661 = vdwg.mxu0
  %v4662 = vmax.f32 %v4527, 0.0
  %v4663 = vmax.f32 %v4529, 0.0
  %v4664 = vmax.f32 %v4570, 0.0
  %v4665 = vmax.f32 %v4572, 0.0
  %v4666 = vmax.f32 %v4613, 0.0
  %v4667 = vmax.f32 %v4615, 0.0
  %v4668 = vmax.f32 %v4656, 0.0
  %v4669 = vmax.f32 %v4531, 0.0
  %v4670 = vmax.f32 %v4533, 0.0
  %v4671 = vmax.f32 %v4574, 0.0
  %v4672 = vmax.f32 %v4576, 0.0
  %v4673 = vmax.f32 %v4617, 0.0
  %v4674 = vmax.f32 %v4619, 0.0
  %v4675 = vmax.f32 %v4659, 0.0
  %v4676 = vpack.c.bf16 %v4669, %v4662
  %v4677 = vpack.c.bf16 %v4670, %v4663
  %v4678 = vpack.c.bf16 %v4671, %v4664
  %v4679 = vpack.c.bf16 %v4672, %v4665
  %v4680 = vpack.c.bf16 %v4673, %v4666
  %v4681 = vpack.c.bf16 %v4674, %v4667
  %v4682 = vpack.c.bf16 %v4675, %v4668
  %v4683 = vld [vmem:[%s19] sm:$0xff]
  %v4684 = vld [vmem:[%s19 + $0x8] sm:$0xff]
  %v4685 = vld [vmem:[%s19 + $0x10] sm:$0xff]
  %v4686 = vld [vmem:[%s19 + $0x18] sm:$0xf]
  %v4687 = vld [vmem:[%s19 + $0x1c] sm:$0xff]
  %v4688 = vld [vmem:[%s19 + $0x24] sm:$0xff]
  %v4689 = vld [vmem:[%s19 + $0x2c] sm:$0xff]
  %v4690 = vld [vmem:[%s19 + $0x34] sm:$0xf]
  %v4691 = vld [vmem:[%s19 + $0x38] sm:$0xff]
  %v4692 = vld [vmem:[%s19 + $0x40] sm:$0xff]
  %v4693 = vld [vmem:[%s19 + $0x48] sm:$0xff]
  %v4694 = vld [vmem:[%s19 + $0x50] sm:$0xf]
  %v4695 = vld [vmem:[%s19 + $0x54] sm:$0xff]
  %v4696 = vld [vmem:[%s19 + $0x5c] sm:$0xff]
  %v4697 = vld [vmem:[%s19 + $0x64] sm:$0xff]
  %v4698 = vld [vmem:[%s19 + $0x6c] sm:$0xf]
  %v4699 = vld [vmem:[%s19 + $0x70] sm:$0xff]
  %v4700 = vld [vmem:[%s19 + $0x78] sm:$0xff]
  %v4701 = vld [vmem:[%s19 + $0x80] sm:$0xff]
  %v4702 = vld [vmem:[%s19 + $0x88] sm:$0xf]
  %v4703 = vld [vmem:[%s19 + $0x8c] sm:$0xff]
  %v4704 = vld [vmem:[%s19 + $0x94] sm:$0xff]
  %v4705 = vld [vmem:[%s19 + $0x9c] sm:$0xff]
  %v4706 = vld [vmem:[%s19 + $0xa4] sm:$0xf]
  %v4707 = vld [vmem:[%s19 + $0xa8] sm:$0xff]
  %v4708 = vld [vmem:[%s19 + $0xb0] sm:$0xff]
  %v4709 = vld [vmem:[%s19 + $0xb8] sm:$0xff]
  %v4710 = vld [vmem:[%s19 + $0xc0] sm:$0xf]
  %v4711 = vld [vmem:[%s19 + $0xc4] sm:$0xff]
  %v4712 = vld [vmem:[%s19 + $0xcc] sm:$0xff]
  %v4713 = vld [vmem:[%s19 + $0xd4] sm:$0xff]
  %v4714 = vld [vmem:[%s19 + $0xdc] sm:$0xf]
  %v4715 = vld [vmem:[%s19 + $0xe0] sm:$0xff]
  %v4716 = vld [vmem:[%s19 + $0xe8] sm:$0xff]
  %v4717 = vld [vmem:[%s19 + $0xf0] sm:$0xff]
  %v4718 = vld [vmem:[%s19 + $0xf8] sm:$0xf]
  %v4719 = vld [vmem:[%s19 + $0xfc] sm:$0xff]
  %v4720 = vld [vmem:[%s19 + $0x104] sm:$0xff]
  %v4721 = vld [vmem:[%s19 + $0x10c] sm:$0xff]
  %v4722 = vld [vmem:[%s19 + $0x114] sm:$0xf]
  %v4723 = vld [vmem:[%s19 + $0x118] sm:$0xff]
  %v4724 = vld [vmem:[%s19 + $0x120] sm:$0xff]
  %v4725 = vld [vmem:[%s19 + $0x128] sm:$0xff]
  %v4726 = vld [vmem:[%s19 + $0x130] sm:$0xf]
  %v4727 = vld [vmem:[%s19 + $0x134] sm:$0xff]
  %v4728 = vld [vmem:[%s19 + $0x13c] sm:$0xff]
  %v4729 = vld [vmem:[%s19 + $0x144] sm:$0xff]
  %v4730 = vld [vmem:[%s19 + $0x14c] sm:$0xf]
  %v4731 = vld [vmem:[%s19 + $0x150] sm:$0xff]
  %v4732 = vld [vmem:[%s19 + $0x158] sm:$0xff]
  %v4733 = vld [vmem:[%s19 + $0x160] sm:$0xff]
  %v4734 = vld [vmem:[%s19 + $0x168] sm:$0xf]
  %v4735 = vld [vmem:[%s19 + $0x16c] sm:$0xff]
  %v4736 = vld [vmem:[%s19 + $0x174] sm:$0xff]
  %v4737 = vld [vmem:[%s19 + $0x17c] sm:$0xff]
  %v4738 = vld [vmem:[%s19 + $0x184] sm:$0xf]
  %v4739 = vld [vmem:[%s19 + $0x188] sm:$0xff]
  %v4740 = vld [vmem:[%s19 + $0x190] sm:$0xff]
  %v4741 = vld [vmem:[%s19 + $0x198] sm:$0xff]
  %v4742 = vld [vmem:[%s19 + $0x1a0] sm:$0xf]
  %v4743 = vld [vmem:[%s19 + $0x1a4] sm:$0xff]
  %v4744 = vld [vmem:[%s19 + $0x1ac] sm:$0xff]
  %v4745 = vld [vmem:[%s19 + $0x1b4] sm:$0xff]
  %v4746 = vld [vmem:[%s19 + $0x1bc] sm:$0xf]
  %v4747 = vld [vmem:[%s19 + $0x1c0] sm:$0xff]
  %v4748 = vld [vmem:[%s19 + $0x1c8] sm:$0xff]
  %v4749 = vld [vmem:[%s19 + $0x1d0] sm:$0xff]
  %v4750 = vld [vmem:[%s19 + $0x1d8] sm:$0xf]
  %v4751 = vld [vmem:[%s19 + $0x1dc] sm:$0xff]
  %v4752 = vld [vmem:[%s19 + $0x1e4] sm:$0xff]
  %v4753 = vld [vmem:[%s19 + $0x1ec] sm:$0xff]
  %v4754 = vld [vmem:[%s19 + $0x1f4] sm:$0xf]
  %v4755 = vld [vmem:[%s19 + $0x1f8] sm:$0xff]
  %v4756 = vld [vmem:[%s19 + $0x200] sm:$0xff]
  %v4757 = vld [vmem:[%s19 + $0x208] sm:$0xff]
  %v4758 = vld [vmem:[%s19 + $0x210] sm:$0xf]
  %v4759 = vld [vmem:[%s19 + $0x214] sm:$0xff]
  %v4760 = vld [vmem:[%s19 + $0x21c] sm:$0xff]
  %v4761 = vld [vmem:[%s19 + $0x224] sm:$0xff]
  %v4762 = vld [vmem:[%s19 + $0x22c] sm:$0xf]
  %v4763 = vld [vmem:[%s19 + $0x230] sm:$0xff]
  %v4764 = vld [vmem:[%s19 + $0x238] sm:$0xff]
  %v4765 = vld [vmem:[%s19 + $0x240] sm:$0xff]
  %v4766 = vld [vmem:[%s19 + $0x248] sm:$0xf]
  %v4767 = vld [vmem:[%s19 + $0x24c] sm:$0xff]
  %v4768 = vld [vmem:[%s19 + $0x254] sm:$0xff]
  %v4769 = vld [vmem:[%s19 + $0x25c] sm:$0xff]
  %v4770 = vld [vmem:[%s19 + $0x264] sm:$0xf]
  %v4771 = vld [vmem:[%s19 + $0x268] sm:$0xff]
  %v4772 = vld [vmem:[%s19 + $0x270] sm:$0xff]
  %v4773 = vld [vmem:[%s19 + $0x278] sm:$0xff]
  %v4774 = vld [vmem:[%s19 + $0x280] sm:$0xf]
  %v4775 = vld [vmem:[%s19 + $0x284] sm:$0xff]
  %v4776 = vld [vmem:[%s19 + $0x28c] sm:$0xff]
  %v4777 = vld [vmem:[%s19 + $0x294] sm:$0xff]
  %v4778 = vld [vmem:[%s19 + $0x29c] sm:$0xf]
  %v4779 = vld [vmem:[%s19 + $0x2a0] sm:$0xff]
  %v4780 = vld [vmem:[%s19 + $0x2a8] sm:$0xff]
  %v4781 = vld [vmem:[%s19 + $0x2b0] sm:$0xff]
  %v4782 = vld [vmem:[%s19 + $0x2b8] sm:$0xf]
  %v4783 = vld [vmem:[%s19 + $0x2bc] sm:$0xff]
  %v4784 = vld [vmem:[%s19 + $0x2c4] sm:$0xff]
  %v4785 = vld [vmem:[%s19 + $0x2cc] sm:$0xff]
  %v4786 = vld [vmem:[%s19 + $0x2d4] sm:$0xf]
  %v4787 = vld [vmem:[%s19 + $0x2d8] sm:$0xff]
  %v4788 = vld [vmem:[%s19 + $0x2e0] sm:$0xff]
  %v4789 = vld [vmem:[%s19 + $0x2e8] sm:$0xff]
  %v4790 = vld [vmem:[%s19 + $0x2f0] sm:$0xf]
  %v4791 = vld [vmem:[%s19 + $0x2f4] sm:$0xff]
  %v4792 = vld [vmem:[%s19 + $0x2fc] sm:$0xff]
  %v4793 = vld [vmem:[%s19 + $0x304] sm:$0xff]
  %v4794 = vld [vmem:[%s19 + $0x30c] sm:$0xf]
  %v4795 = vld [vmem:[%s19 + $0x310] sm:$0xff]
  %v4796 = vld [vmem:[%s19 + $0x318] sm:$0xff]
  %v4797 = vld [vmem:[%s19 + $0x320] sm:$0xff]
  %v4798 = vld [vmem:[%s19 + $0x328] sm:$0xf]
  %v4799 = vld [vmem:[%s19 + $0x32c] sm:$0xff]
  %v4800 = vld [vmem:[%s19 + $0x334] sm:$0xff]
  %v4801 = vld [vmem:[%s19 + $0x33c] sm:$0xff]
  %v4802 = vld [vmem:[%s19 + $0x344] sm:$0xf]
  %v4803 = vld [vmem:[%s19 + $0x348] sm:$0xff]
  %v4804 = vld [vmem:[%s19 + $0x350] sm:$0xff]
  %v4805 = vld [vmem:[%s19 + $0x358] sm:$0xff]
  %v4806 = vld [vmem:[%s19 + $0x360] sm:$0xf]
  %v4807 = vld [vmem:[%s19 + $0x364] sm:$0xff]
  %v4808 = vld [vmem:[%s19 + $0x36c] sm:$0xff]
  %v4809 = vld [vmem:[%s19 + $0x374] sm:$0xff]
  %v4810 = vld [vmem:[%s19 + $0x37c] sm:$0xf]
  %v4811 = vld [vmem:[%s19 + $0x380] sm:$0xff]
  %v4812 = vld [vmem:[%s19 + $0x388] sm:$0xff]
  %v4813 = vld [vmem:[%s19 + $0x390] sm:$0xff]
  %v4814 = vld [vmem:[%s19 + $0x398] sm:$0xf]
  %v4815 = vld [vmem:[%s19 + $0x39c] sm:$0xff]
  %v4816 = vld [vmem:[%s19 + $0x3a4] sm:$0xff]
  %v4817 = vld [vmem:[%s19 + $0x3ac] sm:$0xff]
  %v4818 = vld [vmem:[%s19 + $0x3b4] sm:$0xf]
  %v4819 = vld [vmem:[%s19 + $0x3b8] sm:$0xff]
  %v4820 = vld [vmem:[%s19 + $0x3c0] sm:$0xff]
  %v4821 = vld [vmem:[%s19 + $0x3c8] sm:$0xff]
  %v4822 = vld [vmem:[%s19 + $0x3d0] sm:$0xf]
  %v4823 = vld [vmem:[%s19 + $0x3d4] sm:$0xff]
  %v4824 = vld [vmem:[%s19 + $0x3dc] sm:$0xff]
  %v4825 = vld [vmem:[%s19 + $0x3e4] sm:$0xff]
  %v4826 = vld [vmem:[%s19 + $0x3ec] sm:$0xf]
  %v4827 = vld [vmem:[%s19 + $0x3f0] sm:$0xff]
  %v4828 = vld [vmem:[%s19 + $0x3f8] sm:$0xff]
  %v4829 = vld [vmem:[%s19 + $0x400] sm:$0xff]
  %v4830 = vld [vmem:[%s19 + $0x408] sm:$0xf]
  %v4831 = vld [vmem:[%s19 + $0x40c] sm:$0xff]
  %v4832 = vld [vmem:[%s19 + $0x414] sm:$0xff]
  %v4833 = vld [vmem:[%s19 + $0x41c] sm:$0xff]
  %v4834 = vld [vmem:[%s19 + $0x424] sm:$0xf]
  %v4835 = vld [vmem:[%s19 + $0x428] sm:$0xff]
  %v4836 = vld [vmem:[%s19 + $0x430] sm:$0xff]
  %v4837 = vld [vmem:[%s19 + $0x438] sm:$0xff]
  %v4838 = vld [vmem:[%s19 + $0x440] sm:$0xf]
  %v4839 = vld [vmem:[%s19 + $0x444] sm:$0xff]
  %v4840 = vld [vmem:[%s19 + $0x44c] sm:$0xff]
  %v4841 = vld [vmem:[%s19 + $0x454] sm:$0xff]
  %v4842 = vld [vmem:[%s19 + $0x45c] sm:$0xf]
  %v4843 = vld [vmem:[%s19 + $0x460] sm:$0xff]
  %v4844 = vld [vmem:[%s19 + $0x468] sm:$0xff]
  %v4845 = vld [vmem:[%s19 + $0x470] sm:$0xff]
  %v4846 = vld [vmem:[%s19 + $0x478] sm:$0xf]
  %v4847 = vld [vmem:[%s19 + $0x47c] sm:$0xff]
  %v4848 = vld [vmem:[%s19 + $0x484] sm:$0xff]
  %v4849 = vld [vmem:[%s19 + $0x48c] sm:$0xff]
  %v4850 = vld [vmem:[%s19 + $0x494] sm:$0xf]
  %v4851 = vld [vmem:[%s19 + $0x498] sm:$0xff]
  %v4852 = vld [vmem:[%s19 + $0x4a0] sm:$0xff]
  %v4853 = vld [vmem:[%s19 + $0x4a8] sm:$0xff]
  %v4854 = vld [vmem:[%s19 + $0x4b0] sm:$0xf]
  %v4855 = vld [vmem:[%s19 + $0x4b4] sm:$0xff]
  %v4856 = vld [vmem:[%s19 + $0x4bc] sm:$0xff]
  %v4857 = vld [vmem:[%s19 + $0x4c4] sm:$0xff]
  %v4858 = vld [vmem:[%s19 + $0x4cc] sm:$0xf]
  %v4859 = vld [vmem:[%s19 + $0x4d0] sm:$0xff]
  %v4860 = vld [vmem:[%s19 + $0x4d8] sm:$0xff]
  %v4861 = vld [vmem:[%s19 + $0x4e0] sm:$0xff]
  %v4862 = vld [vmem:[%s19 + $0x4e8] sm:$0xf]
  %v4863 = vld [vmem:[%s19 + $0x4ec] sm:$0xff]
  %v4864 = vld [vmem:[%s19 + $0x4f4] sm:$0xff]
  %v4865 = vld [vmem:[%s19 + $0x4fc] sm:$0xff]
  %v4866 = vld [vmem:[%s19 + $0x504] sm:$0xf]
  %v4867 = vld [vmem:[%s19 + $0x508] sm:$0xff]
  %v4868 = vld [vmem:[%s19 + $0x510] sm:$0xff]
  %v4869 = vld [vmem:[%s19 + $0x518] sm:$0xff]
  %v4870 = vld [vmem:[%s19 + $0x520] sm:$0xf]
  %v4871 = vld [vmem:[%s19 + $0x524] sm:$0xff]
  %v4872 = vld [vmem:[%s19 + $0x52c] sm:$0xff]
  %v4873 = vld [vmem:[%s19 + $0x534] sm:$0xff]
  %v4874 = vld [vmem:[%s19 + $0x53c] sm:$0xf]
  %v4875 = vld [vmem:[%s19 + $0x540] sm:$0xff]
  %v4876 = vld [vmem:[%s19 + $0x548] sm:$0xff]
  %v4877 = vld [vmem:[%s19 + $0x550] sm:$0xff]
  %v4878 = vld [vmem:[%s19 + $0x558] sm:$0xf]
  %v4879 = vld [vmem:[%s19 + $0x55c] sm:$0xff]
  %v4880 = vld [vmem:[%s19 + $0x564] sm:$0xff]
  %v4881 = vld [vmem:[%s19 + $0x56c] sm:$0xff]
  %v4882 = vld [vmem:[%s19 + $0x574] sm:$0xf]
  %v4883 = vld [vmem:[%s19 + $0x578] sm:$0xff]
  %v4884 = vld [vmem:[%s19 + $0x580] sm:$0xff]
  %v4885 = vld [vmem:[%s19 + $0x588] sm:$0xff]
  %v4886 = vld [vmem:[%s19 + $0x590] sm:$0xf]
  %v4887 = vld [vmem:[%s19 + $0x594] sm:$0xff]
  %v4888 = vld [vmem:[%s19 + $0x59c] sm:$0xff]
  %v4889 = vld [vmem:[%s19 + $0x5a4] sm:$0xff]
  %v4890 = vld [vmem:[%s19 + $0x5ac] sm:$0xf]
  %v4891 = vld [vmem:[%s19 + $0x5b0] sm:$0xff]
  %v4892 = vld [vmem:[%s19 + $0x5b8] sm:$0xff]
  %v4893 = vld [vmem:[%s19 + $0x5c0] sm:$0xff]
  %v4894 = vld [vmem:[%s19 + $0x5c8] sm:$0xf]
  %v4895 = vld [vmem:[%s19 + $0x5cc] sm:$0xff]
  %v4896 = vld [vmem:[%s19 + $0x5d4] sm:$0xff]
  %v4897 = vld [vmem:[%s19 + $0x5dc] sm:$0xff]
  %v4898 = vld [vmem:[%s19 + $0x5e4] sm:$0xf]
  %v4899 = vld [vmem:[%s19 + $0x5e8] sm:$0xff]
  %v4900 = vld [vmem:[%s19 + $0x5f0] sm:$0xff]
  %v4901 = vld [vmem:[%s19 + $0x5f8] sm:$0xff]
  %v4902 = vld [vmem:[%s19 + $0x600] sm:$0xf]
  %v4903 = vld [vmem:[%s19 + $0x604] sm:$0xff]
  %v4904 = vld [vmem:[%s19 + $0x60c] sm:$0xff]
  %v4905 = vld [vmem:[%s19 + $0x614] sm:$0xff]
  %v4906 = vld [vmem:[%s19 + $0x61c] sm:$0xf]
  %v4907 = vld [vmem:[%s19 + $0x620] sm:$0xff]
  %v4908 = vld [vmem:[%s19 + $0x628] sm:$0xff]
  %v4909 = vld [vmem:[%s19 + $0x630] sm:$0xff]
  %v4910 = vld [vmem:[%s19 + $0x638] sm:$0xf]
  %v4911 = vld [vmem:[%s19 + $0x63c] sm:$0xff]
  %v4912 = vld [vmem:[%s19 + $0x644] sm:$0xff]
  %v4913 = vld [vmem:[%s19 + $0x64c] sm:$0xff]
  %v4914 = vld [vmem:[%s19 + $0x654] sm:$0xf]
  %v4915 = vld [vmem:[%s19 + $0x658] sm:$0xff]
  %v4916 = vld [vmem:[%s19 + $0x660] sm:$0xff]
  %v4917 = vld [vmem:[%s19 + $0x668] sm:$0xff]
  %v4918 = vld [vmem:[%s19 + $0x670] sm:$0xf]
  %v4919 = vld [vmem:[%s19 + $0x674] sm:$0xff]
  %v4920 = vld [vmem:[%s19 + $0x67c] sm:$0xff]
  %v4921 = vld [vmem:[%s19 + $0x684] sm:$0xff]
  %v4922 = vld [vmem:[%s19 + $0x68c] sm:$0xf]
  %v4923 = vld [vmem:[%s19 + $0x690] sm:$0xff]
  %v4924 = vld [vmem:[%s19 + $0x698] sm:$0xff]
  %v4925 = vld [vmem:[%s19 + $0x6a0] sm:$0xff]
  %v4926 = vld [vmem:[%s19 + $0x6a8] sm:$0xf]
  %v4927 = vld [vmem:[%s19 + $0x6ac] sm:$0xff]
  %v4928 = vld [vmem:[%s19 + $0x6b4] sm:$0xff]
  %v4929 = vld [vmem:[%s19 + $0x6bc] sm:$0xff]
  %v4930 = vld [vmem:[%s19 + $0x6c4] sm:$0xf]
  %v4931 = vld [vmem:[%s19 + $0x6c8] sm:$0xff]
  %v4932 = vld [vmem:[%s19 + $0x6d0] sm:$0xff]
  %v4933 = vld [vmem:[%s19 + $0x6d8] sm:$0xff]
  %v4934 = vld [vmem:[%s19 + $0x6e0] sm:$0xf]
  %v4935 = vld [vmem:[%s19 + $0x6e4] sm:$0xff]
  %v4936 = vld [vmem:[%s19 + $0x6ec] sm:$0xff]
  %v4937 = vld [vmem:[%s19 + $0x6f4] sm:$0xff]
  %v4938 = vld [vmem:[%s19 + $0x6fc] sm:$0xf]
  %v4939 = vld [vmem:[%s19 + $0x700] sm:$0xff]
  %v4940 = vld [vmem:[%s19 + $0x708] sm:$0xff]
  %v4941 = vld [vmem:[%s19 + $0x710] sm:$0xff]
  %v4942 = vld [vmem:[%s19 + $0x718] sm:$0xf]
  %v4943 = vld [vmem:[%s19 + $0x71c] sm:$0xff]
  %v4944 = vld [vmem:[%s19 + $0x724] sm:$0xff]
  %v4945 = vld [vmem:[%s19 + $0x72c] sm:$0xff]
  %v4946 = vld [vmem:[%s19 + $0x734] sm:$0xf]
  %v4947 = vld [vmem:[%s19 + $0x738] sm:$0xff]
  %v4948 = vld [vmem:[%s19 + $0x740] sm:$0xff]
  %v4949 = vld [vmem:[%s19 + $0x748] sm:$0xff]
  %v4950 = vld [vmem:[%s19 + $0x750] sm:$0xf]
  %v4951 = vld [vmem:[%s19 + $0x754] sm:$0xff]
  %v4952 = vld [vmem:[%s19 + $0x75c] sm:$0xff]
  %v4953 = vld [vmem:[%s19 + $0x764] sm:$0xff]
  %v4954 = vld [vmem:[%s19 + $0x76c] sm:$0xf]
  %v4955 = vld [vmem:[%s19 + $0x770] sm:$0xff]
  %v4956 = vld [vmem:[%s19 + $0x778] sm:$0xff]
  %v4957 = vld [vmem:[%s19 + $0x780] sm:$0xff]
  %v4958 = vld [vmem:[%s19 + $0x788] sm:$0xf]
  %v4959 = vld [vmem:[%s19 + $0x78c] sm:$0xff]
  %v4960 = vld [vmem:[%s19 + $0x794] sm:$0xff]
  %v4961 = vld [vmem:[%s19 + $0x79c] sm:$0xff]
  %v4962 = vld [vmem:[%s19 + $0x7a4] sm:$0xf]
  %v4963 = vld [vmem:[%s19 + $0x7a8] sm:$0xff]
  %v4964 = vld [vmem:[%s19 + $0x7b0] sm:$0xff]
  %v4965 = vld [vmem:[%s19 + $0x7b8] sm:$0xff]
  %v4966 = vld [vmem:[%s19 + $0x7c0] sm:$0xf]
  %v4967 = vld [vmem:[%s19 + $0x7c4] sm:$0xff]
  %v4968 = vld [vmem:[%s19 + $0x7cc] sm:$0xff]
  %v4969 = vld [vmem:[%s19 + $0x7d4] sm:$0xff]
  %v4970 = vld [vmem:[%s19 + $0x7dc] sm:$0xf]
  %v4971 = vld [vmem:[%s19 + $0x7e0] sm:$0xff]
  %v4972 = vld [vmem:[%s19 + $0x7e8] sm:$0xff]
  %v4973 = vld [vmem:[%s19 + $0x7f0] sm:$0xff]
  %v4974 = vld [vmem:[%s19 + $0x7f8] sm:$0xf]
  %v4975 = vld [vmem:[%s19 + $0x7fc] sm:$0xff]
  %v4976 = vld [vmem:[%s19 + $0x804] sm:$0xff]
  %v4977 = vld [vmem:[%s19 + $0x80c] sm:$0xff]
  %v4978 = vld [vmem:[%s19 + $0x814] sm:$0xf]
  %v4979 = vld [vmem:[%s19 + $0x818] sm:$0xff]
  %v4980 = vld [vmem:[%s19 + $0x820] sm:$0xff]
  %v4981 = vld [vmem:[%s19 + $0x828] sm:$0xff]
  %v4982 = vld [vmem:[%s19 + $0x830] sm:$0xf]
  %v4983 = vld [vmem:[%s19 + $0x834] sm:$0xff]
  %v4984 = vld [vmem:[%s19 + $0x83c] sm:$0xff]
  %v4985 = vld [vmem:[%s19 + $0x844] sm:$0xff]
  %v4986 = vld [vmem:[%s19 + $0x84c] sm:$0xf]
  %v4987 = vld [vmem:[%s19 + $0x850] sm:$0xff]
  %v4988 = vld [vmem:[%s19 + $0x858] sm:$0xff]
  %v4989 = vld [vmem:[%s19 + $0x860] sm:$0xff]
  %v4990 = vld [vmem:[%s19 + $0x868] sm:$0xf]
  %v4991 = vld [vmem:[%s19 + $0x86c] sm:$0xff]
  %v4992 = vld [vmem:[%s19 + $0x874] sm:$0xff]
  %v4993 = vld [vmem:[%s19 + $0x87c] sm:$0xff]
  %v4994 = vld [vmem:[%s19 + $0x884] sm:$0xf]
  %v4995 = vld [vmem:[%s19 + $0x888] sm:$0xff]
  %v4996 = vld [vmem:[%s19 + $0x890] sm:$0xff]
  %v4997 = vld [vmem:[%s19 + $0x898] sm:$0xff]
  %v4998 = vld [vmem:[%s19 + $0x8a0] sm:$0xf]
  %v4999 = vld [vmem:[%s19 + $0x8a4] sm:$0xff]
  %v5000 = vld [vmem:[%s19 + $0x8ac] sm:$0xff]
  %v5001 = vld [vmem:[%s19 + $0x8b4] sm:$0xff]
  %v5002 = vld [vmem:[%s19 + $0x8bc] sm:$0xf]
  %v5003 = vld [vmem:[%s19 + $0x8c0] sm:$0xff]
  %v5004 = vld [vmem:[%s19 + $0x8c8] sm:$0xff]
  %v5005 = vld [vmem:[%s19 + $0x8d0] sm:$0xff]
  %v5006 = vld [vmem:[%s19 + $0x8d8] sm:$0xf]
  %v5007 = vld [vmem:[%s19 + $0x8dc] sm:$0xff]
  %v5008 = vld [vmem:[%s19 + $0x8e4] sm:$0xff]
  %v5009 = vld [vmem:[%s19 + $0x8ec] sm:$0xff]
  %v5010 = vld [vmem:[%s19 + $0x8f4] sm:$0xf]
  %v5011 = vld [vmem:[%s19 + $0x8f8] sm:$0xff]
  %v5012 = vld [vmem:[%s19 + $0x900] sm:$0xff]
  %v5013 = vld [vmem:[%s19 + $0x908] sm:$0xff]
  %v5014 = vld [vmem:[%s19 + $0x910] sm:$0xf]
  %v5015 = vld [vmem:[%s19 + $0x914] sm:$0xff]
  %v5016 = vld [vmem:[%s19 + $0x91c] sm:$0xff]
  %v5017 = vld [vmem:[%s19 + $0x924] sm:$0xff]
  %v5018 = vld [vmem:[%s19 + $0x92c] sm:$0xf]
  %v5019 = vld [vmem:[%s19 + $0x930] sm:$0xff]
  %v5020 = vld [vmem:[%s19 + $0x938] sm:$0xff]
  %v5021 = vld [vmem:[%s19 + $0x940] sm:$0xff]
  %v5022 = vld [vmem:[%s19 + $0x948] sm:$0xf]
  %v5023 = vld [vmem:[%s19 + $0x94c] sm:$0xff]
  %v5024 = vld [vmem:[%s19 + $0x954] sm:$0xff]
  %v5025 = vld [vmem:[%s19 + $0x95c] sm:$0xff]
  %v5026 = vld [vmem:[%s19 + $0x964] sm:$0xf]
  %v5027 = vld [vmem:[%s19 + $0x968] sm:$0xff]
  %v5028 = vld [vmem:[%s19 + $0x970] sm:$0xff]
  %v5029 = vld [vmem:[%s19 + $0x978] sm:$0xff]
  %v5030 = vld [vmem:[%s19 + $0x980] sm:$0xf]
  %v5031 = vld [vmem:[%s19 + $0x984] sm:$0xff]
  %v5032 = vld [vmem:[%s19 + $0x98c] sm:$0xff]
  %v5033 = vld [vmem:[%s19 + $0x994] sm:$0xff]
  %v5034 = vld [vmem:[%s19 + $0x99c] sm:$0xf]
  %v5035 = vld [vmem:[%s19 + $0x9a0] sm:$0xff]
  %v5036 = vld [vmem:[%s19 + $0x9a8] sm:$0xff]
  %v5037 = vld [vmem:[%s19 + $0x9b0] sm:$0xff]
  %v5038 = vld [vmem:[%s19 + $0x9b8] sm:$0xf]
  %v5039 = vld [vmem:[%s19 + $0x9bc] sm:$0xff]
  %v5040 = vld [vmem:[%s19 + $0x9c4] sm:$0xff]
  %v5041 = vld [vmem:[%s19 + $0x9cc] sm:$0xff]
  %v5042 = vld [vmem:[%s19 + $0x9d4] sm:$0xf]
  %v5043 = vld [vmem:[%s19 + $0x9d8] sm:$0xff]
  %v5044 = vld [vmem:[%s19 + $0x9e0] sm:$0xff]
  %v5045 = vld [vmem:[%s19 + $0x9e8] sm:$0xff]
  %v5046 = vld [vmem:[%s19 + $0x9f0] sm:$0xf]
  %v5047 = vld [vmem:[%s19 + $0x9f4] sm:$0xff]
  %v5048 = vld [vmem:[%s19 + $0x9fc] sm:$0xff]
  %v5049 = vld [vmem:[%s19 + $0xa04] sm:$0xff]
  %v5050 = vld [vmem:[%s19 + $0xa0c] sm:$0xf]
  %v5051 = vld [vmem:[%s19 + $0xa10] sm:$0xff]
  %v5052 = vld [vmem:[%s19 + $0xa18] sm:$0xff]
  %v5053 = vld [vmem:[%s19 + $0xa20] sm:$0xff]
  %v5054 = vld [vmem:[%s19 + $0xa28] sm:$0xf]
  %v5055 = vld [vmem:[%s19 + $0xa2c] sm:$0xff]
  %v5056 = vld [vmem:[%s19 + $0xa34] sm:$0xff]
  %v5057 = vld [vmem:[%s19 + $0xa3c] sm:$0xff]
  %v5058 = vld [vmem:[%s19 + $0xa44] sm:$0xf]
  %v5059 = vld [vmem:[%s19 + $0xa48] sm:$0xff]
  %v5060 = vld [vmem:[%s19 + $0xa50] sm:$0xff]
  %v5061 = vld [vmem:[%s19 + $0xa58] sm:$0xff]
  %v5062 = vld [vmem:[%s19 + $0xa60] sm:$0xf]
  %v5063 = vld [vmem:[%s19 + $0xa64] sm:$0xff]
  %v5064 = vld [vmem:[%s19 + $0xa6c] sm:$0xff]
  %v5065 = vld [vmem:[%s19 + $0xa74] sm:$0xff]
  %v5066 = vld [vmem:[%s19 + $0xa7c] sm:$0xf]
  %v5067 = vld [vmem:[%s19 + $0xa80] sm:$0xff]
  %v5068 = vld [vmem:[%s19 + $0xa88] sm:$0xff]
  %v5069 = vld [vmem:[%s19 + $0xa90] sm:$0xff]
  %v5070 = vld [vmem:[%s19 + $0xa98] sm:$0xf]
  %v5071 = vld [vmem:[%s19 + $0xa9c] sm:$0xff]
  %v5072 = vld [vmem:[%s19 + $0xaa4] sm:$0xff]
  %v5073 = vld [vmem:[%s19 + $0xaac] sm:$0xff]
  %v5074 = vld [vmem:[%s19 + $0xab4] sm:$0xf]
  %v5075 = vld [vmem:[%s20] sm:$0x7f]
  %v5077 = vlaneseq
  %v5078 = vshrl.u32 %v5077, 7
  %v5079 = vsub.s32 0, %v5078
  %v5080 = vrot.slane %v5075, %v5079
  %v5081 = vlaneseq
  %v5082 = vshrl.u32 %v5081, 7
  %v5083 = vsub.s32 1, %v5082
  %v5084 = vrot.slane %v5075, %v5083
  %v5085 = vlaneseq
  %v5086 = vshrl.u32 %v5085, 7
  %v5087 = vsub.s32 2, %v5086
  %v5088 = vrot.slane %v5075, %v5087
  %v5089 = vlaneseq
  %v5090 = vshrl.u32 %v5089, 7
  %v5091 = vsub.s32 3, %v5090
  %v5092 = vrot.slane %v5075, %v5091
  %v5093 = vlaneseq
  %v5094 = vshrl.u32 %v5093, 7
  %v5095 = vsub.s32 4, %v5094
  %v5096 = vrot.slane %v5075, %v5095
  %v5097 = vlaneseq
  %v5098 = vshrl.u32 %v5097, 7
  %v5099 = vsub.s32 5, %v5098
  %v5100 = vrot.slane %v5075, %v5099
  %v5101 = vlaneseq
  %v5102 = vshrl.u32 %v5101, 7
  %v5103 = vsub.s32 6, %v5102
  %v5104 = vrot.slane %v5075, %v5103
  %v5504 = vunpack.c.l.b16 %v4683
  %v5505 = vunpack.c.h.b16 %v4683
  %v5506 = vunpack.c.l.b16 %v4684
  %v5507 = vunpack.c.h.b16 %v4684
  %v5508 = vunpack.c.l.b16 %v4685
  %v5509 = vunpack.c.h.b16 %v4685
  %v5510 = vunpack.c.l.b16 %v4686
  %v5511 = vunpack.c.l.b16 %v4687
  %v5512 = vunpack.c.h.b16 %v4687
  %v5513 = vunpack.c.l.b16 %v4688
  %v5514 = vunpack.c.h.b16 %v4688
  %v5515 = vunpack.c.l.b16 %v4689
  %v5516 = vunpack.c.h.b16 %v4689
  %v5517 = vunpack.c.l.b16 %v4690
  %v5518 = vunpack.c.l.b16 %v4691
  %v5519 = vunpack.c.h.b16 %v4691
  %v5520 = vunpack.c.l.b16 %v4692
  %v5521 = vunpack.c.h.b16 %v4692
  %v5522 = vunpack.c.l.b16 %v4693
  %v5523 = vunpack.c.h.b16 %v4693
  %v5524 = vunpack.c.l.b16 %v4694
  %v5525 = vunpack.c.l.b16 %v4695
  %v5526 = vunpack.c.h.b16 %v4695
  %v5527 = vunpack.c.l.b16 %v4696
  %v5528 = vunpack.c.h.b16 %v4696
  %v5529 = vunpack.c.l.b16 %v4697
  %v5530 = vunpack.c.h.b16 %v4697
  %v5531 = vunpack.c.l.b16 %v4698
  %v5532 = vunpack.c.l.b16 %v4699
  %v5533 = vunpack.c.h.b16 %v4699
  %v5534 = vunpack.c.l.b16 %v4700
  %v5535 = vunpack.c.h.b16 %v4700
  %v5536 = vunpack.c.l.b16 %v4701
  %v5537 = vunpack.c.h.b16 %v4701
  %v5538 = vunpack.c.l.b16 %v4702
  %v5539 = vunpack.c.l.b16 %v4703
  %v5540 = vunpack.c.h.b16 %v4703
  %v5541 = vunpack.c.l.b16 %v4704
  %v5542 = vunpack.c.h.b16 %v4704
  %v5543 = vunpack.c.l.b16 %v4705
  %v5544 = vunpack.c.h.b16 %v4705
  %v5545 = vunpack.c.l.b16 %v4706
  %v5546 = vunpack.c.l.b16 %v4707
  %v5547 = vunpack.c.h.b16 %v4707
  %v5548 = vunpack.c.l.b16 %v4708
  %v5549 = vunpack.c.h.b16 %v4708
  %v5550 = vunpack.c.l.b16 %v4709
  %v5551 = vunpack.c.h.b16 %v4709
  %v5552 = vunpack.c.l.b16 %v4710
  %v5553 = vunpack.c.l.b16 %v4711
  %v5554 = vunpack.c.h.b16 %v4711
  %v5555 = vunpack.c.l.b16 %v4712
  %v5556 = vunpack.c.h.b16 %v4712
  %v5557 = vunpack.c.l.b16 %v4713
  %v5558 = vunpack.c.h.b16 %v4713
  %v5559 = vunpack.c.l.b16 %v4714
  %v5560 = vunpack.c.l.b16 %v4715
  %v5561 = vunpack.c.h.b16 %v4715
  %v5562 = vunpack.c.l.b16 %v4716
  %v5563 = vunpack.c.h.b16 %v4716
  %v5564 = vunpack.c.l.b16 %v4717
  %v5565 = vunpack.c.h.b16 %v4717
  %v5566 = vunpack.c.l.b16 %v4718
  %v5567 = vunpack.c.l.b16 %v4719
  %v5568 = vunpack.c.h.b16 %v4719
  %v5569 = vunpack.c.l.b16 %v4720
  %v5570 = vunpack.c.h.b16 %v4720
  %v5571 = vunpack.c.l.b16 %v4721
  %v5572 = vunpack.c.h.b16 %v4721
  %v5573 = vunpack.c.l.b16 %v4722
  %v5574 = vunpack.c.l.b16 %v4723
  %v5575 = vunpack.c.h.b16 %v4723
  %v5576 = vunpack.c.l.b16 %v4724
  %v5577 = vunpack.c.h.b16 %v4724
  %v5578 = vunpack.c.l.b16 %v4725
  %v5579 = vunpack.c.h.b16 %v4725
  %v5580 = vunpack.c.l.b16 %v4726
  %v5581 = vunpack.c.l.b16 %v4727
  %v5582 = vunpack.c.h.b16 %v4727
  %v5583 = vunpack.c.l.b16 %v4728
  %v5584 = vunpack.c.h.b16 %v4728
  %v5585 = vunpack.c.l.b16 %v4729
  %v5586 = vunpack.c.h.b16 %v4729
  %v5587 = vunpack.c.l.b16 %v4730
  %v5588 = vunpack.c.l.b16 %v4731
  %v5589 = vunpack.c.h.b16 %v4731
  %v5590 = vunpack.c.l.b16 %v4732
  %v5591 = vunpack.c.h.b16 %v4732
  %v5592 = vunpack.c.l.b16 %v4733
  %v5593 = vunpack.c.h.b16 %v4733
  %v5594 = vunpack.c.l.b16 %v4734
  %v5595 = vunpack.c.l.b16 %v4735
  %v5596 = vunpack.c.h.b16 %v4735
  %v5597 = vunpack.c.l.b16 %v4736
  %v5598 = vunpack.c.h.b16 %v4736
  %v5599 = vunpack.c.l.b16 %v4737
  %v5600 = vunpack.c.h.b16 %v4737
  %v5601 = vunpack.c.l.b16 %v4738
  %v5602 = vunpack.c.l.b16 %v4739
  %v5603 = vunpack.c.h.b16 %v4739
  %v5604 = vunpack.c.l.b16 %v4740
  %v5605 = vunpack.c.h.b16 %v4740
  %v5606 = vunpack.c.l.b16 %v4741
  %v5607 = vunpack.c.h.b16 %v4741
  %v5608 = vunpack.c.l.b16 %v4742
  %v5609 = vunpack.c.l.b16 %v4743
  %v5610 = vunpack.c.h.b16 %v4743
  %v5611 = vunpack.c.l.b16 %v4744
  %v5612 = vunpack.c.h.b16 %v4744
  %v5613 = vunpack.c.l.b16 %v4745
  %v5614 = vunpack.c.h.b16 %v4745
  %v5615 = vunpack.c.l.b16 %v4746
  %v5616 = vunpack.c.l.b16 %v4747
  %v5617 = vunpack.c.h.b16 %v4747
  %v5618 = vunpack.c.l.b16 %v4748
  %v5619 = vunpack.c.h.b16 %v4748
  %v5620 = vunpack.c.l.b16 %v4749
  %v5621 = vunpack.c.h.b16 %v4749
  %v5622 = vunpack.c.l.b16 %v4750
  %v5623 = vunpack.c.l.b16 %v4751
  %v5624 = vunpack.c.h.b16 %v4751
  %v5625 = vunpack.c.l.b16 %v4752
  %v5626 = vunpack.c.h.b16 %v4752
  %v5627 = vunpack.c.l.b16 %v4753
  %v5628 = vunpack.c.h.b16 %v4753
  %v5629 = vunpack.c.l.b16 %v4754
  %v5630 = vunpack.c.l.b16 %v4755
  %v5631 = vunpack.c.h.b16 %v4755
  %v5632 = vunpack.c.l.b16 %v4756
  %v5633 = vunpack.c.h.b16 %v4756
  %v5634 = vunpack.c.l.b16 %v4757
  %v5635 = vunpack.c.h.b16 %v4757
  %v5636 = vunpack.c.l.b16 %v4758
  %v5637 = vunpack.c.l.b16 %v4759
  %v5638 = vunpack.c.h.b16 %v4759
  %v5639 = vunpack.c.l.b16 %v4760
  %v5640 = vunpack.c.h.b16 %v4760
  %v5641 = vunpack.c.l.b16 %v4761
  %v5642 = vunpack.c.h.b16 %v4761
  %v5643 = vunpack.c.l.b16 %v4762
  %v5644 = vunpack.c.l.b16 %v4763
  %v5645 = vunpack.c.h.b16 %v4763
  %v5646 = vunpack.c.l.b16 %v4764
  %v5647 = vunpack.c.h.b16 %v4764
  %v5648 = vunpack.c.l.b16 %v4765
  %v5649 = vunpack.c.h.b16 %v4765
  %v5650 = vunpack.c.l.b16 %v4766
  %v5651 = vunpack.c.l.b16 %v4767
  %v5652 = vunpack.c.h.b16 %v4767
  %v5653 = vunpack.c.l.b16 %v4768
  %v5654 = vunpack.c.h.b16 %v4768
  %v5655 = vunpack.c.l.b16 %v4769
  %v5656 = vunpack.c.h.b16 %v4769
  %v5657 = vunpack.c.l.b16 %v4770
  %v5658 = vunpack.c.l.b16 %v4771
  %v5659 = vunpack.c.h.b16 %v4771
  %v5660 = vunpack.c.l.b16 %v4772
  %v5661 = vunpack.c.h.b16 %v4772
  %v5662 = vunpack.c.l.b16 %v4773
  %v5663 = vunpack.c.h.b16 %v4773
  %v5664 = vunpack.c.l.b16 %v4774
  %v5665 = vunpack.c.l.b16 %v4775
  %v5666 = vunpack.c.h.b16 %v4775
  %v5667 = vunpack.c.l.b16 %v4776
  %v5668 = vunpack.c.h.b16 %v4776
  %v5669 = vunpack.c.l.b16 %v4777
  %v5670 = vunpack.c.h.b16 %v4777
  %v5671 = vunpack.c.l.b16 %v4778
  %v5672 = vunpack.c.l.b16 %v4779
  %v5673 = vunpack.c.h.b16 %v4779
  %v5674 = vunpack.c.l.b16 %v4780
  %v5675 = vunpack.c.h.b16 %v4780
  %v5676 = vunpack.c.l.b16 %v4781
  %v5677 = vunpack.c.h.b16 %v4781
  %v5678 = vunpack.c.l.b16 %v4782
  %v5679 = vunpack.c.l.b16 %v4783
  %v5680 = vunpack.c.h.b16 %v4783
  %v5681 = vunpack.c.l.b16 %v4784
  %v5682 = vunpack.c.h.b16 %v4784
  %v5683 = vunpack.c.l.b16 %v4785
  %v5684 = vunpack.c.h.b16 %v4785
  %v5685 = vunpack.c.l.b16 %v4786
  %v5686 = vunpack.c.l.b16 %v4787
  %v5687 = vunpack.c.h.b16 %v4787
  %v5688 = vunpack.c.l.b16 %v4788
  %v5689 = vunpack.c.h.b16 %v4788
  %v5690 = vunpack.c.l.b16 %v4789
  %v5691 = vunpack.c.h.b16 %v4789
  %v5692 = vunpack.c.l.b16 %v4790
  %v5693 = vunpack.c.l.b16 %v4791
  %v5694 = vunpack.c.h.b16 %v4791
  %v5695 = vunpack.c.l.b16 %v4792
  %v5696 = vunpack.c.h.b16 %v4792
  %v5697 = vunpack.c.l.b16 %v4793
  %v5698 = vunpack.c.h.b16 %v4793
  %v5699 = vunpack.c.l.b16 %v4794
  %v5700 = vunpack.c.l.b16 %v4795
  %v5701 = vunpack.c.h.b16 %v4795
  %v5702 = vunpack.c.l.b16 %v4796
  %v5703 = vunpack.c.h.b16 %v4796
  %v5704 = vunpack.c.l.b16 %v4797
  %v5705 = vunpack.c.h.b16 %v4797
  %v5706 = vunpack.c.l.b16 %v4798
  %v5707 = vunpack.c.l.b16 %v4799
  %v5708 = vunpack.c.h.b16 %v4799
  %v5709 = vunpack.c.l.b16 %v4800
  %v5710 = vunpack.c.h.b16 %v4800
  %v5711 = vunpack.c.l.b16 %v4801
  %v5712 = vunpack.c.h.b16 %v4801
  %v5713 = vunpack.c.l.b16 %v4802
  %v5714 = vunpack.c.l.b16 %v4803
  %v5715 = vunpack.c.h.b16 %v4803
  %v5716 = vunpack.c.l.b16 %v4804
  %v5717 = vunpack.c.h.b16 %v4804
  %v5718 = vunpack.c.l.b16 %v4805
  %v5719 = vunpack.c.h.b16 %v4805
  %v5720 = vunpack.c.l.b16 %v4806
  %v5721 = vunpack.c.l.b16 %v4807
  %v5722 = vunpack.c.h.b16 %v4807
  %v5723 = vunpack.c.l.b16 %v4808
  %v5724 = vunpack.c.h.b16 %v4808
  %v5725 = vunpack.c.l.b16 %v4809
  %v5726 = vunpack.c.h.b16 %v4809
  %v5727 = vunpack.c.l.b16 %v4810
  %v5728 = vunpack.c.l.b16 %v4811
  %v5729 = vunpack.c.h.b16 %v4811
  %v5730 = vunpack.c.l.b16 %v4812
  %v5731 = vunpack.c.h.b16 %v4812
  %v5732 = vunpack.c.l.b16 %v4813
  %v5733 = vunpack.c.h.b16 %v4813
  %v5734 = vunpack.c.l.b16 %v4814
  %v5735 = vunpack.c.l.b16 %v4815
  %v5736 = vunpack.c.h.b16 %v4815
  %v5737 = vunpack.c.l.b16 %v4816
  %v5738 = vunpack.c.h.b16 %v4816
  %v5739 = vunpack.c.l.b16 %v4817
  %v5740 = vunpack.c.h.b16 %v4817
  %v5741 = vunpack.c.l.b16 %v4818
  %v5742 = vunpack.c.l.b16 %v4819
  %v5743 = vunpack.c.h.b16 %v4819
  %v5744 = vunpack.c.l.b16 %v4820
  %v5745 = vunpack.c.h.b16 %v4820
  %v5746 = vunpack.c.l.b16 %v4821
  %v5747 = vunpack.c.h.b16 %v4821
  %v5748 = vunpack.c.l.b16 %v4822
  %v5749 = vunpack.c.l.b16 %v4823
  %v5750 = vunpack.c.h.b16 %v4823
  %v5751 = vunpack.c.l.b16 %v4824
  %v5752 = vunpack.c.h.b16 %v4824
  %v5753 = vunpack.c.l.b16 %v4825
  %v5754 = vunpack.c.h.b16 %v4825
  %v5755 = vunpack.c.l.b16 %v4826
  %v5756 = vunpack.c.l.b16 %v4827
  %v5757 = vunpack.c.h.b16 %v4827
  %v5758 = vunpack.c.l.b16 %v4828
  %v5759 = vunpack.c.h.b16 %v4828
  %v5760 = vunpack.c.l.b16 %v4829
  %v5761 = vunpack.c.h.b16 %v4829
  %v5762 = vunpack.c.l.b16 %v4830
  %v5763 = vunpack.c.l.b16 %v4831
  %v5764 = vunpack.c.h.b16 %v4831
  %v5765 = vunpack.c.l.b16 %v4832
  %v5766 = vunpack.c.h.b16 %v4832
  %v5767 = vunpack.c.l.b16 %v4833
  %v5768 = vunpack.c.h.b16 %v4833
  %v5769 = vunpack.c.l.b16 %v4834
  %v5770 = vunpack.c.l.b16 %v4835
  %v5771 = vunpack.c.h.b16 %v4835
  %v5772 = vunpack.c.l.b16 %v4836
  %v5773 = vunpack.c.h.b16 %v4836
  %v5774 = vunpack.c.l.b16 %v4837
  %v5775 = vunpack.c.h.b16 %v4837
  %v5776 = vunpack.c.l.b16 %v4838
  %v5777 = vunpack.c.l.b16 %v4839
  %v5778 = vunpack.c.h.b16 %v4839
  %v5779 = vunpack.c.l.b16 %v4840
  %v5780 = vunpack.c.h.b16 %v4840
  %v5781 = vunpack.c.l.b16 %v4841
  %v5782 = vunpack.c.h.b16 %v4841
  %v5783 = vunpack.c.l.b16 %v4842
  %v5784 = vunpack.c.l.b16 %v4843
  %v5785 = vunpack.c.h.b16 %v4843
  %v5786 = vunpack.c.l.b16 %v4844
  %v5787 = vunpack.c.h.b16 %v4844
  %v5788 = vunpack.c.l.b16 %v4845
  %v5789 = vunpack.c.h.b16 %v4845
  %v5790 = vunpack.c.l.b16 %v4846
  %v5791 = vunpack.c.l.b16 %v4847
  %v5792 = vunpack.c.h.b16 %v4847
  %v5793 = vunpack.c.l.b16 %v4848
  %v5794 = vunpack.c.h.b16 %v4848
  %v5795 = vunpack.c.l.b16 %v4849
  %v5796 = vunpack.c.h.b16 %v4849
  %v5797 = vunpack.c.l.b16 %v4850
  %v5798 = vunpack.c.l.b16 %v4851
  %v5799 = vunpack.c.h.b16 %v4851
  %v5800 = vunpack.c.l.b16 %v4852
  %v5801 = vunpack.c.h.b16 %v4852
  %v5802 = vunpack.c.l.b16 %v4853
  %v5803 = vunpack.c.h.b16 %v4853
  %v5804 = vunpack.c.l.b16 %v4854
  %v5805 = vunpack.c.l.b16 %v4855
  %v5806 = vunpack.c.h.b16 %v4855
  %v5807 = vunpack.c.l.b16 %v4856
  %v5808 = vunpack.c.h.b16 %v4856
  %v5809 = vunpack.c.l.b16 %v4857
  %v5810 = vunpack.c.h.b16 %v4857
  %v5811 = vunpack.c.l.b16 %v4858
  %v5812 = vunpack.c.l.b16 %v4859
  %v5813 = vunpack.c.h.b16 %v4859
  %v5814 = vunpack.c.l.b16 %v4860
  %v5815 = vunpack.c.h.b16 %v4860
  %v5816 = vunpack.c.l.b16 %v4861
  %v5817 = vunpack.c.h.b16 %v4861
  %v5818 = vunpack.c.l.b16 %v4862
  %v5819 = vunpack.c.l.b16 %v4863
  %v5820 = vunpack.c.h.b16 %v4863
  %v5821 = vunpack.c.l.b16 %v4864
  %v5822 = vunpack.c.h.b16 %v4864
  %v5823 = vunpack.c.l.b16 %v4865
  %v5824 = vunpack.c.h.b16 %v4865
  %v5825 = vunpack.c.l.b16 %v4866
  %v5826 = vunpack.c.l.b16 %v4867
  %v5827 = vunpack.c.h.b16 %v4867
  %v5828 = vunpack.c.l.b16 %v4868
  %v5829 = vunpack.c.h.b16 %v4868
  %v5830 = vunpack.c.l.b16 %v4869
  %v5831 = vunpack.c.h.b16 %v4869
  %v5832 = vunpack.c.l.b16 %v4870
  %v5833 = vunpack.c.l.b16 %v4871
  %v5834 = vunpack.c.h.b16 %v4871
  %v5835 = vunpack.c.l.b16 %v4872
  %v5836 = vunpack.c.h.b16 %v4872
  %v5837 = vunpack.c.l.b16 %v4873
  %v5838 = vunpack.c.h.b16 %v4873
  %v5839 = vunpack.c.l.b16 %v4874
  %v5840 = vunpack.c.l.b16 %v4875
  %v5841 = vunpack.c.h.b16 %v4875
  %v5842 = vunpack.c.l.b16 %v4876
  %v5843 = vunpack.c.h.b16 %v4876
  %v5844 = vunpack.c.l.b16 %v4877
  %v5845 = vunpack.c.h.b16 %v4877
  %v5846 = vunpack.c.l.b16 %v4878
  %v5847 = vunpack.c.l.b16 %v4879
  %v5848 = vunpack.c.h.b16 %v4879
  %v5849 = vunpack.c.l.b16 %v4880
  %v5850 = vunpack.c.h.b16 %v4880
  %v5851 = vunpack.c.l.b16 %v4881
  %v5852 = vunpack.c.h.b16 %v4881
  %v5853 = vunpack.c.l.b16 %v4882
  %v5854 = vunpack.c.l.b16 %v4883
  %v5855 = vunpack.c.h.b16 %v4883
  %v5856 = vunpack.c.l.b16 %v4884
  %v5857 = vunpack.c.h.b16 %v4884
  %v5858 = vunpack.c.l.b16 %v4885
  %v5859 = vunpack.c.h.b16 %v4885
  %v5860 = vunpack.c.l.b16 %v4886
  %v5861 = vunpack.c.l.b16 %v4887
  %v5862 = vunpack.c.h.b16 %v4887
  %v5863 = vunpack.c.l.b16 %v4888
  %v5864 = vunpack.c.h.b16 %v4888
  %v5865 = vunpack.c.l.b16 %v4889
  %v5866 = vunpack.c.h.b16 %v4889
  %v5867 = vunpack.c.l.b16 %v4890
  %v5868 = vunpack.c.l.b16 %v4891
  %v5869 = vunpack.c.h.b16 %v4891
  %v5870 = vunpack.c.l.b16 %v4892
  %v5871 = vunpack.c.h.b16 %v4892
  %v5872 = vunpack.c.l.b16 %v4893
  %v5873 = vunpack.c.h.b16 %v4893
  %v5874 = vunpack.c.l.b16 %v4894
  %v5875 = vunpack.c.l.b16 %v4895
  %v5876 = vunpack.c.h.b16 %v4895
  %v5877 = vunpack.c.l.b16 %v4896
  %v5878 = vunpack.c.h.b16 %v4896
  %v5879 = vunpack.c.l.b16 %v4897
  %v5880 = vunpack.c.h.b16 %v4897
  %v5881 = vunpack.c.l.b16 %v4898
  %v5882 = vunpack.c.l.b16 %v4899
  %v5883 = vunpack.c.h.b16 %v4899
  %v5884 = vunpack.c.l.b16 %v4900
  %v5885 = vunpack.c.h.b16 %v4900
  %v5886 = vunpack.c.l.b16 %v4901
  %v5887 = vunpack.c.h.b16 %v4901
  %v5888 = vunpack.c.l.b16 %v4902
  %v5889 = vunpack.c.l.b16 %v4903
  %v5890 = vunpack.c.h.b16 %v4903
  %v5891 = vunpack.c.l.b16 %v4904
  %v5892 = vunpack.c.h.b16 %v4904
  %v5893 = vunpack.c.l.b16 %v4905
  %v5894 = vunpack.c.h.b16 %v4905
  %v5895 = vunpack.c.l.b16 %v4906
  %v5896 = vunpack.c.l.b16 %v4907
  %v5897 = vunpack.c.h.b16 %v4907
  %v5898 = vunpack.c.l.b16 %v4908
  %v5899 = vunpack.c.h.b16 %v4908
  %v5900 = vunpack.c.l.b16 %v4909
  %v5901 = vunpack.c.h.b16 %v4909
  %v5902 = vunpack.c.l.b16 %v4910
  %v5903 = vunpack.c.l.b16 %v4911
  %v5904 = vunpack.c.h.b16 %v4911
  %v5905 = vunpack.c.l.b16 %v4912
  %v5906 = vunpack.c.h.b16 %v4912
  %v5907 = vunpack.c.l.b16 %v4913
  %v5908 = vunpack.c.h.b16 %v4913
  %v5909 = vunpack.c.l.b16 %v4914
  %v5910 = vunpack.c.l.b16 %v4915
  %v5911 = vunpack.c.h.b16 %v4915
  %v5912 = vunpack.c.l.b16 %v4916
  %v5913 = vunpack.c.h.b16 %v4916
  %v5914 = vunpack.c.l.b16 %v4917
  %v5915 = vunpack.c.h.b16 %v4917
  %v5916 = vunpack.c.l.b16 %v4918
  %v5917 = vunpack.c.l.b16 %v4919
  %v5918 = vunpack.c.h.b16 %v4919
  %v5919 = vunpack.c.l.b16 %v4920
  %v5920 = vunpack.c.h.b16 %v4920
  %v5921 = vunpack.c.l.b16 %v4921
  %v5922 = vunpack.c.h.b16 %v4921
  %v5923 = vunpack.c.l.b16 %v4922
  %v5924 = vunpack.c.l.b16 %v4923
  %v5925 = vunpack.c.h.b16 %v4923
  %v5926 = vunpack.c.l.b16 %v4924
  %v5927 = vunpack.c.h.b16 %v4924
  %v5928 = vunpack.c.l.b16 %v4925
  %v5929 = vunpack.c.h.b16 %v4925
  %v5930 = vunpack.c.l.b16 %v4926
  %v5931 = vunpack.c.l.b16 %v4927
  %v5932 = vunpack.c.h.b16 %v4927
  %v5933 = vunpack.c.l.b16 %v4928
  %v5934 = vunpack.c.h.b16 %v4928
  %v5935 = vunpack.c.l.b16 %v4929
  %v5936 = vunpack.c.h.b16 %v4929
  %v5937 = vunpack.c.l.b16 %v4930
  %v5938 = vunpack.c.l.b16 %v4931
  %v5939 = vunpack.c.h.b16 %v4931
  %v5940 = vunpack.c.l.b16 %v4932
  %v5941 = vunpack.c.h.b16 %v4932
  %v5942 = vunpack.c.l.b16 %v4933
  %v5943 = vunpack.c.h.b16 %v4933
  %v5944 = vunpack.c.l.b16 %v4934
  %v5945 = vunpack.c.l.b16 %v4935
  %v5946 = vunpack.c.h.b16 %v4935
  %v5947 = vunpack.c.l.b16 %v4936
  %v5948 = vunpack.c.h.b16 %v4936
  %v5949 = vunpack.c.l.b16 %v4937
  %v5950 = vunpack.c.h.b16 %v4937
  %v5951 = vunpack.c.l.b16 %v4938
  %v5952 = vunpack.c.l.b16 %v4939
  %v5953 = vunpack.c.h.b16 %v4939
  %v5954 = vunpack.c.l.b16 %v4940
  %v5955 = vunpack.c.h.b16 %v4940
  %v5956 = vunpack.c.l.b16 %v4941
  %v5957 = vunpack.c.h.b16 %v4941
  %v5958 = vunpack.c.l.b16 %v4942
  %v5959 = vunpack.c.l.b16 %v4943
  %v5960 = vunpack.c.h.b16 %v4943
  %v5961 = vunpack.c.l.b16 %v4944
  %v5962 = vunpack.c.h.b16 %v4944
  %v5963 = vunpack.c.l.b16 %v4945
  %v5964 = vunpack.c.h.b16 %v4945
  %v5965 = vunpack.c.l.b16 %v4946
  %v5966 = vunpack.c.l.b16 %v4947
  %v5967 = vunpack.c.h.b16 %v4947
  %v5968 = vunpack.c.l.b16 %v4948
  %v5969 = vunpack.c.h.b16 %v4948
  %v5970 = vunpack.c.l.b16 %v4949
  %v5971 = vunpack.c.h.b16 %v4949
  %v5972 = vunpack.c.l.b16 %v4950
  %v5973 = vunpack.c.l.b16 %v4951
  %v5974 = vunpack.c.h.b16 %v4951
  %v5975 = vunpack.c.l.b16 %v4952
  %v5976 = vunpack.c.h.b16 %v4952
  %v5977 = vunpack.c.l.b16 %v4953
  %v5978 = vunpack.c.h.b16 %v4953
  %v5979 = vunpack.c.l.b16 %v4954
  %v5980 = vunpack.c.l.b16 %v4955
  %v5981 = vunpack.c.h.b16 %v4955
  %v5982 = vunpack.c.l.b16 %v4956
  %v5983 = vunpack.c.h.b16 %v4956
  %v5984 = vunpack.c.l.b16 %v4957
  %v5985 = vunpack.c.h.b16 %v4957
  %v5986 = vunpack.c.l.b16 %v4958
  %v5987 = vunpack.c.l.b16 %v4959
  %v5988 = vunpack.c.h.b16 %v4959
  %v5989 = vunpack.c.l.b16 %v4960
  %v5990 = vunpack.c.h.b16 %v4960
  %v5991 = vunpack.c.l.b16 %v4961
  %v5992 = vunpack.c.h.b16 %v4961
  %v5993 = vunpack.c.l.b16 %v4962
  %v5994 = vunpack.c.l.b16 %v4963
  %v5995 = vunpack.c.h.b16 %v4963
  %v5996 = vunpack.c.l.b16 %v4964
  %v5997 = vunpack.c.h.b16 %v4964
  %v5998 = vunpack.c.l.b16 %v4965
  %v5999 = vunpack.c.h.b16 %v4965
  %v6000 = vunpack.c.l.b16 %v4966
  %v6001 = vunpack.c.l.b16 %v4967
  %v6002 = vunpack.c.h.b16 %v4967
  %v6003 = vunpack.c.l.b16 %v4968
  %v6004 = vunpack.c.h.b16 %v4968
  %v6005 = vunpack.c.l.b16 %v4969
  %v6006 = vunpack.c.h.b16 %v4969
  %v6007 = vunpack.c.l.b16 %v4970
  %v6008 = vunpack.c.l.b16 %v4971
  %v6009 = vunpack.c.h.b16 %v4971
  %v6010 = vunpack.c.l.b16 %v4972
  %v6011 = vunpack.c.h.b16 %v4972
  %v6012 = vunpack.c.l.b16 %v4973
  %v6013 = vunpack.c.h.b16 %v4973
  %v6014 = vunpack.c.l.b16 %v4974
  %v6015 = vunpack.c.l.b16 %v4975
  %v6016 = vunpack.c.h.b16 %v4975
  %v6017 = vunpack.c.l.b16 %v4976
  %v6018 = vunpack.c.h.b16 %v4976
  %v6019 = vunpack.c.l.b16 %v4977
  %v6020 = vunpack.c.h.b16 %v4977
  %v6021 = vunpack.c.l.b16 %v4978
  %v6022 = vunpack.c.l.b16 %v4979
  %v6023 = vunpack.c.h.b16 %v4979
  %v6024 = vunpack.c.l.b16 %v4980
  %v6025 = vunpack.c.h.b16 %v4980
  %v6026 = vunpack.c.l.b16 %v4981
  %v6027 = vunpack.c.h.b16 %v4981
  %v6028 = vunpack.c.l.b16 %v4982
  %v6029 = vunpack.c.l.b16 %v4983
  %v6030 = vunpack.c.h.b16 %v4983
  %v6031 = vunpack.c.l.b16 %v4984
  %v6032 = vunpack.c.h.b16 %v4984
  %v6033 = vunpack.c.l.b16 %v4985
  %v6034 = vunpack.c.h.b16 %v4985
  %v6035 = vunpack.c.l.b16 %v4986
  %v6036 = vunpack.c.l.b16 %v4987
  %v6037 = vunpack.c.h.b16 %v4987
  %v6038 = vunpack.c.l.b16 %v4988
  %v6039 = vunpack.c.h.b16 %v4988
  %v6040 = vunpack.c.l.b16 %v4989
  %v6041 = vunpack.c.h.b16 %v4989
  %v6042 = vunpack.c.l.b16 %v4990
  %v6043 = vunpack.c.l.b16 %v4991
  %v6044 = vunpack.c.h.b16 %v4991
  %v6045 = vunpack.c.l.b16 %v4992
  %v6046 = vunpack.c.h.b16 %v4992
  %v6047 = vunpack.c.l.b16 %v4993
  %v6048 = vunpack.c.h.b16 %v4993
  %v6049 = vunpack.c.l.b16 %v4994
  %v6050 = vunpack.c.l.b16 %v4995
  %v6051 = vunpack.c.h.b16 %v4995
  %v6052 = vunpack.c.l.b16 %v4996
  %v6053 = vunpack.c.h.b16 %v4996
  %v6054 = vunpack.c.l.b16 %v4997
  %v6055 = vunpack.c.h.b16 %v4997
  %v6056 = vunpack.c.l.b16 %v4998
  %v6057 = vunpack.c.l.b16 %v4999
  %v6058 = vunpack.c.h.b16 %v4999
  %v6059 = vunpack.c.l.b16 %v5000
  %v6060 = vunpack.c.h.b16 %v5000
  %v6061 = vunpack.c.l.b16 %v5001
  %v6062 = vunpack.c.h.b16 %v5001
  %v6063 = vunpack.c.l.b16 %v5002
  %v6064 = vunpack.c.l.b16 %v5003
  %v6065 = vunpack.c.h.b16 %v5003
  %v6066 = vunpack.c.l.b16 %v5004
  %v6067 = vunpack.c.h.b16 %v5004
  %v6068 = vunpack.c.l.b16 %v5005
  %v6069 = vunpack.c.h.b16 %v5005
  %v6070 = vunpack.c.l.b16 %v5006
  %v6071 = vunpack.c.l.b16 %v5007
  %v6072 = vunpack.c.h.b16 %v5007
  %v6073 = vunpack.c.l.b16 %v5008
  %v6074 = vunpack.c.h.b16 %v5008
  %v6075 = vunpack.c.l.b16 %v5009
  %v6076 = vunpack.c.h.b16 %v5009
  %v6077 = vunpack.c.l.b16 %v5010
  %v6078 = vunpack.c.l.b16 %v5011
  %v6079 = vunpack.c.h.b16 %v5011
  %v6080 = vunpack.c.l.b16 %v5012
  %v6081 = vunpack.c.h.b16 %v5012
  %v6082 = vunpack.c.l.b16 %v5013
  %v6083 = vunpack.c.h.b16 %v5013
  %v6084 = vunpack.c.l.b16 %v5014
  %v6085 = vunpack.c.l.b16 %v5015
  %v6086 = vunpack.c.h.b16 %v5015
  %v6087 = vunpack.c.l.b16 %v5016
  %v6088 = vunpack.c.h.b16 %v5016
  %v6089 = vunpack.c.l.b16 %v5017
  %v6090 = vunpack.c.h.b16 %v5017
  %v6091 = vunpack.c.l.b16 %v5018
  %v6092 = vunpack.c.l.b16 %v5019
  %v6093 = vunpack.c.h.b16 %v5019
  %v6094 = vunpack.c.l.b16 %v5020
  %v6095 = vunpack.c.h.b16 %v5020
  %v6096 = vunpack.c.l.b16 %v5021
  %v6097 = vunpack.c.h.b16 %v5021
  %v6098 = vunpack.c.l.b16 %v5022
  %v6099 = vunpack.c.l.b16 %v5023
  %v6100 = vunpack.c.h.b16 %v5023
  %v6101 = vunpack.c.l.b16 %v5024
  %v6102 = vunpack.c.h.b16 %v5024
  %v6103 = vunpack.c.l.b16 %v5025
  %v6104 = vunpack.c.h.b16 %v5025
  %v6105 = vunpack.c.l.b16 %v5026
  %v6106 = vunpack.c.l.b16 %v5027
  %v6107 = vunpack.c.h.b16 %v5027
  %v6108 = vunpack.c.l.b16 %v5028
  %v6109 = vunpack.c.h.b16 %v5028
  %v6110 = vunpack.c.l.b16 %v5029
  %v6111 = vunpack.c.h.b16 %v5029
  %v6112 = vunpack.c.l.b16 %v5030
  %v6113 = vunpack.c.l.b16 %v5031
  %v6114 = vunpack.c.h.b16 %v5031
  %v6115 = vunpack.c.l.b16 %v5032
  %v6116 = vunpack.c.h.b16 %v5032
  %v6117 = vunpack.c.l.b16 %v5033
  %v6118 = vunpack.c.h.b16 %v5033
  %v6119 = vunpack.c.l.b16 %v5034
  %v6120 = vunpack.c.l.b16 %v5035
  %v6121 = vunpack.c.h.b16 %v5035
  %v6122 = vunpack.c.l.b16 %v5036
  %v6123 = vunpack.c.h.b16 %v5036
  %v6124 = vunpack.c.l.b16 %v5037
  %v6125 = vunpack.c.h.b16 %v5037
  %v6126 = vunpack.c.l.b16 %v5038
  %v6127 = vunpack.c.l.b16 %v5039
  %v6128 = vunpack.c.h.b16 %v5039
  %v6129 = vunpack.c.l.b16 %v5040
  %v6130 = vunpack.c.h.b16 %v5040
  %v6131 = vunpack.c.l.b16 %v5041
  %v6132 = vunpack.c.h.b16 %v5041
  %v6133 = vunpack.c.l.b16 %v5042
  %v6134 = vunpack.c.l.b16 %v5043
  %v6135 = vunpack.c.h.b16 %v5043
  %v6136 = vunpack.c.l.b16 %v5044
  %v6137 = vunpack.c.h.b16 %v5044
  %v6138 = vunpack.c.l.b16 %v5045
  %v6139 = vunpack.c.h.b16 %v5045
  %v6140 = vunpack.c.l.b16 %v5046
  %v6141 = vunpack.c.l.b16 %v5047
  %v6142 = vunpack.c.h.b16 %v5047
  %v6143 = vunpack.c.l.b16 %v5048
  %v6144 = vunpack.c.h.b16 %v5048
  %v6145 = vunpack.c.l.b16 %v5049
  %v6146 = vunpack.c.h.b16 %v5049
  %v6147 = vunpack.c.l.b16 %v5050
  %v6148 = vunpack.c.l.b16 %v5051
  %v6149 = vunpack.c.h.b16 %v5051
  %v6150 = vunpack.c.l.b16 %v5052
  %v6151 = vunpack.c.h.b16 %v5052
  %v6152 = vunpack.c.l.b16 %v5053
  %v6153 = vunpack.c.h.b16 %v5053
  %v6154 = vunpack.c.l.b16 %v5054
  %v6155 = vunpack.c.l.b16 %v5055
  %v6156 = vunpack.c.h.b16 %v5055
  %v6157 = vunpack.c.l.b16 %v5056
  %v6158 = vunpack.c.h.b16 %v5056
  %v6159 = vunpack.c.l.b16 %v5057
  %v6160 = vunpack.c.h.b16 %v5057
  %v6161 = vunpack.c.l.b16 %v5058
  %v6162 = vunpack.c.l.b16 %v5059
  %v6163 = vunpack.c.h.b16 %v5059
  %v6164 = vunpack.c.l.b16 %v5060
  %v6165 = vunpack.c.h.b16 %v5060
  %v6166 = vunpack.c.l.b16 %v5061
  %v6167 = vunpack.c.h.b16 %v5061
  %v6168 = vunpack.c.l.b16 %v5062
  %v6169 = vunpack.c.l.b16 %v5063
  %v6170 = vunpack.c.h.b16 %v5063
  %v6171 = vunpack.c.l.b16 %v5064
  %v6172 = vunpack.c.h.b16 %v5064
  %v6173 = vunpack.c.l.b16 %v5065
  %v6174 = vunpack.c.h.b16 %v5065
  %v6175 = vunpack.c.l.b16 %v5066
  %v6176 = vunpack.c.l.b16 %v5067
  %v6177 = vunpack.c.h.b16 %v5067
  %v6178 = vunpack.c.l.b16 %v5068
  %v6179 = vunpack.c.h.b16 %v5068
  %v6180 = vunpack.c.l.b16 %v5069
  %v6181 = vunpack.c.h.b16 %v5069
  %v6182 = vunpack.c.l.b16 %v5070
  %v6183 = vunpack.c.l.b16 %v5071
  %v6184 = vunpack.c.h.b16 %v5071
  %v6185 = vunpack.c.l.b16 %v5072
  %v6186 = vunpack.c.h.b16 %v5072
  %v6187 = vunpack.c.l.b16 %v5073
  %v6188 = vunpack.c.h.b16 %v5073
  %v6189 = vunpack.c.l.b16 %v5074
  %v6190 = vpack.c.b16 %v5511, %v5504
  %v6191 = vpack.c.b16 %v5512, %v5505
  %v6192 = vpack.c.b16 %v5513, %v5506
  %v6193 = vpack.c.b16 %v5514, %v5507
  %v6194 = vpack.c.b16 %v5515, %v5508
  %v6195 = vpack.c.b16 %v5516, %v5509
  %v6196 = vpack.c.b16 %v5517, %v5510
  %v6197 = vpack.c.b16 %v5525, %v5518
  %v6198 = vpack.c.b16 %v5526, %v5519
  %v6199 = vpack.c.b16 %v5527, %v5520
  %v6200 = vpack.c.b16 %v5528, %v5521
  %v6201 = vpack.c.b16 %v5529, %v5522
  %v6202 = vpack.c.b16 %v5530, %v5523
  %v6203 = vpack.c.b16 %v5531, %v5524
  %v6204 = vpack.c.b16 %v5539, %v5532
  %v6205 = vpack.c.b16 %v5540, %v5533
  %v6206 = vpack.c.b16 %v5541, %v5534
  %v6207 = vpack.c.b16 %v5542, %v5535
  %v6208 = vpack.c.b16 %v5543, %v5536
  %v6209 = vpack.c.b16 %v5544, %v5537
  %v6210 = vpack.c.b16 %v5545, %v5538
  %v6211 = vpack.c.b16 %v5553, %v5546
  %v6212 = vpack.c.b16 %v5554, %v5547
  %v6213 = vpack.c.b16 %v5555, %v5548
  %v6214 = vpack.c.b16 %v5556, %v5549
  %v6215 = vpack.c.b16 %v5557, %v5550
  %v6216 = vpack.c.b16 %v5558, %v5551
  %v6217 = vpack.c.b16 %v5559, %v5552
  %v6218 = vpack.c.b16 %v5567, %v5560
  %v6219 = vpack.c.b16 %v5568, %v5561
  %v6220 = vpack.c.b16 %v5569, %v5562
  %v6221 = vpack.c.b16 %v5570, %v5563
  %v6222 = vpack.c.b16 %v5571, %v5564
  %v6223 = vpack.c.b16 %v5572, %v5565
  %v6224 = vpack.c.b16 %v5573, %v5566
  %v6225 = vpack.c.b16 %v5581, %v5574
  %v6226 = vpack.c.b16 %v5582, %v5575
  %v6227 = vpack.c.b16 %v5583, %v5576
  %v6228 = vpack.c.b16 %v5584, %v5577
  %v6229 = vpack.c.b16 %v5585, %v5578
  %v6230 = vpack.c.b16 %v5586, %v5579
  %v6231 = vpack.c.b16 %v5587, %v5580
  %v6232 = vpack.c.b16 %v5595, %v5588
  %v6233 = vpack.c.b16 %v5596, %v5589
  %v6234 = vpack.c.b16 %v5597, %v5590
  %v6235 = vpack.c.b16 %v5598, %v5591
  %v6236 = vpack.c.b16 %v5599, %v5592
  %v6237 = vpack.c.b16 %v5600, %v5593
  %v6238 = vpack.c.b16 %v5601, %v5594
  %v6239 = vpack.c.b16 %v5609, %v5602
  %v6240 = vpack.c.b16 %v5610, %v5603
  %v6241 = vpack.c.b16 %v5611, %v5604
  %v6242 = vpack.c.b16 %v5612, %v5605
  %v6243 = vpack.c.b16 %v5613, %v5606
  %v6244 = vpack.c.b16 %v5614, %v5607
  %v6245 = vpack.c.b16 %v5615, %v5608
  %v6246 = vpack.c.b16 %v5623, %v5616
  %v6247 = vpack.c.b16 %v5624, %v5617
  %v6248 = vpack.c.b16 %v5625, %v5618
  %v6249 = vpack.c.b16 %v5626, %v5619
  %v6250 = vpack.c.b16 %v5627, %v5620
  %v6251 = vpack.c.b16 %v5628, %v5621
  %v6252 = vpack.c.b16 %v5629, %v5622
  %v6253 = vpack.c.b16 %v5637, %v5630
  %v6254 = vpack.c.b16 %v5638, %v5631
  %v6255 = vpack.c.b16 %v5639, %v5632
  %v6256 = vpack.c.b16 %v5640, %v5633
  %v6257 = vpack.c.b16 %v5641, %v5634
  %v6258 = vpack.c.b16 %v5642, %v5635
  %v6259 = vpack.c.b16 %v5643, %v5636
  %v6260 = vpack.c.b16 %v5651, %v5644
  %v6261 = vpack.c.b16 %v5652, %v5645
  %v6262 = vpack.c.b16 %v5653, %v5646
  %v6263 = vpack.c.b16 %v5654, %v5647
  %v6264 = vpack.c.b16 %v5655, %v5648
  %v6265 = vpack.c.b16 %v5656, %v5649
  %v6266 = vpack.c.b16 %v5657, %v5650
  %v6267 = vpack.c.b16 %v5665, %v5658
  %v6268 = vpack.c.b16 %v5666, %v5659
  %v6269 = vpack.c.b16 %v5667, %v5660
  %v6270 = vpack.c.b16 %v5668, %v5661
  %v6271 = vpack.c.b16 %v5669, %v5662
  %v6272 = vpack.c.b16 %v5670, %v5663
  %v6273 = vpack.c.b16 %v5671, %v5664
  %v6274 = vpack.c.b16 %v5679, %v5672
  %v6275 = vpack.c.b16 %v5680, %v5673
  %v6276 = vpack.c.b16 %v5681, %v5674
  %v6277 = vpack.c.b16 %v5682, %v5675
  %v6278 = vpack.c.b16 %v5683, %v5676
  %v6279 = vpack.c.b16 %v5684, %v5677
  %v6280 = vpack.c.b16 %v5685, %v5678
  %v6281 = vpack.c.b16 %v5693, %v5686
  %v6282 = vpack.c.b16 %v5694, %v5687
  %v6283 = vpack.c.b16 %v5695, %v5688
  %v6284 = vpack.c.b16 %v5696, %v5689
  %v6285 = vpack.c.b16 %v5697, %v5690
  %v6286 = vpack.c.b16 %v5698, %v5691
  %v6287 = vpack.c.b16 %v5699, %v5692
  %v6288 = vpack.c.b16 %v5707, %v5700
  %v6289 = vpack.c.b16 %v5708, %v5701
  %v6290 = vpack.c.b16 %v5709, %v5702
  %v6291 = vpack.c.b16 %v5710, %v5703
  %v6292 = vpack.c.b16 %v5711, %v5704
  %v6293 = vpack.c.b16 %v5712, %v5705
  %v6294 = vpack.c.b16 %v5713, %v5706
  %v6295 = vpack.c.b16 %v5721, %v5714
  %v6296 = vpack.c.b16 %v5722, %v5715
  %v6297 = vpack.c.b16 %v5723, %v5716
  %v6298 = vpack.c.b16 %v5724, %v5717
  %v6299 = vpack.c.b16 %v5725, %v5718
  %v6300 = vpack.c.b16 %v5726, %v5719
  %v6301 = vpack.c.b16 %v5727, %v5720
  %v6302 = vpack.c.b16 %v5735, %v5728
  %v6303 = vpack.c.b16 %v5736, %v5729
  %v6304 = vpack.c.b16 %v5737, %v5730
  %v6305 = vpack.c.b16 %v5738, %v5731
  %v6306 = vpack.c.b16 %v5739, %v5732
  %v6307 = vpack.c.b16 %v5740, %v5733
  %v6308 = vpack.c.b16 %v5741, %v5734
  %v6309 = vpack.c.b16 %v5749, %v5742
  %v6310 = vpack.c.b16 %v5750, %v5743
  %v6311 = vpack.c.b16 %v5751, %v5744
  %v6312 = vpack.c.b16 %v5752, %v5745
  %v6313 = vpack.c.b16 %v5753, %v5746
  %v6314 = vpack.c.b16 %v5754, %v5747
  %v6315 = vpack.c.b16 %v5755, %v5748
  %v6316 = vpack.c.b16 %v5763, %v5756
  %v6317 = vpack.c.b16 %v5764, %v5757
  %v6318 = vpack.c.b16 %v5765, %v5758
  %v6319 = vpack.c.b16 %v5766, %v5759
  %v6320 = vpack.c.b16 %v5767, %v5760
  %v6321 = vpack.c.b16 %v5768, %v5761
  %v6322 = vpack.c.b16 %v5769, %v5762
  %v6323 = vpack.c.b16 %v5777, %v5770
  %v6324 = vpack.c.b16 %v5778, %v5771
  %v6325 = vpack.c.b16 %v5779, %v5772
  %v6326 = vpack.c.b16 %v5780, %v5773
  %v6327 = vpack.c.b16 %v5781, %v5774
  %v6328 = vpack.c.b16 %v5782, %v5775
  %v6329 = vpack.c.b16 %v5783, %v5776
  %v6330 = vpack.c.b16 %v5791, %v5784
  %v6331 = vpack.c.b16 %v5792, %v5785
  %v6332 = vpack.c.b16 %v5793, %v5786
  %v6333 = vpack.c.b16 %v5794, %v5787
  %v6334 = vpack.c.b16 %v5795, %v5788
  %v6335 = vpack.c.b16 %v5796, %v5789
  %v6336 = vpack.c.b16 %v5797, %v5790
  %v6337 = vpack.c.b16 %v5805, %v5798
  %v6338 = vpack.c.b16 %v5806, %v5799
  %v6339 = vpack.c.b16 %v5807, %v5800
  %v6340 = vpack.c.b16 %v5808, %v5801
  %v6341 = vpack.c.b16 %v5809, %v5802
  %v6342 = vpack.c.b16 %v5810, %v5803
  %v6343 = vpack.c.b16 %v5811, %v5804
  %v6344 = vpack.c.b16 %v5819, %v5812
  %v6345 = vpack.c.b16 %v5820, %v5813
  %v6346 = vpack.c.b16 %v5821, %v5814
  %v6347 = vpack.c.b16 %v5822, %v5815
  %v6348 = vpack.c.b16 %v5823, %v5816
  %v6349 = vpack.c.b16 %v5824, %v5817
  %v6350 = vpack.c.b16 %v5825, %v5818
  %v6351 = vpack.c.b16 %v5833, %v5826
  %v6352 = vpack.c.b16 %v5834, %v5827
  %v6353 = vpack.c.b16 %v5835, %v5828
  %v6354 = vpack.c.b16 %v5836, %v5829
  %v6355 = vpack.c.b16 %v5837, %v5830
  %v6356 = vpack.c.b16 %v5838, %v5831
  %v6357 = vpack.c.b16 %v5839, %v5832
  %v6358 = vpack.c.b16 %v5847, %v5840
  %v6359 = vpack.c.b16 %v5848, %v5841
  %v6360 = vpack.c.b16 %v5849, %v5842
  %v6361 = vpack.c.b16 %v5850, %v5843
  %v6362 = vpack.c.b16 %v5851, %v5844
  %v6363 = vpack.c.b16 %v5852, %v5845
  %v6364 = vpack.c.b16 %v5853, %v5846
  %v6365 = vpack.c.b16 %v5861, %v5854
  %v6366 = vpack.c.b16 %v5862, %v5855
  %v6367 = vpack.c.b16 %v5863, %v5856
  %v6368 = vpack.c.b16 %v5864, %v5857
  %v6369 = vpack.c.b16 %v5865, %v5858
  %v6370 = vpack.c.b16 %v5866, %v5859
  %v6371 = vpack.c.b16 %v5867, %v5860
  %v6372 = vpack.c.b16 %v5875, %v5868
  %v6373 = vpack.c.b16 %v5876, %v5869
  %v6374 = vpack.c.b16 %v5877, %v5870
  %v6375 = vpack.c.b16 %v5878, %v5871
  %v6376 = vpack.c.b16 %v5879, %v5872
  %v6377 = vpack.c.b16 %v5880, %v5873
  %v6378 = vpack.c.b16 %v5881, %v5874
  %v6379 = vpack.c.b16 %v5889, %v5882
  %v6380 = vpack.c.b16 %v5890, %v5883
  %v6381 = vpack.c.b16 %v5891, %v5884
  %v6382 = vpack.c.b16 %v5892, %v5885
  %v6383 = vpack.c.b16 %v5893, %v5886
  %v6384 = vpack.c.b16 %v5894, %v5887
  %v6385 = vpack.c.b16 %v5895, %v5888
  %v6386 = vpack.c.b16 %v5903, %v5896
  %v6387 = vpack.c.b16 %v5904, %v5897
  %v6388 = vpack.c.b16 %v5905, %v5898
  %v6389 = vpack.c.b16 %v5906, %v5899
  %v6390 = vpack.c.b16 %v5907, %v5900
  %v6391 = vpack.c.b16 %v5908, %v5901
  %v6392 = vpack.c.b16 %v5909, %v5902
  %v6393 = vpack.c.b16 %v5917, %v5910
  %v6394 = vpack.c.b16 %v5918, %v5911
  %v6395 = vpack.c.b16 %v5919, %v5912
  %v6396 = vpack.c.b16 %v5920, %v5913
  %v6397 = vpack.c.b16 %v5921, %v5914
  %v6398 = vpack.c.b16 %v5922, %v5915
  %v6399 = vpack.c.b16 %v5923, %v5916
  %v6400 = vpack.c.b16 %v5931, %v5924
  %v6401 = vpack.c.b16 %v5932, %v5925
  %v6402 = vpack.c.b16 %v5933, %v5926
  %v6403 = vpack.c.b16 %v5934, %v5927
  %v6404 = vpack.c.b16 %v5935, %v5928
  %v6405 = vpack.c.b16 %v5936, %v5929
  %v6406 = vpack.c.b16 %v5937, %v5930
  %v6407 = vpack.c.b16 %v5945, %v5938
  %v6408 = vpack.c.b16 %v5946, %v5939
  %v6409 = vpack.c.b16 %v5947, %v5940
  %v6410 = vpack.c.b16 %v5948, %v5941
  %v6411 = vpack.c.b16 %v5949, %v5942
  %v6412 = vpack.c.b16 %v5950, %v5943
  %v6413 = vpack.c.b16 %v5951, %v5944
  %v6414 = vpack.c.b16 %v5959, %v5952
  %v6415 = vpack.c.b16 %v5960, %v5953
  %v6416 = vpack.c.b16 %v5961, %v5954
  %v6417 = vpack.c.b16 %v5962, %v5955
  %v6418 = vpack.c.b16 %v5963, %v5956
  %v6419 = vpack.c.b16 %v5964, %v5957
  %v6420 = vpack.c.b16 %v5965, %v5958
  %v6421 = vpack.c.b16 %v5973, %v5966
  %v6422 = vpack.c.b16 %v5974, %v5967
  %v6423 = vpack.c.b16 %v5975, %v5968
  %v6424 = vpack.c.b16 %v5976, %v5969
  %v6425 = vpack.c.b16 %v5977, %v5970
  %v6426 = vpack.c.b16 %v5978, %v5971
  %v6427 = vpack.c.b16 %v5979, %v5972
  %v6428 = vpack.c.b16 %v5987, %v5980
  %v6429 = vpack.c.b16 %v5988, %v5981
  %v6430 = vpack.c.b16 %v5989, %v5982
  %v6431 = vpack.c.b16 %v5990, %v5983
  %v6432 = vpack.c.b16 %v5991, %v5984
  %v6433 = vpack.c.b16 %v5992, %v5985
  %v6434 = vpack.c.b16 %v5993, %v5986
  %v6435 = vpack.c.b16 %v6001, %v5994
  %v6436 = vpack.c.b16 %v6002, %v5995
  %v6437 = vpack.c.b16 %v6003, %v5996
  %v6438 = vpack.c.b16 %v6004, %v5997
  %v6439 = vpack.c.b16 %v6005, %v5998
  %v6440 = vpack.c.b16 %v6006, %v5999
  %v6441 = vpack.c.b16 %v6007, %v6000
  %v6442 = vpack.c.b16 %v6015, %v6008
  %v6443 = vpack.c.b16 %v6016, %v6009
  %v6444 = vpack.c.b16 %v6017, %v6010
  %v6445 = vpack.c.b16 %v6018, %v6011
  %v6446 = vpack.c.b16 %v6019, %v6012
  %v6447 = vpack.c.b16 %v6020, %v6013
  %v6448 = vpack.c.b16 %v6021, %v6014
  %v6449 = vpack.c.b16 %v6029, %v6022
  %v6450 = vpack.c.b16 %v6030, %v6023
  %v6451 = vpack.c.b16 %v6031, %v6024
  %v6452 = vpack.c.b16 %v6032, %v6025
  %v6453 = vpack.c.b16 %v6033, %v6026
  %v6454 = vpack.c.b16 %v6034, %v6027
  %v6455 = vpack.c.b16 %v6035, %v6028
  %v6456 = vpack.c.b16 %v6043, %v6036
  %v6457 = vpack.c.b16 %v6044, %v6037
  %v6458 = vpack.c.b16 %v6045, %v6038
  %v6459 = vpack.c.b16 %v6046, %v6039
  %v6460 = vpack.c.b16 %v6047, %v6040
  %v6461 = vpack.c.b16 %v6048, %v6041
  %v6462 = vpack.c.b16 %v6049, %v6042
  %v6463 = vpack.c.b16 %v6057, %v6050
  %v6464 = vpack.c.b16 %v6058, %v6051
  %v6465 = vpack.c.b16 %v6059, %v6052
  %v6466 = vpack.c.b16 %v6060, %v6053
  %v6467 = vpack.c.b16 %v6061, %v6054
  %v6468 = vpack.c.b16 %v6062, %v6055
  %v6469 = vpack.c.b16 %v6063, %v6056
  %v6470 = vpack.c.b16 %v6071, %v6064
  %v6471 = vpack.c.b16 %v6072, %v6065
  %v6472 = vpack.c.b16 %v6073, %v6066
  %v6473 = vpack.c.b16 %v6074, %v6067
  %v6474 = vpack.c.b16 %v6075, %v6068
  %v6475 = vpack.c.b16 %v6076, %v6069
  %v6476 = vpack.c.b16 %v6077, %v6070
  %v6477 = vpack.c.b16 %v6085, %v6078
  %v6478 = vpack.c.b16 %v6086, %v6079
  %v6479 = vpack.c.b16 %v6087, %v6080
  %v6480 = vpack.c.b16 %v6088, %v6081
  %v6481 = vpack.c.b16 %v6089, %v6082
  %v6482 = vpack.c.b16 %v6090, %v6083
  %v6483 = vpack.c.b16 %v6091, %v6084
  %v6484 = vpack.c.b16 %v6099, %v6092
  %v6485 = vpack.c.b16 %v6100, %v6093
  %v6486 = vpack.c.b16 %v6101, %v6094
  %v6487 = vpack.c.b16 %v6102, %v6095
  %v6488 = vpack.c.b16 %v6103, %v6096
  %v6489 = vpack.c.b16 %v6104, %v6097
  %v6490 = vpack.c.b16 %v6105, %v6098
  %v6491 = vpack.c.b16 %v6113, %v6106
  %v6492 = vpack.c.b16 %v6114, %v6107
  %v6493 = vpack.c.b16 %v6115, %v6108
  %v6494 = vpack.c.b16 %v6116, %v6109
  %v6495 = vpack.c.b16 %v6117, %v6110
  %v6496 = vpack.c.b16 %v6118, %v6111
  %v6497 = vpack.c.b16 %v6119, %v6112
  %v6498 = vpack.c.b16 %v6127, %v6120
  %v6499 = vpack.c.b16 %v6128, %v6121
  %v6500 = vpack.c.b16 %v6129, %v6122
  %v6501 = vpack.c.b16 %v6130, %v6123
  %v6502 = vpack.c.b16 %v6131, %v6124
  %v6503 = vpack.c.b16 %v6132, %v6125
  %v6504 = vpack.c.b16 %v6133, %v6126
  %v6505 = vpack.c.b16 %v6141, %v6134
  %v6506 = vpack.c.b16 %v6142, %v6135
  %v6507 = vpack.c.b16 %v6143, %v6136
  %v6508 = vpack.c.b16 %v6144, %v6137
  %v6509 = vpack.c.b16 %v6145, %v6138
  %v6510 = vpack.c.b16 %v6146, %v6139
  %v6511 = vpack.c.b16 %v6147, %v6140
  %v6512 = vpack.c.b16 %v6155, %v6148
  %v6513 = vpack.c.b16 %v6156, %v6149
  %v6514 = vpack.c.b16 %v6157, %v6150
  %v6515 = vpack.c.b16 %v6158, %v6151
  %v6516 = vpack.c.b16 %v6159, %v6152
  %v6517 = vpack.c.b16 %v6160, %v6153
  %v6518 = vpack.c.b16 %v6161, %v6154
  %v6519 = vpack.c.b16 %v6169, %v6162
  %v6520 = vpack.c.b16 %v6170, %v6163
  %v6521 = vpack.c.b16 %v6171, %v6164
  %v6522 = vpack.c.b16 %v6172, %v6165
  %v6523 = vpack.c.b16 %v6173, %v6166
  %v6524 = vpack.c.b16 %v6174, %v6167
  %v6525 = vpack.c.b16 %v6175, %v6168
  %v6526 = vpack.c.b16 %v6183, %v6176
  %v6527 = vpack.c.b16 %v6184, %v6177
  %v6528 = vpack.c.b16 %v6185, %v6178
  %v6529 = vpack.c.b16 %v6186, %v6179
  %v6530 = vpack.c.b16 %v6187, %v6180
  %v6531 = vpack.c.b16 %v6188, %v6181
  %v6532 = vpack.c.b16 %v6189, %v6182
  %v6877 = vsel %vm2285, %v4682, 0
  %6879 = vmatprep.subr.bf16.mxu0 %v6240
  %6880 = vmatpush1.bf16.msra.mxu0 %v6239
  %6881 = vmatprep.subr.bf16.mxu0 %v6233
  %6882 = vmatpush1.bf16.msra.mxu0 %v6232
  %6883 = vmatprep.subr.bf16.mxu0 %v6226
  %6884 = vmatpush1.bf16.msra.mxu0 %v6225
  %6885 = vmatprep.subr.bf16.mxu0 %v6219
  %6886 = vmatpush1.bf16.msra.mxu0 %v6218
  %6887 = vmatprep.subr.bf16.mxu0 %v6212
  %6888 = vmatpush1.bf16.msra.mxu0 %v6211
  %6889 = vmatprep.subr.bf16.mxu0 %v6205
  %6890 = vmatpush1.bf16.msra.mxu0 %v6204
  %6891 = vmatprep.subr.bf16.mxu0 %v6198
  %6892 = vmatpush1.bf16.msra.mxu0 %v6197
  %6893 = vmatprep.subr.bf16.mxu0 %v6191
  %6894 = vmatpush1.bf16.msra.mxu0 %v6190
  %6895 = vmatprep.subr.bf16.mxu0 %v6296
  %6896 = vmatpush2.bf16.msra.mxu0 %v6295
  %6897 = vmatprep.subr.bf16.mxu0 %v6289
  %6898 = vmatpush2.bf16.msra.mxu0 %v6288
  %6899 = vmatprep.subr.bf16.mxu0 %v6282
  %6900 = vmatpush2.bf16.msra.mxu0 %v6281
  %6901 = vmatprep.subr.bf16.mxu0 %v6275
  %6902 = vmatpush2.bf16.msra.mxu0 %v6274
  %6903 = vmatprep.subr.bf16.mxu0 %v6268
  %6904 = vmatpush2.bf16.msra.mxu0 %v6267
  %6905 = vmatprep.subr.bf16.mxu0 %v6261
  %6906 = vmatpush2.bf16.msra.mxu0 %v6260
  %6907 = vmatprep.subr.bf16.mxu0 %v6254
  %6908 = vmatpush2.bf16.msra.mxu0 %v6253
  %6909 = vmatprep.subr.bf16.mxu0 %v6247
  %6910 = vmatpush2.bf16.msra.mxu0 %v6246
  %6911 = vmatprep.mubr.bf16.mxu0 %v4677
  %6912 = vmatmul.mubr.bf16.gmra.mxu0 %v4676
  %v6913 = vpop.f32.mrf.mxu0
  %v6914 = vadd.f32 %v5080, %v6913
  %v6915 = vpop.f32.mrf.mxu0
  %v6916 = vadd.f32 %v5084, %v6915
  %v6917 = vpop.f32.mrf.mxu0
  %v6918 = vadd.f32 %v5080, %v6917
  %v6919 = vpop.f32.mrf.mxu0
  %v6920 = vadd.f32 %v5084, %v6919
  %6921 = vdwg.mxu0
  %6922 = vmatprep.subr.bf16.mxu0 %v6352
  %6923 = vmatpush1.bf16.msra.mxu0 %v6351
  %6924 = vmatprep.subr.bf16.mxu0 %v6345
  %6925 = vmatpush1.bf16.msra.mxu0 %v6344
  %6926 = vmatprep.subr.bf16.mxu0 %v6338
  %6927 = vmatpush1.bf16.msra.mxu0 %v6337
  %6928 = vmatprep.subr.bf16.mxu0 %v6331
  %6929 = vmatpush1.bf16.msra.mxu0 %v6330
  %6930 = vmatprep.subr.bf16.mxu0 %v6324
  %6931 = vmatpush1.bf16.msra.mxu0 %v6323
  %6932 = vmatprep.subr.bf16.mxu0 %v6317
  %6933 = vmatpush1.bf16.msra.mxu0 %v6316
  %6934 = vmatprep.subr.bf16.mxu0 %v6310
  %6935 = vmatpush1.bf16.msra.mxu0 %v6309
  %6936 = vmatprep.subr.bf16.mxu0 %v6303
  %6937 = vmatpush1.bf16.msra.mxu0 %v6302
  %6938 = vmatprep.subr.bf16.mxu0 %v6408
  %6939 = vmatpush2.bf16.msra.mxu0 %v6407
  %6940 = vmatprep.subr.bf16.mxu0 %v6401
  %6941 = vmatpush2.bf16.msra.mxu0 %v6400
  %6942 = vmatprep.subr.bf16.mxu0 %v6394
  %6943 = vmatpush2.bf16.msra.mxu0 %v6393
  %6944 = vmatprep.subr.bf16.mxu0 %v6387
  %6945 = vmatpush2.bf16.msra.mxu0 %v6386
  %6946 = vmatprep.subr.bf16.mxu0 %v6380
  %6947 = vmatpush2.bf16.msra.mxu0 %v6379
  %6948 = vmatprep.subr.bf16.mxu0 %v6373
  %6949 = vmatpush2.bf16.msra.mxu0 %v6372
  %6950 = vmatprep.subr.bf16.mxu0 %v6366
  %6951 = vmatpush2.bf16.msra.mxu0 %v6365
  %6952 = vmatprep.subr.bf16.mxu0 %v6359
  %6953 = vmatpush2.bf16.msra.mxu0 %v6358
  %6954 = vmatprep.mubr.bf16.mxu0 %v4679
  %6955 = vmatmul.mubr.bf16.gmra.mxu0 %v4678
  %v6956 = vpop.f32.mrf.mxu0
  %v6957 = vadd.f32 %v6914, %v6956
  %v6958 = vpop.f32.mrf.mxu0
  %v6959 = vadd.f32 %v6916, %v6958
  %v6960 = vpop.f32.mrf.mxu0
  %v6961 = vadd.f32 %v6918, %v6960
  %v6962 = vpop.f32.mrf.mxu0
  %v6963 = vadd.f32 %v6920, %v6962
  %6964 = vdwg.mxu0
  %6965 = vmatprep.subr.bf16.mxu0 %v6464
  %6966 = vmatpush1.bf16.msra.mxu0 %v6463
  %6967 = vmatprep.subr.bf16.mxu0 %v6457
  %6968 = vmatpush1.bf16.msra.mxu0 %v6456
  %6969 = vmatprep.subr.bf16.mxu0 %v6450
  %6970 = vmatpush1.bf16.msra.mxu0 %v6449
  %6971 = vmatprep.subr.bf16.mxu0 %v6443
  %6972 = vmatpush1.bf16.msra.mxu0 %v6442
  %6973 = vmatprep.subr.bf16.mxu0 %v6436
  %6974 = vmatpush1.bf16.msra.mxu0 %v6435
  %6975 = vmatprep.subr.bf16.mxu0 %v6429
  %6976 = vmatpush1.bf16.msra.mxu0 %v6428
  %6977 = vmatprep.subr.bf16.mxu0 %v6422
  %6978 = vmatpush1.bf16.msra.mxu0 %v6421
  %6979 = vmatprep.subr.bf16.mxu0 %v6415
  %6980 = vmatpush1.bf16.msra.mxu0 %v6414
  %6981 = vmatprep.subr.bf16.mxu0 %v6520
  %6982 = vmatpush2.bf16.msra.mxu0 %v6519
  %6983 = vmatprep.subr.bf16.mxu0 %v6513
  %6984 = vmatpush2.bf16.msra.mxu0 %v6512
  %6985 = vmatprep.subr.bf16.mxu0 %v6506
  %6986 = vmatpush2.bf16.msra.mxu0 %v6505
  %6987 = vmatprep.subr.bf16.mxu0 %v6499
  %6988 = vmatpush2.bf16.msra.mxu0 %v6498
  %6989 = vmatprep.subr.bf16.mxu0 %v6492
  %6990 = vmatpush2.bf16.msra.mxu0 %v6491
  %6991 = vmatprep.subr.bf16.mxu0 %v6485
  %6992 = vmatpush2.bf16.msra.mxu0 %v6484
  %6993 = vmatprep.subr.bf16.mxu0 %v6478
  %6994 = vmatpush2.bf16.msra.mxu0 %v6477
  %6995 = vmatprep.subr.bf16.mxu0 %v6471
  %6996 = vmatpush2.bf16.msra.mxu0 %v6470
  %6997 = vmatprep.mubr.bf16.mxu0 %v4681
  %6998 = vmatmul.mubr.bf16.gmra.mxu0 %v4680
  %v6999 = vpop.f32.mrf.mxu0
  %v7000 = vadd.f32 %v6957, %v6999
  %v7001 = vpop.f32.mrf.mxu0
  %v7002 = vadd.f32 %v6959, %v7001
  %v7003 = vpop.f32.mrf.mxu0
  %v7004 = vadd.f32 %v6961, %v7003
  %v7005 = vpop.f32.mrf.mxu0
  %v7006 = vadd.f32 %v6963, %v7005
  %7007 = vdwg.mxu0
  %7008 = vmatprep.subr.bf16.mxu0 0
  %7009 = vmatpush1.bf16.msra.mxu0 0
  %7010 = vmatprep.subr.bf16.mxu0 0
  %7011 = vmatpush1.bf16.msra.mxu0 0
  %7012 = vmatprep.subr.bf16.mxu0 0
  %7013 = vmatpush1.bf16.msra.mxu0 0
  %7014 = vmatprep.subr.bf16.mxu0 0
  %7015 = vmatpush1.bf16.msra.mxu0 0
  %7016 = vmatprep.subr.bf16.mxu0 0
  %7017 = vmatpush1.bf16.msra.mxu0 0
  %7018 = vmatprep.subr.bf16.mxu0 0
  %7019 = vmatpush1.bf16.msra.mxu0 0
  %7020 = vmatprep.subr.bf16.mxu0 0
  %7021 = vmatpush1.bf16.msra.mxu0 0
  %7022 = vmatprep.subr.bf16.mxu0 %v6527
  %7023 = vmatpush1.bf16.msra.mxu0 %v6526
  %7024 = vmatprep.subr.bf16.mxu0 0
  %7025 = vmatpush2.bf16.msra.mxu0 0
  %7026 = vmatprep.subr.bf16.mxu0 0
  %7027 = vmatpush2.bf16.msra.mxu0 0
  %7028 = vmatprep.subr.bf16.mxu0 0
  %7029 = vmatpush2.bf16.msra.mxu0 0
  %7030 = vmatprep.subr.bf16.mxu0 0
  %7031 = vmatpush2.bf16.msra.mxu0 0
  %7032 = vmatprep.subr.bf16.mxu0 0
  %7033 = vmatpush2.bf16.msra.mxu0 0
  %7034 = vmatprep.subr.bf16.mxu0 0
  %7035 = vmatpush2.bf16.msra.mxu0 0
  %7036 = vmatprep.subr.bf16.mxu0 0
  %7037 = vmatpush2.bf16.msra.mxu0 0
  %7038 = vmatprep.subr.bf16.mxu0 0
  %7039 = vmatpush2.bf16.msra.mxu0 0
  %7040 = vmatprep.mubr.bf16.mxu0 0
  %7041 = vmatmul.mubr.bf16.gmra.mxu0 %v6877
  %v7042 = vpop.f32.mrf.mxu0
  %v7043 = vadd.f32 %v7000, %v7042
  %v7044 = vpop.f32.mrf.mxu0
  %v7045 = vadd.f32 %v7002, %v7044
  %v7046 = vpop.f32.mrf.mxu0
  %v7047 = vadd.f32 %v7004, %v7046
  %v7048 = vpop.f32.mrf.mxu0
  %v7049 = vadd.f32 %v7006, %v7048
  %7050 = vdwg.mxu0
  %7051 = vmatprep.subr.bf16.mxu0 %v6242
  %7052 = vmatpush1.bf16.msra.mxu0 %v6241
  %7053 = vmatprep.subr.bf16.mxu0 %v6235
  %7054 = vmatpush1.bf16.msra.mxu0 %v6234
  %7055 = vmatprep.subr.bf16.mxu0 %v6228
  %7056 = vmatpush1.bf16.msra.mxu0 %v6227
  %7057 = vmatprep.subr.bf16.mxu0 %v6221
  %7058 = vmatpush1.bf16.msra.mxu0 %v6220
  %7059 = vmatprep.subr.bf16.mxu0 %v6214
  %7060 = vmatpush1.bf16.msra.mxu0 %v6213
  %7061 = vmatprep.subr.bf16.mxu0 %v6207
  %7062 = vmatpush1.bf16.msra.mxu0 %v6206
  %7063 = vmatprep.subr.bf16.mxu0 %v6200
  %7064 = vmatpush1.bf16.msra.mxu0 %v6199
  %7065 = vmatprep.subr.bf16.mxu0 %v6193
  %7066 = vmatpush1.bf16.msra.mxu0 %v6192
  %7067 = vmatprep.subr.bf16.mxu0 %v6298
  %7068 = vmatpush2.bf16.msra.mxu0 %v6297
  %7069 = vmatprep.subr.bf16.mxu0 %v6291
  %7070 = vmatpush2.bf16.msra.mxu0 %v6290
  %7071 = vmatprep.subr.bf16.mxu0 %v6284
  %7072 = vmatpush2.bf16.msra.mxu0 %v6283
  %7073 = vmatprep.subr.bf16.mxu0 %v6277
  %7074 = vmatpush2.bf16.msra.mxu0 %v6276
  %7075 = vmatprep.subr.bf16.mxu0 %v6270
  %7076 = vmatpush2.bf16.msra.mxu0 %v6269
  %7077 = vmatprep.subr.bf16.mxu0 %v6263
  %7078 = vmatpush2.bf16.msra.mxu0 %v6262
  %7079 = vmatprep.subr.bf16.mxu0 %v6256
  %7080 = vmatpush2.bf16.msra.mxu0 %v6255
  %7081 = vmatprep.subr.bf16.mxu0 %v6249
  %7082 = vmatpush2.bf16.msra.mxu0 %v6248
  %7083 = vmatprep.mubr.bf16.mxu0 %v4677
  %7084 = vmatmul.mubr.bf16.gmra.mxu0 %v4676
  %v7085 = vpop.f32.mrf.mxu0
  %v7086 = vadd.f32 %v5088, %v7085
  %v7087 = vpop.f32.mrf.mxu0
  %v7088 = vadd.f32 %v5092, %v7087
  %v7089 = vpop.f32.mrf.mxu0
  %v7090 = vadd.f32 %v5088, %v7089
  %v7091 = vpop.f32.mrf.mxu0
  %v7092 = vadd.f32 %v5092, %v7091
  %7093 = vdwg.mxu0
  %7094 = vmatprep.subr.bf16.mxu0 %v6354
  %7095 = vmatpush1.bf16.msra.mxu0 %v6353
  %7096 = vmatprep.subr.bf16.mxu0 %v6347
  %7097 = vmatpush1.bf16.msra.mxu0 %v6346
  %7098 = vmatprep.subr.bf16.mxu0 %v6340
  %7099 = vmatpush1.bf16.msra.mxu0 %v6339
  %7100 = vmatprep.subr.bf16.mxu0 %v6333
  %7101 = vmatpush1.bf16.msra.mxu0 %v6332
  %7102 = vmatprep.subr.bf16.mxu0 %v6326
  %7103 = vmatpush1.bf16.msra.mxu0 %v6325
  %7104 = vmatprep.subr.bf16.mxu0 %v6319
  %7105 = vmatpush1.bf16.msra.mxu0 %v6318
  %7106 = vmatprep.subr.bf16.mxu0 %v6312
  %7107 = vmatpush1.bf16.msra.mxu0 %v6311
  %7108 = vmatprep.subr.bf16.mxu0 %v6305
  %7109 = vmatpush1.bf16.msra.mxu0 %v6304
  %7110 = vmatprep.subr.bf16.mxu0 %v6410
  %7111 = vmatpush2.bf16.msra.mxu0 %v6409
  %7112 = vmatprep.subr.bf16.mxu0 %v6403
  %7113 = vmatpush2.bf16.msra.mxu0 %v6402
  %7114 = vmatprep.subr.bf16.mxu0 %v6396
  %7115 = vmatpush2.bf16.msra.mxu0 %v6395
  %7116 = vmatprep.subr.bf16.mxu0 %v6389
  %7117 = vmatpush2.bf16.msra.mxu0 %v6388
  %7118 = vmatprep.subr.bf16.mxu0 %v6382
  %7119 = vmatpush2.bf16.msra.mxu0 %v6381
  %7120 = vmatprep.subr.bf16.mxu0 %v6375
  %7121 = vmatpush2.bf16.msra.mxu0 %v6374
  %7122 = vmatprep.subr.bf16.mxu0 %v6368
  %7123 = vmatpush2.bf16.msra.mxu0 %v6367
  %7124 = vmatprep.subr.bf16.mxu0 %v6361
  %7125 = vmatpush2.bf16.msra.mxu0 %v6360
  %7126 = vmatprep.mubr.bf16.mxu0 %v4679
  %7127 = vmatmul.mubr.bf16.gmra.mxu0 %v4678
  %v7128 = vpop.f32.mrf.mxu0
  %v7129 = vadd.f32 %v7086, %v7128
  %v7130 = vpop.f32.mrf.mxu0
  %v7131 = vadd.f32 %v7088, %v7130
  %v7132 = vpop.f32.mrf.mxu0
  %v7133 = vadd.f32 %v7090, %v7132
  %v7134 = vpop.f32.mrf.mxu0
  %v7135 = vadd.f32 %v7092, %v7134
  %7136 = vdwg.mxu0
  %7137 = vmatprep.subr.bf16.mxu0 %v6466
  %7138 = vmatpush1.bf16.msra.mxu0 %v6465
  %7139 = vmatprep.subr.bf16.mxu0 %v6459
  %7140 = vmatpush1.bf16.msra.mxu0 %v6458
  %7141 = vmatprep.subr.bf16.mxu0 %v6452
  %7142 = vmatpush1.bf16.msra.mxu0 %v6451
  %7143 = vmatprep.subr.bf16.mxu0 %v6445
  %7144 = vmatpush1.bf16.msra.mxu0 %v6444
  %7145 = vmatprep.subr.bf16.mxu0 %v6438
  %7146 = vmatpush1.bf16.msra.mxu0 %v6437
  %7147 = vmatprep.subr.bf16.mxu0 %v6431
  %7148 = vmatpush1.bf16.msra.mxu0 %v6430
  %7149 = vmatprep.subr.bf16.mxu0 %v6424
  %7150 = vmatpush1.bf16.msra.mxu0 %v6423
  %7151 = vmatprep.subr.bf16.mxu0 %v6417
  %7152 = vmatpush1.bf16.msra.mxu0 %v6416
  %7153 = vmatprep.subr.bf16.mxu0 %v6522
  %7154 = vmatpush2.bf16.msra.mxu0 %v6521
  %7155 = vmatprep.subr.bf16.mxu0 %v6515
  %7156 = vmatpush2.bf16.msra.mxu0 %v6514
  %7157 = vmatprep.subr.bf16.mxu0 %v6508
  %7158 = vmatpush2.bf16.msra.mxu0 %v6507
  %7159 = vmatprep.subr.bf16.mxu0 %v6501
  %7160 = vmatpush2.bf16.msra.mxu0 %v6500
  %7161 = vmatprep.subr.bf16.mxu0 %v6494
  %7162 = vmatpush2.bf16.msra.mxu0 %v6493
  %7163 = vmatprep.subr.bf16.mxu0 %v6487
  %7164 = vmatpush2.bf16.msra.mxu0 %v6486
  %7165 = vmatprep.subr.bf16.mxu0 %v6480
  %7166 = vmatpush2.bf16.msra.mxu0 %v6479
  %7167 = vmatprep.subr.bf16.mxu0 %v6473
  %7168 = vmatpush2.bf16.msra.mxu0 %v6472
  %7169 = vmatprep.mubr.bf16.mxu0 %v4681
  %7170 = vmatmul.mubr.bf16.gmra.mxu0 %v4680
  %v7171 = vpop.f32.mrf.mxu0
  %v7172 = vadd.f32 %v7129, %v7171
  %v7173 = vpop.f32.mrf.mxu0
  %v7174 = vadd.f32 %v7131, %v7173
  %v7175 = vpop.f32.mrf.mxu0
  %v7176 = vadd.f32 %v7133, %v7175
  %v7177 = vpop.f32.mrf.mxu0
  %v7178 = vadd.f32 %v7135, %v7177
  %7179 = vdwg.mxu0
  %7180 = vmatprep.subr.bf16.mxu0 0
  %7181 = vmatpush1.bf16.msra.mxu0 0
  %7182 = vmatprep.subr.bf16.mxu0 0
  %7183 = vmatpush1.bf16.msra.mxu0 0
  %7184 = vmatprep.subr.bf16.mxu0 0
  %7185 = vmatpush1.bf16.msra.mxu0 0
  %7186 = vmatprep.subr.bf16.mxu0 0
  %7187 = vmatpush1.bf16.msra.mxu0 0
  %7188 = vmatprep.subr.bf16.mxu0 0
  %7189 = vmatpush1.bf16.msra.mxu0 0
  %7190 = vmatprep.subr.bf16.mxu0 0
  %7191 = vmatpush1.bf16.msra.mxu0 0
  %7192 = vmatprep.subr.bf16.mxu0 0
  %7193 = vmatpush1.bf16.msra.mxu0 0
  %7194 = vmatprep.subr.bf16.mxu0 %v6529
  %7195 = vmatpush1.bf16.msra.mxu0 %v6528
  %7196 = vmatprep.subr.bf16.mxu0 0
  %7197 = vmatpush2.bf16.msra.mxu0 0
  %7198 = vmatprep.subr.bf16.mxu0 0
  %7199 = vmatpush2.bf16.msra.mxu0 0
  %7200 = vmatprep.subr.bf16.mxu0 0
  %7201 = vmatpush2.bf16.msra.mxu0 0
  %7202 = vmatprep.subr.bf16.mxu0 0
  %7203 = vmatpush2.bf16.msra.mxu0 0
  %7204 = vmatprep.subr.bf16.mxu0 0
  %7205 = vmatpush2.bf16.msra.mxu0 0
  %7206 = vmatprep.subr.bf16.mxu0 0
  %7207 = vmatpush2.bf16.msra.mxu0 0
  %7208 = vmatprep.subr.bf16.mxu0 0
  %7209 = vmatpush2.bf16.msra.mxu0 0
  %7210 = vmatprep.subr.bf16.mxu0 0
  %7211 = vmatpush2.bf16.msra.mxu0 0
  %7212 = vmatprep.mubr.bf16.mxu0 0
  %7213 = vmatmul.mubr.bf16.gmra.mxu0 %v6877
  %v7214 = vpop.f32.mrf.mxu0
  %v7215 = vadd.f32 %v7172, %v7214
  %v7216 = vpop.f32.mrf.mxu0
  %v7217 = vadd.f32 %v7174, %v7216
  %v7218 = vpop.f32.mrf.mxu0
  %v7219 = vadd.f32 %v7176, %v7218
  %v7220 = vpop.f32.mrf.mxu0
  %v7221 = vadd.f32 %v7178, %v7220
  %7222 = vdwg.mxu0
  %7223 = vmatprep.subr.bf16.mxu0 %v6244
  %7224 = vmatpush1.bf16.msra.mxu0 %v6243
  %7225 = vmatprep.subr.bf16.mxu0 %v6237
  %7226 = vmatpush1.bf16.msra.mxu0 %v6236
  %7227 = vmatprep.subr.bf16.mxu0 %v6230
  %7228 = vmatpush1.bf16.msra.mxu0 %v6229
  %7229 = vmatprep.subr.bf16.mxu0 %v6223
  %7230 = vmatpush1.bf16.msra.mxu0 %v6222
  %7231 = vmatprep.subr.bf16.mxu0 %v6216
  %7232 = vmatpush1.bf16.msra.mxu0 %v6215
  %7233 = vmatprep.subr.bf16.mxu0 %v6209
  %7234 = vmatpush1.bf16.msra.mxu0 %v6208
  %7235 = vmatprep.subr.bf16.mxu0 %v6202
  %7236 = vmatpush1.bf16.msra.mxu0 %v6201
  %7237 = vmatprep.subr.bf16.mxu0 %v6195
  %7238 = vmatpush1.bf16.msra.mxu0 %v6194
  %7239 = vmatprep.subr.bf16.mxu0 %v6300
  %7240 = vmatpush2.bf16.msra.mxu0 %v6299
  %7241 = vmatprep.subr.bf16.mxu0 %v6293
  %7242 = vmatpush2.bf16.msra.mxu0 %v6292
  %7243 = vmatprep.subr.bf16.mxu0 %v6286
  %7244 = vmatpush2.bf16.msra.mxu0 %v6285
  %7245 = vmatprep.subr.bf16.mxu0 %v6279
  %7246 = vmatpush2.bf16.msra.mxu0 %v6278
  %7247 = vmatprep.subr.bf16.mxu0 %v6272
  %7248 = vmatpush2.bf16.msra.mxu0 %v6271
  %7249 = vmatprep.subr.bf16.mxu0 %v6265
  %7250 = vmatpush2.bf16.msra.mxu0 %v6264
  %7251 = vmatprep.subr.bf16.mxu0 %v6258
  %7252 = vmatpush2.bf16.msra.mxu0 %v6257
  %7253 = vmatprep.subr.bf16.mxu0 %v6251
  %7254 = vmatpush2.bf16.msra.mxu0 %v6250
  %7255 = vmatprep.mubr.bf16.mxu0 %v4677
  %7256 = vmatmul.mubr.bf16.gmra.mxu0 %v4676
  %v7257 = vpop.f32.mrf.mxu0
  %v7258 = vadd.f32 %v5096, %v7257
  %v7259 = vpop.f32.mrf.mxu0
  %v7260 = vadd.f32 %v5100, %v7259
  %v7261 = vpop.f32.mrf.mxu0
  %v7262 = vadd.f32 %v5096, %v7261
  %v7263 = vpop.f32.mrf.mxu0
  %v7264 = vadd.f32 %v5100, %v7263
  %7265 = vdwg.mxu0
  %7266 = vmatprep.subr.bf16.mxu0 %v6356
  %7267 = vmatpush1.bf16.msra.mxu0 %v6355
  %7268 = vmatprep.subr.bf16.mxu0 %v6349
  %7269 = vmatpush1.bf16.msra.mxu0 %v6348
  %7270 = vmatprep.subr.bf16.mxu0 %v6342
  %7271 = vmatpush1.bf16.msra.mxu0 %v6341
  %7272 = vmatprep.subr.bf16.mxu0 %v6335
  %7273 = vmatpush1.bf16.msra.mxu0 %v6334
  %7274 = vmatprep.subr.bf16.mxu0 %v6328
  %7275 = vmatpush1.bf16.msra.mxu0 %v6327
  %7276 = vmatprep.subr.bf16.mxu0 %v6321
  %7277 = vmatpush1.bf16.msra.mxu0 %v6320
  %7278 = vmatprep.subr.bf16.mxu0 %v6314
  %7279 = vmatpush1.bf16.msra.mxu0 %v6313
  %7280 = vmatprep.subr.bf16.mxu0 %v6307
  %7281 = vmatpush1.bf16.msra.mxu0 %v6306
  %7282 = vmatprep.subr.bf16.mxu0 %v6412
  %7283 = vmatpush2.bf16.msra.mxu0 %v6411
  %7284 = vmatprep.subr.bf16.mxu0 %v6405
  %7285 = vmatpush2.bf16.msra.mxu0 %v6404
  %7286 = vmatprep.subr.bf16.mxu0 %v6398
  %7287 = vmatpush2.bf16.msra.mxu0 %v6397
  %7288 = vmatprep.subr.bf16.mxu0 %v6391
  %7289 = vmatpush2.bf16.msra.mxu0 %v6390
  %7290 = vmatprep.subr.bf16.mxu0 %v6384
  %7291 = vmatpush2.bf16.msra.mxu0 %v6383
  %7292 = vmatprep.subr.bf16.mxu0 %v6377
  %7293 = vmatpush2.bf16.msra.mxu0 %v6376
  %7294 = vmatprep.subr.bf16.mxu0 %v6370
  %7295 = vmatpush2.bf16.msra.mxu0 %v6369
  %7296 = vmatprep.subr.bf16.mxu0 %v6363
  %7297 = vmatpush2.bf16.msra.mxu0 %v6362
  %7298 = vmatprep.mubr.bf16.mxu0 %v4679
  %7299 = vmatmul.mubr.bf16.gmra.mxu0 %v4678
  %v7300 = vpop.f32.mrf.mxu0
  %v7301 = vadd.f32 %v7258, %v7300
  %v7302 = vpop.f32.mrf.mxu0
  %v7303 = vadd.f32 %v7260, %v7302
  %v7304 = vpop.f32.mrf.mxu0
  %v7305 = vadd.f32 %v7262, %v7304
  %v7306 = vpop.f32.mrf.mxu0
  %v7307 = vadd.f32 %v7264, %v7306
  %7308 = vdwg.mxu0
  %7309 = vmatprep.subr.bf16.mxu0 %v6468
  %7310 = vmatpush1.bf16.msra.mxu0 %v6467
  %7311 = vmatprep.subr.bf16.mxu0 %v6461
  %7312 = vmatpush1.bf16.msra.mxu0 %v6460
  %7313 = vmatprep.subr.bf16.mxu0 %v6454
  %7314 = vmatpush1.bf16.msra.mxu0 %v6453
  %7315 = vmatprep.subr.bf16.mxu0 %v6447
  %7316 = vmatpush1.bf16.msra.mxu0 %v6446
  %7317 = vmatprep.subr.bf16.mxu0 %v6440
  %7318 = vmatpush1.bf16.msra.mxu0 %v6439
  %7319 = vmatprep.subr.bf16.mxu0 %v6433
  %7320 = vmatpush1.bf16.msra.mxu0 %v6432
  %7321 = vmatprep.subr.bf16.mxu0 %v6426
  %7322 = vmatpush1.bf16.msra.mxu0 %v6425
  %7323 = vmatprep.subr.bf16.mxu0 %v6419
  %7324 = vmatpush1.bf16.msra.mxu0 %v6418
  %7325 = vmatprep.subr.bf16.mxu0 %v6524
  %7326 = vmatpush2.bf16.msra.mxu0 %v6523
  %7327 = vmatprep.subr.bf16.mxu0 %v6517
  %7328 = vmatpush2.bf16.msra.mxu0 %v6516
  %7329 = vmatprep.subr.bf16.mxu0 %v6510
  %7330 = vmatpush2.bf16.msra.mxu0 %v6509
  %7331 = vmatprep.subr.bf16.mxu0 %v6503
  %7332 = vmatpush2.bf16.msra.mxu0 %v6502
  %7333 = vmatprep.subr.bf16.mxu0 %v6496
  %7334 = vmatpush2.bf16.msra.mxu0 %v6495
  %7335 = vmatprep.subr.bf16.mxu0 %v6489
  %7336 = vmatpush2.bf16.msra.mxu0 %v6488
  %7337 = vmatprep.subr.bf16.mxu0 %v6482
  %7338 = vmatpush2.bf16.msra.mxu0 %v6481
  %7339 = vmatprep.subr.bf16.mxu0 %v6475
  %7340 = vmatpush2.bf16.msra.mxu0 %v6474
  %7341 = vmatprep.mubr.bf16.mxu0 %v4681
  %7342 = vmatmul.mubr.bf16.gmra.mxu0 %v4680
  %v7343 = vpop.f32.mrf.mxu0
  %v7344 = vadd.f32 %v7301, %v7343
  %v7345 = vpop.f32.mrf.mxu0
  %v7346 = vadd.f32 %v7303, %v7345
  %v7347 = vpop.f32.mrf.mxu0
  %v7348 = vadd.f32 %v7305, %v7347
  %v7349 = vpop.f32.mrf.mxu0
  %v7350 = vadd.f32 %v7307, %v7349
  %7351 = vdwg.mxu0
  %7352 = vmatprep.subr.bf16.mxu0 0
  %7353 = vmatpush1.bf16.msra.mxu0 0
  %7354 = vmatprep.subr.bf16.mxu0 0
  %7355 = vmatpush1.bf16.msra.mxu0 0
  %7356 = vmatprep.subr.bf16.mxu0 0
  %7357 = vmatpush1.bf16.msra.mxu0 0
  %7358 = vmatprep.subr.bf16.mxu0 0
  %7359 = vmatpush1.bf16.msra.mxu0 0
  %7360 = vmatprep.subr.bf16.mxu0 0
  %7361 = vmatpush1.bf16.msra.mxu0 0
  %7362 = vmatprep.subr.bf16.mxu0 0
  %7363 = vmatpush1.bf16.msra.mxu0 0
  %7364 = vmatprep.subr.bf16.mxu0 0
  %7365 = vmatpush1.bf16.msra.mxu0 0
  %7366 = vmatprep.subr.bf16.mxu0 %v6531
  %7367 = vmatpush1.bf16.msra.mxu0 %v6530
  %7368 = vmatprep.subr.bf16.mxu0 0
  %7369 = vmatpush2.bf16.msra.mxu0 0
  %7370 = vmatprep.subr.bf16.mxu0 0
  %7371 = vmatpush2.bf16.msra.mxu0 0
  %7372 = vmatprep.subr.bf16.mxu0 0
  %7373 = vmatpush2.bf16.msra.mxu0 0
  %7374 = vmatprep.subr.bf16.mxu0 0
  %7375 = vmatpush2.bf16.msra.mxu0 0
  %7376 = vmatprep.subr.bf16.mxu0 0
  %7377 = vmatpush2.bf16.msra.mxu0 0
  %7378 = vmatprep.subr.bf16.mxu0 0
  %7379 = vmatpush2.bf16.msra.mxu0 0
  %7380 = vmatprep.subr.bf16.mxu0 0
  %7381 = vmatpush2.bf16.msra.mxu0 0
  %7382 = vmatprep.subr.bf16.mxu0 0
  %7383 = vmatpush2.bf16.msra.mxu0 0
  %7384 = vmatprep.mubr.bf16.mxu0 0
  %7385 = vmatmul.mubr.bf16.gmra.mxu0 %v6877
  %v7386 = vpop.f32.mrf.mxu0
  %v7387 = vadd.f32 %v7344, %v7386
  %v7388 = vpop.f32.mrf.mxu0
  %v7389 = vadd.f32 %v7346, %v7388
  %v7390 = vpop.f32.mrf.mxu0
  %v7391 = vadd.f32 %v7348, %v7390
  %v7392 = vpop.f32.mrf.mxu0
  %v7393 = vadd.f32 %v7350, %v7392
  %7394 = vdwg.mxu0
  %7395 = vmatprep.subr.bf16.mxu0 0
  %7396 = vmatpush1.bf16.msra.mxu0 %v6245
  %7397 = vmatprep.subr.bf16.mxu0 0
  %7398 = vmatpush1.bf16.msra.mxu0 %v6238
  %7399 = vmatprep.subr.bf16.mxu0 0
  %7400 = vmatpush1.bf16.msra.mxu0 %v6231
  %7401 = vmatprep.subr.bf16.mxu0 0
  %7402 = vmatpush1.bf16.msra.mxu0 %v6224
  %7403 = vmatprep.subr.bf16.mxu0 0
  %7404 = vmatpush1.bf16.msra.mxu0 %v6217
  %7405 = vmatprep.subr.bf16.mxu0 0
  %7406 = vmatpush1.bf16.msra.mxu0 %v6210
  %7407 = vmatprep.subr.bf16.mxu0 0
  %7408 = vmatpush1.bf16.msra.mxu0 %v6203
  %7409 = vmatprep.subr.bf16.mxu0 0
  %7410 = vmatpush1.bf16.msra.mxu0 %v6196
  %7411 = vmatprep.subr.bf16.mxu0 0
  %7412 = vmatpush2.bf16.msra.mxu0 %v6301
  %7413 = vmatprep.subr.bf16.mxu0 0
  %7414 = vmatpush2.bf16.msra.mxu0 %v6294
  %7415 = vmatprep.subr.bf16.mxu0 0
  %7416 = vmatpush2.bf16.msra.mxu0 %v6287
  %7417 = vmatprep.subr.bf16.mxu0 0
  %7418 = vmatpush2.bf16.msra.mxu0 %v6280
  %7419 = vmatprep.subr.bf16.mxu0 0
  %7420 = vmatpush2.bf16.msra.mxu0 %v6273
  %7421 = vmatprep.subr.bf16.mxu0 0
  %7422 = vmatpush2.bf16.msra.mxu0 %v6266
  %7423 = vmatprep.subr.bf16.mxu0 0
  %7424 = vmatpush2.bf16.msra.mxu0 %v6259
  %7425 = vmatprep.subr.bf16.mxu0 0
  %7426 = vmatpush2.bf16.msra.mxu0 %v6252
  %7427 = vmatprep.mubr.bf16.mxu0 %v4677
  %7428 = vmatmul.mubr.bf16.gmra.mxu0 %v4676
  %v7429 = vpop.f32.mrf.mxu0
  %v7430 = vadd.f32 %v5104, %v7429
  %v7431 = vpop.f32.mrf.mxu0
  %v7432 = vpop.f32.mrf.mxu0
  %v7433 = vadd.f32 %v5104, %v7432
  %v7434 = vpop.f32.mrf.mxu0
  %7435 = vdwg.mxu0
  %7436 = vmatprep.subr.bf16.mxu0 0
  %7437 = vmatpush1.bf16.msra.mxu0 %v6357
  %7438 = vmatprep.subr.bf16.mxu0 0
  %7439 = vmatpush1.bf16.msra.mxu0 %v6350
  %7440 = vmatprep.subr.bf16.mxu0 0
  %7441 = vmatpush1.bf16.msra.mxu0 %v6343
  %7442 = vmatprep.subr.bf16.mxu0 0
  %7443 = vmatpush1.bf16.msra.mxu0 %v6336
  %7444 = vmatprep.subr.bf16.mxu0 0
  %7445 = vmatpush1.bf16.msra.mxu0 %v6329
  %7446 = vmatprep.subr.bf16.mxu0 0
  %7447 = vmatpush1.bf16.msra.mxu0 %v6322
  %7448 = vmatprep.subr.bf16.mxu0 0
  %7449 = vmatpush1.bf16.msra.mxu0 %v6315
  %7450 = vmatprep.subr.bf16.mxu0 0
  %7451 = vmatpush1.bf16.msra.mxu0 %v6308
  %7452 = vmatprep.subr.bf16.mxu0 0
  %7453 = vmatpush2.bf16.msra.mxu0 %v6413
  %7454 = vmatprep.subr.bf16.mxu0 0
  %7455 = vmatpush2.bf16.msra.mxu0 %v6406
  %7456 = vmatprep.subr.bf16.mxu0 0
  %7457 = vmatpush2.bf16.msra.mxu0 %v6399
  %7458 = vmatprep.subr.bf16.mxu0 0
  %7459 = vmatpush2.bf16.msra.mxu0 %v6392
  %7460 = vmatprep.subr.bf16.mxu0 0
  %7461 = vmatpush2.bf16.msra.mxu0 %v6385
  %7462 = vmatprep.subr.bf16.mxu0 0
  %7463 = vmatpush2.bf16.msra.mxu0 %v6378
  %7464 = vmatprep.subr.bf16.mxu0 0
  %7465 = vmatpush2.bf16.msra.mxu0 %v6371
  %7466 = vmatprep.subr.bf16.mxu0 0
  %7467 = vmatpush2.bf16.msra.mxu0 %v6364
  %7468 = vmatprep.mubr.bf16.mxu0 %v4679
  %7469 = vmatmul.mubr.bf16.gmra.mxu0 %v4678
  %v7470 = vpop.f32.mrf.mxu0
  %v7471 = vadd.f32 %v7430, %v7470
  %v7472 = vpop.f32.mrf.mxu0
  %v7473 = vpop.f32.mrf.mxu0
  %v7474 = vadd.f32 %v7433, %v7473
  %v7475 = vpop.f32.mrf.mxu0
  %7476 = vdwg.mxu0
  %7477 = vmatprep.subr.bf16.mxu0 0
  %7478 = vmatpush1.bf16.msra.mxu0 %v6469
  %7479 = vmatprep.subr.bf16.mxu0 0
  %7480 = vmatpush1.bf16.msra.mxu0 %v6462
  %7481 = vmatprep.subr.bf16.mxu0 0
  %7482 = vmatpush1.bf16.msra.mxu0 %v6455
  %7483 = vmatprep.subr.bf16.mxu0 0
  %7484 = vmatpush1.bf16.msra.mxu0 %v6448
  %7485 = vmatprep.subr.bf16.mxu0 0
  %7486 = vmatpush1.bf16.msra.mxu0 %v6441
  %7487 = vmatprep.subr.bf16.mxu0 0
  %7488 = vmatpush1.bf16.msra.mxu0 %v6434
  %7489 = vmatprep.subr.bf16.mxu0 0
  %7490 = vmatpush1.bf16.msra.mxu0 %v6427
  %7491 = vmatprep.subr.bf16.mxu0 0
  %7492 = vmatpush1.bf16.msra.mxu0 %v6420
  %7493 = vmatprep.subr.bf16.mxu0 0
  %7494 = vmatpush2.bf16.msra.mxu0 %v6525
  %7495 = vmatprep.subr.bf16.mxu0 0
  %7496 = vmatpush2.bf16.msra.mxu0 %v6518
  %7497 = vmatprep.subr.bf16.mxu0 0
  %7498 = vmatpush2.bf16.msra.mxu0 %v6511
  %7499 = vmatprep.subr.bf16.mxu0 0
  %7500 = vmatpush2.bf16.msra.mxu0 %v6504
  %7501 = vmatprep.subr.bf16.mxu0 0
  %7502 = vmatpush2.bf16.msra.mxu0 %v6497
  %7503 = vmatprep.subr.bf16.mxu0 0
  %7504 = vmatpush2.bf16.msra.mxu0 %v6490
  %7505 = vmatprep.subr.bf16.mxu0 0
  %7506 = vmatpush2.bf16.msra.mxu0 %v6483
  %7507 = vmatprep.subr.bf16.mxu0 0
  %7508 = vmatpush2.bf16.msra.mxu0 %v6476
  %7509 = vmatprep.mubr.bf16.mxu0 %v4681
  %7510 = vmatmul.mubr.bf16.gmra.mxu0 %v4680
  %v7511 = vpop.f32.mrf.mxu0
  %v7512 = vadd.f32 %v7471, %v7511
  %v7513 = vpop.f32.mrf.mxu0
  %v7514 = vpop.f32.mrf.mxu0
  %v7515 = vadd.f32 %v7474, %v7514
  %v7516 = vpop.f32.mrf.mxu0
  %7517 = vdwg.mxu0
  %7518 = vmatprep.subr.bf16.mxu0 0
  %7519 = vmatpush1.bf16.msra.mxu0 0
  %7520 = vmatprep.subr.bf16.mxu0 0
  %7521 = vmatpush1.bf16.msra.mxu0 0
  %7522 = vmatprep.subr.bf16.mxu0 0
  %7523 = vmatpush1.bf16.msra.mxu0 0
  %7524 = vmatprep.subr.bf16.mxu0 0
  %7525 = vmatpush1.bf16.msra.mxu0 0
  %7526 = vmatprep.subr.bf16.mxu0 0
  %7527 = vmatpush1.bf16.msra.mxu0 0
  %7528 = vmatprep.subr.bf16.mxu0 0
  %7529 = vmatpush1.bf16.msra.mxu0 0
  %7530 = vmatprep.subr.bf16.mxu0 0
  %7531 = vmatpush1.bf16.msra.mxu0 0
  %7532 = vmatprep.subr.bf16.mxu0 0
  %7533 = vmatpush1.bf16.msra.mxu0 %v6532
  %7534 = vmatprep.subr.bf16.mxu0 0
  %7535 = vmatpush2.bf16.msra.mxu0 0
  %7536 = vmatprep.subr.bf16.mxu0 0
  %7537 = vmatpush2.bf16.msra.mxu0 0
  %7538 = vmatprep.subr.bf16.mxu0 0
  %7539 = vmatpush2.bf16.msra.mxu0 0
  %7540 = vmatprep.subr.bf16.mxu0 0
  %7541 = vmatpush2.bf16.msra.mxu0 0
  %7542 = vmatprep.subr.bf16.mxu0 0
  %7543 = vmatpush2.bf16.msra.mxu0 0
  %7544 = vmatprep.subr.bf16.mxu0 0
  %7545 = vmatpush2.bf16.msra.mxu0 0
  %7546 = vmatprep.subr.bf16.mxu0 0
  %7547 = vmatpush2.bf16.msra.mxu0 0
  %7548 = vmatprep.subr.bf16.mxu0 0
  %7549 = vmatpush2.bf16.msra.mxu0 0
  %7550 = vmatprep.mubr.bf16.mxu0 0
  %7551 = vmatmul.mubr.bf16.gmra.mxu0 %v6877
  %v7552 = vpop.f32.mrf.mxu0
  %v7553 = vadd.f32 %v7512, %v7552
  %v7554 = vpop.f32.mrf.mxu0
  %v7555 = vpop.f32.mrf.mxu0
  %v7556 = vadd.f32 %v7515, %v7555
  %v7557 = vpop.f32.mrf.mxu0
  %7558 = vdwg.mxu0
  %v7559 = vmul.f32 %v7043, 0.5
  %v7560 = vmul.f32 %v7045, 0.5
  %v7561 = vmul.f32 %v7215, 0.5
  %v7562 = vmul.f32 %v7217, 0.5
  %v7563 = vmul.f32 %v7387, 0.5
  %v7564 = vmul.f32 %v7389, 0.5
  %v7565 = vmul.f32 %v7553, 0.5
  %v7566 = vmul.f32 %v7047, 0.5
  %v7567 = vmul.f32 %v7049, 0.5
  %v7568 = vmul.f32 %v7219, 0.5
  %v7569 = vmul.f32 %v7221, 0.5
  %v7570 = vmul.f32 %v7391, 0.5
  %v7571 = vmul.f32 %v7393, 0.5
  %v7572 = vmul.f32 %v7556, 0.5
  %v7573 = vtanh.pop %v7559
  %v7574 = vtanh.pop %v7560
  %v7575 = vtanh.pop %v7561
  %v7576 = vtanh.pop %v7562
  %v7577 = vtanh.pop %v7563
  %v7578 = vtanh.pop %v7564
  %v7579 = vtanh.pop %v7565
  %v7580 = vtanh.pop %v7566
  %v7581 = vtanh.pop %v7567
  %v7582 = vtanh.pop %v7568
  %v7583 = vtanh.pop %v7569
  %v7584 = vtanh.pop %v7570
  %v7585 = vtanh.pop %v7571
  %v7586 = vtanh.pop %v7572
  %v7587 = vmul.f32 %v7573, 0.5
  %v7588 = vmul.f32 %v7574, 0.5
  %v7589 = vmul.f32 %v7575, 0.5
  %v7590 = vmul.f32 %v7576, 0.5
  %v7591 = vmul.f32 %v7577, 0.5
  %v7592 = vmul.f32 %v7578, 0.5
  %v7593 = vmul.f32 %v7579, 0.5
  %v7594 = vmul.f32 %v7580, 0.5
  %v7595 = vmul.f32 %v7581, 0.5
  %v7596 = vmul.f32 %v7582, 0.5
  %v7597 = vmul.f32 %v7583, 0.5
  %v7598 = vmul.f32 %v7584, 0.5
  %v7599 = vmul.f32 %v7585, 0.5
  %v7600 = vmul.f32 %v7586, 0.5
  %v7601 = vadd.f32 %v7587, 0.5
  %v7602 = vadd.f32 %v7588, 0.5
  %v7603 = vadd.f32 %v7589, 0.5
  %v7604 = vadd.f32 %v7590, 0.5
  %v7605 = vadd.f32 %v7591, 0.5
  %v7606 = vadd.f32 %v7592, 0.5
  %v7607 = vadd.f32 %v7593, 0.5
  %v7608 = vadd.f32 %v7594, 0.5
  %v7609 = vadd.f32 %v7595, 0.5
  %v7610 = vadd.f32 %v7596, 0.5
  %v7611 = vadd.f32 %v7597, 0.5
  %v7612 = vadd.f32 %v7598, 0.5
  %v7613 = vadd.f32 %v7599, 0.5
  %v7614 = vadd.f32 %v7600, 0.5
  %7615 = vst [vmem:[%s22] sm:$0xff] %v7601
  %7616 = vst [vmem:[%s22 + $0x8] sm:$0xff] %v7602
  %7617 = vst [vmem:[%s22 + $0x10] sm:$0xff] %v7603
  %7618 = vst [vmem:[%s22 + $0x18] sm:$0xff] %v7604
  %7619 = vst [vmem:[%s22 + $0x20] sm:$0xff] %v7605
  %7620 = vst [vmem:[%s22 + $0x28] sm:$0xff] %v7606
  %7621 = vst.msk [vmem:[%s22 + $0x30] sm:$0xff] %vm2285, %v7607
  %7622 = vst [vmem:[%s22 + $0x38] sm:$0xff] %v7608
  %7623 = vst [vmem:[%s22 + $0x40] sm:$0xff] %v7609
  %7624 = vst [vmem:[%s22 + $0x48] sm:$0xff] %v7610
  %7625 = vst [vmem:[%s22 + $0x50] sm:$0xff] %v7611
  %7626 = vst [vmem:[%s22 + $0x58] sm:$0xff] %v7612
  %7627 = vst [vmem:[%s22 + $0x60] sm:$0xff] %v7613
  %7628 = vst.msk [vmem:[%s22 + $0x68] sm:$0xff] %vm2285, %v7614
  // Predicated region
  $region86: #{ae_forward.1} parent=0 // pred_check
    _
  $region87: #{ae_forward.1} parent=0 // pred_check_branch
    %7630 = sbr.rel (0) target = $region89
  $region88: #{ae_forward.1} parent=0 // pred_region
    _
  $region89: #{ae_forward.1} parent=0 // pred_fallthru
    _
  // Predicated region
  $region90: #{ae_forward.1} parent=0 // pred_check
    _
  $region91: #{ae_forward.1} parent=0 // pred_check_branch
    %7632 = sbr.rel (0) target = $region93
  $region92: #{ae_forward.1} parent=0 // pred_region
    _
  $region93: #{ae_forward.1} parent=0 // pred_fallthru
    _
  // Predicated region
  $region94: #{ae_forward.1} parent=0 // pred_check
    _
  $region95: #{ae_forward.1} parent=0 // pred_check_branch
    %7634 = sbr.rel (0) target = $region97
  $region96: #{ae_forward.1} parent=0 // pred_region
    _
  $region97: #{ae_forward.1} parent=0 // pred_fallthru
    _
  // Predicated region
  $region98: #{ae_forward.1} parent=0 // pred_check
    _
  $region99: #{ae_forward.1} parent=0 // pred_check_branch
    %7636 = sbr.rel (0) target = $region101
  $region100: #{ae_forward.1} parent=0 // pred_region
    _
  $region101: #{ae_forward.1} parent=0 // pred_fallthru
    _

</llo_original>
